<compile_context>
chip_gen: v5e
topology: v5e:2x2
jax: 0.10.0
libtpu: 0.0.40
codegen_flags: <defaults>
</compile_context>

<pallas_src>
import functools
import math

import jax
import jax.numpy as jnp
from jax.experimental import pallas as pl
from jax.experimental.pallas import tpu as pltpu

NEG_INF = -1e9
LN_EPS = 1e-5


# ----------------------------------------------------------------------------
# Value-level helpers used inside kernels
# ----------------------------------------------------------------------------
def _ln(x, g, b, eps=LN_EPS):
    mean = jnp.mean(x, axis=-1, keepdims=True)
    var = jnp.mean((x - mean) ** 2, axis=-1, keepdims=True)
    return (x - mean) * jax.lax.rsqrt(var + eps) * g + b


def _heads_attention(q_all, k_all, v_all, bias, wo, bo, nhead, scale):
    """Multi-head scaled-dot attention over all heads in one grid step.

    q_all: [Lq, D], k_all/v_all: [Lk, D], bias broadcastable to [Lq, Lk],
    wo: [D, D], bo: [1, D].  The output projection is folded into the head
    loop (out = sum_h ctx_h @ wo[h*dh:(h+1)*dh, :]) so no concat / transpose /
    3-D reshape is ever needed inside the kernel.
    """
    D = q_all.shape[-1]
    dh = D // nhead
    out = None
    for h in range(nhead):
        lo = h * dh
        qh = q_all[:, lo:lo + dh]
        kh = k_all[:, lo:lo + dh]
        vh = v_all[:, lo:lo + dh]
        s = jax.lax.dot_general(
            qh, kh, (((1,), (1,)), ((), ())),
            preferred_element_type=jnp.float32) * scale + bias
        m = jnp.max(s, axis=-1, keepdims=True)
        p = jnp.exp(s - m)
        denom = jnp.sum(p, axis=-1, keepdims=True)
        p = p * pl.reciprocal(denom, approx=True)          # EUP slot, frees VALU
        ctx_h = jnp.dot(p, vh, preferred_element_type=jnp.float32)      # [Lq, dh]
        contrib = jnp.dot(ctx_h, wo[lo:lo + dh, :],
                          preferred_element_type=jnp.float32)           # [Lq, D]
        out = contrib if out is None else out + contrib
    return out + bo


# ----------------------------------------------------------------------------
# Fused Pallas kernels
# ----------------------------------------------------------------------------
def _encoder_layer_kernel(x_ref, bias_ref,
                          ln1_g, ln1_b, wqkv, bqkv, wo, bo,
                          ln2_g, ln2_b, w1, b1, w2, b2,
                          o_ref, *, nhead, scale):
    x = x_ref[0].astype(jnp.float32)          # [Ls, D]
    bias = bias_ref[0]                        # [1, Ls] -> broadcasts over queries
    D = x.shape[-1]

    # --- pre-norm self-attention (fused QKV) + residual ---
    xn = _ln(x, ln1_g[...], ln1_b[...])
    qkv = jnp.dot(xn, wqkv[...], preferred_element_type=jnp.float32) + bqkv[...]
    attn = _heads_attention(qkv[:, :D], qkv[:, D:2 * D], qkv[:, 2 * D:],
                            bias, wo[...], bo[...], nhead, scale)
    x = x + attn

    # --- pre-norm feed-forward + residual ---
    xn2 = _ln(x, ln2_g[...], ln2_b[...])
    h = jnp.dot(xn2, w1[...], preferred_element_type=jnp.float32) + b1[...]
    h = jnp.maximum(h, 0.0)
    h = jnp.dot(h, w2[...], preferred_element_type=jnp.float32) + b2[...]
    o_ref[0] = (x + h).astype(o_ref.dtype)


def _decoder_layer_kernel(y_ref, mem_ref, self_bias_ref, ctx_bias_ref,
                          ln1_g, ln1_b, s_wqkv, s_bqkv, s_wo, s_bo,
                          ln2_g, ln2_b, c_wq, c_bq, c_wkv, c_bkv, c_wo, c_bo,
                          ln3_g, ln3_b, w1, b1, w2, b2,
                          o_ref, *, nhead, scale):
    y = y_ref[0].astype(jnp.float32)          # [Lt, D]
    mem = mem_ref[0].astype(jnp.float32)      # [Ls, D]
    self_bias = self_bias_ref[0]              # [Lt, Lt]
    ctx_bias = ctx_bias_ref[0]                # [1, Ls]
    D = y.shape[-1]

    # --- masked self-attention + residual ---
    yn = _ln(y, ln1_g[...], ln1_b[...])
    qkv = jnp.dot(yn, s_wqkv[...], preferred_element_type=jnp.float32) + s_bqkv[...]
    attn = _heads_attention(qkv[:, :D], qkv[:, D:2 * D], qkv[:, 2 * D:],
                            self_bias, s_wo[...], s_bo[...], nhead, scale)
    y = y + attn

    # --- cross-attention over encoder memory + residual ---
    yn2 = _ln(y, ln2_g[...], ln2_b[...])
    q_all = jnp.dot(yn2, c_wq[...], preferred_element_type=jnp.float32) + c_bq[...]
    kv = jnp.dot(mem, c_wkv[...], preferred_element_type=jnp.float32) + c_bkv[...]
    attn2 = _heads_attention(q_all, kv[:, :D], kv[:, D:],
                             ctx_bias, c_wo[...], c_bo[...], nhead, scale)
    y = y + attn2

    # --- feed-forward + residual ---
    yn3 = _ln(y, ln3_g[...], ln3_b[...])
    h = jnp.dot(yn3, w1[...], preferred_element_type=jnp.float32) + b1[...]
    h = jnp.maximum(h, 0.0)
    h = jnp.dot(h, w2[...], preferred_element_type=jnp.float32) + b2[...]
    o_ref[0] = (y + h).astype(o_ref.dtype)


def _single_ln_kernel(x_ref, g_ref, b_ref, o_ref, *, eps):
    x = x_ref[0].astype(jnp.float32)
    o_ref[0] = _ln(x, g_ref[...], b_ref[...], eps).astype(o_ref.dtype)


def _double_ln_kernel(x_ref, g1_ref, b1_ref, g2_ref, b2_ref, o_ref, *, eps):
    x = x_ref[0].astype(jnp.float32)
    y = _ln(x, g1_ref[...], b1_ref[...], eps)       # decoder final LayerNorm
    y = _ln(y, g2_ref[...], b2_ref[...], eps)       # generator LayerNorm
    o_ref[0] = y.astype(o_ref.dtype)


# ----------------------------------------------------------------------------
# pallas_call wrappers
# ----------------------------------------------------------------------------
def _rep_spec(shape):
    """Full-array block that ignores the grid index (weights / params)."""
    n = len(shape)
    return pl.BlockSpec(shape, lambda *_: (0,) * n)


_PARALLEL = pltpu.CompilerParams(dimension_semantics=("parallel",))


def encoder_layer(p, x, src_bias, nhead):
    B, L, D = x.shape
    dff = p["ffn"]["w1"].shape[1]
    scale = 1.0 / math.sqrt(D // nhead)
    args = [
        x, src_bias,
        p["ln_g"].reshape(1, D), p["ln_b"].reshape(1, D),
        p["self_attn"]["wqkv"], p["self_attn"]["bqkv"].reshape(1, 3 * D),
        p["self_attn"]["wo"], p["self_attn"]["bo"].reshape(1, D),
        p["ffn"]["ln_g"].reshape(1, D), p["ffn"]["ln_b"].reshape(1, D),
        p["ffn"]["w1"], p["ffn"]["b1"].reshape(1, dff),
        p["ffn"]["w2"], p["ffn"]["b2"].reshape(1, D),
    ]
    in_specs = [
        pl.BlockSpec((1, L, D), lambda b: (b, 0, 0)),
        pl.BlockSpec((1, 1, src_bias.shape[-1]), lambda b: (b, 0, 0)),
    ] + [_rep_spec(a.shape) for a in args[2:]]
    return pl.pallas_call(
        functools.partial(_encoder_layer_kernel, nhead=nhead, scale=scale),
        grid=(B,),
        in_specs=in_specs,
        out_specs=pl.BlockSpec((1, L, D), lambda b: (b, 0, 0)),
        out_shape=jax.ShapeDtypeStruct((B, L, D), x.dtype),
        compiler_params=_PARALLEL,
    )(*args)


def decoder_layer(p, y, memory, self_bias, ctx_bias, nhead):
    B, Lt, D = y.shape
    Ls = memory.shape[1]
    dff = p["ffn"]["w1"].shape[1]
    scale = 1.0 / math.sqrt(D // nhead)
    args = [
        y, memory, self_bias, ctx_bias,
        p["ln1_g"].reshape(1, D), p["ln1_b"].reshape(1, D),
        p["self_attn"]["wqkv"], p["self_attn"]["bqkv"].reshape(1, 3 * D),
        p["self_attn"]["wo"], p["self_attn"]["bo"].reshape(1, D),
        p["ln2_g"].reshape(1, D), p["ln2_b"].reshape(1, D),
        p["ctx_attn"]["wq"], p["ctx_attn"]["bq"].reshape(1, D),
        p["ctx_attn"]["wkv"], p["ctx_attn"]["bkv"].reshape(1, 2 * D),
        p["ctx_attn"]["wo"], p["ctx_attn"]["bo"].reshape(1, D),
        p["ffn"]["ln_g"].reshape(1, D), p["ffn"]["ln_b"].reshape(1, D),
        p["ffn"]["w1"], p["ffn"]["b1"].reshape(1, dff),
        p["ffn"]["w2"], p["ffn"]["b2"].reshape(1, D),
    ]
    in_specs = [
        pl.BlockSpec((1, Lt, D), lambda b: (b, 0, 0)),
        pl.BlockSpec((1, Ls, D), lambda b: (b, 0, 0)),
        pl.BlockSpec((1, Lt, Lt), lambda b: (b, 0, 0)),
        pl.BlockSpec((1, 1, Ls), lambda b: (b, 0, 0)),
    ] + [_rep_spec(a.shape) for a in args[4:]]
    return pl.pallas_call(
        functools.partial(_decoder_layer_kernel, nhead=nhead, scale=scale),
        grid=(B,),
        in_specs=in_specs,
        out_specs=pl.BlockSpec((1, Lt, D), lambda b: (b, 0, 0)),
        out_shape=jax.ShapeDtypeStruct((B, Lt, D), y.dtype),
        compiler_params=_PARALLEL,
    )(*args)


def final_layer_norm(x, g, b, eps=LN_EPS):
    B, L, D = x.shape
    return pl.pallas_call(
        functools.partial(_single_ln_kernel, eps=eps),
        grid=(B,),
        in_specs=[pl.BlockSpec((1, L, D), lambda i: (i, 0, 0)),
                  _rep_spec((1, D)), _rep_spec((1, D))],
        out_specs=pl.BlockSpec((1, L, D), lambda i: (i, 0, 0)),
        out_shape=jax.ShapeDtypeStruct((B, L, D), x.dtype),
        compiler_params=_PARALLEL,
    )(x, g.reshape(1, D), b.reshape(1, D))


def double_layer_norm(x, g1, b1, g2, b2, eps=LN_EPS):
    B, L, D = x.shape
    return pl.pallas_call(
        functools.partial(_double_ln_kernel, eps=eps),
        grid=(B,),
        in_specs=[pl.BlockSpec((1, L, D), lambda i: (i, 0, 0)),
                  _rep_spec((1, D)), _rep_spec((1, D)),
                  _rep_spec((1, D)), _rep_spec((1, D))],
        out_specs=pl.BlockSpec((1, L, D), lambda i: (i, 0, 0)),
        out_shape=jax.ShapeDtypeStruct((B, L, D), x.dtype),
        compiler_params=_PARALLEL,
    )(x, g1.reshape(1, D), b1.reshape(1, D), g2.reshape(1, D), b2.reshape(1, D))


# ----------------------------------------------------------------------------
# Plain-JAX glue: embeddings, positional encoding, masks
# ----------------------------------------------------------------------------
def sinusoidal_pe(max_len, d_model):
    pos = jnp.arange(max_len, dtype=jnp.float32)[:, None]
    div = jnp.exp(
        jnp.arange(0, d_model, 2, dtype=jnp.float32) * (-math.log(10000.0) / d_model)
    )
    pe = jnp.zeros((max_len, d_model), jnp.float32)
    pe = pe.at[:, 0::2].set(jnp.sin(pos * div))
    pe = pe.at[:, 1::2].set(jnp.cos(pos * div))
    return pe


def embed(table, tokens, pe, d_model):
    # TODO(synk): embedding gather stays in plain JAX (data-dependent gather
    # has no clean small-scale Pallas equivalent).
    emb = jnp.take(table, tokens, axis=0) * math.sqrt(d_model)
    return emb + pe[None, : tokens.shape[1], :]


def ptransformer_forward(params, src, tgt, lengths, cfg):
    d_model, nhead = cfg["d_model"], cfg["nhead"]
    pad_idx = cfg["pad_idx"]
    B, Ls = src.shape
    Lt = tgt.shape[1]

    dec_in = tgt[:, :-1]  # computed but unused, mirroring the PyTorch forward
    del dec_in

    # --- additive attention biases (per batch element, no per-head broadcast) ---
    src_key_mask = jnp.arange(Ls)[None, :] >= lengths[:, None]            # [B, Ls]
    src_key_bias = jnp.where(src_key_mask, NEG_INF, 0.0).astype(jnp.float32)
    src_key_bias = src_key_bias[:, None, :]                               # [B, 1, Ls]

    causal = jnp.triu(jnp.ones((Lt, Lt), jnp.bool_), k=1)                 # [Lt, Lt]
    tgt_pad = (tgt == pad_idx)[:, None, :]                                # [B, 1, Lt]
    dec_self_bias = jnp.where(causal[None, :, :] | tgt_pad, NEG_INF, 0.0)
    dec_self_bias = dec_self_bias.astype(jnp.float32)                     # [B, Lt, Lt]

    pe = params["pe"]

    # --- encoder (one fused pallas_call per layer) ---
    x = embed(params["src_emb"], src, pe, d_model)
    for lp in params["enc_layers"]:
        x = encoder_layer(lp, x, src_key_bias, nhead)
    memory = final_layer_norm(x, params["enc_ln_g"], params["enc_ln_b"])

    # --- decoder (one fused pallas_call per layer) ---
    y = embed(params["tgt_emb"], tgt, pe, d_model)
    for lp in params["dec_layers"]:
        y = decoder_layer(lp, y, memory, dec_self_bias, src_key_bias, nhead)

    # --- decoder final LayerNorm + generator LayerNorm fused ---
    return double_layer_norm(y, params["dec_ln_g"], params["dec_ln_b"],
                             params["gen_ln_g"], params["gen_ln_b"])


# ----------------------------------------------------------------------------
# Deterministic parameter initialization (fused QKV / KV layouts)
# ----------------------------------------------------------------------------
def _linear(key, din, dout):
    return (jax.random.normal(key, (din, dout), jnp.float32) * 0.02,
            jnp.zeros((dout,), jnp.float32))


def _self_attn_params(key, d):
    kq, kk, kv, ko = jax.random.split(key, 4)
    wq, bq = _linear(kq, d, d)
    wk, bk = _linear(kk, d, d)
    wv, bv = _linear(kv, d, d)
    wo, bo = _linear(ko, d, d)
    return {"wqkv": jnp.concatenate([wq, wk, wv], axis=1),
            "bqkv": jnp.concatenate([bq, bk, bv], axis=0),
            "wo": wo, "bo": bo}


def _cross_attn_params(key, d):
    kq, kk, kv, ko = jax.random.split(key, 4)
    wq, bq = _linear(kq, d, d)
    wk, bk = _linear(kk, d, d)
    wv, bv = _linear(kv, d, d)
    wo, bo = _linear(ko, d, d)
    return {"wq": wq, "bq": bq,
            "wkv": jnp.concatenate([wk, wv], axis=1),
            "bkv": jnp.concatenate([bk, bv], axis=0),
            "wo": wo, "bo": bo}


def _ffn_params(key, d, d_ff):
    k1, k2 = jax.random.split(key)
    w1, b1 = _linear(k1, d, d_ff)
    w2, b2 = _linear(k2, d_ff, d)
    return {"w1": w1, "b1": b1, "w2": w2, "b2": b2,
            "ln_g": jnp.ones((d,), jnp.float32), "ln_b": jnp.zeros((d,), jnp.float32)}


def init_params(key, cfg):
    d, d_ff = cfg["d_model"], cfg["d_ff"]
    keys = jax.random.split(key, 8)

    src_emb = jax.random.normal(keys[0], (cfg["src_vocab"], d), jnp.float32) * 0.1
    src_emb = src_emb.at[cfg["pad_idx"]].set(0.0)
    tgt_emb = jax.random.normal(keys[1], (cfg["tgt_vocab"], d), jnp.float32) * 0.1
    tgt_emb = tgt_emb.at[cfg["pad_idx"]].set(0.0)

    enc_layers = []
    for k in jax.random.split(keys[2], cfg["enc_layers"]):
        ka, kf = jax.random.split(k)
        enc_layers.append({
            "self_attn": _self_attn_params(ka, d),
            "ffn": _ffn_params(kf, d, d_ff),
            "ln_g": jnp.ones((d,), jnp.float32),
            "ln_b": jnp.zeros((d,), jnp.float32),
        })

    dec_layers = []
    for k in jax.random.split(keys[3], cfg["dec_layers"]):
        ka, kc, kf = jax.random.split(k, 3)
        dec_layers.append({
            "self_attn": _self_attn_params(ka, d),
            "ctx_attn": _cross_attn_params(kc, d),
            "ffn": _ffn_params(kf, d, d_ff),
            "ln1_g": jnp.ones((d,), jnp.float32),
            "ln1_b": jnp.zeros((d,), jnp.float32),
            "ln2_g": jnp.ones((d,), jnp.float32),
            "ln2_b": jnp.zeros((d,), jnp.float32),
        })

    return {
        "src_emb": src_emb,
        "tgt_emb": tgt_emb,
        "pe": sinusoidal_pe(cfg["max_len"], d),
        "enc_layers": enc_layers,
        "dec_layers": dec_layers,
        "enc_ln_g": jnp.ones((d,), jnp.float32),
        "enc_ln_b": jnp.zeros((d,), jnp.float32),
        "dec_ln_g": jnp.ones((d,), jnp.float32),
        "dec_ln_b": jnp.zeros((d,), jnp.float32),
        "gen_ln_g": jnp.ones((d,), jnp.float32),
        "gen_ln_b": jnp.zeros((d,), jnp.float32),
    }


# ----------------------------------------------------------------------------
if __name__ == "__main__":
    cfg = dict(
        src_vocab=17, tgt_vocab=19,
        enc_layers=2, dec_layers=2,
        d_model=32, nhead=4, d_ff=64,
        pad_idx=1, max_len=64,
    )
    B, Ls, Lt = 2, 10, 8

    root = jax.random.PRNGKey(0)
    kp, ks, kt = jax.random.split(root, 3)
    params = init_params(kp, cfg)

    lengths = jnp.array([Ls, 7], dtype=jnp.int32)
    src = jax.random.randint(ks, (B, Ls), 4, cfg["src_vocab"], dtype=jnp.int32)
    src = jnp.where(jnp.arange(Ls)[None, :] >= lengths[:, None], cfg["pad_idx"], src)
    tgt = jax.random.randint(kt, (B, Lt), 4, cfg["tgt_vocab"], dtype=jnp.int32)

    fwd = jax.jit(functools.partial(ptransformer_forward, cfg=cfg))
    out = fwd(params, src, tgt, lengths)
    out = jax.block_until_ready(out)

    assert out.shape == (B, Lt, cfg["d_model"]), out.shape
    assert bool(jnp.all(jnp.isfinite(out)))
    print("KERNEL_OK")
</pallas_src>

<mosaic_0001>
module attributes {stable_mosaic.version = 11 : i64} {
  func.func @_encoder_layer_kernel(%arg0: i32, %arg1: memref<1x10x32xf32, #tpu.memory_space<vmem>>, %arg2: memref<1x1x10xf32, #tpu.memory_space<vmem>>, %arg3: memref<1x32xf32, #tpu.memory_space<vmem>>, %arg4: memref<1x32xf32, #tpu.memory_space<vmem>>, %arg5: memref<32x96xf32, #tpu.memory_space<vmem>>, %arg6: memref<1x96xf32, #tpu.memory_space<vmem>>, %arg7: memref<32x32xf32, #tpu.memory_space<vmem>>, %arg8: memref<1x32xf32, #tpu.memory_space<vmem>>, %arg9: memref<1x32xf32, #tpu.memory_space<vmem>>, %arg10: memref<1x32xf32, #tpu.memory_space<vmem>>, %arg11: memref<32x64xf32, #tpu.memory_space<vmem>>, %arg12: memref<1x64xf32, #tpu.memory_space<vmem>>, %arg13: memref<64x32xf32, #tpu.memory_space<vmem>>, %arg14: memref<1x32xf32, #tpu.memory_space<vmem>>, %arg15: memref<1x10x32xf32, #tpu.memory_space<vmem>>) attributes {dimension_semantics = [#tpu.dimension_semantics<parallel>], iteration_bounds = array<i64: 2>, scalar_prefetch = 0 : i64, scratch_operands = 0 : i64, tpu.core_type = #tpu.core_type<tc>, window_params = [{transform_indices = @transform_0, window_bounds = array<i64: 1, 10, 32>}, {transform_indices = @transform_1, window_bounds = array<i64: 1, 1, 10>}, {pipeline_mode = #tpu.pipeline_mode<synchronous>, transform_indices = @transform_2, window_bounds = array<i64: 1, 32>}, {pipeline_mode = #tpu.pipeline_mode<synchronous>, transform_indices = @transform_3, window_bounds = array<i64: 1, 32>}, {pipeline_mode = #tpu.pipeline_mode<synchronous>, transform_indices = @transform_4, window_bounds = array<i64: 32, 96>}, {pipeline_mode = #tpu.pipeline_mode<synchronous>, transform_indices = @transform_5, window_bounds = array<i64: 1, 96>}, {pipeline_mode = #tpu.pipeline_mode<synchronous>, transform_indices = @transform_6, window_bounds = array<i64: 32, 32>}, {pipeline_mode = #tpu.pipeline_mode<synchronous>, transform_indices = @transform_7, window_bounds = array<i64: 1, 32>}, {pipeline_mode = #tpu.pipeline_mode<synchronous>, transform_indices = @transform_8, window_bounds = array<i64: 1, 32>}, {pipeline_mode = #tpu.pipeline_mode<synchronous>, transform_indices = @transform_9, window_bounds = array<i64: 1, 32>}, {pipeline_mode = #tpu.pipeline_mode<synchronous>, transform_indices = @transform_10, window_bounds = array<i64: 32, 64>}, {pipeline_mode = #tpu.pipeline_mode<synchronous>, transform_indices = @transform_11, window_bounds = array<i64: 1, 64>}, {pipeline_mode = #tpu.pipeline_mode<synchronous>, transform_indices = @transform_12, window_bounds = array<i64: 64, 32>}, {pipeline_mode = #tpu.pipeline_mode<synchronous>, transform_indices = @transform_13, window_bounds = array<i64: 1, 32>}, {transform_indices = @transform_14, window_bounds = array<i64: 1, 10, 32>}]} {
    %c0 = arith.constant 0 : index
    %c0_0 = arith.constant 0 : index
    %c0_1 = arith.constant 0 : index
    %0 = vector.load %arg1[%c0, %c0_0, %c0_1] : memref<1x10x32xf32, #tpu.memory_space<vmem>>, vector<1x10x32xf32>
    %1 = vector.shape_cast %0 : vector<1x10x32xf32> to vector<10x32xf32>
    %c0_2 = arith.constant 0 : index
    %c0_3 = arith.constant 0 : index
    %c0_4 = arith.constant 0 : index
    %2 = vector.load %arg2[%c0_2, %c0_3, %c0_4] : memref<1x1x10xf32, #tpu.memory_space<vmem>>, vector<1x1x10xf32>
    %3 = vector.shape_cast %2 : vector<1x1x10xf32> to vector<1x10xf32>
    %c0_5 = arith.constant 0 : index
    %c0_6 = arith.constant 0 : index
    %4 = vector.load %arg3[%c0_5, %c0_6] : memref<1x32xf32, #tpu.memory_space<vmem>>, vector<1x32xf32>
    %c0_7 = arith.constant 0 : index
    %c0_8 = arith.constant 0 : index
    %5 = vector.load %arg4[%c0_7, %c0_8] : memref<1x32xf32, #tpu.memory_space<vmem>>, vector<1x32xf32>
    %cst = arith.constant dense<0.000000e+00> : vector<10xf32>
    %6 = vector.multi_reduction <add>, %1, %cst [1] : vector<10x32xf32> to vector<10xf32>
    %7 = vector.shape_cast %6 : vector<10xf32> to vector<10x1xf32>
    %cst_9 = arith.constant 3.200000e+01 : f32
    %8 = vector.broadcast %cst_9 : f32 to vector<10x1xf32>
    %9 = arith.divf %7, %8 : vector<10x1xf32>
    %10 = vector.broadcast %9 : vector<10x1xf32> to vector<10x32xf32>
    %11 = arith.subf %1, %10 : vector<10x32xf32>
    %12 = arith.mulf %11, %11 : vector<10x32xf32>
    %cst_10 = arith.constant dense<0.000000e+00> : vector<10xf32>
    %13 = vector.multi_reduction <add>, %12, %cst_10 [1] : vector<10x32xf32> to vector<10xf32>
    %14 = vector.shape_cast %13 : vector<10xf32> to vector<10x1xf32>
    %cst_11 = arith.constant 3.200000e+01 : f32
    %15 = vector.broadcast %cst_11 : f32 to vector<10x1xf32>
    %16 = arith.divf %14, %15 : vector<10x1xf32>
    %17 = vector.broadcast %9 : vector<10x1xf32> to vector<10x32xf32>
    %18 = arith.subf %1, %17 : vector<10x32xf32>
    %cst_12 = arith.constant 9.99999974E-6 : f32
    %19 = vector.broadcast %cst_12 : f32 to vector<10x1xf32>
    %20 = arith.addf %16, %19 : vector<10x1xf32>
    %21 = math.rsqrt %20 : vector<10x1xf32>
    %22 = vector.broadcast %21 : vector<10x1xf32> to vector<10x32xf32>
    %23 = arith.mulf %18, %22 : vector<10x32xf32>
    %24 = vector.broadcast %4 : vector<1x32xf32> to vector<10x32xf32>
    %25 = arith.mulf %23, %24 : vector<10x32xf32>
    %26 = vector.broadcast %5 : vector<1x32xf32> to vector<10x32xf32>
    %27 = arith.addf %25, %26 : vector<10x32xf32>
    %c0_13 = arith.constant 0 : index
    %c0_14 = arith.constant 0 : index
    %28 = vector.load %arg5[%c0_13, %c0_14] : memref<32x96xf32, #tpu.memory_space<vmem>>, vector<32x96xf32>
    %cst_15 = arith.constant dense<0.000000e+00> : vector<10x96xf32>
    %29 = tpu.matmul %27, %28, %cst_15 {dimension_numbers = #tpu.dot_dimension_numbers<[1], [0], [0], [1], [0, 0, 1, 1], [], []>} : vector<10x32xf32>, vector<32x96xf32>, vector<10x96xf32> -> vector<10x96xf32>
    %c0_16 = arith.constant 0 : index
    %c0_17 = arith.constant 0 : index
    %30 = vector.load %arg6[%c0_16, %c0_17] : memref<1x96xf32, #tpu.memory_space<vmem>>, vector<1x96xf32>
    %31 = vector.broadcast %30 : vector<1x96xf32> to vector<10x96xf32>
    %32 = arith.addf %29, %31 : vector<10x96xf32>
    %33 = vector.extract_strided_slice %32 {offsets = [0, 0], sizes = [10, 32], strides = [1, 1]} : vector<10x96xf32> to vector<10x32xf32>
    %34 = vector.extract_strided_slice %32 {offsets = [0, 32], sizes = [10, 32], strides = [1, 1]} : vector<10x96xf32> to vector<10x32xf32>
    %35 = vector.extract_strided_slice %32 {offsets = [0, 64], sizes = [10, 32], strides = [1, 1]} : vector<10x96xf32> to vector<10x32xf32>
    %c0_18 = arith.constant 0 : index
    %c0_19 = arith.constant 0 : index
    %36 = vector.load %arg7[%c0_18, %c0_19] : memref<32x32xf32, #tpu.memory_space<vmem>>, vector<32x32xf32>
    %c0_20 = arith.constant 0 : index
    %c0_21 = arith.constant 0 : index
    %37 = vector.load %arg8[%c0_20, %c0_21] : memref<1x32xf32, #tpu.memory_space<vmem>>, vector<1x32xf32>
    %38 = vector.extract_strided_slice %33 {offsets = [0, 0], sizes = [10, 8], strides = [1, 1]} : vector<10x32xf32> to vector<10x8xf32>
    %39 = vector.extract_strided_slice %34 {offsets = [0, 0], sizes = [10, 8], strides = [1, 1]} : vector<10x32xf32> to vector<10x8xf32>
    %40 = vector.extract_strided_slice %35 {offsets = [0, 0], sizes = [10, 8], strides = [1, 1]} : vector<10x32xf32> to vector<10x8xf32>
    %cst_22 = arith.constant dense<0.000000e+00> : vector<10x10xf32>
    %41 = tpu.matmul %38, %39, %cst_22 {dimension_numbers = #tpu.dot_dimension_numbers<[1], [1], [0], [0], [0, 0, 1, 0], [], []>} : vector<10x8xf32>, vector<10x8xf32>, vector<10x10xf32> -> vector<10x10xf32>
    %cst_23 = arith.constant 0.353553385 : f32
    %42 = vector.broadcast %cst_23 : f32 to vector<10x10xf32>
    %43 = arith.mulf %41, %42 : vector<10x10xf32>
    %44 = vector.broadcast %3 : vector<1x10xf32> to vector<10x10xf32>
    %45 = arith.addf %43, %44 : vector<10x10xf32>
    %cst_24 = arith.constant dense<0xFF800000> : vector<10xf32>
    %46 = vector.multi_reduction <maximumf>, %45, %cst_24 [1] : vector<10x10xf32> to vector<10xf32>
    %47 = vector.shape_cast %46 : vector<10xf32> to vector<10x1xf32>
    %48 = vector.broadcast %47 : vector<10x1xf32> to vector<10x10xf32>
    %49 = arith.subf %45, %48 : vector<10x10xf32>
    %50 = math.exp %49 : vector<10x10xf32>
    %cst_25 = arith.constant dense<0.000000e+00> : vector<10xf32>
    %51 = vector.multi_reduction <add>, %50, %cst_25 [1] : vector<10x10xf32> to vector<10xf32>
    %52 = vector.shape_cast %51 : vector<10xf32> to vector<10x1xf32>
    %53 = tpu.reciprocal %52 {approx = true} : vector<10x1xf32> -> vector<10x1xf32>
    %54 = vector.broadcast %53 : vector<10x1xf32> to vector<10x10xf32>
    %55 = arith.mulf %50, %54 : vector<10x10xf32>
    %cst_26 = arith.constant dense<0.000000e+00> : vector<10x8xf32>
    %56 = tpu.matmul %55, %40, %cst_26 {dimension_numbers = #tpu.dot_dimension_numbers<[1], [0], [0], [1], [0, 0, 1, 1], [], []>} : vector<10x10xf32>, vector<10x8xf32>, vector<10x8xf32> -> vector<10x8xf32>
    %57 = vector.extract_strided_slice %36 {offsets = [0, 0], sizes = [8, 32], strides = [1, 1]} : vector<32x32xf32> to vector<8x32xf32>
    %cst_27 = arith.constant dense<0.000000e+00> : vector<10x32xf32>
    %58 = tpu.matmul %56, %57, %cst_27 {dimension_numbers = #tpu.dot_dimension_numbers<[1], [0], [0], [1], [0, 0, 1, 1], [], []>} : vector<10x8xf32>, vector<8x32xf32>, vector<10x32xf32> -> vector<10x32xf32>
    %59 = vector.extract_strided_slice %33 {offsets = [0, 8], sizes = [10, 8], strides = [1, 1]} : vector<10x32xf32> to vector<10x8xf32>
    %60 = vector.extract_strided_slice %34 {offsets = [0, 8], sizes = [10, 8], strides = [1, 1]} : vector<10x32xf32> to vector<10x8xf32>
    %61 = vector.extract_strided_slice %35 {offsets = [0, 8], sizes = [10, 8], strides = [1, 1]} : vector<10x32xf32> to vector<10x8xf32>
    %cst_28 = arith.constant dense<0.000000e+00> : vector<10x10xf32>
    %62 = tpu.matmul %59, %60, %cst_28 {dimension_numbers = #tpu.dot_dimension_numbers<[1], [1], [0], [0], [0, 0, 1, 0], [], []>} : vector<10x8xf32>, vector<10x8xf32>, vector<10x10xf32> -> vector<10x10xf32>
    %cst_29 = arith.constant 0.353553385 : f32
    %63 = vector.broadcast %cst_29 : f32 to vector<10x10xf32>
    %64 = arith.mulf %62, %63 : vector<10x10xf32>
    %65 = vector.broadcast %3 : vector<1x10xf32> to vector<10x10xf32>
    %66 = arith.addf %64, %65 : vector<10x10xf32>
    %cst_30 = arith.constant dense<0xFF800000> : vector<10xf32>
    %67 = vector.multi_reduction <maximumf>, %66, %cst_30 [1] : vector<10x10xf32> to vector<10xf32>
    %68 = vector.shape_cast %67 : vector<10xf32> to vector<10x1xf32>
    %69 = vector.broadcast %68 : vector<10x1xf32> to vector<10x10xf32>
    %70 = arith.subf %66, %69 : vector<10x10xf32>
    %71 = math.exp %70 : vector<10x10xf32>
    %cst_31 = arith.constant dense<0.000000e+00> : vector<10xf32>
    %72 = vector.multi_reduction <add>, %71, %cst_31 [1] : vector<10x10xf32> to vector<10xf32>
    %73 = vector.shape_cast %72 : vector<10xf32> to vector<10x1xf32>
    %74 = tpu.reciprocal %73 {approx = true} : vector<10x1xf32> -> vector<10x1xf32>
    %75 = vector.broadcast %74 : vector<10x1xf32> to vector<10x10xf32>
    %76 = arith.mulf %71, %75 : vector<10x10xf32>
    %cst_32 = arith.constant dense<0.000000e+00> : vector<10x8xf32>
    %77 = tpu.matmul %76, %61, %cst_32 {dimension_numbers = #tpu.dot_dimension_numbers<[1], [0], [0], [1], [0, 0, 1, 1], [], []>} : vector<10x10xf32>, vector<10x8xf32>, vector<10x8xf32> -> vector<10x8xf32>
    %78 = vector.extract_strided_slice %36 {offsets = [8, 0], sizes = [8, 32], strides = [1, 1]} : vector<32x32xf32> to vector<8x32xf32>
    %cst_33 = arith.constant dense<0.000000e+00> : vector<10x32xf32>
    %79 = tpu.matmul %77, %78, %cst_33 {dimension_numbers = #tpu.dot_dimension_numbers<[1], [0], [0], [1], [0, 0, 1, 1], [], []>} : vector<10x8xf32>, vector<8x32xf32>, vector<10x32xf32> -> vector<10x32xf32>
    %80 = arith.addf %58, %79 : vector<10x32xf32>
    %81 = vector.extract_strided_slice %33 {offsets = [0, 16], sizes = [10, 8], strides = [1, 1]} : vector<10x32xf32> to vector<10x8xf32>
    %82 = vector.extract_strided_slice %34 {offsets = [0, 16], sizes = [10, 8], strides = [1, 1]} : vector<10x32xf32> to vector<10x8xf32>
    %83 = vector.extract_strided_slice %35 {offsets = [0, 16], sizes = [10, 8], strides = [1, 1]} : vector<10x32xf32> to vector<10x8xf32>
    %cst_34 = arith.constant dense<0.000000e+00> : vector<10x10xf32>
    %84 = tpu.matmul %81, %82, %cst_34 {dimension_numbers = #tpu.dot_dimension_numbers<[1], [1], [0], [0], [0, 0, 1, 0], [], []>} : vector<10x8xf32>, vector<10x8xf32>, vector<10x10xf32> -> vector<10x10xf32>
    %cst_35 = arith.constant 0.353553385 : f32
    %85 = vector.broadcast %cst_35 : f32 to vector<10x10xf32>
    %86 = arith.mulf %84, %85 : vector<10x10xf32>
    %87 = vector.broadcast %3 : vector<1x10xf32> to vector<10x10xf32>
    %88 = arith.addf %86, %87 : vector<10x10xf32>
    %cst_36 = arith.constant dense<0xFF800000> : vector<10xf32>
    %89 = vector.multi_reduction <maximumf>, %88, %cst_36 [1] : vector<10x10xf32> to vector<10xf32>
    %90 = vector.shape_cast %89 : vector<10xf32> to vector<10x1xf32>
    %91 = vector.broadcast %90 : vector<10x1xf32> to vector<10x10xf32>
    %92 = arith.subf %88, %91 : vector<10x10xf32>
    %93 = math.exp %92 : vector<10x10xf32>
    %cst_37 = arith.constant dense<0.000000e+00> : vector<10xf32>
    %94 = vector.multi_reduction <add>, %93, %cst_37 [1] : vector<10x10xf32> to vector<10xf32>
    %95 = vector.shape_cast %94 : vector<10xf32> to vector<10x1xf32>
    %96 = tpu.reciprocal %95 {approx = true} : vector<10x1xf32> -> vector<10x1xf32>
    %97 = vector.broadcast %96 : vector<10x1xf32> to vector<10x10xf32>
    %98 = arith.mulf %93, %97 : vector<10x10xf32>
    %cst_38 = arith.constant dense<0.000000e+00> : vector<10x8xf32>
    %99 = tpu.matmul %98, %83, %cst_38 {dimension_numbers = #tpu.dot_dimension_numbers<[1], [0], [0], [1], [0, 0, 1, 1], [], []>} : vector<10x10xf32>, vector<10x8xf32>, vector<10x8xf32> -> vector<10x8xf32>
    %100 = vector.extract_strided_slice %36 {offsets = [16, 0], sizes = [8, 32], strides = [1, 1]} : vector<32x32xf32> to vector<8x32xf32>
    %cst_39 = arith.constant dense<0.000000e+00> : vector<10x32xf32>
    %101 = tpu.matmul %99, %100, %cst_39 {dimension_numbers = #tpu.dot_dimension_numbers<[1], [0], [0], [1], [0, 0, 1, 1], [], []>} : vector<10x8xf32>, vector<8x32xf32>, vector<10x32xf32> -> vector<10x32xf32>
    %102 = arith.addf %80, %101 : vector<10x32xf32>
    %103 = vector.extract_strided_slice %33 {offsets = [0, 24], sizes = [10, 8], strides = [1, 1]} : vector<10x32xf32> to vector<10x8xf32>
    %104 = vector.extract_strided_slice %34 {offsets = [0, 24], sizes = [10, 8], strides = [1, 1]} : vector<10x32xf32> to vector<10x8xf32>
    %105 = vector.extract_strided_slice %35 {offsets = [0, 24], sizes = [10, 8], strides = [1, 1]} : vector<10x32xf32> to vector<10x8xf32>
    %cst_40 = arith.constant dense<0.000000e+00> : vector<10x10xf32>
    %106 = tpu.matmul %103, %104, %cst_40 {dimension_numbers = #tpu.dot_dimension_numbers<[1], [1], [0], [0], [0, 0, 1, 0], [], []>} : vector<10x8xf32>, vector<10x8xf32>, vector<10x10xf32> -> vector<10x10xf32>
    %cst_41 = arith.constant 0.353553385 : f32
    %107 = vector.broadcast %cst_41 : f32 to vector<10x10xf32>
    %108 = arith.mulf %106, %107 : vector<10x10xf32>
    %109 = vector.broadcast %3 : vector<1x10xf32> to vector<10x10xf32>
    %110 = arith.addf %108, %109 : vector<10x10xf32>
    %cst_42 = arith.constant dense<0xFF800000> : vector<10xf32>
    %111 = vector.multi_reduction <maximumf>, %110, %cst_42 [1] : vector<10x10xf32> to vector<10xf32>
    %112 = vector.shape_cast %111 : vector<10xf32> to vector<10x1xf32>
    %113 = vector.broadcast %112 : vector<10x1xf32> to vector<10x10xf32>
    %114 = arith.subf %110, %113 : vector<10x10xf32>
    %115 = math.exp %114 : vector<10x10xf32>
    %cst_43 = arith.constant dense<0.000000e+00> : vector<10xf32>
    %116 = vector.multi_reduction <add>, %115, %cst_43 [1] : vector<10x10xf32> to vector<10xf32>
    %117 = vector.shape_cast %116 : vector<10xf32> to vector<10x1xf32>
    %118 = tpu.reciprocal %117 {approx = true} : vector<10x1xf32> -> vector<10x1xf32>
    %119 = vector.broadcast %118 : vector<10x1xf32> to vector<10x10xf32>
    %120 = arith.mulf %115, %119 : vector<10x10xf32>
    %cst_44 = arith.constant dense<0.000000e+00> : vector<10x8xf32>
    %121 = tpu.matmul %120, %105, %cst_44 {dimension_numbers = #tpu.dot_dimension_numbers<[1], [0], [0], [1], [0, 0, 1, 1], [], []>} : vector<10x10xf32>, vector<10x8xf32>, vector<10x8xf32> -> vector<10x8xf32>
    %122 = vector.extract_strided_slice %36 {offsets = [24, 0], sizes = [8, 32], strides = [1, 1]} : vector<32x32xf32> to vector<8x32xf32>
    %cst_45 = arith.constant dense<0.000000e+00> : vector<10x32xf32>
    %123 = tpu.matmul %121, %122, %cst_45 {dimension_numbers = #tpu.dot_dimension_numbers<[1], [0], [0], [1], [0, 0, 1, 1], [], []>} : vector<10x8xf32>, vector<8x32xf32>, vector<10x32xf32> -> vector<10x32xf32>
    %124 = arith.addf %102, %123 : vector<10x32xf32>
    %125 = vector.broadcast %37 : vector<1x32xf32> to vector<10x32xf32>
    %126 = arith.addf %124, %125 : vector<10x32xf32>
    %127 = arith.addf %1, %126 : vector<10x32xf32>
    %c0_46 = arith.constant 0 : index
    %c0_47 = arith.constant 0 : index
    %128 = vector.load %arg9[%c0_46, %c0_47] : memref<1x32xf32, #tpu.memory_space<vmem>>, vector<1x32xf32>
    %c0_48 = arith.constant 0 : index
    %c0_49 = arith.constant 0 : index
    %129 = vector.load %arg10[%c0_48, %c0_49] : memref<1x32xf32, #tpu.memory_space<vmem>>, vector<1x32xf32>
    %cst_50 = arith.constant dense<0.000000e+00> : vector<10xf32>
    %130 = vector.multi_reduction <add>, %127, %cst_50 [1] : vector<10x32xf32> to vector<10xf32>
    %131 = vector.shape_cast %130 : vector<10xf32> to vector<10x1xf32>
    %cst_51 = arith.constant 3.200000e+01 : f32
    %132 = vector.broadcast %cst_51 : f32 to vector<10x1xf32>
    %133 = arith.divf %131, %132 : vector<10x1xf32>
    %134 = vector.broadcast %133 : vector<10x1xf32> to vector<10x32xf32>
    %135 = arith.subf %127, %134 : vector<10x32xf32>
    %136 = arith.mulf %135, %135 : vector<10x32xf32>
    %cst_52 = arith.constant dense<0.000000e+00> : vector<10xf32>
    %137 = vector.multi_reduction <add>, %136, %cst_52 [1] : vector<10x32xf32> to vector<10xf32>
    %138 = vector.shape_cast %137 : vector<10xf32> to vector<10x1xf32>
    %cst_53 = arith.constant 3.200000e+01 : f32
    %139 = vector.broadcast %cst_53 : f32 to vector<10x1xf32>
    %140 = arith.divf %138, %139 : vector<10x1xf32>
    %141 = vector.broadcast %133 : vector<10x1xf32> to vector<10x32xf32>
    %142 = arith.subf %127, %141 : vector<10x32xf32>
    %cst_54 = arith.constant 9.99999974E-6 : f32
    %143 = vector.broadcast %cst_54 : f32 to vector<10x1xf32>
    %144 = arith.addf %140, %143 : vector<10x1xf32>
    %145 = math.rsqrt %144 : vector<10x1xf32>
    %146 = vector.broadcast %145 : vector<10x1xf32> to vector<10x32xf32>
    %147 = arith.mulf %142, %146 : vector<10x32xf32>
    %148 = vector.broadcast %128 : vector<1x32xf32> to vector<10x32xf32>
    %149 = arith.mulf %147, %148 : vector<10x32xf32>
    %150 = vector.broadcast %129 : vector<1x32xf32> to vector<10x32xf32>
    %151 = arith.addf %149, %150 : vector<10x32xf32>
    %c0_55 = arith.constant 0 : index
    %c0_56 = arith.constant 0 : index
    %152 = vector.load %arg11[%c0_55, %c0_56] : memref<32x64xf32, #tpu.memory_space<vmem>>, vector<32x64xf32>
    %cst_57 = arith.constant dense<0.000000e+00> : vector<10x64xf32>
    %153 = tpu.matmul %151, %152, %cst_57 {dimension_numbers = #tpu.dot_dimension_numbers<[1], [0], [0], [1], [0, 0, 1, 1], [], []>} : vector<10x32xf32>, vector<32x64xf32>, vector<10x64xf32> -> vector<10x64xf32>
    %c0_58 = arith.constant 0 : index
    %c0_59 = arith.constant 0 : index
    %154 = vector.load %arg12[%c0_58, %c0_59] : memref<1x64xf32, #tpu.memory_space<vmem>>, vector<1x64xf32>
    %155 = vector.broadcast %154 : vector<1x64xf32> to vector<10x64xf32>
    %156 = arith.addf %153, %155 : vector<10x64xf32>
    %cst_60 = arith.constant 0.000000e+00 : f32
    %157 = vector.broadcast %cst_60 : f32 to vector<10x64xf32>
    %158 = arith.maximumf %156, %157 : vector<10x64xf32>
    %c0_61 = arith.constant 0 : index
    %c0_62 = arith.constant 0 : index
    %159 = vector.load %arg13[%c0_61, %c0_62] : memref<64x32xf32, #tpu.memory_space<vmem>>, vector<64x32xf32>
    %cst_63 = arith.constant dense<0.000000e+00> : vector<10x32xf32>
    %160 = tpu.matmul %158, %159, %cst_63 {dimension_numbers = #tpu.dot_dimension_numbers<[1], [0], [0], [1], [0, 0, 1, 1], [], []>} : vector<10x64xf32>, vector<64x32xf32>, vector<10x32xf32> -> vector<10x32xf32>
    %c0_64 = arith.constant 0 : index
    %c0_65 = arith.constant 0 : index
    %161 = vector.load %arg14[%c0_64, %c0_65] : memref<1x32xf32, #tpu.memory_space<vmem>>, vector<1x32xf32>
    %162 = vector.broadcast %161 : vector<1x32xf32> to vector<10x32xf32>
    %163 = arith.addf %160, %162 : vector<10x32xf32>
    %164 = arith.addf %127, %163 : vector<10x32xf32>
    %c0_66 = arith.constant 0 : index
    %c0_67 = arith.constant 0 : index
    %c0_68 = arith.constant 0 : index
    %165 = vector.load %arg15[%c0_66, %c0_67, %c0_68] : memref<1x10x32xf32, #tpu.memory_space<vmem>>, vector<1x10x32xf32>
    %166 = vector.shape_cast %165 : vector<1x10x32xf32> to vector<10x32xf32>
    %167 = vector.shape_cast %164 : vector<10x32xf32> to vector<1x10x32xf32>
    tpu.vector_store %arg15[%c0_66, %c0_67, %c0_68], %167 {strides = array<i32>} : memref<1x10x32xf32, #tpu.memory_space<vmem>>, vector<1x10x32xf32>,
    return
  }
  func.func @transform_0(%arg0: i32) -> (i32, i32, i32) {
    %c0_i32 = arith.constant 0 : i32
    %c0_i32_0 = arith.constant 0 : i32
    %c0_i32_1 = arith.constant 0 : i32
    return %arg0, %c0_i32, %c0_i32_0 : i32, i32, i32
  }
  func.func @transform_1(%arg0: i32) -> (i32, i32, i32) {
    %c0_i32 = arith.constant 0 : i32
    %c0_i32_0 = arith.constant 0 : i32
    %c0_i32_1 = arith.constant 0 : i32
    return %arg0, %c0_i32, %c0_i32_0 : i32, i32, i32
  }
  func.func @transform_2(%arg0: i32) -> (i32, i32) {
    %c0_i32 = arith.constant 0 : i32
    %c0_i32_0 = arith.constant 0 : i32
    %c0_i32_1 = arith.constant 0 : i32
    return %c0_i32, %c0_i32_0 : i32, i32
  }
  func.func @transform_3(%arg0: i32) -> (i32, i32) {
    %c0_i32 = arith.constant 0 : i32
    %c0_i32_0 = arith.constant 0 : i32
    %c0_i32_1 = arith.constant 0 : i32
    return %c0_i32, %c0_i32_0 : i32, i32
  }
  func.func @transform_4(%arg0: i32) -> (i32, i32) {
    %c0_i32 = arith.constant 0 : i32
    %c0_i32_0 = arith.constant 0 : i32
    %c0_i32_1 = arith.constant 0 : i32
    return %c0_i32, %c0_i32_0 : i32, i32
  }
  func.func @transform_5(%arg0: i32) -> (i32, i32) {
    %c0_i32 = arith.constant 0 : i32
    %c0_i32_0 = arith.constant 0 : i32
    %c0_i32_1 = arith.constant 0 : i32
    return %c0_i32, %c0_i32_0 : i32, i32
  }
  func.func @transform_6(%arg0: i32) -> (i32, i32) {
    %c0_i32 = arith.constant 0 : i32
    %c0_i32_0 = arith.constant 0 : i32
    %c0_i32_1 = arith.constant 0 : i32
    return %c0_i32, %c0_i32_0 : i32, i32
  }
  func.func @transform_7(%arg0: i32) -> (i32, i32) {
    %c0_i32 = arith.constant 0 : i32
    %c0_i32_0 = arith.constant 0 : i32
    %c0_i32_1 = arith.constant 0 : i32
    return %c0_i32, %c0_i32_0 : i32, i32
  }
  func.func @transform_8(%arg0: i32) -> (i32, i32) {
    %c0_i32 = arith.constant 0 : i32
    %c0_i32_0 = arith.constant 0 : i32
    %c0_i32_1 = arith.constant 0 : i32
    return %c0_i32, %c0_i32_0 : i32, i32
  }
  func.func @transform_9(%arg0: i32) -> (i32, i32) {
    %c0_i32 = arith.constant 0 : i32
    %c0_i32_0 = arith.constant 0 : i32
    %c0_i32_1 = arith.constant 0 : i32
    return %c0_i32, %c0_i32_0 : i32, i32
  }
  func.func @transform_10(%arg0: i32) -> (i32, i32) {
    %c0_i32 = arith.constant 0 : i32
    %c0_i32_0 = arith.constant 0 : i32
    %c0_i32_1 = arith.constant 0 : i32
    return %c0_i32, %c0_i32_0 : i32, i32
  }
  func.func @transform_11(%arg0: i32) -> (i32, i32) {
    %c0_i32 = arith.constant 0 : i32
    %c0_i32_0 = arith.constant 0 : i32
    %c0_i32_1 = arith.constant 0 : i32
    return %c0_i32, %c0_i32_0 : i32, i32
  }
  func.func @transform_12(%arg0: i32) -> (i32, i32) {
    %c0_i32 = arith.constant 0 : i32
    %c0_i32_0 = arith.constant 0 : i32
    %c0_i32_1 = arith.constant 0 : i32
    return %c0_i32, %c0_i32_0 : i32, i32
  }
  func.func @transform_13(%arg0: i32) -> (i32, i32) {
    %c0_i32 = arith.constant 0 : i32
    %c0_i32_0 = arith.constant 0 : i32
    %c0_i32_1 = arith.constant 0 : i32
    return %c0_i32, %c0_i32_0 : i32, i32
  }
  func.func @transform_14(%arg0: i32) -> (i32, i32, i32) {
    %c0_i32 = arith.constant 0 : i32
    %c0_i32_0 = arith.constant 0 : i32
    %c0_i32_1 = arith.constant 0 : i32
    return %arg0, %c0_i32, %c0_i32_0 : i32, i32, i32
  }
}

module attributes {stable_mosaic.version = 11 : i64} {
  func.func @_single_ln_kernel(%arg0: i32, %arg1: memref<1x10x32xf32, #tpu.memory_space<vmem>>, %arg2: memref<1x32xf32, #tpu.memory_space<vmem>>, %arg3: memref<1x32xf32, #tpu.memory_space<vmem>>, %arg4: memref<1x10x32xf32, #tpu.memory_space<vmem>>) attributes {dimension_semantics = [#tpu.dimension_semantics<parallel>], iteration_bounds = array<i64: 2>, scalar_prefetch = 0 : i64, scratch_operands = 0 : i64, tpu.core_type = #tpu.core_type<tc>, window_params = [{transform_indices = @transform_0, window_bounds = array<i64: 1, 10, 32>}, {pipeline_mode = #tpu.pipeline_mode<synchronous>, transform_indices = @transform_1, window_bounds = array<i64: 1, 32>}, {pipeline_mode = #tpu.pipeline_mode<synchronous>, transform_indices = @transform_2, window_bounds = array<i64: 1, 32>}, {transform_indices = @transform_3, window_bounds = array<i64: 1, 10, 32>}]} {
    %c0 = arith.constant 0 : index
    %c0_0 = arith.constant 0 : index
    %c0_1 = arith.constant 0 : index
    %0 = vector.load %arg1[%c0, %c0_0, %c0_1] : memref<1x10x32xf32, #tpu.memory_space<vmem>>, vector<1x10x32xf32>
    %1 = vector.shape_cast %0 : vector<1x10x32xf32> to vector<10x32xf32>
    %c0_2 = arith.constant 0 : index
    %c0_3 = arith.constant 0 : index
    %2 = vector.load %arg2[%c0_2, %c0_3] : memref<1x32xf32, #tpu.memory_space<vmem>>, vector<1x32xf32>
    %c0_4 = arith.constant 0 : index
    %c0_5 = arith.constant 0 : index
    %3 = vector.load %arg3[%c0_4, %c0_5] : memref<1x32xf32, #tpu.memory_space<vmem>>, vector<1x32xf32>
    %cst = arith.constant dense<0.000000e+00> : vector<10xf32>
    %4 = vector.multi_reduction <add>, %1, %cst [1] : vector<10x32xf32> to vector<10xf32>
    %5 = vector.shape_cast %4 : vector<10xf32> to vector<10x1xf32>
    %cst_6 = arith.constant 3.200000e+01 : f32
    %6 = vector.broadcast %cst_6 : f32 to vector<10x1xf32>
    %7 = arith.divf %5, %6 : vector<10x1xf32>
    %8 = vector.broadcast %7 : vector<10x1xf32> to vector<10x32xf32>
    %9 = arith.subf %1, %8 : vector<10x32xf32>
    %10 = arith.mulf %9, %9 : vector<10x32xf32>
    %cst_7 = arith.constant dense<0.000000e+00> : vector<10xf32>
    %11 = vector.multi_reduction <add>, %10, %cst_7 [1] : vector<10x32xf32> to vector<10xf32>
    %12 = vector.shape_cast %11 : vector<10xf32> to vector<10x1xf32>
    %cst_8 = arith.constant 3.200000e+01 : f32
    %13 = vector.broadcast %cst_8 : f32 to vector<10x1xf32>
    %14 = arith.divf %12, %13 : vector<10x1xf32>
    %15 = vector.broadcast %7 : vector<10x1xf32> to vector<10x32xf32>
    %16 = arith.subf %1, %15 : vector<10x32xf32>
    %cst_9 = arith.constant 9.99999974E-6 : f32
    %17 = vector.broadcast %cst_9 : f32 to vector<10x1xf32>
    %18 = arith.addf %14, %17 : vector<10x1xf32>
    %19 = math.rsqrt %18 : vector<10x1xf32>
    %20 = vector.broadcast %19 : vector<10x1xf32> to vector<10x32xf32>
    %21 = arith.mulf %16, %20 : vector<10x32xf32>
    %22 = vector.broadcast %2 : vector<1x32xf32> to vector<10x32xf32>
    %23 = arith.mulf %21, %22 : vector<10x32xf32>
    %24 = vector.broadcast %3 : vector<1x32xf32> to vector<10x32xf32>
    %25 = arith.addf %23, %24 : vector<10x32xf32>
    %c0_10 = arith.constant 0 : index
    %c0_11 = arith.constant 0 : index
    %c0_12 = arith.constant 0 : index
    %26 = vector.load %arg4[%c0_10, %c0_11, %c0_12] : memref<1x10x32xf32, #tpu.memory_space<vmem>>, vector<1x10x32xf32>
    %27 = vector.shape_cast %26 : vector<1x10x32xf32> to vector<10x32xf32>
    %28 = vector.shape_cast %25 : vector<10x32xf32> to vector<1x10x32xf32>
    tpu.vector_store %arg4[%c0_10, %c0_11, %c0_12], %28 {strides = array<i32>} : memref<1x10x32xf32, #tpu.memory_space<vmem>>, vector<1x10x32xf32>,
    return
  }
  func.func @transform_0(%arg0: i32) -> (i32, i32, i32) {
    %c0_i32 = arith.constant 0 : i32
    %c0_i32_0 = arith.constant 0 : i32
    %c0_i32_1 = arith.constant 0 : i32
    return %arg0, %c0_i32, %c0_i32_0 : i32, i32, i32
  }
  func.func @transform_1(%arg0: i32) -> (i32, i32) {
    %c0_i32 = arith.constant 0 : i32
    %c0_i32_0 = arith.constant 0 : i32
    %c0_i32_1 = arith.constant 0 : i32
    return %c0_i32, %c0_i32_0 : i32, i32
  }
  func.func @transform_2(%arg0: i32) -> (i32, i32) {
    %c0_i32 = arith.constant 0 : i32
    %c0_i32_0 = arith.constant 0 : i32
    %c0_i32_1 = arith.constant 0 : i32
    return %c0_i32, %c0_i32_0 : i32, i32
  }
  func.func @transform_3(%arg0: i32) -> (i32, i32, i32) {
    %c0_i32 = arith.constant 0 : i32
    %c0_i32_0 = arith.constant 0 : i32
    %c0_i32_1 = arith.constant 0 : i32
    return %arg0, %c0_i32, %c0_i32_0 : i32, i32, i32
  }
}

module attributes {stable_mosaic.version = 11 : i64} {
  func.func @_decoder_layer_kernel(%arg0: i32, %arg1: memref<1x8x32xf32, #tpu.memory_space<vmem>>, %arg2: memref<1x10x32xf32, #tpu.memory_space<vmem>>, %arg3: memref<1x8x8xf32, #tpu.memory_space<vmem>>, %arg4: memref<1x1x10xf32, #tpu.memory_space<vmem>>, %arg5: memref<1x32xf32, #tpu.memory_space<vmem>>, %arg6: memref<1x32xf32, #tpu.memory_space<vmem>>, %arg7: memref<32x96xf32, #tpu.memory_space<vmem>>, %arg8: memref<1x96xf32, #tpu.memory_space<vmem>>, %arg9: memref<32x32xf32, #tpu.memory_space<vmem>>, %arg10: memref<1x32xf32, #tpu.memory_space<vmem>>, %arg11: memref<1x32xf32, #tpu.memory_space<vmem>>, %arg12: memref<1x32xf32, #tpu.memory_space<vmem>>, %arg13: memref<32x32xf32, #tpu.memory_space<vmem>>, %arg14: memref<1x32xf32, #tpu.memory_space<vmem>>, %arg15: memref<32x64xf32, #tpu.memory_space<vmem>>, %arg16: memref<1x64xf32, #tpu.memory_space<vmem>>, %arg17: memref<32x32xf32, #tpu.memory_space<vmem>>, %arg18: memref<1x32xf32, #tpu.memory_space<vmem>>, %arg19: memref<1x32xf32, #tpu.memory_space<vmem>>, %arg20: memref<1x32xf32, #tpu.memory_space<vmem>>, %arg21: memref<32x64xf32, #tpu.memory_space<vmem>>, %arg22: memref<1x64xf32, #tpu.memory_space<vmem>>, %arg23: memref<64x32xf32, #tpu.memory_space<vmem>>, %arg24: memref<1x32xf32, #tpu.memory_space<vmem>>, %arg25: memref<1x8x32xf32, #tpu.memory_space<vmem>>) attributes {dimension_semantics = [#tpu.dimension_semantics<parallel>], iteration_bounds = array<i64: 2>, scalar_prefetch = 0 : i64, scratch_operands = 0 : i64, tpu.core_type = #tpu.core_type<tc>, window_params = [{transform_indices = @transform_0, window_bounds = array<i64: 1, 8, 32>}, {transform_indices = @transform_1, window_bounds = array<i64: 1, 10, 32>}, {transform_indices = @transform_2, window_bounds = array<i64: 1, 8, 8>}, {transform_indices = @transform_3, window_bounds = array<i64: 1, 1, 10>}, {pipeline_mode = #tpu.pipeline_mode<synchronous>, transform_indices = @transform_4, window_bounds = array<i64: 1, 32>}, {pipeline_mode = #tpu.pipeline_mode<synchronous>, transform_indices = @transform_5, window_bounds = array<i64: 1, 32>}, {pipeline_mode = #tpu.pipeline_mode<synchronous>, transform_indices = @transform_6, window_bounds = array<i64: 32, 96>}, {pipeline_mode = #tpu.pipeline_mode<synchronous>, transform_indices = @transform_7, window_bounds = array<i64: 1, 96>}, {pipeline_mode = #tpu.pipeline_mode<synchronous>, transform_indices = @transform_8, window_bounds = array<i64: 32, 32>}, {pipeline_mode = #tpu.pipeline_mode<synchronous>, transform_indices = @transform_9, window_bounds = array<i64: 1, 32>}, {pipeline_mode = #tpu.pipeline_mode<synchronous>, transform_indices = @transform_10, window_bounds = array<i64: 1, 32>}, {pipeline_mode = #tpu.pipeline_mode<synchronous>, transform_indices = @transform_11, window_bounds = array<i64: 1, 32>}, {pipeline_mode = #tpu.pipeline_mode<synchronous>, transform_indices = @transform_12, window_bounds = array<i64: 32, 32>}, {pipeline_mode = #tpu.pipeline_mode<synchronous>, transform_indices = @transform_13, window_bounds = array<i64: 1, 32>}, {pipeline_mode = #tpu.pipeline_mode<synchronous>, transform_indices = @transform_14, window_bounds = array<i64: 32, 64>}, {pipeline_mode = #tpu.pipeline_mode<synchronous>, transform_indices = @transform_15, window_bounds = array<i64: 1, 64>}, {pipeline_mode = #tpu.pipeline_mode<synchronous>, transform_indices = @transform_16, window_bounds = array<i64: 32, 32>}, {pipeline_mode = #tpu.pipeline_mode<synchronous>, transform_indices = @transform_17, window_bounds = array<i64: 1, 32>}, {pipeline_mode = #tpu.pipeline_mode<synchronous>, transform_indices = @transform_18, window_bounds = array<i64: 1, 32>}, {pipeline_mode = #tpu.pipeline_mode<synchronous>, transform_indices = @transform_19, window_bounds = array<i64: 1, 32>}, {pipeline_mode = #tpu.pipeline_mode<synchronous>, transform_indices = @transform_20, window_bounds = array<i64: 32, 64>}, {pipeline_mode = #tpu.pipeline_mode<synchronous>, transform_indices = @transform_21, window_bounds = array<i64: 1, 64>}, {pipeline_mode = #tpu.pipeline_mode<synchronous>, transform_indices = @transform_22, window_bounds = array<i64: 64, 32>}, {pipeline_mode = #tpu.pipeline_mode<synchronous>, transform_indices = @transform_23, window_bounds = array<i64: 1, 32>}, {transform_indices = @transform_24, window_bounds = array<i64: 1, 8, 32>}]} {
    %c0 = arith.constant 0 : index
    %c0_0 = arith.constant 0 : index
    %c0_1 = arith.constant 0 : index
    %0 = vector.load %arg1[%c0, %c0_0, %c0_1] : memref<1x8x32xf32, #tpu.memory_space<vmem>>, vector<1x8x32xf32>
    %1 = vector.shape_cast %0 : vector<1x8x32xf32> to vector<8x32xf32>
    %c0_2 = arith.constant 0 : index
    %c0_3 = arith.constant 0 : index
    %c0_4 = arith.constant 0 : index
    %2 = vector.load %arg2[%c0_2, %c0_3, %c0_4] : memref<1x10x32xf32, #tpu.memory_space<vmem>>, vector<1x10x32xf32>
    %3 = vector.shape_cast %2 : vector<1x10x32xf32> to vector<10x32xf32>
    %c0_5 = arith.constant 0 : index
    %c0_6 = arith.constant 0 : index
    %c0_7 = arith.constant 0 : index
    %4 = vector.load %arg3[%c0_5, %c0_6, %c0_7] : memref<1x8x8xf32, #tpu.memory_space<vmem>>, vector<1x8x8xf32>
    %5 = vector.shape_cast %4 : vector<1x8x8xf32> to vector<8x8xf32>
    %c0_8 = arith.constant 0 : index
    %c0_9 = arith.constant 0 : index
    %c0_10 = arith.constant 0 : index
    %6 = vector.load %arg4[%c0_8, %c0_9, %c0_10] : memref<1x1x10xf32, #tpu.memory_space<vmem>>, vector<1x1x10xf32>
    %7 = vector.shape_cast %6 : vector<1x1x10xf32> to vector<1x10xf32>
    %c0_11 = arith.constant 0 : index
    %c0_12 = arith.constant 0 : index
    %8 = vector.load %arg5[%c0_11, %c0_12] : memref<1x32xf32, #tpu.memory_space<vmem>>, vector<1x32xf32>
    %c0_13 = arith.constant 0 : index
    %c0_14 = arith.constant 0 : index
    %9 = vector.load %arg6[%c0_13, %c0_14] : memref<1x32xf32, #tpu.memory_space<vmem>>, vector<1x32xf32>
    %cst = arith.constant dense<0.000000e+00> : vector<8xf32>
    %10 = vector.multi_reduction <add>, %1, %cst [1] : vector<8x32xf32> to vector<8xf32>
    %11 = vector.shape_cast %10 : vector<8xf32> to vector<8x1xf32>
    %cst_15 = arith.constant 3.200000e+01 : f32
    %12 = vector.broadcast %cst_15 : f32 to vector<8x1xf32>
    %13 = arith.divf %11, %12 : vector<8x1xf32>
    %14 = vector.broadcast %13 : vector<8x1xf32> to vector<8x32xf32>
    %15 = arith.subf %1, %14 : vector<8x32xf32>
    %16 = arith.mulf %15, %15 : vector<8x32xf32>
    %cst_16 = arith.constant dense<0.000000e+00> : vector<8xf32>
    %17 = vector.multi_reduction <add>, %16, %cst_16 [1] : vector<8x32xf32> to vector<8xf32>
    %18 = vector.shape_cast %17 : vector<8xf32> to vector<8x1xf32>
    %cst_17 = arith.constant 3.200000e+01 : f32
    %19 = vector.broadcast %cst_17 : f32 to vector<8x1xf32>
    %20 = arith.divf %18, %19 : vector<8x1xf32>
    %21 = vector.broadcast %13 : vector<8x1xf32> to vector<8x32xf32>
    %22 = arith.subf %1, %21 : vector<8x32xf32>
    %cst_18 = arith.constant 9.99999974E-6 : f32
    %23 = vector.broadcast %cst_18 : f32 to vector<8x1xf32>
    %24 = arith.addf %20, %23 : vector<8x1xf32>
    %25 = math.rsqrt %24 : vector<8x1xf32>
    %26 = vector.broadcast %25 : vector<8x1xf32> to vector<8x32xf32>
    %27 = arith.mulf %22, %26 : vector<8x32xf32>
    %28 = vector.broadcast %8 : vector<1x32xf32> to vector<8x32xf32>
    %29 = arith.mulf %27, %28 : vector<8x32xf32>
    %30 = vector.broadcast %9 : vector<1x32xf32> to vector<8x32xf32>
    %31 = arith.addf %29, %30 : vector<8x32xf32>
    %c0_19 = arith.constant 0 : index
    %c0_20 = arith.constant 0 : index
    %32 = vector.load %arg7[%c0_19, %c0_20] : memref<32x96xf32, #tpu.memory_space<vmem>>, vector<32x96xf32>
    %cst_21 = arith.constant dense<0.000000e+00> : vector<8x96xf32>
    %33 = tpu.matmul %31, %32, %cst_21 {dimension_numbers = #tpu.dot_dimension_numbers<[1], [0], [0], [1], [0, 0, 1, 1], [], []>} : vector<8x32xf32>, vector<32x96xf32>, vector<8x96xf32> -> vector<8x96xf32>
    %c0_22 = arith.constant 0 : index
    %c0_23 = arith.constant 0 : index
    %34 = vector.load %arg8[%c0_22, %c0_23] : memref<1x96xf32, #tpu.memory_space<vmem>>, vector<1x96xf32>
    %35 = vector.broadcast %34 : vector<1x96xf32> to vector<8x96xf32>
    %36 = arith.addf %33, %35 : vector<8x96xf32>
    %37 = vector.extract_strided_slice %36 {offsets = [0, 0], sizes = [8, 32], strides = [1, 1]} : vector<8x96xf32> to vector<8x32xf32>
    %38 = vector.extract_strided_slice %36 {offsets = [0, 32], sizes = [8, 32], strides = [1, 1]} : vector<8x96xf32> to vector<8x32xf32>
    %39 = vector.extract_strided_slice %36 {offsets = [0, 64], sizes = [8, 32], strides = [1, 1]} : vector<8x96xf32> to vector<8x32xf32>
    %c0_24 = arith.constant 0 : index
    %c0_25 = arith.constant 0 : index
    %40 = vector.load %arg9[%c0_24, %c0_25] : memref<32x32xf32, #tpu.memory_space<vmem>>, vector<32x32xf32>
    %c0_26 = arith.constant 0 : index
    %c0_27 = arith.constant 0 : index
    %41 = vector.load %arg10[%c0_26, %c0_27] : memref<1x32xf32, #tpu.memory_space<vmem>>, vector<1x32xf32>
    %42 = vector.extract_strided_slice %37 {offsets = [0, 0], sizes = [8, 8], strides = [1, 1]} : vector<8x32xf32> to vector<8x8xf32>
    %43 = vector.extract_strided_slice %38 {offsets = [0, 0], sizes = [8, 8], strides = [1, 1]} : vector<8x32xf32> to vector<8x8xf32>
    %44 = vector.extract_strided_slice %39 {offsets = [0, 0], sizes = [8, 8], strides = [1, 1]} : vector<8x32xf32> to vector<8x8xf32>
    %cst_28 = arith.constant dense<0.000000e+00> : vector<8x8xf32>
    %45 = tpu.matmul %42, %43, %cst_28 {dimension_numbers = #tpu.dot_dimension_numbers<[1], [1], [0], [0], [0, 0, 1, 0], [], []>} : vector<8x8xf32>, vector<8x8xf32>, vector<8x8xf32> -> vector<8x8xf32>
    %cst_29 = arith.constant 0.353553385 : f32
    %46 = vector.broadcast %cst_29 : f32 to vector<8x8xf32>
    %47 = arith.mulf %45, %46 : vector<8x8xf32>
    %48 = arith.addf %47, %5 : vector<8x8xf32>
    %cst_30 = arith.constant dense<0xFF800000> : vector<8xf32>
    %49 = vector.multi_reduction <maximumf>, %48, %cst_30 [1] : vector<8x8xf32> to vector<8xf32>
    %50 = vector.shape_cast %49 : vector<8xf32> to vector<8x1xf32>
    %51 = vector.broadcast %50 : vector<8x1xf32> to vector<8x8xf32>
    %52 = arith.subf %48, %51 : vector<8x8xf32>
    %53 = math.exp %52 : vector<8x8xf32>
    %cst_31 = arith.constant dense<0.000000e+00> : vector<8xf32>
    %54 = vector.multi_reduction <add>, %53, %cst_31 [1] : vector<8x8xf32> to vector<8xf32>
    %55 = vector.shape_cast %54 : vector<8xf32> to vector<8x1xf32>
    %56 = tpu.reciprocal %55 {approx = true} : vector<8x1xf32> -> vector<8x1xf32>
    %57 = vector.broadcast %56 : vector<8x1xf32> to vector<8x8xf32>
    %58 = arith.mulf %53, %57 : vector<8x8xf32>
    %cst_32 = arith.constant dense<0.000000e+00> : vector<8x8xf32>
    %59 = tpu.matmul %58, %44, %cst_32 {dimension_numbers = #tpu.dot_dimension_numbers<[1], [0], [0], [1], [0, 0, 1, 1], [], []>} : vector<8x8xf32>, vector<8x8xf32>, vector<8x8xf32> -> vector<8x8xf32>
    %60 = vector.extract_strided_slice %40 {offsets = [0, 0], sizes = [8, 32], strides = [1, 1]} : vector<32x32xf32> to vector<8x32xf32>
    %cst_33 = arith.constant dense<0.000000e+00> : vector<8x32xf32>
    %61 = tpu.matmul %59, %60, %cst_33 {dimension_numbers = #tpu.dot_dimension_numbers<[1], [0], [0], [1], [0, 0, 1, 1], [], []>} : vector<8x8xf32>, vector<8x32xf32>, vector<8x32xf32> -> vector<8x32xf32>
    %62 = vector.extract_strided_slice %37 {offsets = [0, 8], sizes = [8, 8], strides = [1, 1]} : vector<8x32xf32> to vector<8x8xf32>
    %63 = vector.extract_strided_slice %38 {offsets = [0, 8], sizes = [8, 8], strides = [1, 1]} : vector<8x32xf32> to vector<8x8xf32>
    %64 = vector.extract_strided_slice %39 {offsets = [0, 8], sizes = [8, 8], strides = [1, 1]} : vector<8x32xf32> to vector<8x8xf32>
    %cst_34 = arith.constant dense<0.000000e+00> : vector<8x8xf32>
    %65 = tpu.matmul %62, %63, %cst_34 {dimension_numbers = #tpu.dot_dimension_numbers<[1], [1], [0], [0], [0, 0, 1, 0], [], []>} : vector<8x8xf32>, vector<8x8xf32>, vector<8x8xf32> -> vector<8x8xf32>
    %cst_35 = arith.constant 0.353553385 : f32
    %66 = vector.broadcast %cst_35 : f32 to vector<8x8xf32>
    %67 = arith.mulf %65, %66 : vector<8x8xf32>
    %68 = arith.addf %67, %5 : vector<8x8xf32>
    %cst_36 = arith.constant dense<0xFF800000> : vector<8xf32>
    %69 = vector.multi_reduction <maximumf>, %68, %cst_36 [1] : vector<8x8xf32> to vector<8xf32>
    %70 = vector.shape_cast %69 : vector<8xf32> to vector<8x1xf32>
    %71 = vector.broadcast %70 : vector<8x1xf32> to vector<8x8xf32>
    %72 = arith.subf %68, %71 : vector<8x8xf32>
    %73 = math.exp %72 : vector<8x8xf32>
    %cst_37 = arith.constant dense<0.000000e+00> : vector<8xf32>
    %74 = vector.multi_reduction <add>, %73, %cst_37 [1] : vector<8x8xf32> to vector<8xf32>
    %75 = vector.shape_cast %74 : vector<8xf32> to vector<8x1xf32>
    %76 = tpu.reciprocal %75 {approx = true} : vector<8x1xf32> -> vector<8x1xf32>
    %77 = vector.broadcast %76 : vector<8x1xf32> to vector<8x8xf32>
    %78 = arith.mulf %73, %77 : vector<8x8xf32>
    %cst_38 = arith.constant dense<0.000000e+00> : vector<8x8xf32>
    %79 = tpu.matmul %78, %64, %cst_38 {dimension_numbers = #tpu.dot_dimension_numbers<[1], [0], [0], [1], [0, 0, 1, 1], [], []>} : vector<8x8xf32>, vector<8x8xf32>, vector<8x8xf32> -> vector<8x8xf32>
    %80 = vector.extract_strided_slice %40 {offsets = [8, 0], sizes = [8, 32], strides = [1, 1]} : vector<32x32xf32> to vector<8x32xf32>
    %cst_39 = arith.constant dense<0.000000e+00> : vector<8x32xf32>
    %81 = tpu.matmul %79, %80, %cst_39 {dimension_numbers = #tpu.dot_dimension_numbers<[1], [0], [0], [1], [0, 0, 1, 1], [], []>} : vector<8x8xf32>, vector<8x32xf32>, vector<8x32xf32> -> vector<8x32xf32>
    %82 = arith.addf %61, %81 : vector<8x32xf32>
    %83 = vector.extract_strided_slice %37 {offsets = [0, 16], sizes = [8, 8], strides = [1, 1]} : vector<8x32xf32> to vector<8x8xf32>
    %84 = vector.extract_strided_slice %38 {offsets = [0, 16], sizes = [8, 8], strides = [1, 1]} : vector<8x32xf32> to vector<8x8xf32>
    %85 = vector.extract_strided_slice %39 {offsets = [0, 16], sizes = [8, 8], strides = [1, 1]} : vector<8x32xf32> to vector<8x8xf32>
    %cst_40 = arith.constant dense<0.000000e+00> : vector<8x8xf32>
    %86 = tpu.matmul %83, %84, %cst_40 {dimension_numbers = #tpu.dot_dimension_numbers<[1], [1], [0], [0], [0, 0, 1, 0], [], []>} : vector<8x8xf32>, vector<8x8xf32>, vector<8x8xf32> -> vector<8x8xf32>
    %cst_41 = arith.constant 0.353553385 : f32
    %87 = vector.broadcast %cst_41 : f32 to vector<8x8xf32>
    %88 = arith.mulf %86, %87 : vector<8x8xf32>
    %89 = arith.addf %88, %5 : vector<8x8xf32>
    %cst_42 = arith.constant dense<0xFF800000> : vector<8xf32>
    %90 = vector.multi_reduction <maximumf>, %89, %cst_42 [1] : vector<8x8xf32> to vector<8xf32>
    %91 = vector.shape_cast %90 : vector<8xf32> to vector<8x1xf32>
    %92 = vector.broadcast %91 : vector<8x1xf32> to vector<8x8xf32>
    %93 = arith.subf %89, %92 : vector<8x8xf32>
    %94 = math.exp %93 : vector<8x8xf32>
    %cst_43 = arith.constant dense<0.000000e+00> : vector<8xf32>
    %95 = vector.multi_reduction <add>, %94, %cst_43 [1] : vector<8x8xf32> to vector<8xf32>
    %96 = vector.shape_cast %95 : vector<8xf32> to vector<8x1xf32>
    %97 = tpu.reciprocal %96 {approx = true} : vector<8x1xf32> -> vector<8x1xf32>
    %98 = vector.broadcast %97 : vector<8x1xf32> to vector<8x8xf32>
    %99 = arith.mulf %94, %98 : vector<8x8xf32>
    %cst_44 = arith.constant dense<0.000000e+00> : vector<8x8xf32>
    %100 = tpu.matmul %99, %85, %cst_44 {dimension_numbers = #tpu.dot_dimension_numbers<[1], [0], [0], [1], [0, 0, 1, 1], [], []>} : vector<8x8xf32>, vector<8x8xf32>, vector<8x8xf32> -> vector<8x8xf32>
    %101 = vector.extract_strided_slice %40 {offsets = [16, 0], sizes = [8, 32], strides = [1, 1]} : vector<32x32xf32> to vector<8x32xf32>
    %cst_45 = arith.constant dense<0.000000e+00> : vector<8x32xf32>
    %102 = tpu.matmul %100, %101, %cst_45 {dimension_numbers = #tpu.dot_dimension_numbers<[1], [0], [0], [1], [0, 0, 1, 1], [], []>} : vector<8x8xf32>, vector<8x32xf32>, vector<8x32xf32> -> vector<8x32xf32>
    %103 = arith.addf %82, %102 : vector<8x32xf32>
    %104 = vector.extract_strided_slice %37 {offsets = [0, 24], sizes = [8, 8], strides = [1, 1]} : vector<8x32xf32> to vector<8x8xf32>
    %105 = vector.extract_strided_slice %38 {offsets = [0, 24], sizes = [8, 8], strides = [1, 1]} : vector<8x32xf32> to vector<8x8xf32>
    %106 = vector.extract_strided_slice %39 {offsets = [0, 24], sizes = [8, 8], strides = [1, 1]} : vector<8x32xf32> to vector<8x8xf32>
    %cst_46 = arith.constant dense<0.000000e+00> : vector<8x8xf32>
    %107 = tpu.matmul %104, %105, %cst_46 {dimension_numbers = #tpu.dot_dimension_numbers<[1], [1], [0], [0], [0, 0, 1, 0], [], []>} : vector<8x8xf32>, vector<8x8xf32>, vector<8x8xf32> -> vector<8x8xf32>
    %cst_47 = arith.constant 0.353553385 : f32
    %108 = vector.broadcast %cst_47 : f32 to vector<8x8xf32>
    %109 = arith.mulf %107, %108 : vector<8x8xf32>
    %110 = arith.addf %109, %5 : vector<8x8xf32>
    %cst_48 = arith.constant dense<0xFF800000> : vector<8xf32>
    %111 = vector.multi_reduction <maximumf>, %110, %cst_48 [1] : vector<8x8xf32> to vector<8xf32>
    %112 = vector.shape_cast %111 : vector<8xf32> to vector<8x1xf32>
    %113 = vector.broadcast %112 : vector<8x1xf32> to vector<8x8xf32>
    %114 = arith.subf %110, %113 : vector<8x8xf32>
    %115 = math.exp %114 : vector<8x8xf32>
    %cst_49 = arith.constant dense<0.000000e+00> : vector<8xf32>
    %116 = vector.multi_reduction <add>, %115, %cst_49 [1] : vector<8x8xf32> to vector<8xf32>
    %117 = vector.shape_cast %116 : vector<8xf32> to vector<8x1xf32>
    %118 = tpu.reciprocal %117 {approx = true} : vector<8x1xf32> -> vector<8x1xf32>
    %119 = vector.broadcast %118 : vector<8x1xf32> to vector<8x8xf32>
    %120 = arith.mulf %115, %119 : vector<8x8xf32>
    %cst_50 = arith.constant dense<0.000000e+00> : vector<8x8xf32>
    %121 = tpu.matmul %120, %106, %cst_50 {dimension_numbers = #tpu.dot_dimension_numbers<[1], [0], [0], [1], [0, 0, 1, 1], [], []>} : vector<8x8xf32>, vector<8x8xf32>, vector<8x8xf32> -> vector<8x8xf32>
    %122 = vector.extract_strided_slice %40 {offsets = [24, 0], sizes = [8, 32], strides = [1, 1]} : vector<32x32xf32> to vector<8x32xf32>
    %cst_51 = arith.constant dense<0.000000e+00> : vector<8x32xf32>
    %123 = tpu.matmul %121, %122, %cst_51 {dimension_numbers = #tpu.dot_dimension_numbers<[1], [0], [0], [1], [0, 0, 1, 1], [], []>} : vector<8x8xf32>, vector<8x32xf32>, vector<8x32xf32> -> vector<8x32xf32>
    %124 = arith.addf %103, %123 : vector<8x32xf32>
    %125 = vector.broadcast %41 : vector<1x32xf32> to vector<8x32xf32>
    %126 = arith.addf %124, %125 : vector<8x32xf32>
    %127 = arith.addf %1, %126 : vector<8x32xf32>
    %c0_52 = arith.constant 0 : index
    %c0_53 = arith.constant 0 : index
    %128 = vector.load %arg11[%c0_52, %c0_53] : memref<1x32xf32, #tpu.memory_space<vmem>>, vector<1x32xf32>
    %c0_54 = arith.constant 0 : index
    %c0_55 = arith.constant 0 : index
    %129 = vector.load %arg12[%c0_54, %c0_55] : memref<1x32xf32, #tpu.memory_space<vmem>>, vector<1x32xf32>
    %cst_56 = arith.constant dense<0.000000e+00> : vector<8xf32>
    %130 = vector.multi_reduction <add>, %127, %cst_56 [1] : vector<8x32xf32> to vector<8xf32>
    %131 = vector.shape_cast %130 : vector<8xf32> to vector<8x1xf32>
    %cst_57 = arith.constant 3.200000e+01 : f32
    %132 = vector.broadcast %cst_57 : f32 to vector<8x1xf32>
    %133 = arith.divf %131, %132 : vector<8x1xf32>
    %134 = vector.broadcast %133 : vector<8x1xf32> to vector<8x32xf32>
    %135 = arith.subf %127, %134 : vector<8x32xf32>
    %136 = arith.mulf %135, %135 : vector<8x32xf32>
    %cst_58 = arith.constant dense<0.000000e+00> : vector<8xf32>
    %137 = vector.multi_reduction <add>, %136, %cst_58 [1] : vector<8x32xf32> to vector<8xf32>
    %138 = vector.shape_cast %137 : vector<8xf32> to vector<8x1xf32>
    %cst_59 = arith.constant 3.200000e+01 : f32
    %139 = vector.broadcast %cst_59 : f32 to vector<8x1xf32>
    %140 = arith.divf %138, %139 : vector<8x1xf32>
    %141 = vector.broadcast %133 : vector<8x1xf32> to vector<8x32xf32>
    %142 = arith.subf %127, %141 : vector<8x32xf32>
    %cst_60 = arith.constant 9.99999974E-6 : f32
    %143 = vector.broadcast %cst_60 : f32 to vector<8x1xf32>
    %144 = arith.addf %140, %143 : vector<8x1xf32>
    %145 = math.rsqrt %144 : vector<8x1xf32>
    %146 = vector.broadcast %145 : vector<8x1xf32> to vector<8x32xf32>
    %147 = arith.mulf %142, %146 : vector<8x32xf32>
    %148 = vector.broadcast %128 : vector<1x32xf32> to vector<8x32xf32>
    %149 = arith.mulf %147, %148 : vector<8x32xf32>
    %150 = vector.broadcast %129 : vector<1x32xf32> to vector<8x32xf32>
    %151 = arith.addf %149, %150 : vector<8x32xf32>
    %c0_61 = arith.constant 0 : index
    %c0_62 = arith.constant 0 : index
    %152 = vector.load %arg13[%c0_61, %c0_62] : memref<32x32xf32, #tpu.memory_space<vmem>>, vector<32x32xf32>
    %cst_63 = arith.constant dense<0.000000e+00> : vector<8x32xf32>
    %153 = tpu.matmul %151, %152, %cst_63 {dimension_numbers = #tpu.dot_dimension_numbers<[1], [0], [0], [1], [0, 0, 1, 1], [], []>} : vector<8x32xf32>, vector<32x32xf32>, vector<8x32xf32> -> vector<8x32xf32>
    %c0_64 = arith.constant 0 : index
    %c0_65 = arith.constant 0 : index
    %154 = vector.load %arg14[%c0_64, %c0_65] : memref<1x32xf32, #tpu.memory_space<vmem>>, vector<1x32xf32>
    %155 = vector.broadcast %154 : vector<1x32xf32> to vector<8x32xf32>
    %156 = arith.addf %153, %155 : vector<8x32xf32>
    %c0_66 = arith.constant 0 : index
    %c0_67 = arith.constant 0 : index
    %157 = vector.load %arg15[%c0_66, %c0_67] : memref<32x64xf32, #tpu.memory_space<vmem>>, vector<32x64xf32>
    %cst_68 = arith.constant dense<0.000000e+00> : vector<10x64xf32>
    %158 = tpu.matmul %3, %157, %cst_68 {dimension_numbers = #tpu.dot_dimension_numbers<[1], [0], [0], [1], [0, 0, 1, 1], [], []>} : vector<10x32xf32>, vector<32x64xf32>, vector<10x64xf32> -> vector<10x64xf32>
    %c0_69 = arith.constant 0 : index
    %c0_70 = arith.constant 0 : index
    %159 = vector.load %arg16[%c0_69, %c0_70] : memref<1x64xf32, #tpu.memory_space<vmem>>, vector<1x64xf32>
    %160 = vector.broadcast %159 : vector<1x64xf32> to vector<10x64xf32>
    %161 = arith.addf %158, %160 : vector<10x64xf32>
    %162 = vector.extract_strided_slice %161 {offsets = [0, 0], sizes = [10, 32], strides = [1, 1]} : vector<10x64xf32> to vector<10x32xf32>
    %163 = vector.extract_strided_slice %161 {offsets = [0, 32], sizes = [10, 32], strides = [1, 1]} : vector<10x64xf32> to vector<10x32xf32>
    %c0_71 = arith.constant 0 : index
    %c0_72 = arith.constant 0 : index
    %164 = vector.load %arg17[%c0_71, %c0_72] : memref<32x32xf32, #tpu.memory_space<vmem>>, vector<32x32xf32>
    %c0_73 = arith.constant 0 : index
    %c0_74 = arith.constant 0 : index
    %165 = vector.load %arg18[%c0_73, %c0_74] : memref<1x32xf32, #tpu.memory_space<vmem>>, vector<1x32xf32>
    %166 = vector.extract_strided_slice %156 {offsets = [0, 0], sizes = [8, 8], strides = [1, 1]} : vector<8x32xf32> to vector<8x8xf32>
    %167 = vector.extract_strided_slice %162 {offsets = [0, 0], sizes = [10, 8], strides = [1, 1]} : vector<10x32xf32> to vector<10x8xf32>
    %168 = vector.extract_strided_slice %163 {offsets = [0, 0], sizes = [10, 8], strides = [1, 1]} : vector<10x32xf32> to vector<10x8xf32>
    %cst_75 = arith.constant dense<0.000000e+00> : vector<8x10xf32>
    %169 = tpu.matmul %166, %167, %cst_75 {dimension_numbers = #tpu.dot_dimension_numbers<[1], [1], [0], [0], [0, 0, 1, 0], [], []>} : vector<8x8xf32>, vector<10x8xf32>, vector<8x10xf32> -> vector<8x10xf32>
    %cst_76 = arith.constant 0.353553385 : f32
    %170 = vector.broadcast %cst_76 : f32 to vector<8x10xf32>
    %171 = arith.mulf %169, %170 : vector<8x10xf32>
    %172 = vector.broadcast %7 : vector<1x10xf32> to vector<8x10xf32>
    %173 = arith.addf %171, %172 : vector<8x10xf32>
    %cst_77 = arith.constant dense<0xFF800000> : vector<8xf32>
    %174 = vector.multi_reduction <maximumf>, %173, %cst_77 [1] : vector<8x10xf32> to vector<8xf32>
    %175 = vector.shape_cast %174 : vector<8xf32> to vector<8x1xf32>
    %176 = vector.broadcast %175 : vector<8x1xf32> to vector<8x10xf32>
    %177 = arith.subf %173, %176 : vector<8x10xf32>
    %178 = math.exp %177 : vector<8x10xf32>
    %cst_78 = arith.constant dense<0.000000e+00> : vector<8xf32>
    %179 = vector.multi_reduction <add>, %178, %cst_78 [1] : vector<8x10xf32> to vector<8xf32>
    %180 = vector.shape_cast %179 : vector<8xf32> to vector<8x1xf32>
    %181 = tpu.reciprocal %180 {approx = true} : vector<8x1xf32> -> vector<8x1xf32>
    %182 = vector.broadcast %181 : vector<8x1xf32> to vector<8x10xf32>
    %183 = arith.mulf %178, %182 : vector<8x10xf32>
    %cst_79 = arith.constant dense<0.000000e+00> : vector<8x8xf32>
    %184 = tpu.matmul %183, %168, %cst_79 {dimension_numbers = #tpu.dot_dimension_numbers<[1], [0], [0], [1], [0, 0, 1, 1], [], []>} : vector<8x10xf32>, vector<10x8xf32>, vector<8x8xf32> -> vector<8x8xf32>
    %185 = vector.extract_strided_slice %164 {offsets = [0, 0], sizes = [8, 32], strides = [1, 1]} : vector<32x32xf32> to vector<8x32xf32>
    %cst_80 = arith.constant dense<0.000000e+00> : vector<8x32xf32>
    %186 = tpu.matmul %184, %185, %cst_80 {dimension_numbers = #tpu.dot_dimension_numbers<[1], [0], [0], [1], [0, 0, 1, 1], [], []>} : vector<8x8xf32>, vector<8x32xf32>, vector<8x32xf32> -> vector<8x32xf32>
    %187 = vector.extract_strided_slice %156 {offsets = [0, 8], sizes = [8, 8], strides = [1, 1]} : vector<8x32xf32> to vector<8x8xf32>
    %188 = vector.extract_strided_slice %162 {offsets = [0, 8], sizes = [10, 8], strides = [1, 1]} : vector<10x32xf32> to vector<10x8xf32>
    %189 = vector.extract_strided_slice %163 {offsets = [0, 8], sizes = [10, 8], strides = [1, 1]} : vector<10x32xf32> to vector<10x8xf32>
    %cst_81 = arith.constant dense<0.000000e+00> : vector<8x10xf32>
    %190 = tpu.matmul %187, %188, %cst_81 {dimension_numbers = #tpu.dot_dimension_numbers<[1], [1], [0], [0], [0, 0, 1, 0], [], []>} : vector<8x8xf32>, vector<10x8xf32>, vector<8x10xf32> -> vector<8x10xf32>
    %cst_82 = arith.constant 0.353553385 : f32
    %191 = vector.broadcast %cst_82 : f32 to vector<8x10xf32>
    %192 = arith.mulf %190, %191 : vector<8x10xf32>
    %193 = vector.broadcast %7 : vector<1x10xf32> to vector<8x10xf32>
    %194 = arith.addf %192, %193 : vector<8x10xf32>
    %cst_83 = arith.constant dense<0xFF800000> : vector<8xf32>
    %195 = vector.multi_reduction <maximumf>, %194, %cst_83 [1] : vector<8x10xf32> to vector<8xf32>
    %196 = vector.shape_cast %195 : vector<8xf32> to vector<8x1xf32>
    %197 = vector.broadcast %196 : vector<8x1xf32> to vector<8x10xf32>
    %198 = arith.subf %194, %197 : vector<8x10xf32>
    %199 = math.exp %198 : vector<8x10xf32>
    %cst_84 = arith.constant dense<0.000000e+00> : vector<8xf32>
    %200 = vector.multi_reduction <add>, %199, %cst_84 [1] : vector<8x10xf32> to vector<8xf32>
    %201 = vector.shape_cast %200 : vector<8xf32> to vector<8x1xf32>
    %202 = tpu.reciprocal %201 {approx = true} : vector<8x1xf32> -> vector<8x1xf32>
    %203 = vector.broadcast %202 : vector<8x1xf32> to vector<8x10xf32>
    %204 = arith.mulf %199, %203 : vector<8x10xf32>
    %cst_85 = arith.constant dense<0.000000e+00> : vector<8x8xf32>
    %205 = tpu.matmul %204, %189, %cst_85 {dimension_numbers = #tpu.dot_dimension_numbers<[1], [0], [0], [1], [0, 0, 1, 1], [], []>} : vector<8x10xf32>, vector<10x8xf32>, vector<8x8xf32> -> vector<8x8xf32>
    %206 = vector.extract_strided_slice %164 {offsets = [8, 0], sizes = [8, 32], strides = [1, 1]} : vector<32x32xf32> to vector<8x32xf32>
    %cst_86 = arith.constant dense<0.000000e+00> : vector<8x32xf32>
    %207 = tpu.matmul %205, %206, %cst_86 {dimension_numbers = #tpu.dot_dimension_numbers<[1], [0], [0], [1], [0, 0, 1, 1], [], []>} : vector<8x8xf32>, vector<8x32xf32>, vector<8x32xf32> -> vector<8x32xf32>
    %208 = arith.addf %186, %207 : vector<8x32xf32>
    %209 = vector.extract_strided_slice %156 {offsets = [0, 16], sizes = [8, 8], strides = [1, 1]} : vector<8x32xf32> to vector<8x8xf32>
    %210 = vector.extract_strided_slice %162 {offsets = [0, 16], sizes = [10, 8], strides = [1, 1]} : vector<10x32xf32> to vector<10x8xf32>
    %211 = vector.extract_strided_slice %163 {offsets = [0, 16], sizes = [10, 8], strides = [1, 1]} : vector<10x32xf32> to vector<10x8xf32>
    %cst_87 = arith.constant dense<0.000000e+00> : vector<8x10xf32>
    %212 = tpu.matmul %209, %210, %cst_87 {dimension_numbers = #tpu.dot_dimension_numbers<[1], [1], [0], [0], [0, 0, 1, 0], [], []>} : vector<8x8xf32>, vector<10x8xf32>, vector<8x10xf32> -> vector<8x10xf32>
    %cst_88 = arith.constant 0.353553385 : f32
    %213 = vector.broadcast %cst_88 : f32 to vector<8x10xf32>
    %214 = arith.mulf %212, %213 : vector<8x10xf32>
    %215 = vector.broadcast %7 : vector<1x10xf32> to vector<8x10xf32>
    %216 = arith.addf %214, %215 : vector<8x10xf32>
    %cst_89 = arith.constant dense<0xFF800000> : vector<8xf32>
    %217 = vector.multi_reduction <maximumf>, %216, %cst_89 [1] : vector<8x10xf32> to vector<8xf32>
    %218 = vector.shape_cast %217 : vector<8xf32> to vector<8x1xf32>
    %219 = vector.broadcast %218 : vector<8x1xf32> to vector<8x10xf32>
    %220 = arith.subf %216, %219 : vector<8x10xf32>
    %221 = math.exp %220 : vector<8x10xf32>
    %cst_90 = arith.constant dense<0.000000e+00> : vector<8xf32>
    %222 = vector.multi_reduction <add>, %221, %cst_90 [1] : vector<8x10xf32> to vector<8xf32>
    %223 = vector.shape_cast %222 : vector<8xf32> to vector<8x1xf32>
    %224 = tpu.reciprocal %223 {approx = true} : vector<8x1xf32> -> vector<8x1xf32>
    %225 = vector.broadcast %224 : vector<8x1xf32> to vector<8x10xf32>
    %226 = arith.mulf %221, %225 : vector<8x10xf32>
    %cst_91 = arith.constant dense<0.000000e+00> : vector<8x8xf32>
    %227 = tpu.matmul %226, %211, %cst_91 {dimension_numbers = #tpu.dot_dimension_numbers<[1], [0], [0], [1], [0, 0, 1, 1], [], []>} : vector<8x10xf32>, vector<10x8xf32>, vector<8x8xf32> -> vector<8x8xf32>
    %228 = vector.extract_strided_slice %164 {offsets = [16, 0], sizes = [8, 32], strides = [1, 1]} : vector<32x32xf32> to vector<8x32xf32>
    %cst_92 = arith.constant dense<0.000000e+00> : vector<8x32xf32>
    %229 = tpu.matmul %227, %228, %cst_92 {dimension_numbers = #tpu.dot_dimension_numbers<[1], [0], [0], [1], [0, 0, 1, 1], [], []>} : vector<8x8xf32>, vector<8x32xf32>, vector<8x32xf32> -> vector<8x32xf32>
    %230 = arith.addf %208, %229 : vector<8x32xf32>
    %231 = vector.extract_strided_slice %156 {offsets = [0, 24], sizes = [8, 8], strides = [1, 1]} : vector<8x32xf32> to vector<8x8xf32>
    %232 = vector.extract_strided_slice %162 {offsets = [0, 24], sizes = [10, 8], strides = [1, 1]} : vector<10x32xf32> to vector<10x8xf32>
    %233 = vector.extract_strided_slice %163 {offsets = [0, 24], sizes = [10, 8], strides = [1, 1]} : vector<10x32xf32> to vector<10x8xf32>
    %cst_93 = arith.constant dense<0.000000e+00> : vector<8x10xf32>
    %234 = tpu.matmul %231, %232, %cst_93 {dimension_numbers = #tpu.dot_dimension_numbers<[1], [1], [0], [0], [0, 0, 1, 0], [], []>} : vector<8x8xf32>, vector<10x8xf32>, vector<8x10xf32> -> vector<8x10xf32>
    %cst_94 = arith.constant 0.353553385 : f32
    %235 = vector.broadcast %cst_94 : f32 to vector<8x10xf32>
    %236 = arith.mulf %234, %235 : vector<8x10xf32>
    %237 = vector.broadcast %7 : vector<1x10xf32> to vector<8x10xf32>
    %238 = arith.addf %236, %237 : vector<8x10xf32>
    %cst_95 = arith.constant dense<0xFF800000> : vector<8xf32>
    %239 = vector.multi_reduction <maximumf>, %238, %cst_95 [1] : vector<8x10xf32> to vector<8xf32>
    %240 = vector.shape_cast %239 : vector<8xf32> to vector<8x1xf32>
    %241 = vector.broadcast %240 : vector<8x1xf32> to vector<8x10xf32>
    %242 = arith.subf %238, %241 : vector<8x10xf32>
    %243 = math.exp %242 : vector<8x10xf32>
    %cst_96 = arith.constant dense<0.000000e+00> : vector<8xf32>
    %244 = vector.multi_reduction <add>, %243, %cst_96 [1] : vector<8x10xf32> to vector<8xf32>
    %245 = vector.shape_cast %244 : vector<8xf32> to vector<8x1xf32>
    %246 = tpu.reciprocal %245 {approx = true} : vector<8x1xf32> -> vector<8x1xf32>
    %247 = vector.broadcast %246 : vector<8x1xf32> to vector<8x10xf32>
    %248 = arith.mulf %243, %247 : vector<8x10xf32>
    %cst_97 = arith.constant dense<0.000000e+00> : vector<8x8xf32>
    %249 = tpu.matmul %248, %233, %cst_97 {dimension_numbers = #tpu.dot_dimension_numbers<[1], [0], [0], [1], [0, 0, 1, 1], [], []>} : vector<8x10xf32>, vector<10x8xf32>, vector<8x8xf32> -> vector<8x8xf32>
    %250 = vector.extract_strided_slice %164 {offsets = [24, 0], sizes = [8, 32], strides = [1, 1]} : vector<32x32xf32> to vector<8x32xf32>
    %cst_98 = arith.constant dense<0.000000e+00> : vector<8x32xf32>
    %251 = tpu.matmul %249, %250, %cst_98 {dimension_numbers = #tpu.dot_dimension_numbers<[1], [0], [0], [1], [0, 0, 1, 1], [], []>} : vector<8x8xf32>, vector<8x32xf32>, vector<8x32xf32> -> vector<8x32xf32>
    %252 = arith.addf %230, %251 : vector<8x32xf32>
    %253 = vector.broadcast %165 : vector<1x32xf32> to vector<8x32xf32>
    %254 = arith.addf %252, %253 : vector<8x32xf32>
    %255 = arith.addf %127, %254 : vector<8x32xf32>
    %c0_99 = arith.constant 0 : index
    %c0_100 = arith.constant 0 : index
    %256 = vector.load %arg19[%c0_99, %c0_100] : memref<1x32xf32, #tpu.memory_space<vmem>>, vector<1x32xf32>
    %c0_101 = arith.constant 0 : index
    %c0_102 = arith.constant 0 : index
    %257 = vector.load %arg20[%c0_101, %c0_102] : memref<1x32xf32, #tpu.memory_space<vmem>>, vector<1x32xf32>
    %cst_103 = arith.constant dense<0.000000e+00> : vector<8xf32>
    %258 = vector.multi_reduction <add>, %255, %cst_103 [1] : vector<8x32xf32> to vector<8xf32>
    %259 = vector.shape_cast %258 : vector<8xf32> to vector<8x1xf32>
    %cst_104 = arith.constant 3.200000e+01 : f32
    %260 = vector.broadcast %cst_104 : f32 to vector<8x1xf32>
    %261 = arith.divf %259, %260 : vector<8x1xf32>
    %262 = vector.broadcast %261 : vector<8x1xf32> to vector<8x32xf32>
    %263 = arith.subf %255, %262 : vector<8x32xf32>
    %264 = arith.mulf %263, %263 : vector<8x32xf32>
    %cst_105 = arith.constant dense<0.000000e+00> : vector<8xf32>
    %265 = vector.multi_reduction <add>, %264, %cst_105 [1] : vector<8x32xf32> to vector<8xf32>
    %266 = vector.shape_cast %265 : vector<8xf32> to vector<8x1xf32>
    %cst_106 = arith.constant 3.200000e+01 : f32
    %267 = vector.broadcast %cst_106 : f32 to vector<8x1xf32>
    %268 = arith.divf %266, %267 : vector<8x1xf32>
    %269 = vector.broadcast %261 : vector<8x1xf32> to vector<8x32xf32>
    %270 = arith.subf %255, %269 : vector<8x32xf32>
    %cst_107 = arith.constant 9.99999974E-6 : f32
    %271 = vector.broadcast %cst_107 : f32 to vector<8x1xf32>
    %272 = arith.addf %268, %271 : vector<8x1xf32>
    %273 = math.rsqrt %272 : vector<8x1xf32>
    %274 = vector.broadcast %273 : vector<8x1xf32> to vector<8x32xf32>
    %275 = arith.mulf %270, %274 : vector<8x32xf32>
    %276 = vector.broadcast %256 : vector<1x32xf32> to vector<8x32xf32>
    %277 = arith.mulf %275, %276 : vector<8x32xf32>
    %278 = vector.broadcast %257 : vector<1x32xf32> to vector<8x32xf32>
    %279 = arith.addf %277, %278 : vector<8x32xf32>
    %c0_108 = arith.constant 0 : index
    %c0_109 = arith.constant 0 : index
    %280 = vector.load %arg21[%c0_108, %c0_109] : memref<32x64xf32, #tpu.memory_space<vmem>>, vector<32x64xf32>
    %cst_110 = arith.constant dense<0.000000e+00> : vector<8x64xf32>
    %281 = tpu.matmul %279, %280, %cst_110 {dimension_numbers = #tpu.dot_dimension_numbers<[1], [0], [0], [1], [0, 0, 1, 1], [], []>} : vector<8x32xf32>, vector<32x64xf32>, vector<8x64xf32> -> vector<8x64xf32>
    %c0_111 = arith.constant 0 : index
    %c0_112 = arith.constant 0 : index
    %282 = vector.load %arg22[%c0_111, %c0_112] : memref<1x64xf32, #tpu.memory_space<vmem>>, vector<1x64xf32>
    %283 = vector.broadcast %282 : vector<1x64xf32> to vector<8x64xf32>
    %284 = arith.addf %281, %283 : vector<8x64xf32>
    %cst_113 = arith.constant 0.000000e+00 : f32
    %285 = vector.broadcast %cst_113 : f32 to vector<8x64xf32>
    %286 = arith.maximumf %284, %285 : vector<8x64xf32>
    %c0_114 = arith.constant 0 : index
    %c0_115 = arith.constant 0 : index
    %287 = vector.load %arg23[%c0_114, %c0_115] : memref<64x32xf32, #tpu.memory_space<vmem>>, vector<64x32xf32>
    %cst_116 = arith.constant dense<0.000000e+00> : vector<8x32xf32>
    %288 = tpu.matmul %286, %287, %cst_116 {dimension_numbers = #tpu.dot_dimension_numbers<[1], [0], [0], [1], [0, 0, 1, 1], [], []>} : vector<8x64xf32>, vector<64x32xf32>, vector<8x32xf32> -> vector<8x32xf32>
    %c0_117 = arith.constant 0 : index
    %c0_118 = arith.constant 0 : index
    %289 = vector.load %arg24[%c0_117, %c0_118] : memref<1x32xf32, #tpu.memory_space<vmem>>, vector<1x32xf32>
    %290 = vector.broadcast %289 : vector<1x32xf32> to vector<8x32xf32>
    %291 = arith.addf %288, %290 : vector<8x32xf32>
    %292 = arith.addf %255, %291 : vector<8x32xf32>
    %c0_119 = arith.constant 0 : index
    %c0_120 = arith.constant 0 : index
    %c0_121 = arith.constant 0 : index
    %293 = vector.load %arg25[%c0_119, %c0_120, %c0_121] : memref<1x8x32xf32, #tpu.memory_space<vmem>>, vector<1x8x32xf32>
    %294 = vector.shape_cast %293 : vector<1x8x32xf32> to vector<8x32xf32>
    %295 = vector.shape_cast %292 : vector<8x32xf32> to vector<1x8x32xf32>
    tpu.vector_store %arg25[%c0_119, %c0_120, %c0_121], %295 {strides = array<i32>} : memref<1x8x32xf32, #tpu.memory_space<vmem>>, vector<1x8x32xf32>,
    return
  }
  func.func @transform_0(%arg0: i32) -> (i32, i32, i32) {
    %c0_i32 = arith.constant 0 : i32
    %c0_i32_0 = arith.constant 0 : i32
    %c0_i32_1 = arith.constant 0 : i32
    return %arg0, %c0_i32, %c0_i32_0 : i32, i32, i32
  }
  func.func @transform_1(%arg0: i32) -> (i32, i32, i32) {
    %c0_i32 = arith.constant 0 : i32
    %c0_i32_0 = arith.constant 0 : i32
    %c0_i32_1 = arith.constant 0 : i32
    return %arg0, %c0_i32, %c0_i32_0 : i32, i32, i32
  }
  func.func @transform_2(%arg0: i32) -> (i32, i32, i32) {
    %c0_i32 = arith.constant 0 : i32
    %c0_i32_0 = arith.constant 0 : i32
    %c0_i32_1 = arith.constant 0 : i32
    return %arg0, %c0_i32, %c0_i32_0 : i32, i32, i32
  }
  func.func @transform_3(%arg0: i32) -> (i32, i32, i32) {
    %c0_i32 = arith.constant 0 : i32
    %c0_i32_0 = arith.constant 0 : i32
    %c0_i32_1 = arith.constant 0 : i32
    return %arg0, %c0_i32, %c0_i32_0 : i32, i32, i32
  }
  func.func @transform_4(%arg0: i32) -> (i32, i32) {
    %c0_i32 = arith.constant 0 : i32
    %c0_i32_0 = arith.constant 0 : i32
    %c0_i32_1 = arith.constant 0 : i32
    return %c0_i32, %c0_i32_0 : i32, i32
  }
  func.func @transform_5(%arg0: i32) -> (i32, i32) {
    %c0_i32 = arith.constant 0 : i32
    %c0_i32_0 = arith.constant 0 : i32
    %c0_i32_1 = arith.constant 0 : i32
    return %c0_i32, %c0_i32_0 : i32, i32
  }
  func.func @transform_6(%arg0: i32) -> (i32, i32) {
    %c0_i32 = arith.constant 0 : i32
    %c0_i32_0 = arith.constant 0 : i32
    %c0_i32_1 = arith.constant 0 : i32
    return %c0_i32, %c0_i32_0 : i32, i32
  }
  func.func @transform_7(%arg0: i32) -> (i32, i32) {
    %c0_i32 = arith.constant 0 : i32
    %c0_i32_0 = arith.constant 0 : i32
    %c0_i32_1 = arith.constant 0 : i32
    return %c0_i32, %c0_i32_0 : i32, i32
  }
  func.func @transform_8(%arg0: i32) -> (i32, i32) {
    %c0_i32 = arith.constant 0 : i32
    %c0_i32_0 = arith.constant 0 : i32
    %c0_i32_1 = arith.constant 0 : i32
    return %c0_i32, %c0_i32_0 : i32, i32
  }
  func.func @transform_9(%arg0: i32) -> (i32, i32) {
    %c0_i32 = arith.constant 0 : i32
    %c0_i32_0 = arith.constant 0 : i32
    %c0_i32_1 = arith.constant 0 : i32
    return %c0_i32, %c0_i32_0 : i32, i32
  }
  func.func @transform_10(%arg0: i32) -> (i32, i32) {
    %c0_i32 = arith.constant 0 : i32
    %c0_i32_0 = arith.constant 0 : i32
    %c0_i32_1 = arith.constant 0 : i32
    return %c0_i32, %c0_i32_0 : i32, i32
  }
  func.func @transform_11(%arg0: i32) -> (i32, i32) {
    %c0_i32 = arith.constant 0 : i32
    %c0_i32_0 = arith.constant 0 : i32
    %c0_i32_1 = arith.constant 0 : i32
    return %c0_i32, %c0_i32_0 : i32, i32
  }
  func.func @transform_12(%arg0: i32) -> (i32, i32) {
    %c0_i32 = arith.constant 0 : i32
    %c0_i32_0 = arith.constant 0 : i32
    %c0_i32_1 = arith.constant 0 : i32
    return %c0_i32, %c0_i32_0 : i32, i32
  }
  func.func @transform_13(%arg0: i32) -> (i32, i32) {
    %c0_i32 = arith.constant 0 : i32
    %c0_i32_0 = arith.constant 0 : i32
    %c0_i32_1 = arith.constant 0 : i32
    return %c0_i32, %c0_i32_0 : i32, i32
  }
  func.func @transform_14(%arg0: i32) -> (i32, i32) {
    %c0_i32 = arith.constant 0 : i32
    %c0_i32_0 = arith.constant 0 : i32
    %c0_i32_1 = arith.constant 0 : i32
    return %c0_i32, %c0_i32_0 : i32, i32
  }
  func.func @transform_15(%arg0: i32) -> (i32, i32) {
    %c0_i32 = arith.constant 0 : i32
    %c0_i32_0 = arith.constant 0 : i32
    %c0_i32_1 = arith.constant 0 : i32
    return %c0_i32, %c0_i32_0 : i32, i32
  }
  func.func @transform_16(%arg0: i32) -> (i32, i32) {
    %c0_i32 = arith.constant 0 : i32
    %c0_i32_0 = arith.constant 0 : i32
    %c0_i32_1 = arith.constant 0 : i32
    return %c0_i32, %c0_i32_0 : i32, i32
  }
  func.func @transform_17(%arg0: i32) -> (i32, i32) {
    %c0_i32 = arith.constant 0 : i32
    %c0_i32_0 = arith.constant 0 : i32
    %c0_i32_1 = arith.constant 0 : i32
    return %c0_i32, %c0_i32_0 : i32, i32
  }
  func.func @transform_18(%arg0: i32) -> (i32, i32) {
    %c0_i32 = arith.constant 0 : i32
    %c0_i32_0 = arith.constant 0 : i32
    %c0_i32_1 = arith.constant 0 : i32
    return %c0_i32, %c0_i32_0 : i32, i32
  }
  func.func @transform_19(%arg0: i32) -> (i32, i32) {
    %c0_i32 = arith.constant 0 : i32
    %c0_i32_0 = arith.constant 0 : i32
    %c0_i32_1 = arith.constant 0 : i32
    return %c0_i32, %c0_i32_0 : i32, i32
  }
  func.func @transform_20(%arg0: i32) -> (i32, i32) {
    %c0_i32 = arith.constant 0 : i32
    %c0_i32_0 = arith.constant 0 : i32
    %c0_i32_1 = arith.constant 0 : i32
    return %c0_i32, %c0_i32_0 : i32, i32
  }
  func.func @transform_21(%arg0: i32) -> (i32, i32) {
    %c0_i32 = arith.constant 0 : i32
    %c0_i32_0 = arith.constant 0 : i32
    %c0_i32_1 = arith.constant 0 : i32
    return %c0_i32, %c0_i32_0 : i32, i32
  }
  func.func @transform_22(%arg0: i32) -> (i32, i32) {
    %c0_i32 = arith.constant 0 : i32
    %c0_i32_0 = arith.constant 0 : i32
    %c0_i32_1 = arith.constant 0 : i32
    return %c0_i32, %c0_i32_0 : i32, i32
  }
  func.func @transform_23(%arg0: i32) -> (i32, i32) {
    %c0_i32 = arith.constant 0 : i32
    %c0_i32_0 = arith.constant 0 : i32
    %c0_i32_1 = arith.constant 0 : i32
    return %c0_i32, %c0_i32_0 : i32, i32
  }
  func.func @transform_24(%arg0: i32) -> (i32, i32, i32) {
    %c0_i32 = arith.constant 0 : i32
    %c0_i32_0 = arith.constant 0 : i32
    %c0_i32_1 = arith.constant 0 : i32
    return %arg0, %c0_i32, %c0_i32_0 : i32, i32, i32
  }
}

module attributes {stable_mosaic.version = 11 : i64} {
  func.func @_decoder_layer_kernel(%arg0: i32, %arg1: memref<1x8x32xf32, #tpu.memory_space<vmem>>, %arg2: memref<1x10x32xf32, #tpu.memory_space<vmem>>, %arg3: memref<1x8x8xf32, #tpu.memory_space<vmem>>, %arg4: memref<1x1x10xf32, #tpu.memory_space<vmem>>, %arg5: memref<1x32xf32, #tpu.memory_space<vmem>>, %arg6: memref<1x32xf32, #tpu.memory_space<vmem>>, %arg7: memref<32x96xf32, #tpu.memory_space<vmem>>, %arg8: memref<1x96xf32, #tpu.memory_space<vmem>>, %arg9: memref<32x32xf32, #tpu.memory_space<vmem>>, %arg10: memref<1x32xf32, #tpu.memory_space<vmem>>, %arg11: memref<1x32xf32, #tpu.memory_space<vmem>>, %arg12: memref<1x32xf32, #tpu.memory_space<vmem>>, %arg13: memref<32x32xf32, #tpu.memory_space<vmem>>, %arg14: memref<1x32xf32, #tpu.memory_space<vmem>>, %arg15: memref<32x64xf32, #tpu.memory_space<vmem>>, %arg16: memref<1x64xf32, #tpu.memory_space<vmem>>, %arg17: memref<32x32xf32, #tpu.memory_space<vmem>>, %arg18: memref<1x32xf32, #tpu.memory_space<vmem>>, %arg19: memref<1x32xf32, #tpu.memory_space<vmem>>, %arg20: memref<1x32xf32, #tpu.memory_space<vmem>>, %arg21: memref<32x64xf32, #tpu.memory_space<vmem>>, %arg22: memref<1x64xf32, #tpu.memory_space<vmem>>, %arg23: memref<64x32xf32, #tpu.memory_space<vmem>>, %arg24: memref<1x32xf32, #tpu.memory_space<vmem>>, %arg25: memref<1x8x32xf32, #tpu.memory_space<vmem>>) attributes {dimension_semantics = [#tpu.dimension_semantics<parallel>], iteration_bounds = array<i64: 2>, scalar_prefetch = 0 : i64, scratch_operands = 0 : i64, tpu.core_type = #tpu.core_type<tc>, window_params = [{transform_indices = @transform_0, window_bounds = array<i64: 1, 8, 32>}, {transform_indices = @transform_1, window_bounds = array<i64: 1, 10, 32>}, {transform_indices = @transform_2, window_bounds = array<i64: 1, 8, 8>}, {transform_indices = @transform_3, window_bounds = array<i64: 1, 1, 10>}, {pipeline_mode = #tpu.pipeline_mode<synchronous>, transform_indices = @transform_4, window_bounds = array<i64: 1, 32>}, {pipeline_mode = #tpu.pipeline_mode<synchronous>, transform_indices = @transform_5, window_bounds = array<i64: 1, 32>}, {pipeline_mode = #tpu.pipeline_mode<synchronous>, transform_indices = @transform_6, window_bounds = array<i64: 32, 96>}, {pipeline_mode = #tpu.pipeline_mode<synchronous>, transform_indices = @transform_7, window_bounds = array<i64: 1, 96>}, {pipeline_mode = #tpu.pipeline_mode<synchronous>, transform_indices = @transform_8, window_bounds = array<i64: 32, 32>}, {pipeline_mode = #tpu.pipeline_mode<synchronous>, transform_indices = @transform_9, window_bounds = array<i64: 1, 32>}, {pipeline_mode = #tpu.pipeline_mode<synchronous>, transform_indices = @transform_10, window_bounds = array<i64: 1, 32>}, {pipeline_mode = #tpu.pipeline_mode<synchronous>, transform_indices = @transform_11, window_bounds = array<i64: 1, 32>}, {pipeline_mode = #tpu.pipeline_mode<synchronous>, transform_indices = @transform_12, window_bounds = array<i64: 32, 32>}, {pipeline_mode = #tpu.pipeline_mode<synchronous>, transform_indices = @transform_13, window_bounds = array<i64: 1, 32>}, {pipeline_mode = #tpu.pipeline_mode<synchronous>, transform_indices = @transform_14, window_bounds = array<i64: 32, 64>}, {pipeline_mode = #tpu.pipeline_mode<synchronous>, transform_indices = @transform_15, window_bounds = array<i64: 1, 64>}, {pipeline_mode = #tpu.pipeline_mode<synchronous>, transform_indices = @transform_16, window_bounds = array<i64: 32, 32>}, {pipeline_mode = #tpu.pipeline_mode<synchronous>, transform_indices = @transform_17, window_bounds = array<i64: 1, 32>}, {pipeline_mode = #tpu.pipeline_mode<synchronous>, transform_indices = @transform_18, window_bounds = array<i64: 1, 32>}, {pipeline_mode = #tpu.pipeline_mode<synchronous>, transform_indices = @transform_19, window_bounds = array<i64: 1, 32>}, {pipeline_mode = #tpu.pipeline_mode<synchronous>, transform_indices = @transform_20, window_bounds = array<i64: 32, 64>}, {pipeline_mode = #tpu.pipeline_mode<synchronous>, transform_indices = @transform_21, window_bounds = array<i64: 1, 64>}, {pipeline_mode = #tpu.pipeline_mode<synchronous>, transform_indices = @transform_22, window_bounds = array<i64: 64, 32>}, {pipeline_mode = #tpu.pipeline_mode<synchronous>, transform_indices = @transform_23, window_bounds = array<i64: 1, 32>}, {transform_indices = @transform_24, window_bounds = array<i64: 1, 8, 32>}]} {
    %c0 = arith.constant 0 : index
    %c0_0 = arith.constant 0 : index
    %c0_1 = arith.constant 0 : index
    %0 = vector.load %arg1[%c0, %c0_0, %c0_1] : memref<1x8x32xf32, #tpu.memory_space<vmem>>, vector<1x8x32xf32>
    %1 = vector.shape_cast %0 : vector<1x8x32xf32> to vector<8x32xf32>
    %c0_2 = arith.constant 0 : index
    %c0_3 = arith.constant 0 : index
    %c0_4 = arith.constant 0 : index
    %2 = vector.load %arg2[%c0_2, %c0_3, %c0_4] : memref<1x10x32xf32, #tpu.memory_space<vmem>>, vector<1x10x32xf32>
    %3 = vector.shape_cast %2 : vector<1x10x32xf32> to vector<10x32xf32>
    %c0_5 = arith.constant 0 : index
    %c0_6 = arith.constant 0 : index
    %c0_7 = arith.constant 0 : index
    %4 = vector.load %arg3[%c0_5, %c0_6, %c0_7] : memref<1x8x8xf32, #tpu.memory_space<vmem>>, vector<1x8x8xf32>
    %5 = vector.shape_cast %4 : vector<1x8x8xf32> to vector<8x8xf32>
    %c0_8 = arith.constant 0 : index
    %c0_9 = arith.constant 0 : index
    %c0_10 = arith.constant 0 : index
    %6 = vector.load %arg4[%c0_8, %c0_9, %c0_10] : memref<1x1x10xf32, #tpu.memory_space<vmem>>, vector<1x1x10xf32>
    %7 = vector.shape_cast %6 : vector<1x1x10xf32> to vector<1x10xf32>
    %c0_11 = arith.constant 0 : index
    %c0_12 = arith.constant 0 : index
    %8 = vector.load %arg5[%c0_11, %c0_12] : memref<1x32xf32, #tpu.memory_space<vmem>>, vector<1x32xf32>
    %c0_13 = arith.constant 0 : index
    %c0_14 = arith.constant 0 : index
    %9 = vector.load %arg6[%c0_13, %c0_14] : memref<1x32xf32, #tpu.memory_space<vmem>>, vector<1x32xf32>
    %cst = arith.constant dense<0.000000e+00> : vector<8xf32>
    %10 = vector.multi_reduction <add>, %1, %cst [1] : vector<8x32xf32> to vector<8xf32>
    %11 = vector.shape_cast %10 : vector<8xf32> to vector<8x1xf32>
    %cst_15 = arith.constant 3.200000e+01 : f32
    %12 = vector.broadcast %cst_15 : f32 to vector<8x1xf32>
    %13 = arith.divf %11, %12 : vector<8x1xf32>
    %14 = vector.broadcast %13 : vector<8x1xf32> to vector<8x32xf32>
    %15 = arith.subf %1, %14 : vector<8x32xf32>
    %16 = arith.mulf %15, %15 : vector<8x32xf32>
    %cst_16 = arith.constant dense<0.000000e+00> : vector<8xf32>
    %17 = vector.multi_reduction <add>, %16, %cst_16 [1] : vector<8x32xf32> to vector<8xf32>
    %18 = vector.shape_cast %17 : vector<8xf32> to vector<8x1xf32>
    %cst_17 = arith.constant 3.200000e+01 : f32
    %19 = vector.broadcast %cst_17 : f32 to vector<8x1xf32>
    %20 = arith.divf %18, %19 : vector<8x1xf32>
    %21 = vector.broadcast %13 : vector<8x1xf32> to vector<8x32xf32>
    %22 = arith.subf %1, %21 : vector<8x32xf32>
    %cst_18 = arith.constant 9.99999974E-6 : f32
    %23 = vector.broadcast %cst_18 : f32 to vector<8x1xf32>
    %24 = arith.addf %20, %23 : vector<8x1xf32>
    %25 = math.rsqrt %24 : vector<8x1xf32>
    %26 = vector.broadcast %25 : vector<8x1xf32> to vector<8x32xf32>
    %27 = arith.mulf %22, %26 : vector<8x32xf32>
    %28 = vector.broadcast %8 : vector<1x32xf32> to vector<8x32xf32>
    %29 = arith.mulf %27, %28 : vector<8x32xf32>
    %30 = vector.broadcast %9 : vector<1x32xf32> to vector<8x32xf32>
    %31 = arith.addf %29, %30 : vector<8x32xf32>
    %c0_19 = arith.constant 0 : index
    %c0_20 = arith.constant 0 : index
    %32 = vector.load %arg7[%c0_19, %c0_20] : memref<32x96xf32, #tpu.memory_space<vmem>>, vector<32x96xf32>
    %cst_21 = arith.constant dense<0.000000e+00> : vector<8x96xf32>
    %33 = tpu.matmul %31, %32, %cst_21 {dimension_numbers = #tpu.dot_dimension_numbers<[1], [0], [0], [1], [0, 0, 1, 1], [], []>} : vector<8x32xf32>, vector<32x96xf32>, vector<8x96xf32> -> vector<8x96xf32>
    %c0_22 = arith.constant 0 : index
    %c0_23 = arith.constant 0 : index
    %34 = vector.load %arg8[%c0_22, %c0_23] : memref<1x96xf32, #tpu.memory_space<vmem>>, vector<1x96xf32>
    %35 = vector.broadcast %34 : vector<1x96xf32> to vector<8x96xf32>
    %36 = arith.addf %33, %35 : vector<8x96xf32>
    %37 = vector.extract_strided_slice %36 {offsets = [0, 0], sizes = [8, 32], strides = [1, 1]} : vector<8x96xf32> to vector<8x32xf32>
    %38 = vector.extract_strided_slice %36 {offsets = [0, 32], sizes = [8, 32], strides = [1, 1]} : vector<8x96xf32> to vector<8x32xf32>
    %39 = vector.extract_strided_slice %36 {offsets = [0, 64], sizes = [8, 32], strides = [1, 1]} : vector<8x96xf32> to vector<8x32xf32>
    %c0_24 = arith.constant 0 : index
    %c0_25 = arith.constant 0 : index
    %40 = vector.load %arg9[%c0_24, %c0_25] : memref<32x32xf32, #tpu.memory_space<vmem>>, vector<32x32xf32>
    %c0_26 = arith.constant 0 : index
    %c0_27 = arith.constant 0 : index
    %41 = vector.load %arg10[%c0_26, %c0_27] : memref<1x32xf32, #tpu.memory_space<vmem>>, vector<1x32xf32>
    %42 = vector.extract_strided_slice %37 {offsets = [0, 0], sizes = [8, 8], strides = [1, 1]} : vector<8x32xf32> to vector<8x8xf32>
    %43 = vector.extract_strided_slice %38 {offsets = [0, 0], sizes = [8, 8], strides = [1, 1]} : vector<8x32xf32> to vector<8x8xf32>
    %44 = vector.extract_strided_slice %39 {offsets = [0, 0], sizes = [8, 8], strides = [1, 1]} : vector<8x32xf32> to vector<8x8xf32>
    %cst_28 = arith.constant dense<0.000000e+00> : vector<8x8xf32>
    %45 = tpu.matmul %42, %43, %cst_28 {dimension_numbers = #tpu.dot_dimension_numbers<[1], [1], [0], [0], [0, 0, 1, 0], [], []>} : vector<8x8xf32>, vector<8x8xf32>, vector<8x8xf32> -> vector<8x8xf32>
    %cst_29 = arith.constant 0.353553385 : f32
    %46 = vector.broadcast %cst_29 : f32 to vector<8x8xf32>
    %47 = arith.mulf %45, %46 : vector<8x8xf32>
    %48 = arith.addf %47, %5 : vector<8x8xf32>
    %cst_30 = arith.constant dense<0xFF800000> : vector<8xf32>
    %49 = vector.multi_reduction <maximumf>, %48, %cst_30 [1] : vector<8x8xf32> to vector<8xf32>
    %50 = vector.shape_cast %49 : vector<8xf32> to vector<8x1xf32>
    %51 = vector.broadcast %50 : vector<8x1xf32> to vector<8x8xf32>
    %52 = arith.subf %48, %51 : vector<8x8xf32>
    %53 = math.exp %52 : vector<8x8xf32>
    %cst_31 = arith.constant dense<0.000000e+00> : vector<8xf32>
    %54 = vector.multi_reduction <add>, %53, %cst_31 [1] : vector<8x8xf32> to vector<8xf32>
    %55 = vector.shape_cast %54 : vector<8xf32> to vector<8x1xf32>
    %56 = tpu.reciprocal %55 {approx = true} : vector<8x1xf32> -> vector<8x1xf32>
    %57 = vector.broadcast %56 : vector<8x1xf32> to vector<8x8xf32>
    %58 = arith.mulf %53, %57 : vector<8x8xf32>
    %cst_32 = arith.constant dense<0.000000e+00> : vector<8x8xf32>
    %59 = tpu.matmul %58, %44, %cst_32 {dimension_numbers = #tpu.dot_dimension_numbers<[1], [0], [0], [1], [0, 0, 1, 1], [], []>} : vector<8x8xf32>, vector<8x8xf32>, vector<8x8xf32> -> vector<8x8xf32>
    %60 = vector.extract_strided_slice %40 {offsets = [0, 0], sizes = [8, 32], strides = [1, 1]} : vector<32x32xf32> to vector<8x32xf32>
    %cst_33 = arith.constant dense<0.000000e+00> : vector<8x32xf32>
    %61 = tpu.matmul %59, %60, %cst_33 {dimension_numbers = #tpu.dot_dimension_numbers<[1], [0], [0], [1], [0, 0, 1, 1], [], []>} : vector<8x8xf32>, vector<8x32xf32>, vector<8x32xf32> -> vector<8x32xf32>
    %62 = vector.extract_strided_slice %37 {offsets = [0, 8], sizes = [8, 8], strides = [1, 1]} : vector<8x32xf32> to vector<8x8xf32>
    %63 = vector.extract_strided_slice %38 {offsets = [0, 8], sizes = [8, 8], strides = [1, 1]} : vector<8x32xf32> to vector<8x8xf32>
    %64 = vector.extract_strided_slice %39 {offsets = [0, 8], sizes = [8, 8], strides = [1, 1]} : vector<8x32xf32> to vector<8x8xf32>
    %cst_34 = arith.constant dense<0.000000e+00> : vector<8x8xf32>
    %65 = tpu.matmul %62, %63, %cst_34 {dimension_numbers = #tpu.dot_dimension_numbers<[1], [1], [0], [0], [0, 0, 1, 0], [], []>} : vector<8x8xf32>, vector<8x8xf32>, vector<8x8xf32> -> vector<8x8xf32>
    %cst_35 = arith.constant 0.353553385 : f32
    %66 = vector.broadcast %cst_35 : f32 to vector<8x8xf32>
    %67 = arith.mulf %65, %66 : vector<8x8xf32>
    %68 = arith.addf %67, %5 : vector<8x8xf32>
    %cst_36 = arith.constant dense<0xFF800000> : vector<8xf32>
    %69 = vector.multi_reduction <maximumf>, %68, %cst_36 [1] : vector<8x8xf32> to vector<8xf32>
    %70 = vector.shape_cast %69 : vector<8xf32> to vector<8x1xf32>
    %71 = vector.broadcast %70 : vector<8x1xf32> to vector<8x8xf32>
    %72 = arith.subf %68, %71 : vector<8x8xf32>
    %73 = math.exp %72 : vector<8x8xf32>
    %cst_37 = arith.constant dense<0.000000e+00> : vector<8xf32>
    %74 = vector.multi_reduction <add>, %73, %cst_37 [1] : vector<8x8xf32> to vector<8xf32>
    %75 = vector.shape_cast %74 : vector<8xf32> to vector<8x1xf32>
    %76 = tpu.reciprocal %75 {approx = true} : vector<8x1xf32> -> vector<8x1xf32>
    %77 = vector.broadcast %76 : vector<8x1xf32> to vector<8x8xf32>
    %78 = arith.mulf %73, %77 : vector<8x8xf32>
    %cst_38 = arith.constant dense<0.000000e+00> : vector<8x8xf32>
    %79 = tpu.matmul %78, %64, %cst_38 {dimension_numbers = #tpu.dot_dimension_numbers<[1], [0], [0], [1], [0, 0, 1, 1], [], []>} : vector<8x8xf32>, vector<8x8xf32>, vector<8x8xf32> -> vector<8x8xf32>
    %80 = vector.extract_strided_slice %40 {offsets = [8, 0], sizes = [8, 32], strides = [1, 1]} : vector<32x32xf32> to vector<8x32xf32>
    %cst_39 = arith.constant dense<0.000000e+00> : vector<8x32xf32>
    %81 = tpu.matmul %79, %80, %cst_39 {dimension_numbers = #tpu.dot_dimension_numbers<[1], [0], [0], [1], [0, 0, 1, 1], [], []>} : vector<8x8xf32>, vector<8x32xf32>, vector<8x32xf32> -> vector<8x32xf32>
    %82 = arith.addf %61, %81 : vector<8x32xf32>
    %83 = vector.extract_strided_slice %37 {offsets = [0, 16], sizes = [8, 8], strides = [1, 1]} : vector<8x32xf32> to vector<8x8xf32>
    %84 = vector.extract_strided_slice %38 {offsets = [0, 16], sizes = [8, 8], strides = [1, 1]} : vector<8x32xf32> to vector<8x8xf32>
    %85 = vector.extract_strided_slice %39 {offsets = [0, 16], sizes = [8, 8], strides = [1, 1]} : vector<8x32xf32> to vector<8x8xf32>
    %cst_40 = arith.constant dense<0.000000e+00> : vector<8x8xf32>
    %86 = tpu.matmul %83, %84, %cst_40 {dimension_numbers = #tpu.dot_dimension_numbers<[1], [1], [0], [0], [0, 0, 1, 0], [], []>} : vector<8x8xf32>, vector<8x8xf32>, vector<8x8xf32> -> vector<8x8xf32>
    %cst_41 = arith.constant 0.353553385 : f32
    %87 = vector.broadcast %cst_41 : f32 to vector<8x8xf32>
    %88 = arith.mulf %86, %87 : vector<8x8xf32>
    %89 = arith.addf %88, %5 : vector<8x8xf32>
    %cst_42 = arith.constant dense<0xFF800000> : vector<8xf32>
    %90 = vector.multi_reduction <maximumf>, %89, %cst_42 [1] : vector<8x8xf32> to vector<8xf32>
    %91 = vector.shape_cast %90 : vector<8xf32> to vector<8x1xf32>
    %92 = vector.broadcast %91 : vector<8x1xf32> to vector<8x8xf32>
    %93 = arith.subf %89, %92 : vector<8x8xf32>
    %94 = math.exp %93 : vector<8x8xf32>
    %cst_43 = arith.constant dense<0.000000e+00> : vector<8xf32>
    %95 = vector.multi_reduction <add>, %94, %cst_43 [1] : vector<8x8xf32> to vector<8xf32>
    %96 = vector.shape_cast %95 : vector<8xf32> to vector<8x1xf32>
    %97 = tpu.reciprocal %96 {approx = true} : vector<8x1xf32> -> vector<8x1xf32>
    %98 = vector.broadcast %97 : vector<8x1xf32> to vector<8x8xf32>
    %99 = arith.mulf %94, %98 : vector<8x8xf32>
    %cst_44 = arith.constant dense<0.000000e+00> : vector<8x8xf32>
    %100 = tpu.matmul %99, %85, %cst_44 {dimension_numbers = #tpu.dot_dimension_numbers<[1], [0], [0], [1], [0, 0, 1, 1], [], []>} : vector<8x8xf32>, vector<8x8xf32>, vector<8x8xf32> -> vector<8x8xf32>
    %101 = vector.extract_strided_slice %40 {offsets = [16, 0], sizes = [8, 32], strides = [1, 1]} : vector<32x32xf32> to vector<8x32xf32>
    %cst_45 = arith.constant dense<0.000000e+00> : vector<8x32xf32>
    %102 = tpu.matmul %100, %101, %cst_45 {dimension_numbers = #tpu.dot_dimension_numbers<[1], [0], [0], [1], [0, 0, 1, 1], [], []>} : vector<8x8xf32>, vector<8x32xf32>, vector<8x32xf32> -> vector<8x32xf32>
    %103 = arith.addf %82, %102 : vector<8x32xf32>
    %104 = vector.extract_strided_slice %37 {offsets = [0, 24], sizes = [8, 8], strides = [1, 1]} : vector<8x32xf32> to vector<8x8xf32>
    %105 = vector.extract_strided_slice %38 {offsets = [0, 24], sizes = [8, 8], strides = [1, 1]} : vector<8x32xf32> to vector<8x8xf32>
    %106 = vector.extract_strided_slice %39 {offsets = [0, 24], sizes = [8, 8], strides = [1, 1]} : vector<8x32xf32> to vector<8x8xf32>
    %cst_46 = arith.constant dense<0.000000e+00> : vector<8x8xf32>
    %107 = tpu.matmul %104, %105, %cst_46 {dimension_numbers = #tpu.dot_dimension_numbers<[1], [1], [0], [0], [0, 0, 1, 0], [], []>} : vector<8x8xf32>, vector<8x8xf32>, vector<8x8xf32> -> vector<8x8xf32>
    %cst_47 = arith.constant 0.353553385 : f32
    %108 = vector.broadcast %cst_47 : f32 to vector<8x8xf32>
    %109 = arith.mulf %107, %108 : vector<8x8xf32>
    %110 = arith.addf %109, %5 : vector<8x8xf32>
    %cst_48 = arith.constant dense<0xFF800000> : vector<8xf32>
    %111 = vector.multi_reduction <maximumf>, %110, %cst_48 [1] : vector<8x8xf32> to vector<8xf32>
    %112 = vector.shape_cast %111 : vector<8xf32> to vector<8x1xf32>
    %113 = vector.broadcast %112 : vector<8x1xf32> to vector<8x8xf32>
    %114 = arith.subf %110, %113 : vector<8x8xf32>
    %115 = math.exp %114 : vector<8x8xf32>
    %cst_49 = arith.constant dense<0.000000e+00> : vector<8xf32>
    %116 = vector.multi_reduction <add>, %115, %cst_49 [1] : vector<8x8xf32> to vector<8xf32>
    %117 = vector.shape_cast %116 : vector<8xf32> to vector<8x1xf32>
    %118 = tpu.reciprocal %117 {approx = true} : vector<8x1xf32> -> vector<8x1xf32>
    %119 = vector.broadcast %118 : vector<8x1xf32> to vector<8x8xf32>
    %120 = arith.mulf %115, %119 : vector<8x8xf32>
    %cst_50 = arith.constant dense<0.000000e+00> : vector<8x8xf32>
    %121 = tpu.matmul %120, %106, %cst_50 {dimension_numbers = #tpu.dot_dimension_numbers<[1], [0], [0], [1], [0, 0, 1, 1], [], []>} : vector<8x8xf32>, vector<8x8xf32>, vector<8x8xf32> -> vector<8x8xf32>
    %122 = vector.extract_strided_slice %40 {offsets = [24, 0], sizes = [8, 32], strides = [1, 1]} : vector<32x32xf32> to vector<8x32xf32>
    %cst_51 = arith.constant dense<0.000000e+00> : vector<8x32xf32>
    %123 = tpu.matmul %121, %122, %cst_51 {dimension_numbers = #tpu.dot_dimension_numbers<[1], [0], [0], [1], [0, 0, 1, 1], [], []>} : vector<8x8xf32>, vector<8x32xf32>, vector<8x32xf32> -> vector<8x32xf32>
    %124 = arith.addf %103, %123 : vector<8x32xf32>
    %125 = vector.broadcast %41 : vector<1x32xf32> to vector<8x32xf32>
    %126 = arith.addf %124, %125 : vector<8x32xf32>
    %127 = arith.addf %1, %126 : vector<8x32xf32>
    %c0_52 = arith.constant 0 : index
    %c0_53 = arith.constant 0 : index
    %128 = vector.load %arg11[%c0_52, %c0_53] : memref<1x32xf32, #tpu.memory_space<vmem>>, vector<1x32xf32>
    %c0_54 = arith.constant 0 : index
    %c0_55 = arith.constant 0 : index
    %129 = vector.load %arg12[%c0_54, %c0_55] : memref<1x32xf32, #tpu.memory_space<vmem>>, vector<1x32xf32>
    %cst_56 = arith.constant dense<0.000000e+00> : vector<8xf32>
    %130 = vector.multi_reduction <add>, %127, %cst_56 [1] : vector<8x32xf32> to vector<8xf32>
    %131 = vector.shape_cast %130 : vector<8xf32> to vector<8x1xf32>
    %cst_57 = arith.constant 3.200000e+01 : f32
    %132 = vector.broadcast %cst_57 : f32 to vector<8x1xf32>
    %133 = arith.divf %131, %132 : vector<8x1xf32>
    %134 = vector.broadcast %133 : vector<8x1xf32> to vector<8x32xf32>
    %135 = arith.subf %127, %134 : vector<8x32xf32>
    %136 = arith.mulf %135, %135 : vector<8x32xf32>
    %cst_58 = arith.constant dense<0.000000e+00> : vector<8xf32>
    %137 = vector.multi_reduction <add>, %136, %cst_58 [1] : vector<8x32xf32> to vector<8xf32>
    %138 = vector.shape_cast %137 : vector<8xf32> to vector<8x1xf32>
    %cst_59 = arith.constant 3.200000e+01 : f32
    %139 = vector.broadcast %cst_59 : f32 to vector<8x1xf32>
    %140 = arith.divf %138, %139 : vector<8x1xf32>
    %141 = vector.broadcast %133 : vector<8x1xf32> to vector<8x32xf32>
    %142 = arith.subf %127, %141 : vector<8x32xf32>
    %cst_60 = arith.constant 9.99999974E-6 : f32
    %143 = vector.broadcast %cst_60 : f32 to vector<8x1xf32>
    %144 = arith.addf %140, %143 : vector<8x1xf32>
    %145 = math.rsqrt %144 : vector<8x1xf32>
    %146 = vector.broadcast %145 : vector<8x1xf32> to vector<8x32xf32>
    %147 = arith.mulf %142, %146 : vector<8x32xf32>
    %148 = vector.broadcast %128 : vector<1x32xf32> to vector<8x32xf32>
    %149 = arith.mulf %147, %148 : vector<8x32xf32>
    %150 = vector.broadcast %129 : vector<1x32xf32> to vector<8x32xf32>
    %151 = arith.addf %149, %150 : vector<8x32xf32>
    %c0_61 = arith.constant 0 : index
    %c0_62 = arith.constant 0 : index
    %152 = vector.load %arg13[%c0_61, %c0_62] : memref<32x32xf32, #tpu.memory_space<vmem>>, vector<32x32xf32>
    %cst_63 = arith.constant dense<0.000000e+00> : vector<8x32xf32>
    %153 = tpu.matmul %151, %152, %cst_63 {dimension_numbers = #tpu.dot_dimension_numbers<[1], [0], [0], [1], [0, 0, 1, 1], [], []>} : vector<8x32xf32>, vector<32x32xf32>, vector<8x32xf32> -> vector<8x32xf32>
    %c0_64 = arith.constant 0 : index
    %c0_65 = arith.constant 0 : index
    %154 = vector.load %arg14[%c0_64, %c0_65] : memref<1x32xf32, #tpu.memory_space<vmem>>, vector<1x32xf32>
    %155 = vector.broadcast %154 : vector<1x32xf32> to vector<8x32xf32>
    %156 = arith.addf %153, %155 : vector<8x32xf32>
    %c0_66 = arith.constant 0 : index
    %c0_67 = arith.constant 0 : index
    %157 = vector.load %arg15[%c0_66, %c0_67] : memref<32x64xf32, #tpu.memory_space<vmem>>, vector<32x64xf32>
    %cst_68 = arith.constant dense<0.000000e+00> : vector<10x64xf32>
    %158 = tpu.matmul %3, %157, %cst_68 {dimension_numbers = #tpu.dot_dimension_numbers<[1], [0], [0], [1], [0, 0, 1, 1], [], []>} : vector<10x32xf32>, vector<32x64xf32>, vector<10x64xf32> -> vector<10x64xf32>
    %c0_69 = arith.constant 0 : index
    %c0_70 = arith.constant 0 : index
    %159 = vector.load %arg16[%c0_69, %c0_70] : memref<1x64xf32, #tpu.memory_space<vmem>>, vector<1x64xf32>
    %160 = vector.broadcast %159 : vector<1x64xf32> to vector<10x64xf32>
    %161 = arith.addf %158, %160 : vector<10x64xf32>
    %162 = vector.extract_strided_slice %161 {offsets = [0, 0], sizes = [10, 32], strides = [1, 1]} : vector<10x64xf32> to vector<10x32xf32>
    %163 = vector.extract_strided_slice %161 {offsets = [0, 32], sizes = [10, 32], strides = [1, 1]} : vector<10x64xf32> to vector<10x32xf32>
    %c0_71 = arith.constant 0 : index
    %c0_72 = arith.constant 0 : index
    %164 = vector.load %arg17[%c0_71, %c0_72] : memref<32x32xf32, #tpu.memory_space<vmem>>, vector<32x32xf32>
    %c0_73 = arith.constant 0 : index
    %c0_74 = arith.constant 0 : index
    %165 = vector.load %arg18[%c0_73, %c0_74] : memref<1x32xf32, #tpu.memory_space<vmem>>, vector<1x32xf32>
    %166 = vector.extract_strided_slice %156 {offsets = [0, 0], sizes = [8, 8], strides = [1, 1]} : vector<8x32xf32> to vector<8x8xf32>
    %167 = vector.extract_strided_slice %162 {offsets = [0, 0], sizes = [10, 8], strides = [1, 1]} : vector<10x32xf32> to vector<10x8xf32>
    %168 = vector.extract_strided_slice %163 {offsets = [0, 0], sizes = [10, 8], strides = [1, 1]} : vector<10x32xf32> to vector<10x8xf32>
    %cst_75 = arith.constant dense<0.000000e+00> : vector<8x10xf32>
    %169 = tpu.matmul %166, %167, %cst_75 {dimension_numbers = #tpu.dot_dimension_numbers<[1], [1], [0], [0], [0, 0, 1, 0], [], []>} : vector<8x8xf32>, vector<10x8xf32>, vector<8x10xf32> -> vector<8x10xf32>
    %cst_76 = arith.constant 0.353553385 : f32
    %170 = vector.broadcast %cst_76 : f32 to vector<8x10xf32>
    %171 = arith.mulf %169, %170 : vector<8x10xf32>
    %172 = vector.broadcast %7 : vector<1x10xf32> to vector<8x10xf32>
    %173 = arith.addf %171, %172 : vector<8x10xf32>
    %cst_77 = arith.constant dense<0xFF800000> : vector<8xf32>
    %174 = vector.multi_reduction <maximumf>, %173, %cst_77 [1] : vector<8x10xf32> to vector<8xf32>
    %175 = vector.shape_cast %174 : vector<8xf32> to vector<8x1xf32>
    %176 = vector.broadcast %175 : vector<8x1xf32> to vector<8x10xf32>
    %177 = arith.subf %173, %176 : vector<8x10xf32>
    %178 = math.exp %177 : vector<8x10xf32>
    %cst_78 = arith.constant dense<0.000000e+00> : vector<8xf32>
    %179 = vector.multi_reduction <add>, %178, %cst_78 [1] : vector<8x10xf32> to vector<8xf32>
    %180 = vector.shape_cast %179 : vector<8xf32> to vector<8x1xf32>
    %181 = tpu.reciprocal %180 {approx = true} : vector<8x1xf32> -> vector<8x1xf32>
    %182 = vector.broadcast %181 : vector<8x1xf32> to vector<8x10xf32>
    %183 = arith.mulf %178, %182 : vector<8x10xf32>
    %cst_79 = arith.constant dense<0.000000e+00> : vector<8x8xf32>
    %184 = tpu.matmul %183, %168, %cst_79 {dimension_numbers = #tpu.dot_dimension_numbers<[1], [0], [0], [1], [0, 0, 1, 1], [], []>} : vector<8x10xf32>, vector<10x8xf32>, vector<8x8xf32> -> vector<8x8xf32>
    %185 = vector.extract_strided_slice %164 {offsets = [0, 0], sizes = [8, 32], strides = [1, 1]} : vector<32x32xf32> to vector<8x32xf32>
    %cst_80 = arith.constant dense<0.000000e+00> : vector<8x32xf32>
    %186 = tpu.matmul %184, %185, %cst_80 {dimension_numbers = #tpu.dot_dimension_numbers<[1], [0], [0], [1], [0, 0, 1, 1], [], []>} : vector<8x8xf32>, vector<8x32xf32>, vector<8x32xf32> -> vector<8x32xf32>
    %187 = vector.extract_strided_slice %156 {offsets = [0, 8], sizes = [8, 8], strides = [1, 1]} : vector<8x32xf32> to vector<8x8xf32>
    %188 = vector.extract_strided_slice %162 {offsets = [0, 8], sizes = [10, 8], strides = [1, 1]} : vector<10x32xf32> to vector<10x8xf32>
    %189 = vector.extract_strided_slice %163 {offsets = [0, 8], sizes = [10, 8], strides = [1, 1]} : vector<10x32xf32> to vector<10x8xf32>
    %cst_81 = arith.constant dense<0.000000e+00> : vector<8x10xf32>
    %190 = tpu.matmul %187, %188, %cst_81 {dimension_numbers = #tpu.dot_dimension_numbers<[1], [1], [0], [0], [0, 0, 1, 0], [], []>} : vector<8x8xf32>, vector<10x8xf32>, vector<8x10xf32> -> vector<8x10xf32>
    %cst_82 = arith.constant 0.353553385 : f32
    %191 = vector.broadcast %cst_82 : f32 to vector<8x10xf32>
    %192 = arith.mulf %190, %191 : vector<8x10xf32>
    %193 = vector.broadcast %7 : vector<1x10xf32> to vector<8x10xf32>
    %194 = arith.addf %192, %193 : vector<8x10xf32>
    %cst_83 = arith.constant dense<0xFF800000> : vector<8xf32>
    %195 = vector.multi_reduction <maximumf>, %194, %cst_83 [1] : vector<8x10xf32> to vector<8xf32>
    %196 = vector.shape_cast %195 : vector<8xf32> to vector<8x1xf32>
    %197 = vector.broadcast %196 : vector<8x1xf32> to vector<8x10xf32>
    %198 = arith.subf %194, %197 : vector<8x10xf32>
    %199 = math.exp %198 : vector<8x10xf32>
    %cst_84 = arith.constant dense<0.000000e+00> : vector<8xf32>
    %200 = vector.multi_reduction <add>, %199, %cst_84 [1] : vector<8x10xf32> to vector<8xf32>
    %201 = vector.shape_cast %200 : vector<8xf32> to vector<8x1xf32>
    %202 = tpu.reciprocal %201 {approx = true} : vector<8x1xf32> -> vector<8x1xf32>
    %203 = vector.broadcast %202 : vector<8x1xf32> to vector<8x10xf32>
    %204 = arith.mulf %199, %203 : vector<8x10xf32>
    %cst_85 = arith.constant dense<0.000000e+00> : vector<8x8xf32>
    %205 = tpu.matmul %204, %189, %cst_85 {dimension_numbers = #tpu.dot_dimension_numbers<[1], [0], [0], [1], [0, 0, 1, 1], [], []>} : vector<8x10xf32>, vector<10x8xf32>, vector<8x8xf32> -> vector<8x8xf32>
    %206 = vector.extract_strided_slice %164 {offsets = [8, 0], sizes = [8, 32], strides = [1, 1]} : vector<32x32xf32> to vector<8x32xf32>
    %cst_86 = arith.constant dense<0.000000e+00> : vector<8x32xf32>
    %207 = tpu.matmul %205, %206, %cst_86 {dimension_numbers = #tpu.dot_dimension_numbers<[1], [0], [0], [1], [0, 0, 1, 1], [], []>} : vector<8x8xf32>, vector<8x32xf32>, vector<8x32xf32> -> vector<8x32xf32>
    %208 = arith.addf %186, %207 : vector<8x32xf32>
    %209 = vector.extract_strided_slice %156 {offsets = [0, 16], sizes = [8, 8], strides = [1, 1]} : vector<8x32xf32> to vector<8x8xf32>
    %210 = vector.extract_strided_slice %162 {offsets = [0, 16], sizes = [10, 8], strides = [1, 1]} : vector<10x32xf32> to vector<10x8xf32>
    %211 = vector.extract_strided_slice %163 {offsets = [0, 16], sizes = [10, 8], strides = [1, 1]} : vector<10x32xf32> to vector<10x8xf32>
    %cst_87 = arith.constant dense<0.000000e+00> : vector<8x10xf32>
    %212 = tpu.matmul %209, %210, %cst_87 {dimension_numbers = #tpu.dot_dimension_numbers<[1], [1], [0], [0], [0, 0, 1, 0], [], []>} : vector<8x8xf32>, vector<10x8xf32>, vector<8x10xf32> -> vector<8x10xf32>
    %cst_88 = arith.constant 0.353553385 : f32
    %213 = vector.broadcast %cst_88 : f32 to vector<8x10xf32>
    %214 = arith.mulf %212, %213 : vector<8x10xf32>
    %215 = vector.broadcast %7 : vector<1x10xf32> to vector<8x10xf32>
    %216 = arith.addf %214, %215 : vector<8x10xf32>
    %cst_89 = arith.constant dense<0xFF800000> : vector<8xf32>
    %217 = vector.multi_reduction <maximumf>, %216, %cst_89 [1] : vector<8x10xf32> to vector<8xf32>
    %218 = vector.shape_cast %217 : vector<8xf32> to vector<8x1xf32>
    %219 = vector.broadcast %218 : vector<8x1xf32> to vector<8x10xf32>
    %220 = arith.subf %216, %219 : vector<8x10xf32>
    %221 = math.exp %220 : vector<8x10xf32>
    %cst_90 = arith.constant dense<0.000000e+00> : vector<8xf32>
    %222 = vector.multi_reduction <add>, %221, %cst_90 [1] : vector<8x10xf32> to vector<8xf32>
    %223 = vector.shape_cast %222 : vector<8xf32> to vector<8x1xf32>
    %224 = tpu.reciprocal %223 {approx = true} : vector<8x1xf32> -> vector<8x1xf32>
    %225 = vector.broadcast %224 : vector<8x1xf32> to vector<8x10xf32>
    %226 = arith.mulf %221, %225 : vector<8x10xf32>
    %cst_91 = arith.constant dense<0.000000e+00> : vector<8x8xf32>
    %227 = tpu.matmul %226, %211, %cst_91 {dimension_numbers = #tpu.dot_dimension_numbers<[1], [0], [0], [1], [0, 0, 1, 1], [], []>} : vector<8x10xf32>, vector<10x8xf32>, vector<8x8xf32> -> vector<8x8xf32>
    %228 = vector.extract_strided_slice %164 {offsets = [16, 0], sizes = [8, 32], strides = [1, 1]} : vector<32x32xf32> to vector<8x32xf32>
    %cst_92 = arith.constant dense<0.000000e+00> : vector<8x32xf32>
    %229 = tpu.matmul %227, %228, %cst_92 {dimension_numbers = #tpu.dot_dimension_numbers<[1], [0], [0], [1], [0, 0, 1, 1], [], []>} : vector<8x8xf32>, vector<8x32xf32>, vector<8x32xf32> -> vector<8x32xf32>
    %230 = arith.addf %208, %229 : vector<8x32xf32>
    %231 = vector.extract_strided_slice %156 {offsets = [0, 24], sizes = [8, 8], strides = [1, 1]} : vector<8x32xf32> to vector<8x8xf32>
    %232 = vector.extract_strided_slice %162 {offsets = [0, 24], sizes = [10, 8], strides = [1, 1]} : vector<10x32xf32> to vector<10x8xf32>
    %233 = vector.extract_strided_slice %163 {offsets = [0, 24], sizes = [10, 8], strides = [1, 1]} : vector<10x32xf32> to vector<10x8xf32>
    %cst_93 = arith.constant dense<0.000000e+00> : vector<8x10xf32>
    %234 = tpu.matmul %231, %232, %cst_93 {dimension_numbers = #tpu.dot_dimension_numbers<[1], [1], [0], [0], [0, 0, 1, 0], [], []>} : vector<8x8xf32>, vector<10x8xf32>, vector<8x10xf32> -> vector<8x10xf32>
    %cst_94 = arith.constant 0.353553385 : f32
    %235 = vector.broadcast %cst_94 : f32 to vector<8x10xf32>
    %236 = arith.mulf %234, %235 : vector<8x10xf32>
    %237 = vector.broadcast %7 : vector<1x10xf32> to vector<8x10xf32>
    %238 = arith.addf %236, %237 : vector<8x10xf32>
    %cst_95 = arith.constant dense<0xFF800000> : vector<8xf32>
    %239 = vector.multi_reduction <maximumf>, %238, %cst_95 [1] : vector<8x10xf32> to vector<8xf32>
    %240 = vector.shape_cast %239 : vector<8xf32> to vector<8x1xf32>
    %241 = vector.broadcast %240 : vector<8x1xf32> to vector<8x10xf32>
    %242 = arith.subf %238, %241 : vector<8x10xf32>
    %243 = math.exp %242 : vector<8x10xf32>
    %cst_96 = arith.constant dense<0.000000e+00> : vector<8xf32>
    %244 = vector.multi_reduction <add>, %243, %cst_96 [1] : vector<8x10xf32> to vector<8xf32>
    %245 = vector.shape_cast %244 : vector<8xf32> to vector<8x1xf32>
    %246 = tpu.reciprocal %245 {approx = true} : vector<8x1xf32> -> vector<8x1xf32>
    %247 = vector.broadcast %246 : vector<8x1xf32> to vector<8x10xf32>
    %248 = arith.mulf %243, %247 : vector<8x10xf32>
    %cst_97 = arith.constant dense<0.000000e+00> : vector<8x8xf32>
    %249 = tpu.matmul %248, %233, %cst_97 {dimension_numbers = #tpu.dot_dimension_numbers<[1], [0], [0], [1], [0, 0, 1, 1], [], []>} : vector<8x10xf32>, vector<10x8xf32>, vector<8x8xf32> -> vector<8x8xf32>
    %250 = vector.extract_strided_slice %164 {offsets = [24, 0], sizes = [8, 32], strides = [1, 1]} : vector<32x32xf32> to vector<8x32xf32>
    %cst_98 = arith.constant dense<0.000000e+00> : vector<8x32xf32>
    %251 = tpu.matmul %249, %250, %cst_98 {dimension_numbers = #tpu.dot_dimension_numbers<[1], [0], [0], [1], [0, 0, 1, 1], [], []>} : vector<8x8xf32>, vector<8x32xf32>, vector<8x32xf32> -> vector<8x32xf32>
    %252 = arith.addf %230, %251 : vector<8x32xf32>
    %253 = vector.broadcast %165 : vector<1x32xf32> to vector<8x32xf32>
    %254 = arith.addf %252, %253 : vector<8x32xf32>
    %255 = arith.addf %127, %254 : vector<8x32xf32>
    %c0_99 = arith.constant 0 : index
    %c0_100 = arith.constant 0 : index
    %256 = vector.load %arg19[%c0_99, %c0_100] : memref<1x32xf32, #tpu.memory_space<vmem>>, vector<1x32xf32>
    %c0_101 = arith.constant 0 : index
    %c0_102 = arith.constant 0 : index
    %257 = vector.load %arg20[%c0_101, %c0_102] : memref<1x32xf32, #tpu.memory_space<vmem>>, vector<1x32xf32>
    %cst_103 = arith.constant dense<0.000000e+00> : vector<8xf32>
    %258 = vector.multi_reduction <add>, %255, %cst_103 [1] : vector<8x32xf32> to vector<8xf32>
    %259 = vector.shape_cast %258 : vector<8xf32> to vector<8x1xf32>
    %cst_104 = arith.constant 3.200000e+01 : f32
    %260 = vector.broadcast %cst_104 : f32 to vector<8x1xf32>
    %261 = arith.divf %259, %260 : vector<8x1xf32>
    %262 = vector.broadcast %261 : vector<8x1xf32> to vector<8x32xf32>
    %263 = arith.subf %255, %262 : vector<8x32xf32>
    %264 = arith.mulf %263, %263 : vector<8x32xf32>
    %cst_105 = arith.constant dense<0.000000e+00> : vector<8xf32>
    %265 = vector.multi_reduction <add>, %264, %cst_105 [1] : vector<8x32xf32> to vector<8xf32>
    %266 = vector.shape_cast %265 : vector<8xf32> to vector<8x1xf32>
    %cst_106 = arith.constant 3.200000e+01 : f32
    %267 = vector.broadcast %cst_106 : f32 to vector<8x1xf32>
    %268 = arith.divf %266, %267 : vector<8x1xf32>
    %269 = vector.broadcast %261 : vector<8x1xf32> to vector<8x32xf32>
    %270 = arith.subf %255, %269 : vector<8x32xf32>
    %cst_107 = arith.constant 9.99999974E-6 : f32
    %271 = vector.broadcast %cst_107 : f32 to vector<8x1xf32>
    %272 = arith.addf %268, %271 : vector<8x1xf32>
    %273 = math.rsqrt %272 : vector<8x1xf32>
    %274 = vector.broadcast %273 : vector<8x1xf32> to vector<8x32xf32>
    %275 = arith.mulf %270, %274 : vector<8x32xf32>
    %276 = vector.broadcast %256 : vector<1x32xf32> to vector<8x32xf32>
    %277 = arith.mulf %275, %276 : vector<8x32xf32>
    %278 = vector.broadcast %257 : vector<1x32xf32> to vector<8x32xf32>
    %279 = arith.addf %277, %278 : vector<8x32xf32>
    %c0_108 = arith.constant 0 : index
    %c0_109 = arith.constant 0 : index
    %280 = vector.load %arg21[%c0_108, %c0_109] : memref<32x64xf32, #tpu.memory_space<vmem>>, vector<32x64xf32>
    %cst_110 = arith.constant dense<0.000000e+00> : vector<8x64xf32>
    %281 = tpu.matmul %279, %280, %cst_110 {dimension_numbers = #tpu.dot_dimension_numbers<[1], [0], [0], [1], [0, 0, 1, 1], [], []>} : vector<8x32xf32>, vector<32x64xf32>, vector<8x64xf32> -> vector<8x64xf32>
    %c0_111 = arith.constant 0 : index
    %c0_112 = arith.constant 0 : index
    %282 = vector.load %arg22[%c0_111, %c0_112] : memref<1x64xf32, #tpu.memory_space<vmem>>, vector<1x64xf32>
    %283 = vector.broadcast %282 : vector<1x64xf32> to vector<8x64xf32>
    %284 = arith.addf %281, %283 : vector<8x64xf32>
    %cst_113 = arith.constant 0.000000e+00 : f32
    %285 = vector.broadcast %cst_113 : f32 to vector<8x64xf32>
    %286 = arith.maximumf %284, %285 : vector<8x64xf32>
    %c0_114 = arith.constant 0 : index
    %c0_115 = arith.constant 0 : index
    %287 = vector.load %arg23[%c0_114, %c0_115] : memref<64x32xf32, #tpu.memory_space<vmem>>, vector<64x32xf32>
    %cst_116 = arith.constant dense<0.000000e+00> : vector<8x32xf32>
    %288 = tpu.matmul %286, %287, %cst_116 {dimension_numbers = #tpu.dot_dimension_numbers<[1], [0], [0], [1], [0, 0, 1, 1], [], []>} : vector<8x64xf32>, vector<64x32xf32>, vector<8x32xf32> -> vector<8x32xf32>
    %c0_117 = arith.constant 0 : index
    %c0_118 = arith.constant 0 : index
    %289 = vector.load %arg24[%c0_117, %c0_118] : memref<1x32xf32, #tpu.memory_space<vmem>>, vector<1x32xf32>
    %290 = vector.broadcast %289 : vector<1x32xf32> to vector<8x32xf32>
    %291 = arith.addf %288, %290 : vector<8x32xf32>
    %292 = arith.addf %255, %291 : vector<8x32xf32>
    %c0_119 = arith.constant 0 : index
    %c0_120 = arith.constant 0 : index
    %c0_121 = arith.constant 0 : index
    %293 = vector.load %arg25[%c0_119, %c0_120, %c0_121] : memref<1x8x32xf32, #tpu.memory_space<vmem>>, vector<1x8x32xf32>
    %294 = vector.shape_cast %293 : vector<1x8x32xf32> to vector<8x32xf32>
    %295 = vector.shape_cast %292 : vector<8x32xf32> to vector<1x8x32xf32>
    tpu.vector_store %arg25[%c0_119, %c0_120, %c0_121], %295 {strides = array<i32>} : memref<1x8x32xf32, #tpu.memory_space<vmem>>, vector<1x8x32xf32>,
    return
  }
  func.func @transform_0(%arg0: i32) -> (i32, i32, i32) {
    %c0_i32 = arith.constant 0 : i32
    %c0_i32_0 = arith.constant 0 : i32
    %c0_i32_1 = arith.constant 0 : i32
    return %arg0, %c0_i32, %c0_i32_0 : i32, i32, i32
  }
  func.func @transform_1(%arg0: i32) -> (i32, i32, i32) {
    %c0_i32 = arith.constant 0 : i32
    %c0_i32_0 = arith.constant 0 : i32
    %c0_i32_1 = arith.constant 0 : i32
    return %arg0, %c0_i32, %c0_i32_0 : i32, i32, i32
  }
  func.func @transform_2(%arg0: i32) -> (i32, i32, i32) {
    %c0_i32 = arith.constant 0 : i32
    %c0_i32_0 = arith.constant 0 : i32
    %c0_i32_1 = arith.constant 0 : i32
    return %arg0, %c0_i32, %c0_i32_0 : i32, i32, i32
  }
  func.func @transform_3(%arg0: i32) -> (i32, i32, i32) {
    %c0_i32 = arith.constant 0 : i32
    %c0_i32_0 = arith.constant 0 : i32
    %c0_i32_1 = arith.constant 0 : i32
    return %arg0, %c0_i32, %c0_i32_0 : i32, i32, i32
  }
  func.func @transform_4(%arg0: i32) -> (i32, i32) {
    %c0_i32 = arith.constant 0 : i32
    %c0_i32_0 = arith.constant 0 : i32
    %c0_i32_1 = arith.constant 0 : i32
    return %c0_i32, %c0_i32_0 : i32, i32
  }
  func.func @transform_5(%arg0: i32) -> (i32, i32) {
    %c0_i32 = arith.constant 0 : i32
    %c0_i32_0 = arith.constant 0 : i32
    %c0_i32_1 = arith.constant 0 : i32
    return %c0_i32, %c0_i32_0 : i32, i32
  }
  func.func @transform_6(%arg0: i32) -> (i32, i32) {
    %c0_i32 = arith.constant 0 : i32
    %c0_i32_0 = arith.constant 0 : i32
    %c0_i32_1 = arith.constant 0 : i32
    return %c0_i32, %c0_i32_0 : i32, i32
  }
  func.func @transform_7(%arg0: i32) -> (i32, i32) {
    %c0_i32 = arith.constant 0 : i32
    %c0_i32_0 = arith.constant 0 : i32
    %c0_i32_1 = arith.constant 0 : i32
    return %c0_i32, %c0_i32_0 : i32, i32
  }
  func.func @transform_8(%arg0: i32) -> (i32, i32) {
    %c0_i32 = arith.constant 0 : i32
    %c0_i32_0 = arith.constant 0 : i32
    %c0_i32_1 = arith.constant 0 : i32
    return %c0_i32, %c0_i32_0 : i32, i32
  }
  func.func @transform_9(%arg0: i32) -> (i32, i32) {
    %c0_i32 = arith.constant 0 : i32
    %c0_i32_0 = arith.constant 0 : i32
    %c0_i32_1 = arith.constant 0 : i32
    return %c0_i32, %c0_i32_0 : i32, i32
  }
  func.func @transform_10(%arg0: i32) -> (i32, i32) {
    %c0_i32 = arith.constant 0 : i32
    %c0_i32_0 = arith.constant 0 : i32
    %c0_i32_1 = arith.constant 0 : i32
    return %c0_i32, %c0_i32_0 : i32, i32
  }
  func.func @transform_11(%arg0: i32) -> (i32, i32) {
    %c0_i32 = arith.constant 0 : i32
    %c0_i32_0 = arith.constant 0 : i32
    %c0_i32_1 = arith.constant 0 : i32
    return %c0_i32, %c0_i32_0 : i32, i32
  }
  func.func @transform_12(%arg0: i32) -> (i32, i32) {
    %c0_i32 = arith.constant 0 : i32
    %c0_i32_0 = arith.constant 0 : i32
    %c0_i32_1 = arith.constant 0 : i32
    return %c0_i32, %c0_i32_0 : i32, i32
  }
  func.func @transform_13(%arg0: i32) -> (i32, i32) {
    %c0_i32 = arith.constant 0 : i32
    %c0_i32_0 = arith.constant 0 : i32
    %c0_i32_1 = arith.constant 0 : i32
    return %c0_i32, %c0_i32_0 : i32, i32
  }
  func.func @transform_14(%arg0: i32) -> (i32, i32) {
    %c0_i32 = arith.constant 0 : i32
    %c0_i32_0 = arith.constant 0 : i32
    %c0_i32_1 = arith.constant 0 : i32
    return %c0_i32, %c0_i32_0 : i32, i32
  }
  func.func @transform_15(%arg0: i32) -> (i32, i32) {
    %c0_i32 = arith.constant 0 : i32
    %c0_i32_0 = arith.constant 0 : i32
    %c0_i32_1 = arith.constant 0 : i32
    return %c0_i32, %c0_i32_0 : i32, i32
  }
  func.func @transform_16(%arg0: i32) -> (i32, i32) {
    %c0_i32 = arith.constant 0 : i32
    %c0_i32_0 = arith.constant 0 : i32
    %c0_i32_1 = arith.constant 0 : i32
    return %c0_i32, %c0_i32_0 : i32, i32
  }
  func.func @transform_17(%arg0: i32) -> (i32, i32) {
    %c0_i32 = arith.constant 0 : i32
    %c0_i32_0 = arith.constant 0 : i32
    %c0_i32_1 = arith.constant 0 : i32
    return %c0_i32, %c0_i32_0 : i32, i32
  }
  func.func @transform_18(%arg0: i32) -> (i32, i32) {
    %c0_i32 = arith.constant 0 : i32
    %c0_i32_0 = arith.constant 0 : i32
    %c0_i32_1 = arith.constant 0 : i32
    return %c0_i32, %c0_i32_0 : i32, i32
  }
  func.func @transform_19(%arg0: i32) -> (i32, i32) {
    %c0_i32 = arith.constant 0 : i32
    %c0_i32_0 = arith.constant 0 : i32
    %c0_i32_1 = arith.constant 0 : i32
    return %c0_i32, %c0_i32_0 : i32, i32
  }
  func.func @transform_20(%arg0: i32) -> (i32, i32) {
    %c0_i32 = arith.constant 0 : i32
    %c0_i32_0 = arith.constant 0 : i32
    %c0_i32_1 = arith.constant 0 : i32
    return %c0_i32, %c0_i32_0 : i32, i32
  }
  func.func @transform_21(%arg0: i32) -> (i32, i32) {
    %c0_i32 = arith.constant 0 : i32
    %c0_i32_0 = arith.constant 0 : i32
    %c0_i32_1 = arith.constant 0 : i32
    return %c0_i32, %c0_i32_0 : i32, i32
  }
  func.func @transform_22(%arg0: i32) -> (i32, i32) {
    %c0_i32 = arith.constant 0 : i32
    %c0_i32_0 = arith.constant 0 : i32
    %c0_i32_1 = arith.constant 0 : i32
    return %c0_i32, %c0_i32_0 : i32, i32
  }
  func.func @transform_23(%arg0: i32) -> (i32, i32) {
    %c0_i32 = arith.constant 0 : i32
    %c0_i32_0 = arith.constant 0 : i32
    %c0_i32_1 = arith.constant 0 : i32
    return %c0_i32, %c0_i32_0 : i32, i32
  }
  func.func @transform_24(%arg0: i32) -> (i32, i32, i32) {
    %c0_i32 = arith.constant 0 : i32
    %c0_i32_0 = arith.constant 0 : i32
    %c0_i32_1 = arith.constant 0 : i32
    return %arg0, %c0_i32, %c0_i32_0 : i32, i32, i32
  }
}

module attributes {stable_mosaic.version = 11 : i64} {
  func.func @_double_ln_kernel(%arg0: i32, %arg1: memref<1x8x32xf32, #tpu.memory_space<vmem>>, %arg2: memref<1x32xf32, #tpu.memory_space<vmem>>, %arg3: memref<1x32xf32, #tpu.memory_space<vmem>>, %arg4: memref<1x32xf32, #tpu.memory_space<vmem>>, %arg5: memref<1x32xf32, #tpu.memory_space<vmem>>, %arg6: memref<1x8x32xf32, #tpu.memory_space<vmem>>) attributes {dimension_semantics = [#tpu.dimension_semantics<parallel>], iteration_bounds = array<i64: 2>, scalar_prefetch = 0 : i64, scratch_operands = 0 : i64, tpu.core_type = #tpu.core_type<tc>, window_params = [{transform_indices = @transform_0, window_bounds = array<i64: 1, 8, 32>}, {pipeline_mode = #tpu.pipeline_mode<synchronous>, transform_indices = @transform_1, window_bounds = array<i64: 1, 32>}, {pipeline_mode = #tpu.pipeline_mode<synchronous>, transform_indices = @transform_2, window_bounds = array<i64: 1, 32>}, {pipeline_mode = #tpu.pipeline_mode<synchronous>, transform_indices = @transform_3, window_bounds = array<i64: 1, 32>}, {pipeline_mode = #tpu.pipeline_mode<synchronous>, transform_indices = @transform_4, window_bounds = array<i64: 1, 32>}, {transform_indices = @transform_5, window_bounds = array<i64: 1, 8, 32>}]} {
    %c0 = arith.constant 0 : index
    %c0_0 = arith.constant 0 : index
    %c0_1 = arith.constant 0 : index
    %0 = vector.load %arg1[%c0, %c0_0, %c0_1] : memref<1x8x32xf32, #tpu.memory_space<vmem>>, vector<1x8x32xf32>
    %1 = vector.shape_cast %0 : vector<1x8x32xf32> to vector<8x32xf32>
    %c0_2 = arith.constant 0 : index
    %c0_3 = arith.constant 0 : index
    %2 = vector.load %arg2[%c0_2, %c0_3] : memref<1x32xf32, #tpu.memory_space<vmem>>, vector<1x32xf32>
    %c0_4 = arith.constant 0 : index
    %c0_5 = arith.constant 0 : index
    %3 = vector.load %arg3[%c0_4, %c0_5] : memref<1x32xf32, #tpu.memory_space<vmem>>, vector<1x32xf32>
    %cst = arith.constant dense<0.000000e+00> : vector<8xf32>
    %4 = vector.multi_reduction <add>, %1, %cst [1] : vector<8x32xf32> to vector<8xf32>
    %5 = vector.shape_cast %4 : vector<8xf32> to vector<8x1xf32>
    %cst_6 = arith.constant 3.200000e+01 : f32
    %6 = vector.broadcast %cst_6 : f32 to vector<8x1xf32>
    %7 = arith.divf %5, %6 : vector<8x1xf32>
    %8 = vector.broadcast %7 : vector<8x1xf32> to vector<8x32xf32>
    %9 = arith.subf %1, %8 : vector<8x32xf32>
    %10 = arith.mulf %9, %9 : vector<8x32xf32>
    %cst_7 = arith.constant dense<0.000000e+00> : vector<8xf32>
    %11 = vector.multi_reduction <add>, %10, %cst_7 [1] : vector<8x32xf32> to vector<8xf32>
    %12 = vector.shape_cast %11 : vector<8xf32> to vector<8x1xf32>
    %cst_8 = arith.constant 3.200000e+01 : f32
    %13 = vector.broadcast %cst_8 : f32 to vector<8x1xf32>
    %14 = arith.divf %12, %13 : vector<8x1xf32>
    %15 = vector.broadcast %7 : vector<8x1xf32> to vector<8x32xf32>
    %16 = arith.subf %1, %15 : vector<8x32xf32>
    %cst_9 = arith.constant 9.99999974E-6 : f32
    %17 = vector.broadcast %cst_9 : f32 to vector<8x1xf32>
    %18 = arith.addf %14, %17 : vector<8x1xf32>
    %19 = math.rsqrt %18 : vector<8x1xf32>
    %20 = vector.broadcast %19 : vector<8x1xf32> to vector<8x32xf32>
    %21 = arith.mulf %16, %20 : vector<8x32xf32>
    %22 = vector.broadcast %2 : vector<1x32xf32> to vector<8x32xf32>
    %23 = arith.mulf %21, %22 : vector<8x32xf32>
    %24 = vector.broadcast %3 : vector<1x32xf32> to vector<8x32xf32>
    %25 = arith.addf %23, %24 : vector<8x32xf32>
    %c0_10 = arith.constant 0 : index
    %c0_11 = arith.constant 0 : index
    %26 = vector.load %arg4[%c0_10, %c0_11] : memref<1x32xf32, #tpu.memory_space<vmem>>, vector<1x32xf32>
    %c0_12 = arith.constant 0 : index
    %c0_13 = arith.constant 0 : index
    %27 = vector.load %arg5[%c0_12, %c0_13] : memref<1x32xf32, #tpu.memory_space<vmem>>, vector<1x32xf32>
    %cst_14 = arith.constant dense<0.000000e+00> : vector<8xf32>
    %28 = vector.multi_reduction <add>, %25, %cst_14 [1] : vector<8x32xf32> to vector<8xf32>
    %29 = vector.shape_cast %28 : vector<8xf32> to vector<8x1xf32>
    %cst_15 = arith.constant 3.200000e+01 : f32
    %30 = vector.broadcast %cst_15 : f32 to vector<8x1xf32>
    %31 = arith.divf %29, %30 : vector<8x1xf32>
    %32 = vector.broadcast %31 : vector<8x1xf32> to vector<8x32xf32>
    %33 = arith.subf %25, %32 : vector<8x32xf32>
    %34 = arith.mulf %33, %33 : vector<8x32xf32>
    %cst_16 = arith.constant dense<0.000000e+00> : vector<8xf32>
    %35 = vector.multi_reduction <add>, %34, %cst_16 [1] : vector<8x32xf32> to vector<8xf32>
    %36 = vector.shape_cast %35 : vector<8xf32> to vector<8x1xf32>
    %cst_17 = arith.constant 3.200000e+01 : f32
    %37 = vector.broadcast %cst_17 : f32 to vector<8x1xf32>
    %38 = arith.divf %36, %37 : vector<8x1xf32>
    %39 = vector.broadcast %31 : vector<8x1xf32> to vector<8x32xf32>
    %40 = arith.subf %25, %39 : vector<8x32xf32>
    %cst_18 = arith.constant 9.99999974E-6 : f32
    %41 = vector.broadcast %cst_18 : f32 to vector<8x1xf32>
    %42 = arith.addf %38, %41 : vector<8x1xf32>
    %43 = math.rsqrt %42 : vector<8x1xf32>
    %44 = vector.broadcast %43 : vector<8x1xf32> to vector<8x32xf32>
    %45 = arith.mulf %40, %44 : vector<8x32xf32>
    %46 = vector.broadcast %26 : vector<1x32xf32> to vector<8x32xf32>
    %47 = arith.mulf %45, %46 : vector<8x32xf32>
    %48 = vector.broadcast %27 : vector<1x32xf32> to vector<8x32xf32>
    %49 = arith.addf %47, %48 : vector<8x32xf32>
    %c0_19 = arith.constant 0 : index
    %c0_20 = arith.constant 0 : index
    %c0_21 = arith.constant 0 : index
    %50 = vector.load %arg6[%c0_19, %c0_20, %c0_21] : memref<1x8x32xf32, #tpu.memory_space<vmem>>, vector<1x8x32xf32>
    %51 = vector.shape_cast %50 : vector<1x8x32xf32> to vector<8x32xf32>
    %52 = vector.shape_cast %49 : vector<8x32xf32> to vector<1x8x32xf32>
    tpu.vector_store %arg6[%c0_19, %c0_20, %c0_21], %52 {strides = array<i32>} : memref<1x8x32xf32, #tpu.memory_space<vmem>>, vector<1x8x32xf32>,
    return
  }
  func.func @transform_0(%arg0: i32) -> (i32, i32, i32) {
    %c0_i32 = arith.constant 0 : i32
    %c0_i32_0 = arith.constant 0 : i32
    %c0_i32_1 = arith.constant 0 : i32
    return %arg0, %c0_i32, %c0_i32_0 : i32, i32, i32
  }
  func.func @transform_1(%arg0: i32) -> (i32, i32) {
    %c0_i32 = arith.constant 0 : i32
    %c0_i32_0 = arith.constant 0 : i32
    %c0_i32_1 = arith.constant 0 : i32
    return %c0_i32, %c0_i32_0 : i32, i32
  }
  func.func @transform_2(%arg0: i32) -> (i32, i32) {
    %c0_i32 = arith.constant 0 : i32
    %c0_i32_0 = arith.constant 0 : i32
    %c0_i32_1 = arith.constant 0 : i32
    return %c0_i32, %c0_i32_0 : i32, i32
  }
  func.func @transform_3(%arg0: i32) -> (i32, i32) {
    %c0_i32 = arith.constant 0 : i32
    %c0_i32_0 = arith.constant 0 : i32
    %c0_i32_1 = arith.constant 0 : i32
    return %c0_i32, %c0_i32_0 : i32, i32
  }
  func.func @transform_4(%arg0: i32) -> (i32, i32) {
    %c0_i32 = arith.constant 0 : i32
    %c0_i32_0 = arith.constant 0 : i32
    %c0_i32_1 = arith.constant 0 : i32
    return %c0_i32, %c0_i32_0 : i32, i32
  }
  func.func @transform_5(%arg0: i32) -> (i32, i32, i32) {
    %c0_i32 = arith.constant 0 : i32
    %c0_i32_0 = arith.constant 0 : i32
    %c0_i32_1 = arith.constant 0 : i32
    return %arg0, %c0_i32, %c0_i32_0 : i32, i32, i32
  }
}

</mosaic_0001>

<llo_original>
// kernel: ptransformer_forward.8
$region0: #{ptransformer_forward.8}
  #allocation0 [shape = 'u32[]', space=smem, size = 0x4, offset = 0x4, fixed_abs, tag = 'smem constant byte address 0x4 - core index']
  #allocation1 [shape = 'u32[72,128]{1,0:T(1,128)}', space=vmem, size = 0x9000, scoped, tag = 'internal scratch']
  %s0 = inlined_call_operand.vmem [shape: f32[2,10,32], index: 0, kind: input, shape index: {}]
  %s1 = inlined_call_operand.vmem [shape: f32[1,32], index: 1, kind: input, shape index: {}]
  %s2 = inlined_call_operand.vmem [shape: f32[1,32], index: 2, kind: input, shape index: {}]
  %s3 = inlined_call_operand.vmem [shape: f32[2,10,32], index: 3, kind: output, shape index: {}]
  %s4 = sld [smem:[#allocation0]]
  $region45: #{ptransformer_forward.8} parent=0
    _
  %s6 = ssub.s32 1, %s4
  %s7 = scalar_select 0, %s6, %s4
  loop: start=0, step=1, limit=4
  $region2: #{ptransformer_forward.8} parent=0 // loop_pre_header
    _
  $region3: #{ptransformer_forward.8} parent=0 // loop_header
    %s9 = sphi 0, %s13
    %p10 = scmp.ge.s32.totalorder %s9, 4
    %s19 = sphi 0, %s21
    %s22 = sphi 0, %s19
    %s23 = sphi 0, %s22
    %s39 = sphi 0, %s23
    %s43 = sphi 0, %s43
    %s45 = sphi 0, %s43
    %s46 = sphi 0, %s45
    %s60 = sphi 0, %s46
    %s64 = sphi 0, %s64
    %s66 = sphi 0, %s64
    %s67 = sphi 0, %s66
    %s81 = sphi 0, %s67
    %s87 = sphi 0, %s89
    %s90 = sphi 0, %s87
    %s91 = sphi 0, %s90
    %s107 = sphi 0, %s91
  $region4: #{ptransformer_forward.8} parent=0 // loop_header_branch
    %12 = sbr.rel (%p10) target = $region8
  $region5: #{ptransformer_forward.8} parent=0 // loop_body
    %s14 = ssub.s32 %s9, 1
    %s15 = ssub.s32 %s9, 2
    %s16 = sadd.s32 %s9, 1
    %s17 = ssub.s32 %s9, %s16
    %p18 = scmp.eq.s32.totalorder %s17, 0
    %s20 = sadd.s32 %s19, 1
    %s21 = scalar_select %p18, %s19, %s20
    %p24 = pneg %p18
    %p25 = scmp.eq.s32.totalorder %s9, 1
    %p26 = por %p24, %p25
    %p27 = scmp.ne.s32.totalorder %s19, %s22
    %p28 = scmp.eq.s32.totalorder %s9, 0
    %p29 = por %p27, %p28
    %p30 = scmp.ne.s32.totalorder %s19, %s22
    %p31 = scmp.eq.s32.totalorder %s14, 1
    %p32 = por %p30, %p31
    %p33 = scmp.ne.s32.totalorder %s22, %s23
    %p34 = scmp.eq.s32.totalorder %s14, 0
    %p35 = por %p33, %p34
    %p36 = scmp.ne.s32.totalorder %s22, %s23
    %p37 = scmp.eq.s32.totalorder %s15, 1
    %p38 = por %p36, %p37
    %p40 = scmp.ne.s32.totalorder %s23, %s39
    %p41 = scmp.eq.s32.totalorder %s15, 0
    %p42 = por %p40, %p41
    %s44 = sadd.s32 %s43, 1
    %p47 = scmp.eq.s32.totalorder %s9, 1
    %p48 = scmp.ne.s32.totalorder %s43, %s45
    %p49 = scmp.eq.s32.totalorder %s9, 0
    %p50 = por %p48, %p49
    %p51 = scmp.ne.s32.totalorder %s43, %s45
    %p52 = scmp.eq.s32.totalorder %s14, 1
    %p53 = por %p51, %p52
    %p54 = scmp.ne.s32.totalorder %s45, %s46
    %p55 = scmp.eq.s32.totalorder %s14, 0
    %p56 = por %p54, %p55
    %p57 = scmp.ne.s32.totalorder %s45, %s46
    %p58 = scmp.eq.s32.totalorder %s15, 1
    %p59 = por %p57, %p58
    %p61 = scmp.ne.s32.totalorder %s46, %s60
    %p62 = scmp.eq.s32.totalorder %s15, 0
    %p63 = por %p61, %p62
    %s65 = sadd.s32 %s64, 1
    %p68 = scmp.eq.s32.totalorder %s9, 1
    %p69 = scmp.ne.s32.totalorder %s64, %s66
    %p70 = scmp.eq.s32.totalorder %s9, 0
    %p71 = por %p69, %p70
    %p72 = scmp.ne.s32.totalorder %s64, %s66
    %p73 = scmp.eq.s32.totalorder %s14, 1
    %p74 = por %p72, %p73
    %p75 = scmp.ne.s32.totalorder %s66, %s67
    %p76 = scmp.eq.s32.totalorder %s14, 0
    %p77 = por %p75, %p76
    %p78 = scmp.ne.s32.totalorder %s66, %s67
    %p79 = scmp.eq.s32.totalorder %s15, 1
    %p80 = por %p78, %p79
    %p82 = scmp.ne.s32.totalorder %s67, %s81
    %p83 = scmp.eq.s32.totalorder %s15, 0
    %p84 = por %p82, %p83
    %s85 = ssub.s32 %s9, %s16
    %p86 = scmp.eq.s32.totalorder %s85, 0
    %s88 = sadd.s32 %s87, 1
    %s89 = scalar_select %p86, %s87, %s88
    %p92 = pneg %p86
    %p93 = scmp.eq.s32.totalorder %s9, 1
    %p94 = por %p92, %p93
    %p95 = scmp.ne.s32.totalorder %s87, %s90
    %p96 = scmp.eq.s32.totalorder %s9, 0
    %p97 = por %p95, %p96
    %p98 = scmp.ne.s32.totalorder %s87, %s90
    %p99 = scmp.eq.s32.totalorder %s14, 1
    %p100 = por %p98, %p99
    %p101 = scmp.ne.s32.totalorder %s90, %s91
    %p102 = scmp.eq.s32.totalorder %s14, 0
    %p103 = por %p101, %p102
    %p104 = scmp.ne.s32.totalorder %s90, %s91
    %p105 = scmp.eq.s32.totalorder %s15, 1
    %p106 = por %p104, %p105
    %p108 = scmp.ne.s32.totalorder %s91, %s107
    %p109 = scmp.eq.s32.totalorder %s15, 0
    %p110 = por %p108, %p109
    %p111 = scmp.le.s32.totalorder 1, %s9
    %p112 = scmp.lt.s32.totalorder %s9, 3
    %p113 = pnand %p111, %p112
    %p114 = pneg %p113
    // Predicated region
    $region9: #{ptransformer_forward.8} parent=5 // pred_check
      _
    $region10: #{ptransformer_forward.8} parent=5 // pred_check_branch
      %116 = sbr.rel (%p113) target = $region12
    $region11: #{ptransformer_forward.8} parent=5 // pred_region
      %s117 = ssub.s32 %s9, 1
      // Predicated region
      $region13: #{ptransformer_forward.8} parent=11 // pred_check
        %p118 = pneg %p56
      $region14: #{ptransformer_forward.8} parent=11 // pred_check_branch
        %120 = sbr.rel (%p118) target = $region16
      $region15: #{ptransformer_forward.8} parent=11 // pred_region
        _
      $region16: #{ptransformer_forward.8} parent=11 // pred_fallthru
        _
      // Predicated region
      $region17: #{ptransformer_forward.8} parent=11 // pred_check
        %p121 = pneg %p77
      $region18: #{ptransformer_forward.8} parent=11 // pred_check_branch
        %123 = sbr.rel (%p121) target = $region20
      $region19: #{ptransformer_forward.8} parent=11 // pred_region
        _
      $region20: #{ptransformer_forward.8} parent=11 // pred_fallthru
        _
    $region12: #{ptransformer_forward.8} parent=5 // pred_fallthru
      _
    %p124 = scmp.lt.s32.totalorder %s9, 2
    // Predicated region
    $region21: #{ptransformer_forward.8} parent=5 // pred_check
      %p125 = pneg %p124
    $region22: #{ptransformer_forward.8} parent=5 // pred_check_branch
      %127 = sbr.rel (%p125) target = $region24
    $region23: #{ptransformer_forward.8} parent=5 // pred_region
      // Predicated region
      $region25: #{ptransformer_forward.8} parent=23 // pred_check
        %p128 = pneg %p29
      $region26: #{ptransformer_forward.8} parent=23 // pred_check_branch
        %130 = sbr.rel (%p128) target = $region28
      $region27: #{ptransformer_forward.8} parent=23 // pred_region
        %p131 = scmp.lt.s32.totalorder %s9, 1
        %s132 = scalar_select %p131, %s9, 1
        %s133 = smul.addr %s132, 2
        %s134 = smul.addr %s133, 8
        %s135 = scalar_lea.vmem %s0, %s134
      $region28: #{ptransformer_forward.8} parent=23 // pred_fallthru
        _
    $region24: #{ptransformer_forward.8} parent=5 // pred_fallthru
      _
    %p136 = scmp.le.s32.totalorder 1, %s9
    %p137 = scmp.lt.s32.totalorder %s9, 3
    %p138 = pnand %p136, %p137
    %p139 = pneg %p138
    // Predicated region
    $region29: #{ptransformer_forward.8} parent=5 // pred_check
      _
    $region30: #{ptransformer_forward.8} parent=5 // pred_check_branch
      %141 = sbr.rel (%p138) target = $region32
    $region31: #{ptransformer_forward.8} parent=5 // pred_region
      %s142 = ssub.s32 %s9, 1
      %p143 = scmp.lt.s32.totalorder %s14, 1
      %s144 = scalar_select %p143, %s14, 1
      %s145 = smul.addr %s144, 2
      %s146 = smul.addr %s145, 8
      %s147 = scalar_lea.vmem %s0, %s146
      %p148 = pneg %p35
      %p149 = pneg %p32
      %p150 = pneg %p56
      %p151 = pneg %p53
      %p152 = pneg %p77
      %p153 = pneg %p74
      %p154 = pneg %p103
      %p155 = pneg %p100
      %p156 = scmp.lt.s32.totalorder %s14, 1
      %s157 = scalar_select %p156, %s14, 1
      %s158 = smul.addr %s157, 2
      %s159 = smul.addr %s158, 8
      %s160 = scalar_lea.vmem %s3, %s159
      %p161 = scmp.lt.s32.totalorder %s14, 1
      %s162 = scalar_select %p161, %s14, 1
      %s163 = smul.addr %s162, 2
      %s164 = smul.addr %s163, 8
      %s165 = scalar_lea.vmem %s0, %s164
      %p166 = scmp.lt.s32.totalorder %s14, 1
      %s167 = scalar_select %p166, %s14, 1
      %s168 = smul.addr %s167, 2
      %s169 = smul.addr %s168, 8
      %s170 = scalar_lea.vmem %s3, %s169
      %v171 = vld [vmem:[%s165] sm:$0xff]
      %v172 = vld [vmem:[%s165 + $0x8] sm:$0x3]
      %v173 = vld [vmem:[%s1] sm:$0x1]
      %v174 = vld [vmem:[%s2] sm:$0x1]
      %vm175 = vcmask 261120
      %v176 = vsel %vm175, %v171, 0.0
      %177 = vadd.xlane.f32.xlu0 %v176
      %v178 = vpop.xlane.xlu0 %177
      %vm179 = vcmask 254976
      %v180 = vsel %vm179, %v172, 0.0
      %181 = vadd.xlane.f32.xlu0 %v180
      %v182 = vpop.xlane.xlu0 %181
      %v183 = vrcp.pop 32.0
      %v184 = vmul.f32 32.0, %v183
      %v185 = vsub.f32 1.0, %v184
      %v186 = vmul.f32 %v183, %v185
      %v187 = vadd.f32 %v183, %v186
      %vm188 = vweird.f32 %v183
      %v189 = vsel %vm188, %v183, %v187
      %v190 = vmul.f32 %v178, %v189
      %v191 = vmul.f32 %v182, %v189
      %v192 = vsub.f32 %v171, %v190
      %v193 = vsub.f32 %v172, %v191
      %v194 = vmul.f32 %v192, %v192
      %v195 = vmul.f32 %v193, %v193
      %v196 = vsel %vm175, %v194, 0.0
      %197 = vadd.xlane.f32.xlu0 %v196
      %v198 = vpop.xlane.xlu0 %197
      %v199 = vsel %vm179, %v195, 0.0
      %200 = vadd.xlane.f32.xlu0 %v199
      %v201 = vpop.xlane.xlu0 %200
      %v202 = vmul.f32 %v198, %v189
      %v203 = vmul.f32 %v201, %v189
      %v204 = vadd.f32 %v202, 1e-05
      %v205 = vadd.f32 %v203, 1e-05
      %v206 = vrsqrt.pop %v204
      %v207 = vmul.f32 %v206, %v204
      %v208 = vmul.f32 %v207, %v206
      %v209 = vmul.f32 0.5, %v208
      %v210 = vsub.f32 1.5, %v209
      %v211 = vmul.f32 %v206, %v210
      %vm212 = vweird.f32 %v204
      %vm213 = vweird.f32 %v206
      %vm214 = vmor %vm212, %vm213
      %v215 = vsel %vm214, %v206, %v211
      %v216 = vrsqrt.pop %v205
      %v217 = vmul.f32 %v216, %v205
      %v218 = vmul.f32 %v217, %v216
      %v219 = vmul.f32 0.5, %v218
      %v220 = vsub.f32 1.5, %v219
      %v221 = vmul.f32 %v216, %v220
      %vm222 = vweird.f32 %v205
      %vm223 = vweird.f32 %v216
      %vm224 = vmor %vm222, %vm223
      %v225 = vsel %vm224, %v216, %v221
      %v226 = vmul.f32 %v192, %v215
      %v227 = vmul.f32 %v193, %v225
      %v229 = vperm.slane %v173, 0
      %v231 = vmul.f32 %v226, %v229
      %v232 = vmul.f32 %v227, %v229
      %v234 = vperm.slane %v174, 0
      %v236 = vadd.f32 %v231, %v234
      %v237 = vadd.f32 %v232, %v234
      %238 = vst.msk [vmem:[%s170] sm:$0xff] %vm175, %v236
      %239 = vst.msk [vmem:[%s170 + $0x8] sm:$0x3] %vm179, %v237
      %p240 = scmp.lt.s32.totalorder %s14, 1
      %s241 = scalar_select %p240, %s14, 1
      %s242 = smul.addr %s241, 2
      %s243 = smul.addr %s242, 8
      %s244 = scalar_lea.vmem %s3, %s243
      // Predicated region
      $region33: #{ptransformer_forward.8} parent=31 // pred_check
        %p245 = pneg %p100
      $region34: #{ptransformer_forward.8} parent=31 // pred_check_branch
        %247 = sbr.rel (%p245) target = $region36
      $region35: #{ptransformer_forward.8} parent=31 // pred_region
        _
      $region36: #{ptransformer_forward.8} parent=31 // pred_fallthru
        _
    $region32: #{ptransformer_forward.8} parent=5 // pred_fallthru
      _
    %p248 = scmp.le.s32.totalorder 2, %s9
    // Predicated region
    $region37: #{ptransformer_forward.8} parent=5 // pred_check
      %p249 = pneg %p248
    $region38: #{ptransformer_forward.8} parent=5 // pred_check_branch
      %251 = sbr.rel (%p249) target = $region40
    $region39: #{ptransformer_forward.8} parent=5 // pred_region
      %s252 = ssub.s32 %s9, 2
      // Predicated region
      $region41: #{ptransformer_forward.8} parent=39 // pred_check
        %p253 = pneg %p106
      $region42: #{ptransformer_forward.8} parent=39 // pred_check_branch
        %255 = sbr.rel (%p253) target = $region44
      $region43: #{ptransformer_forward.8} parent=39 // pred_region
        %p256 = scmp.lt.s32.totalorder %s15, 1
        %s257 = scalar_select %p256, %s15, 1
        %s258 = smul.addr %s257, 2
        %s259 = smul.addr %s258, 8
        %s260 = scalar_lea.vmem %s3, %s259
      $region44: #{ptransformer_forward.8} parent=39 // pred_fallthru
        _
    $region40: #{ptransformer_forward.8} parent=5 // pred_fallthru
      _
  $region6: #{ptransformer_forward.8} parent=0 // loop_footer
    %s13 = sadd.s32 1, %s9
  $region7: #{ptransformer_forward.8} parent=0 // loop_footer_branch
    %8 = sbr.rel target = $region3
  $region8: #{ptransformer_forward.8} parent=0 // loop_exit
    _

// kernel: ptransformer_forward.11
$region0: #{ptransformer_forward.11}
  #allocation0 [shape = 'u32[]', space=smem, size = 0x4, offset = 0x4, fixed_abs, tag = 'smem constant byte address 0x4 - core index']
  #allocation1 [shape = 'u32[72,128]{1,0:T(1,128)}', space=vmem, size = 0x9000, scoped, tag = 'internal scratch']
  %s0 = inlined_call_operand.vmem [shape: f32[2,8,32], index: 0, kind: input, shape index: {}]
  %s1 = inlined_call_operand.vmem [shape: f32[1,32], index: 1, kind: input, shape index: {}]
  %s2 = inlined_call_operand.hbm [shape: f32[1,32], index: 2, kind: input, shape index: {}]
  %s3 = inlined_call_operand.hbm [shape: f32[1,32], index: 3, kind: input, shape index: {}]
  %s4 = inlined_call_operand.hbm [shape: f32[1,32], index: 4, kind: input, shape index: {}]
  %s5 = inlined_call_operand.hbm [shape: f32[2,8,32], index: 5, kind: output, shape index: {}]
  %s6 = sld [smem:[#allocation0]]
  $region65: #{ptransformer_forward.11} parent=0
    _
  %s8 = ssub.s32 1, %s6
  %s9 = scalar_select 0, %s8, %s6
  $region1: #{ptransformer_forward.11} parent=0
    #allocation2 [shape = 'u8[512]{0}', space=vmem, size = 0x400, scoped, tag = 'input window, operand 2, single buffered']
    #allocation3 [shape = 's32[2]{0}', space=sflag, size = 0x8, scoped, tag = 'scoped memory for ptransformer_forward.11']
    #allocation4 [shape = 's32[2]{0}', space=sflag, size = 0x8, scoped, tag = 'scoped memory for ptransformer_forward.11']
    #allocation5 [shape = 'u8[512]{0}', space=vmem, size = 0x400, scoped, tag = 'input window, operand 3, single buffered']
    #allocation6 [shape = 's32[1]{0}', space=sflag, size = 0x4, scoped, tag = 'scoped memory for ptransformer_forward.11']
    #allocation7 [shape = 'u8[512]{0}', space=vmem, size = 0x400, scoped, tag = 'input window, operand 4, single buffered']
    #allocation8 [shape = 'u8[8192]{0}', space=vmem, size = 0x2000, scoped, tag = 'output window, operand 0']
    %10 = vsyncpa [#allocation3], 0
    %11 = vsyncpa [#allocation6], 0
    %12 = vsyncpa [#allocation4], 0
    %s13 = scalar_lea.sflag [#allocation4], 1
    %14 = vsyncpa %s13, 0
    loop: start=0, step=1, limit=4
    $region2: #{ptransformer_forward.11} parent=1 // loop_pre_header
      _
    $region3: #{ptransformer_forward.11} parent=1 // loop_header
      %s16 = sphi 0, %s20
      %p17 = scmp.ge.s32.totalorder %s16, 4
      %s26 = sphi 0, %s28
      %s29 = sphi 0, %s26
      %s30 = sphi 0, %s29
      %s46 = sphi 0, %s30
      %s50 = sphi 0, %s50
      %s52 = sphi 0, %s50
      %s53 = sphi 0, %s52
      %s67 = sphi 0, %s53
      %s71 = sphi 0, %s71
      %s73 = sphi 0, %s71
      %s74 = sphi 0, %s73
      %s88 = sphi 0, %s74
      %s92 = sphi 0, %s92
      %s94 = sphi 0, %s92
      %s95 = sphi 0, %s94
      %s109 = sphi 0, %s95
      %s113 = sphi 0, %s113
      %s115 = sphi 0, %s113
      %s116 = sphi 0, %s115
      %s130 = sphi 0, %s116
      %s136 = sphi 0, %s138
      %s139 = sphi 0, %s136
      %s140 = sphi 0, %s139
      %s156 = sphi 0, %s140
    $region4: #{ptransformer_forward.11} parent=1 // loop_header_branch
      %19 = sbr.rel (%p17) target = $region8
    $region5: #{ptransformer_forward.11} parent=1 // loop_body
      %s21 = ssub.s32 %s16, 1
      %s22 = ssub.s32 %s16, 2
      %s23 = sadd.s32 %s16, 1
      %s24 = ssub.s32 %s16, %s23
      %p25 = scmp.eq.s32.totalorder %s24, 0
      %s27 = sadd.s32 %s26, 1
      %s28 = scalar_select %p25, %s26, %s27
      %p31 = pneg %p25
      %p32 = scmp.eq.s32.totalorder %s16, 1
      %p33 = por %p31, %p32
      %p34 = scmp.ne.s32.totalorder %s26, %s29
      %p35 = scmp.eq.s32.totalorder %s16, 0
      %p36 = por %p34, %p35
      %p37 = scmp.ne.s32.totalorder %s26, %s29
      %p38 = scmp.eq.s32.totalorder %s21, 1
      %p39 = por %p37, %p38
      %p40 = scmp.ne.s32.totalorder %s29, %s30
      %p41 = scmp.eq.s32.totalorder %s21, 0
      %p42 = por %p40, %p41
      %p43 = scmp.ne.s32.totalorder %s29, %s30
      %p44 = scmp.eq.s32.totalorder %s22, 1
      %p45 = por %p43, %p44
      %p47 = scmp.ne.s32.totalorder %s30, %s46
      %p48 = scmp.eq.s32.totalorder %s22, 0
      %p49 = por %p47, %p48
      %s51 = sadd.s32 %s50, 1
      %p54 = scmp.eq.s32.totalorder %s16, 1
      %p55 = scmp.ne.s32.totalorder %s50, %s52
      %p56 = scmp.eq.s32.totalorder %s16, 0
      %p57 = por %p55, %p56
      %p58 = scmp.ne.s32.totalorder %s50, %s52
      %p59 = scmp.eq.s32.totalorder %s21, 1
      %p60 = por %p58, %p59
      %p61 = scmp.ne.s32.totalorder %s52, %s53
      %p62 = scmp.eq.s32.totalorder %s21, 0
      %p63 = por %p61, %p62
      %p64 = scmp.ne.s32.totalorder %s52, %s53
      %p65 = scmp.eq.s32.totalorder %s22, 1
      %p66 = por %p64, %p65
      %p68 = scmp.ne.s32.totalorder %s53, %s67
      %p69 = scmp.eq.s32.totalorder %s22, 0
      %p70 = por %p68, %p69
      %s72 = sadd.s32 %s71, 1
      %p75 = scmp.eq.s32.totalorder %s16, 1
      %p76 = scmp.ne.s32.totalorder %s71, %s73
      %p77 = scmp.eq.s32.totalorder %s16, 0
      %p78 = por %p76, %p77
      %p79 = scmp.ne.s32.totalorder %s71, %s73
      %p80 = scmp.eq.s32.totalorder %s21, 1
      %p81 = por %p79, %p80
      %p82 = scmp.ne.s32.totalorder %s73, %s74
      %p83 = scmp.eq.s32.totalorder %s21, 0
      %p84 = por %p82, %p83
      %p85 = scmp.ne.s32.totalorder %s73, %s74
      %p86 = scmp.eq.s32.totalorder %s22, 1
      %p87 = por %p85, %p86
      %p89 = scmp.ne.s32.totalorder %s74, %s88
      %p90 = scmp.eq.s32.totalorder %s22, 0
      %p91 = por %p89, %p90
      %s93 = sadd.s32 %s92, 1
      %p96 = scmp.eq.s32.totalorder %s16, 1
      %p97 = scmp.ne.s32.totalorder %s92, %s94
      %p98 = scmp.eq.s32.totalorder %s16, 0
      %p99 = por %p97, %p98
      %p100 = scmp.ne.s32.totalorder %s92, %s94
      %p101 = scmp.eq.s32.totalorder %s21, 1
      %p102 = por %p100, %p101
      %p103 = scmp.ne.s32.totalorder %s94, %s95
      %p104 = scmp.eq.s32.totalorder %s21, 0
      %p105 = por %p103, %p104
      %p106 = scmp.ne.s32.totalorder %s94, %s95
      %p107 = scmp.eq.s32.totalorder %s22, 1
      %p108 = por %p106, %p107
      %p110 = scmp.ne.s32.totalorder %s95, %s109
      %p111 = scmp.eq.s32.totalorder %s22, 0
      %p112 = por %p110, %p111
      %s114 = sadd.s32 %s113, 1
      %p117 = scmp.eq.s32.totalorder %s16, 1
      %p118 = scmp.ne.s32.totalorder %s113, %s115
      %p119 = scmp.eq.s32.totalorder %s16, 0
      %p120 = por %p118, %p119
      %p121 = scmp.ne.s32.totalorder %s113, %s115
      %p122 = scmp.eq.s32.totalorder %s21, 1
      %p123 = por %p121, %p122
      %p124 = scmp.ne.s32.totalorder %s115, %s116
      %p125 = scmp.eq.s32.totalorder %s21, 0
      %p126 = por %p124, %p125
      %p127 = scmp.ne.s32.totalorder %s115, %s116
      %p128 = scmp.eq.s32.totalorder %s22, 1
      %p129 = por %p127, %p128
      %p131 = scmp.ne.s32.totalorder %s116, %s130
      %p132 = scmp.eq.s32.totalorder %s22, 0
      %p133 = por %p131, %p132
      %s134 = ssub.s32 %s16, %s23
      %p135 = scmp.eq.s32.totalorder %s134, 0
      %s137 = sadd.s32 %s136, 1
      %s138 = scalar_select %p135, %s136, %s137
      %p141 = pneg %p135
      %p142 = scmp.eq.s32.totalorder %s16, 1
      %p143 = por %p141, %p142
      %p144 = scmp.ne.s32.totalorder %s136, %s139
      %p145 = scmp.eq.s32.totalorder %s16, 0
      %p146 = por %p144, %p145
      %p147 = scmp.ne.s32.totalorder %s136, %s139
      %p148 = scmp.eq.s32.totalorder %s21, 1
      %p149 = por %p147, %p148
      %p150 = scmp.ne.s32.totalorder %s139, %s140
      %p151 = scmp.eq.s32.totalorder %s21, 0
      %p152 = por %p150, %p151
      %p153 = scmp.ne.s32.totalorder %s139, %s140
      %p154 = scmp.eq.s32.totalorder %s22, 1
      %p155 = por %p153, %p154
      %p157 = scmp.ne.s32.totalorder %s140, %s156
      %p158 = scmp.eq.s32.totalorder %s22, 0
      %p159 = por %p157, %p158
      %p160 = scmp.le.s32.totalorder 1, %s16
      %p161 = scmp.lt.s32.totalorder %s16, 3
      %p162 = pnand %p160, %p161
      %p163 = pneg %p162
      // Predicated region
      $region9: #{ptransformer_forward.11} parent=5 // pred_check
        _
      $region10: #{ptransformer_forward.11} parent=5 // pred_check_branch
        %165 = sbr.rel (%p162) target = $region12
      $region11: #{ptransformer_forward.11} parent=5 // pred_region
        %s166 = ssub.s32 %s16, 1
        // Predicated region
        $region13: #{ptransformer_forward.11} parent=11 // pred_check
          %p167 = pneg %p63
        $region14: #{ptransformer_forward.11} parent=11 // pred_check_branch
          %169 = sbr.rel (%p167) target = $region16
        $region15: #{ptransformer_forward.11} parent=11 // pred_region
          _
        $region16: #{ptransformer_forward.11} parent=11 // pred_fallthru
          _
        // Predicated region
        $region17: #{ptransformer_forward.11} parent=11 // pred_check
          %p170 = pneg %p84
        $region18: #{ptransformer_forward.11} parent=11 // pred_check_branch
          %172 = sbr.rel (%p170) target = $region20
        $region19: #{ptransformer_forward.11} parent=11 // pred_region
          %174 = vsyncadd [#allocation3], 0
          %s176 = sshll.u32 %s2, 4
          %s177 = int_to_ptr.hbm [resolvable:$true] %s176
          %s178 = sshll.u32 [#allocation2], 4
          %s179 = int_to_ptr.vmem [resolvable:$true] %s178
          %181 = dma.hbm_to_vmem [thread:$0]  %s177, 16, %s179, [#allocation3]
        $region20: #{ptransformer_forward.11} parent=11 // pred_fallthru
          _
        // Predicated region
        $region21: #{ptransformer_forward.11} parent=11 // pred_check
          %p182 = pneg %p105
        $region22: #{ptransformer_forward.11} parent=11 // pred_check_branch
          %184 = sbr.rel (%p182) target = $region24
        $region23: #{ptransformer_forward.11} parent=11 // pred_region
          %186 = vsyncadd [#allocation6], 0
          %s188 = sshll.u32 %s3, 4
          %s189 = int_to_ptr.hbm [resolvable:$true] %s188
          %s190 = sshll.u32 [#allocation5], 4
          %s191 = int_to_ptr.vmem [resolvable:$true] %s190
          %193 = dma.hbm_to_vmem [thread:$0]  %s189, 16, %s191, [#allocation6]
        $region24: #{ptransformer_forward.11} parent=11 // pred_fallthru
          _
        // Predicated region
        $region25: #{ptransformer_forward.11} parent=11 // pred_check
          %p194 = pneg %p126
        $region26: #{ptransformer_forward.11} parent=11 // pred_check_branch
          %196 = sbr.rel (%p194) target = $region28
        $region27: #{ptransformer_forward.11} parent=11 // pred_region
          %198 = vsyncadd [#allocation6], 0
          %s200 = sshll.u32 %s4, 4
          %s201 = int_to_ptr.hbm [resolvable:$true] %s200
          %s202 = sshll.u32 [#allocation7], 4
          %s203 = int_to_ptr.vmem [resolvable:$true] %s202
          %205 = dma.hbm_to_vmem [thread:$0]  %s201, 16, %s203, [#allocation6]
        $region28: #{ptransformer_forward.11} parent=11 // pred_fallthru
          _
      $region12: #{ptransformer_forward.11} parent=5 // pred_fallthru
        _
      %p206 = scmp.lt.s32.totalorder %s16, 2
      // Predicated region
      $region29: #{ptransformer_forward.11} parent=5 // pred_check
        %p207 = pneg %p206
      $region30: #{ptransformer_forward.11} parent=5 // pred_check_branch
        %209 = sbr.rel (%p207) target = $region32
      $region31: #{ptransformer_forward.11} parent=5 // pred_region
        // Predicated region
        $region33: #{ptransformer_forward.11} parent=31 // pred_check
          %p210 = pneg %p36
        $region34: #{ptransformer_forward.11} parent=31 // pred_check_branch
          %212 = sbr.rel (%p210) target = $region36
        $region35: #{ptransformer_forward.11} parent=31 // pred_region
          %p213 = scmp.lt.s32.totalorder %s16, 1
          %s214 = scalar_select %p213, %s16, 1
          %s215 = smul.addr %s214, 8
          %s216 = scalar_lea.vmem %s0, %s215
        $region36: #{ptransformer_forward.11} parent=31 // pred_fallthru
          _
      $region32: #{ptransformer_forward.11} parent=5 // pred_fallthru
        _
      %p217 = scmp.le.s32.totalorder 1, %s16
      %p218 = scmp.lt.s32.totalorder %s16, 3
      %p219 = pnand %p217, %p218
      %p220 = pneg %p219
      // Predicated region
      $region37: #{ptransformer_forward.11} parent=5 // pred_check
        _
      $region38: #{ptransformer_forward.11} parent=5 // pred_check_branch
        %222 = sbr.rel (%p219) target = $region40
      $region39: #{ptransformer_forward.11} parent=5 // pred_region
        %s223 = ssub.s32 %s16, 1
        // Predicated region
        $region41: #{ptransformer_forward.11} parent=39 // pred_check
          %p224 = pneg %p84
        $region42: #{ptransformer_forward.11} parent=39 // pred_check_branch
          %226 = sbr.rel (%p224) target = $region44
        $region43: #{ptransformer_forward.11} parent=39 // pred_region
          %228 = dma.done [#allocation3], 16
        $region44: #{ptransformer_forward.11} parent=39 // pred_fallthru
          _
        // Predicated region
        $region45: #{ptransformer_forward.11} parent=39 // pred_check
          %p229 = pneg %p105
        $region46: #{ptransformer_forward.11} parent=39 // pred_check_branch
          %231 = sbr.rel (%p229) target = $region48
        $region47: #{ptransformer_forward.11} parent=39 // pred_region
          %233 = dma.done [#allocation6], 16
        $region48: #{ptransformer_forward.11} parent=39 // pred_fallthru
          _
        // Predicated region
        $region49: #{ptransformer_forward.11} parent=39 // pred_check
          %p234 = pneg %p126
        $region50: #{ptransformer_forward.11} parent=39 // pred_check_branch
          %236 = sbr.rel (%p234) target = $region52
        $region51: #{ptransformer_forward.11} parent=39 // pred_region
          %238 = dma.done [#allocation6], 16
        $region52: #{ptransformer_forward.11} parent=39 // pred_fallthru
          _
        %p239 = scmp.lt.s32.totalorder %s21, 1
        %s240 = scalar_select %p239, %s21, 1
        %s241 = smul.addr %s240, 8
        %s242 = scalar_lea.vmem %s0, %s241
        %p243 = pneg %p42
        %p244 = pneg %p39
        %p245 = pneg %p63
        %p246 = pneg %p60
        %p247 = pneg %p84
        %p248 = pneg %p81
        %p249 = pneg %p105
        %p250 = pneg %p102
        %p251 = pneg %p126
        %p252 = pneg %p123
        %p253 = pneg %p152
        %p254 = pneg %p149
        %s255 = sand.u32 %s139, 1
        %s256 = scalar_lea.sflag [#allocation4], %s255
        %s257 = sand.u32 %s139, 1
        %s258 = smul.addr %s257, 8
        %s259 = scalar_lea.vmem [#allocation8], %s258
        %p260 = scmp.lt.s32.totalorder %s21, 1
        %s261 = scalar_select %p260, %s21, 1
        %s262 = smul.addr %s261, 8
        %s263 = scalar_lea.vmem %s0, %s262
        %v264 = vld [vmem:[%s263] sm:$0xff]
        %v265 = vld [vmem:[%s1] sm:$0x1]
        %v266 = vld [vmem:[#allocation2] sm:$0x1]
        %vm267 = vcmask 261120
        %v268 = vsel %vm267, %v264, 0.0
        %269 = vadd.xlane.f32.xlu0 %v268
        %v270 = vpop.xlane.xlu0 %269
        %v271 = vrcp.pop 32.0
        %v272 = vmul.f32 32.0, %v271
        %v273 = vsub.f32 1.0, %v272
        %v274 = vmul.f32 %v271, %v273
        %v275 = vadd.f32 %v271, %v274
        %vm276 = vweird.f32 %v271
        %v277 = vsel %vm276, %v271, %v275
        %v278 = vmul.f32 %v270, %v277
        %v279 = vsub.f32 %v264, %v278
        %v280 = vmul.f32 %v279, %v279
        %v281 = vsel %vm267, %v280, 0.0
        %282 = vadd.xlane.f32.xlu0 %v281
        %v283 = vpop.xlane.xlu0 %282
        %v284 = vmul.f32 %v283, %v277
        %v285 = vadd.f32 %v284, 1e-05
        %v286 = vrsqrt.pop %v285
        %v287 = vmul.f32 %v286, %v285
        %v288 = vmul.f32 %v287, %v286
        %v289 = vmul.f32 0.5, %v288
        %v290 = vsub.f32 1.5, %v289
        %v291 = vmul.f32 %v286, %v290
        %vm292 = vweird.f32 %v285
        %vm293 = vweird.f32 %v286
        %vm294 = vmor %vm292, %vm293
        %v295 = vsel %vm294, %v286, %v291
        %v296 = vmul.f32 %v279, %v295
        %v298 = vperm.slane %v265, 0
        %v300 = vmul.f32 %v296, %v298
        %v302 = vperm.slane %v266, 0
        %v304 = vadd.f32 %v300, %v302
        %v305 = vld [vmem:[#allocation5] sm:$0x1]
        %v306 = vld [vmem:[#allocation7] sm:$0x1]
        %v307 = vsel %vm267, %v304, 0.0
        %308 = vadd.xlane.f32.xlu0 %v307
        %v309 = vpop.xlane.xlu0 %308
        %v310 = vmul.f32 %v309, %v277
        %v311 = vsub.f32 %v304, %v310
        %v312 = vmul.f32 %v311, %v311
        %v313 = vsel %vm267, %v312, 0.0
        %314 = vadd.xlane.f32.xlu0 %v313
        %v315 = vpop.xlane.xlu0 %314
        %v316 = vmul.f32 %v315, %v277
        %v317 = vadd.f32 %v316, 1e-05
        %v318 = vrsqrt.pop %v317
        %v319 = vmul.f32 %v318, %v317
        %v320 = vmul.f32 %v319, %v318
        %v321 = vmul.f32 0.5, %v320
        %v322 = vsub.f32 1.5, %v321
        %v323 = vmul.f32 %v318, %v322
        %vm324 = vweird.f32 %v317
        %vm325 = vweird.f32 %v318
        %vm326 = vmor %vm324, %vm325
        %v327 = vsel %vm326, %v318, %v323
        %v328 = vmul.f32 %v311, %v327
        %v330 = vperm.slane %v305, 0
        %v332 = vmul.f32 %v328, %v330
        %v334 = vperm.slane %v306, 0
        %v336 = vadd.f32 %v332, %v334
        %337 = vst.msk [vmem:[%s259] sm:$0xff] %vm267, %v336
        %s338 = sand.u32 %s139, 1
        %s339 = scalar_lea.sflag [#allocation4], %s338
        %s340 = sand.u32 %s139, 1
        %s341 = smul.addr %s340, 8
        %s342 = scalar_lea.vmem [#allocation8], %s341
        // Predicated region
        $region53: #{ptransformer_forward.11} parent=39 // pred_check
          %p343 = pneg %p149
        $region54: #{ptransformer_forward.11} parent=39 // pred_check_branch
          %345 = sbr.rel (%p343) target = $region56
        $region55: #{ptransformer_forward.11} parent=39 // pred_region
          %347 = vsyncadd %s339, 0
          %s348 = smul.addr %s21, 8
          %s349 = scalar_lea.hbm %s5, %s348
          %s351 = sshll.u32 %s342, 4
          %s352 = int_to_ptr.vmem [resolvable:$true] %s351
          %s353 = sshll.u32 %s349, 4
          %s354 = int_to_ptr.hbm [resolvable:$true] %s353
          %356 = dma.vmem_to_hbm [thread:$0]  %s352, 128, %s354, %s339
        $region56: #{ptransformer_forward.11} parent=39 // pred_fallthru
          _
      $region40: #{ptransformer_forward.11} parent=5 // pred_fallthru
        _
      %p357 = scmp.le.s32.totalorder 2, %s16
      // Predicated region
      $region57: #{ptransformer_forward.11} parent=5 // pred_check
        %p358 = pneg %p357
      $region58: #{ptransformer_forward.11} parent=5 // pred_check_branch
        %360 = sbr.rel (%p358) target = $region60
      $region59: #{ptransformer_forward.11} parent=5 // pred_region
        %s361 = ssub.s32 %s16, 2
        // Predicated region
        $region61: #{ptransformer_forward.11} parent=59 // pred_check
          %p362 = pneg %p155
        $region62: #{ptransformer_forward.11} parent=59 // pred_check_branch
          %364 = sbr.rel (%p362) target = $region64
        $region63: #{ptransformer_forward.11} parent=59 // pred_region
          %s365 = sand.u32 %s140, 1
          %s366 = scalar_lea.sflag [#allocation4], %s365
          %s367 = sand.u32 %s140, 1
          %s368 = smul.addr %s367, 8
          %s369 = scalar_lea.vmem [#allocation8], %s368
          %371 = dma.done %s366, 128
        $region64: #{ptransformer_forward.11} parent=59 // pred_fallthru
          _
      $region60: #{ptransformer_forward.11} parent=5 // pred_fallthru
        _
    $region6: #{ptransformer_forward.11} parent=1 // loop_footer
      %s20 = sadd.s32 1, %s16
    $region7: #{ptransformer_forward.11} parent=1 // loop_footer_branch
      %15 = sbr.rel target = $region3
    $region8: #{ptransformer_forward.11} parent=1 // loop_exit
      _
    %372 = vsyncpa [#allocation3], 1
    %s373 = scalar_lea.sflag [#allocation3], 1
    %374 = vsyncpa %s373, 1
    %375 = vsyncpa [#allocation6], 1
    %376 = vsyncpa [#allocation4], 1
    %s377 = scalar_lea.sflag [#allocation4], 1
    %378 = vsyncpa %s377, 1

// kernel: ptransformer_forward.6
$region0: #{ptransformer_forward.6}
  #allocation0 [shape = 'u32[]', space=smem, size = 0x4, offset = 0x4, fixed_abs, tag = 'smem constant byte address 0x4 - core index']
  #allocation1 [shape = 'u32[72,128]{1,0:T(1,128)}', space=vmem, size = 0x9000, scoped, tag = 'internal scratch']
  %s0 = inlined_call_operand.vmem [shape: f32[2,10,32], index: 0, kind: input, shape index: {}]
  %s1 = inlined_call_operand.vmem [shape: f32[2,1,10], index: 1, kind: input, shape index: {}]
  %s2 = inlined_call_operand.vmem [shape: f32[1,32], index: 2, kind: input, shape index: {}]
  %s3 = inlined_call_operand.vmem [shape: f32[1,32], index: 3, kind: input, shape index: {}]
  %s4 = inlined_call_operand.vmem [shape: f32[32,96], index: 4, kind: input, shape index: {}]
  %s5 = inlined_call_operand.vmem [shape: f32[1,96], index: 5, kind: input, shape index: {}]
  %s6 = inlined_call_operand.vmem [shape: f32[32,32], index: 6, kind: input, shape index: {}]
  %s7 = inlined_call_operand.vmem [shape: f32[1,32], index: 7, kind: input, shape index: {}]
  %s8 = inlined_call_operand.vmem [shape: f32[1,32], index: 8, kind: input, shape index: {}]
  %s9 = inlined_call_operand.vmem [shape: f32[1,32], index: 9, kind: input, shape index: {}]
  %s10 = inlined_call_operand.vmem [shape: f32[32,64], index: 10, kind: input, shape index: {}]
  %s11 = inlined_call_operand.vmem [shape: f32[1,64], index: 11, kind: input, shape index: {}]
  %s12 = inlined_call_operand.vmem [shape: f32[64,32], index: 12, kind: input, shape index: {}]
  %s13 = inlined_call_operand.vmem [shape: f32[1,32], index: 13, kind: input, shape index: {}]
  %s14 = inlined_call_operand.vmem [shape: f32[2,10,32], index: 14, kind: output, shape index: {}]
  %s15 = sld [smem:[#allocation0]]
  $region89: #{ptransformer_forward.6} parent=0
    _
  %s17 = ssub.s32 1, %s15
  %s18 = scalar_select 0, %s17, %s15
  loop: start=0, step=1, limit=4
  $region2: #{ptransformer_forward.6} parent=0 // loop_pre_header
    _
  $region3: #{ptransformer_forward.6} parent=0 // loop_header
    %s20 = sphi 0, %s24
    %p21 = scmp.ge.s32.totalorder %s20, 4
    %s30 = sphi 0, %s32
    %s33 = sphi 0, %s30
    %s34 = sphi 0, %s33
    %s50 = sphi 0, %s34
    %s56 = sphi 0, %s58
    %s59 = sphi 0, %s56
    %s60 = sphi 0, %s59
    %s76 = sphi 0, %s60
    %s80 = sphi 0, %s80
    %s82 = sphi 0, %s80
    %s83 = sphi 0, %s82
    %s97 = sphi 0, %s83
    %s101 = sphi 0, %s101
    %s103 = sphi 0, %s101
    %s104 = sphi 0, %s103
    %s118 = sphi 0, %s104
    %s122 = sphi 0, %s122
    %s124 = sphi 0, %s122
    %s125 = sphi 0, %s124
    %s139 = sphi 0, %s125
    %s143 = sphi 0, %s143
    %s145 = sphi 0, %s143
    %s146 = sphi 0, %s145
    %s160 = sphi 0, %s146
    %s164 = sphi 0, %s164
    %s166 = sphi 0, %s164
    %s167 = sphi 0, %s166
    %s181 = sphi 0, %s167
    %s185 = sphi 0, %s185
    %s187 = sphi 0, %s185
    %s188 = sphi 0, %s187
    %s202 = sphi 0, %s188
    %s206 = sphi 0, %s206
    %s208 = sphi 0, %s206
    %s209 = sphi 0, %s208
    %s223 = sphi 0, %s209
    %s227 = sphi 0, %s227
    %s229 = sphi 0, %s227
    %s230 = sphi 0, %s229
    %s244 = sphi 0, %s230
    %s248 = sphi 0, %s248
    %s250 = sphi 0, %s248
    %s251 = sphi 0, %s250
    %s265 = sphi 0, %s251
    %s269 = sphi 0, %s269
    %s271 = sphi 0, %s269
    %s272 = sphi 0, %s271
    %s286 = sphi 0, %s272
    %s290 = sphi 0, %s290
    %s292 = sphi 0, %s290
    %s293 = sphi 0, %s292
    %s307 = sphi 0, %s293
    %s311 = sphi 0, %s311
    %s313 = sphi 0, %s311
    %s314 = sphi 0, %s313
    %s328 = sphi 0, %s314
    %s334 = sphi 0, %s336
    %s337 = sphi 0, %s334
    %s338 = sphi 0, %s337
    %s354 = sphi 0, %s338
  $region4: #{ptransformer_forward.6} parent=0 // loop_header_branch
    %23 = sbr.rel (%p21) target = $region8
  $region5: #{ptransformer_forward.6} parent=0 // loop_body
    %s25 = ssub.s32 %s20, 1
    %s26 = ssub.s32 %s20, 2
    %s27 = sadd.s32 %s20, 1
    %s28 = ssub.s32 %s20, %s27
    %p29 = scmp.eq.s32.totalorder %s28, 0
    %s31 = sadd.s32 %s30, 1
    %s32 = scalar_select %p29, %s30, %s31
    %p35 = pneg %p29
    %p36 = scmp.eq.s32.totalorder %s20, 1
    %p37 = por %p35, %p36
    %p38 = scmp.ne.s32.totalorder %s30, %s33
    %p39 = scmp.eq.s32.totalorder %s20, 0
    %p40 = por %p38, %p39
    %p41 = scmp.ne.s32.totalorder %s30, %s33
    %p42 = scmp.eq.s32.totalorder %s25, 1
    %p43 = por %p41, %p42
    %p44 = scmp.ne.s32.totalorder %s33, %s34
    %p45 = scmp.eq.s32.totalorder %s25, 0
    %p46 = por %p44, %p45
    %p47 = scmp.ne.s32.totalorder %s33, %s34
    %p48 = scmp.eq.s32.totalorder %s26, 1
    %p49 = por %p47, %p48
    %p51 = scmp.ne.s32.totalorder %s34, %s50
    %p52 = scmp.eq.s32.totalorder %s26, 0
    %p53 = por %p51, %p52
    %s54 = ssub.s32 %s20, %s27
    %p55 = scmp.eq.s32.totalorder %s54, 0
    %s57 = sadd.s32 %s56, 1
    %s58 = scalar_select %p55, %s56, %s57
    %p61 = pneg %p55
    %p62 = scmp.eq.s32.totalorder %s20, 1
    %p63 = por %p61, %p62
    %p64 = scmp.ne.s32.totalorder %s56, %s59
    %p65 = scmp.eq.s32.totalorder %s20, 0
    %p66 = por %p64, %p65
    %p67 = scmp.ne.s32.totalorder %s56, %s59
    %p68 = scmp.eq.s32.totalorder %s25, 1
    %p69 = por %p67, %p68
    %p70 = scmp.ne.s32.totalorder %s59, %s60
    %p71 = scmp.eq.s32.totalorder %s25, 0
    %p72 = por %p70, %p71
    %p73 = scmp.ne.s32.totalorder %s59, %s60
    %p74 = scmp.eq.s32.totalorder %s26, 1
    %p75 = por %p73, %p74
    %p77 = scmp.ne.s32.totalorder %s60, %s76
    %p78 = scmp.eq.s32.totalorder %s26, 0
    %p79 = por %p77, %p78
    %s81 = sadd.s32 %s80, 1
    %p84 = scmp.eq.s32.totalorder %s20, 1
    %p85 = scmp.ne.s32.totalorder %s80, %s82
    %p86 = scmp.eq.s32.totalorder %s20, 0
    %p87 = por %p85, %p86
    %p88 = scmp.ne.s32.totalorder %s80, %s82
    %p89 = scmp.eq.s32.totalorder %s25, 1
    %p90 = por %p88, %p89
    %p91 = scmp.ne.s32.totalorder %s82, %s83
    %p92 = scmp.eq.s32.totalorder %s25, 0
    %p93 = por %p91, %p92
    %p94 = scmp.ne.s32.totalorder %s82, %s83
    %p95 = scmp.eq.s32.totalorder %s26, 1
    %p96 = por %p94, %p95
    %p98 = scmp.ne.s32.totalorder %s83, %s97
    %p99 = scmp.eq.s32.totalorder %s26, 0
    %p100 = por %p98, %p99
    %s102 = sadd.s32 %s101, 1
    %p105 = scmp.eq.s32.totalorder %s20, 1
    %p106 = scmp.ne.s32.totalorder %s101, %s103
    %p107 = scmp.eq.s32.totalorder %s20, 0
    %p108 = por %p106, %p107
    %p109 = scmp.ne.s32.totalorder %s101, %s103
    %p110 = scmp.eq.s32.totalorder %s25, 1
    %p111 = por %p109, %p110
    %p112 = scmp.ne.s32.totalorder %s103, %s104
    %p113 = scmp.eq.s32.totalorder %s25, 0
    %p114 = por %p112, %p113
    %p115 = scmp.ne.s32.totalorder %s103, %s104
    %p116 = scmp.eq.s32.totalorder %s26, 1
    %p117 = por %p115, %p116
    %p119 = scmp.ne.s32.totalorder %s104, %s118
    %p120 = scmp.eq.s32.totalorder %s26, 0
    %p121 = por %p119, %p120
    %s123 = sadd.s32 %s122, 1
    %p126 = scmp.eq.s32.totalorder %s20, 1
    %p127 = scmp.ne.s32.totalorder %s122, %s124
    %p128 = scmp.eq.s32.totalorder %s20, 0
    %p129 = por %p127, %p128
    %p130 = scmp.ne.s32.totalorder %s122, %s124
    %p131 = scmp.eq.s32.totalorder %s25, 1
    %p132 = por %p130, %p131
    %p133 = scmp.ne.s32.totalorder %s124, %s125
    %p134 = scmp.eq.s32.totalorder %s25, 0
    %p135 = por %p133, %p134
    %p136 = scmp.ne.s32.totalorder %s124, %s125
    %p137 = scmp.eq.s32.totalorder %s26, 1
    %p138 = por %p136, %p137
    %p140 = scmp.ne.s32.totalorder %s125, %s139
    %p141 = scmp.eq.s32.totalorder %s26, 0
    %p142 = por %p140, %p141
    %s144 = sadd.s32 %s143, 1
    %p147 = scmp.eq.s32.totalorder %s20, 1
    %p148 = scmp.ne.s32.totalorder %s143, %s145
    %p149 = scmp.eq.s32.totalorder %s20, 0
    %p150 = por %p148, %p149
    %p151 = scmp.ne.s32.totalorder %s143, %s145
    %p152 = scmp.eq.s32.totalorder %s25, 1
    %p153 = por %p151, %p152
    %p154 = scmp.ne.s32.totalorder %s145, %s146
    %p155 = scmp.eq.s32.totalorder %s25, 0
    %p156 = por %p154, %p155
    %p157 = scmp.ne.s32.totalorder %s145, %s146
    %p158 = scmp.eq.s32.totalorder %s26, 1
    %p159 = por %p157, %p158
    %p161 = scmp.ne.s32.totalorder %s146, %s160
    %p162 = scmp.eq.s32.totalorder %s26, 0
    %p163 = por %p161, %p162
    %s165 = sadd.s32 %s164, 1
    %p168 = scmp.eq.s32.totalorder %s20, 1
    %p169 = scmp.ne.s32.totalorder %s164, %s166
    %p170 = scmp.eq.s32.totalorder %s20, 0
    %p171 = por %p169, %p170
    %p172 = scmp.ne.s32.totalorder %s164, %s166
    %p173 = scmp.eq.s32.totalorder %s25, 1
    %p174 = por %p172, %p173
    %p175 = scmp.ne.s32.totalorder %s166, %s167
    %p176 = scmp.eq.s32.totalorder %s25, 0
    %p177 = por %p175, %p176
    %p178 = scmp.ne.s32.totalorder %s166, %s167
    %p179 = scmp.eq.s32.totalorder %s26, 1
    %p180 = por %p178, %p179
    %p182 = scmp.ne.s32.totalorder %s167, %s181
    %p183 = scmp.eq.s32.totalorder %s26, 0
    %p184 = por %p182, %p183
    %s186 = sadd.s32 %s185, 1
    %p189 = scmp.eq.s32.totalorder %s20, 1
    %p190 = scmp.ne.s32.totalorder %s185, %s187
    %p191 = scmp.eq.s32.totalorder %s20, 0
    %p192 = por %p190, %p191
    %p193 = scmp.ne.s32.totalorder %s185, %s187
    %p194 = scmp.eq.s32.totalorder %s25, 1
    %p195 = por %p193, %p194
    %p196 = scmp.ne.s32.totalorder %s187, %s188
    %p197 = scmp.eq.s32.totalorder %s25, 0
    %p198 = por %p196, %p197
    %p199 = scmp.ne.s32.totalorder %s187, %s188
    %p200 = scmp.eq.s32.totalorder %s26, 1
    %p201 = por %p199, %p200
    %p203 = scmp.ne.s32.totalorder %s188, %s202
    %p204 = scmp.eq.s32.totalorder %s26, 0
    %p205 = por %p203, %p204
    %s207 = sadd.s32 %s206, 1
    %p210 = scmp.eq.s32.totalorder %s20, 1
    %p211 = scmp.ne.s32.totalorder %s206, %s208
    %p212 = scmp.eq.s32.totalorder %s20, 0
    %p213 = por %p211, %p212
    %p214 = scmp.ne.s32.totalorder %s206, %s208
    %p215 = scmp.eq.s32.totalorder %s25, 1
    %p216 = por %p214, %p215
    %p217 = scmp.ne.s32.totalorder %s208, %s209
    %p218 = scmp.eq.s32.totalorder %s25, 0
    %p219 = por %p217, %p218
    %p220 = scmp.ne.s32.totalorder %s208, %s209
    %p221 = scmp.eq.s32.totalorder %s26, 1
    %p222 = por %p220, %p221
    %p224 = scmp.ne.s32.totalorder %s209, %s223
    %p225 = scmp.eq.s32.totalorder %s26, 0
    %p226 = por %p224, %p225
    %s228 = sadd.s32 %s227, 1
    %p231 = scmp.eq.s32.totalorder %s20, 1
    %p232 = scmp.ne.s32.totalorder %s227, %s229
    %p233 = scmp.eq.s32.totalorder %s20, 0
    %p234 = por %p232, %p233
    %p235 = scmp.ne.s32.totalorder %s227, %s229
    %p236 = scmp.eq.s32.totalorder %s25, 1
    %p237 = por %p235, %p236
    %p238 = scmp.ne.s32.totalorder %s229, %s230
    %p239 = scmp.eq.s32.totalorder %s25, 0
    %p240 = por %p238, %p239
    %p241 = scmp.ne.s32.totalorder %s229, %s230
    %p242 = scmp.eq.s32.totalorder %s26, 1
    %p243 = por %p241, %p242
    %p245 = scmp.ne.s32.totalorder %s230, %s244
    %p246 = scmp.eq.s32.totalorder %s26, 0
    %p247 = por %p245, %p246
    %s249 = sadd.s32 %s248, 1
    %p252 = scmp.eq.s32.totalorder %s20, 1
    %p253 = scmp.ne.s32.totalorder %s248, %s250
    %p254 = scmp.eq.s32.totalorder %s20, 0
    %p255 = por %p253, %p254
    %p256 = scmp.ne.s32.totalorder %s248, %s250
    %p257 = scmp.eq.s32.totalorder %s25, 1
    %p258 = por %p256, %p257
    %p259 = scmp.ne.s32.totalorder %s250, %s251
    %p260 = scmp.eq.s32.totalorder %s25, 0
    %p261 = por %p259, %p260
    %p262 = scmp.ne.s32.totalorder %s250, %s251
    %p263 = scmp.eq.s32.totalorder %s26, 1
    %p264 = por %p262, %p263
    %p266 = scmp.ne.s32.totalorder %s251, %s265
    %p267 = scmp.eq.s32.totalorder %s26, 0
    %p268 = por %p266, %p267
    %s270 = sadd.s32 %s269, 1
    %p273 = scmp.eq.s32.totalorder %s20, 1
    %p274 = scmp.ne.s32.totalorder %s269, %s271
    %p275 = scmp.eq.s32.totalorder %s20, 0
    %p276 = por %p274, %p275
    %p277 = scmp.ne.s32.totalorder %s269, %s271
    %p278 = scmp.eq.s32.totalorder %s25, 1
    %p279 = por %p277, %p278
    %p280 = scmp.ne.s32.totalorder %s271, %s272
    %p281 = scmp.eq.s32.totalorder %s25, 0
    %p282 = por %p280, %p281
    %p283 = scmp.ne.s32.totalorder %s271, %s272
    %p284 = scmp.eq.s32.totalorder %s26, 1
    %p285 = por %p283, %p284
    %p287 = scmp.ne.s32.totalorder %s272, %s286
    %p288 = scmp.eq.s32.totalorder %s26, 0
    %p289 = por %p287, %p288
    %s291 = sadd.s32 %s290, 1
    %p294 = scmp.eq.s32.totalorder %s20, 1
    %p295 = scmp.ne.s32.totalorder %s290, %s292
    %p296 = scmp.eq.s32.totalorder %s20, 0
    %p297 = por %p295, %p296
    %p298 = scmp.ne.s32.totalorder %s290, %s292
    %p299 = scmp.eq.s32.totalorder %s25, 1
    %p300 = por %p298, %p299
    %p301 = scmp.ne.s32.totalorder %s292, %s293
    %p302 = scmp.eq.s32.totalorder %s25, 0
    %p303 = por %p301, %p302
    %p304 = scmp.ne.s32.totalorder %s292, %s293
    %p305 = scmp.eq.s32.totalorder %s26, 1
    %p306 = por %p304, %p305
    %p308 = scmp.ne.s32.totalorder %s293, %s307
    %p309 = scmp.eq.s32.totalorder %s26, 0
    %p310 = por %p308, %p309
    %s312 = sadd.s32 %s311, 1
    %p315 = scmp.eq.s32.totalorder %s20, 1
    %p316 = scmp.ne.s32.totalorder %s311, %s313
    %p317 = scmp.eq.s32.totalorder %s20, 0
    %p318 = por %p316, %p317
    %p319 = scmp.ne.s32.totalorder %s311, %s313
    %p320 = scmp.eq.s32.totalorder %s25, 1
    %p321 = por %p319, %p320
    %p322 = scmp.ne.s32.totalorder %s313, %s314
    %p323 = scmp.eq.s32.totalorder %s25, 0
    %p324 = por %p322, %p323
    %p325 = scmp.ne.s32.totalorder %s313, %s314
    %p326 = scmp.eq.s32.totalorder %s26, 1
    %p327 = por %p325, %p326
    %p329 = scmp.ne.s32.totalorder %s314, %s328
    %p330 = scmp.eq.s32.totalorder %s26, 0
    %p331 = por %p329, %p330
    %s332 = ssub.s32 %s20, %s27
    %p333 = scmp.eq.s32.totalorder %s332, 0
    %s335 = sadd.s32 %s334, 1
    %s336 = scalar_select %p333, %s334, %s335
    %p339 = pneg %p333
    %p340 = scmp.eq.s32.totalorder %s20, 1
    %p341 = por %p339, %p340
    %p342 = scmp.ne.s32.totalorder %s334, %s337
    %p343 = scmp.eq.s32.totalorder %s20, 0
    %p344 = por %p342, %p343
    %p345 = scmp.ne.s32.totalorder %s334, %s337
    %p346 = scmp.eq.s32.totalorder %s25, 1
    %p347 = por %p345, %p346
    %p348 = scmp.ne.s32.totalorder %s337, %s338
    %p349 = scmp.eq.s32.totalorder %s25, 0
    %p350 = por %p348, %p349
    %p351 = scmp.ne.s32.totalorder %s337, %s338
    %p352 = scmp.eq.s32.totalorder %s26, 1
    %p353 = por %p351, %p352
    %p355 = scmp.ne.s32.totalorder %s338, %s354
    %p356 = scmp.eq.s32.totalorder %s26, 0
    %p357 = por %p355, %p356
    %p358 = scmp.le.s32.totalorder 1, %s20
    %p359 = scmp.lt.s32.totalorder %s20, 3
    %p360 = pnand %p358, %p359
    %p361 = pneg %p360
    // Predicated region
    $region9: #{ptransformer_forward.6} parent=5 // pred_check
      _
    $region10: #{ptransformer_forward.6} parent=5 // pred_check_branch
      %363 = sbr.rel (%p360) target = $region12
    $region11: #{ptransformer_forward.6} parent=5 // pred_region
      %s364 = ssub.s32 %s20, 1
      // Predicated region
      $region13: #{ptransformer_forward.6} parent=11 // pred_check
        %p365 = pneg %p93
      $region14: #{ptransformer_forward.6} parent=11 // pred_check_branch
        %367 = sbr.rel (%p365) target = $region16
      $region15: #{ptransformer_forward.6} parent=11 // pred_region
        _
      $region16: #{ptransformer_forward.6} parent=11 // pred_fallthru
        _
      // Predicated region
      $region17: #{ptransformer_forward.6} parent=11 // pred_check
        %p368 = pneg %p114
      $region18: #{ptransformer_forward.6} parent=11 // pred_check_branch
        %370 = sbr.rel (%p368) target = $region20
      $region19: #{ptransformer_forward.6} parent=11 // pred_region
        _
      $region20: #{ptransformer_forward.6} parent=11 // pred_fallthru
        _
      // Predicated region
      $region21: #{ptransformer_forward.6} parent=11 // pred_check
        %p371 = pneg %p135
      $region22: #{ptransformer_forward.6} parent=11 // pred_check_branch
        %373 = sbr.rel (%p371) target = $region24
      $region23: #{ptransformer_forward.6} parent=11 // pred_region
        _
      $region24: #{ptransformer_forward.6} parent=11 // pred_fallthru
        _
      // Predicated region
      $region25: #{ptransformer_forward.6} parent=11 // pred_check
        %p374 = pneg %p156
      $region26: #{ptransformer_forward.6} parent=11 // pred_check_branch
        %376 = sbr.rel (%p374) target = $region28
      $region27: #{ptransformer_forward.6} parent=11 // pred_region
        _
      $region28: #{ptransformer_forward.6} parent=11 // pred_fallthru
        _
      // Predicated region
      $region29: #{ptransformer_forward.6} parent=11 // pred_check
        %p377 = pneg %p177
      $region30: #{ptransformer_forward.6} parent=11 // pred_check_branch
        %379 = sbr.rel (%p377) target = $region32
      $region31: #{ptransformer_forward.6} parent=11 // pred_region
        _
      $region32: #{ptransformer_forward.6} parent=11 // pred_fallthru
        _
      // Predicated region
      $region33: #{ptransformer_forward.6} parent=11 // pred_check
        %p380 = pneg %p198
      $region34: #{ptransformer_forward.6} parent=11 // pred_check_branch
        %382 = sbr.rel (%p380) target = $region36
      $region35: #{ptransformer_forward.6} parent=11 // pred_region
        _
      $region36: #{ptransformer_forward.6} parent=11 // pred_fallthru
        _
      // Predicated region
      $region37: #{ptransformer_forward.6} parent=11 // pred_check
        %p383 = pneg %p219
      $region38: #{ptransformer_forward.6} parent=11 // pred_check_branch
        %385 = sbr.rel (%p383) target = $region40
      $region39: #{ptransformer_forward.6} parent=11 // pred_region
        _
      $region40: #{ptransformer_forward.6} parent=11 // pred_fallthru
        _
      // Predicated region
      $region41: #{ptransformer_forward.6} parent=11 // pred_check
        %p386 = pneg %p240
      $region42: #{ptransformer_forward.6} parent=11 // pred_check_branch
        %388 = sbr.rel (%p386) target = $region44
      $region43: #{ptransformer_forward.6} parent=11 // pred_region
        _
      $region44: #{ptransformer_forward.6} parent=11 // pred_fallthru
        _
      // Predicated region
      $region45: #{ptransformer_forward.6} parent=11 // pred_check
        %p389 = pneg %p261
      $region46: #{ptransformer_forward.6} parent=11 // pred_check_branch
        %391 = sbr.rel (%p389) target = $region48
      $region47: #{ptransformer_forward.6} parent=11 // pred_region
        _
      $region48: #{ptransformer_forward.6} parent=11 // pred_fallthru
        _
      // Predicated region
      $region49: #{ptransformer_forward.6} parent=11 // pred_check
        %p392 = pneg %p282
      $region50: #{ptransformer_forward.6} parent=11 // pred_check_branch
        %394 = sbr.rel (%p392) target = $region52
      $region51: #{ptransformer_forward.6} parent=11 // pred_region
        _
      $region52: #{ptransformer_forward.6} parent=11 // pred_fallthru
        _
      // Predicated region
      $region53: #{ptransformer_forward.6} parent=11 // pred_check
        %p395 = pneg %p303
      $region54: #{ptransformer_forward.6} parent=11 // pred_check_branch
        %397 = sbr.rel (%p395) target = $region56
      $region55: #{ptransformer_forward.6} parent=11 // pred_region
        _
      $region56: #{ptransformer_forward.6} parent=11 // pred_fallthru
        _
      // Predicated region
      $region57: #{ptransformer_forward.6} parent=11 // pred_check
        %p398 = pneg %p324
      $region58: #{ptransformer_forward.6} parent=11 // pred_check_branch
        %400 = sbr.rel (%p398) target = $region60
      $region59: #{ptransformer_forward.6} parent=11 // pred_region
        _
      $region60: #{ptransformer_forward.6} parent=11 // pred_fallthru
        _
    $region12: #{ptransformer_forward.6} parent=5 // pred_fallthru
      _
    %p401 = scmp.lt.s32.totalorder %s20, 2
    // Predicated region
    $region61: #{ptransformer_forward.6} parent=5 // pred_check
      %p402 = pneg %p401
    $region62: #{ptransformer_forward.6} parent=5 // pred_check_branch
      %404 = sbr.rel (%p402) target = $region64
    $region63: #{ptransformer_forward.6} parent=5 // pred_region
      // Predicated region
      $region65: #{ptransformer_forward.6} parent=63 // pred_check
        %p405 = pneg %p40
      $region66: #{ptransformer_forward.6} parent=63 // pred_check_branch
        %407 = sbr.rel (%p405) target = $region68
      $region67: #{ptransformer_forward.6} parent=63 // pred_region
        %p408 = scmp.lt.s32.totalorder %s20, 1
        %s409 = scalar_select %p408, %s20, 1
        %s410 = smul.addr %s409, 2
        %s411 = smul.addr %s410, 8
        %s412 = scalar_lea.vmem %s0, %s411
      $region68: #{ptransformer_forward.6} parent=63 // pred_fallthru
        _
      // Predicated region
      $region69: #{ptransformer_forward.6} parent=63 // pred_check
        %p413 = pneg %p66
      $region70: #{ptransformer_forward.6} parent=63 // pred_check_branch
        %415 = sbr.rel (%p413) target = $region72
      $region71: #{ptransformer_forward.6} parent=63 // pred_region
        %p416 = scmp.lt.s32.totalorder %s20, 1
        %s417 = scalar_select %p416, %s20, 1
        %s418 = scalar_lea.vmem %s1, %s417
      $region72: #{ptransformer_forward.6} parent=63 // pred_fallthru
        _
    $region64: #{ptransformer_forward.6} parent=5 // pred_fallthru
      _
    %p419 = scmp.le.s32.totalorder 1, %s20
    %p420 = scmp.lt.s32.totalorder %s20, 3
    %p421 = pnand %p419, %p420
    %p422 = pneg %p421
    // Predicated region
    $region73: #{ptransformer_forward.6} parent=5 // pred_check
      _
    $region74: #{ptransformer_forward.6} parent=5 // pred_check_branch
      %424 = sbr.rel (%p421) target = $region76
    $region75: #{ptransformer_forward.6} parent=5 // pred_region
      %s425 = ssub.s32 %s20, 1
      %p426 = scmp.lt.s32.totalorder %s25, 1
      %s427 = scalar_select %p426, %s25, 1
      %s428 = smul.addr %s427, 2
      %s429 = smul.addr %s428, 8
      %s430 = scalar_lea.vmem %s0, %s429
      %p431 = pneg %p46
      %p432 = pneg %p43
      %p433 = scmp.lt.s32.totalorder %s25, 1
      %s434 = scalar_select %p433, %s25, 1
      %s435 = scalar_lea.vmem %s1, %s434
      %p436 = pneg %p72
      %p437 = pneg %p69
      %p438 = pneg %p93
      %p439 = pneg %p90
      %p440 = pneg %p114
      %p441 = pneg %p111
      %p442 = pneg %p135
      %p443 = pneg %p132
      %p444 = pneg %p156
      %p445 = pneg %p153
      %p446 = pneg %p177
      %p447 = pneg %p174
      %p448 = pneg %p198
      %p449 = pneg %p195
      %p450 = pneg %p219
      %p451 = pneg %p216
      %p452 = pneg %p240
      %p453 = pneg %p237
      %p454 = pneg %p261
      %p455 = pneg %p258
      %p456 = pneg %p282
      %p457 = pneg %p279
      %p458 = pneg %p303
      %p459 = pneg %p300
      %p460 = pneg %p324
      %p461 = pneg %p321
      %p462 = pneg %p350
      %p463 = pneg %p347
      %p464 = scmp.lt.s32.totalorder %s25, 1
      %s465 = scalar_select %p464, %s25, 1
      %s466 = smul.addr %s465, 2
      %s467 = smul.addr %s466, 8
      %s468 = scalar_lea.vmem %s14, %s467
      %p469 = scmp.lt.s32.totalorder %s25, 1
      %s470 = scalar_select %p469, %s25, 1
      %s471 = smul.addr %s470, 2
      %s472 = smul.addr %s471, 8
      %s473 = scalar_lea.vmem %s0, %s472
      %p474 = scmp.lt.s32.totalorder %s25, 1
      %s475 = scalar_select %p474, %s25, 1
      %s476 = scalar_lea.vmem %s1, %s475
      %p477 = scmp.lt.s32.totalorder %s25, 1
      %s478 = scalar_select %p477, %s25, 1
      %s479 = smul.addr %s478, 2
      %s480 = smul.addr %s479, 8
      %s481 = scalar_lea.vmem %s14, %s480
      %v482 = vld [vmem:[%s473] sm:$0xff]
      %v483 = vld [vmem:[%s473 + $0x8] sm:$0x3]
      %v484 = vld [vmem:[%s476] sm:$0x1]
      %v485 = vld [vmem:[%s2] sm:$0x1]
      %v486 = vld [vmem:[%s3] sm:$0x1]
      %vm487 = vcmask 261120
      %v488 = vsel %vm487, %v482, 0.0
      %489 = vadd.xlane.f32.xlu0 %v488
      %v490 = vpop.xlane.xlu0 %489
      %vm491 = vcmask 254976
      %v492 = vsel %vm491, %v483, 0.0
      %493 = vadd.xlane.f32.xlu0 %v492
      %v494 = vpop.xlane.xlu0 %493
      %v495 = vrcp.pop 32.0
      %v496 = vmul.f32 32.0, %v495
      %v497 = vsub.f32 1.0, %v496
      %v498 = vmul.f32 %v495, %v497
      %v499 = vadd.f32 %v495, %v498
      %vm500 = vweird.f32 %v495
      %v501 = vsel %vm500, %v495, %v499
      %v502 = vmul.f32 %v490, %v501
      %v503 = vmul.f32 %v494, %v501
      %v504 = vsub.f32 %v482, %v502
      %v505 = vsub.f32 %v483, %v503
      %v506 = vmul.f32 %v504, %v504
      %v507 = vmul.f32 %v505, %v505
      %v508 = vsel %vm487, %v506, 0.0
      %509 = vadd.xlane.f32.xlu0 %v508
      %v510 = vpop.xlane.xlu0 %509
      %v511 = vsel %vm491, %v507, 0.0
      %512 = vadd.xlane.f32.xlu0 %v511
      %v513 = vpop.xlane.xlu0 %512
      %v514 = vmul.f32 %v510, %v501
      %v515 = vmul.f32 %v513, %v501
      %v516 = vadd.f32 %v514, 1e-05
      %v517 = vadd.f32 %v515, 1e-05
      %v518 = vrsqrt.pop %v516
      %v519 = vmul.f32 %v518, %v516
      %v520 = vmul.f32 %v519, %v518
      %v521 = vmul.f32 0.5, %v520
      %v522 = vsub.f32 1.5, %v521
      %v523 = vmul.f32 %v518, %v522
      %vm524 = vweird.f32 %v516
      %vm525 = vweird.f32 %v518
      %vm526 = vmor %vm524, %vm525
      %v527 = vsel %vm526, %v518, %v523
      %v528 = vrsqrt.pop %v517
      %v529 = vmul.f32 %v528, %v517
      %v530 = vmul.f32 %v529, %v528
      %v531 = vmul.f32 0.5, %v530
      %v532 = vsub.f32 1.5, %v531
      %v533 = vmul.f32 %v528, %v532
      %vm534 = vweird.f32 %v517
      %vm535 = vweird.f32 %v528
      %vm536 = vmor %vm534, %vm535
      %v537 = vsel %vm536, %v528, %v533
      %v538 = vmul.f32 %v504, %v527
      %v539 = vmul.f32 %v505, %v537
      %v541 = vperm.slane %v485, 0
      %v543 = vmul.f32 %v538, %v541
      %v544 = vmul.f32 %v539, %v541
      %v546 = vperm.slane %v486, 0
      %v548 = vadd.f32 %v543, %v546
      %v549 = vadd.f32 %v544, %v546
      %v550 = vld [vmem:[%s4] sm:$0xff]
      %v551 = vld [vmem:[%s4 + $0x8] sm:$0xff]
      %v552 = vld [vmem:[%s4 + $0x10] sm:$0xff]
      %v553 = vld [vmem:[%s4 + $0x18] sm:$0xff]
      %v554 = vld [vmem:[%s5] sm:$0x1]
      %v556 = vperm.slane %v554, 0
      %v559 = vsel %vm487, %v548, 0
      %v562 = vsel %vm487, %v549, 0
      %564 = vmatpush.msra.mxu0 0.0
      %565 = vmatpush.msra.mxu0 0.0
      %566 = vmatpush.msra.mxu0 0.0
      %567 = vmatpush.msra.mxu0 0.0
      %568 = vmatpush.msra.mxu0 0.0
      %569 = vmatpush.msra.mxu0 0.0
      %570 = vmatpush.msra.mxu0 0.0
      %571 = vmatpush.msra.mxu0 0.0
      %572 = vmatpush.msra.mxu0 0.0
      %573 = vmatpush.msra.mxu0 0.0
      %574 = vmatpush.msra.mxu0 0.0
      %575 = vmatpush.msra.mxu0 0.0
      %576 = vmatpush.msra.mxu0 %v553
      %577 = vmatpush.msra.mxu0 %v552
      %578 = vmatpush.msra.mxu0 %v551
      %579 = vmatpush.msra.mxu0 %v550
      %580 = vmatmul.f32.gmra.mxu0 %v559
      %v581 = vpop.f32.mrf.mxu0
      %v582 = vadd.f32 %v556, %v581
      %583 = vmatmul.f32.gmra.mxu0 %v562
      %v584 = vpop.f32.mrf.mxu0
      %v585 = vadd.f32 %v556, %v584
      %586 = vdwg.mxu0
      %v587 = vld [vmem:[%s6] sm:$0xff]
      %v588 = vld [vmem:[%s6 + $0x8] sm:$0xff]
      %v589 = vld [vmem:[%s6 + $0x10] sm:$0xff]
      %v590 = vld [vmem:[%s6 + $0x18] sm:$0xff]
      %v591 = vld [vmem:[%s7] sm:$0x1]
      %594 = vrot.lane.b32.xlu0 %v582, 96
      %v595 = vpop.permute.xlu0 %594
      %596 = vrot.lane.b32.xlu0 %v585, 96
      %v597 = vpop.permute.xlu0 %596
      %vm598 = vcmask 64512
      %v599 = vsel %vm598, %v582, 0
      %v601 = vsel %vm598, %v585, 0
      %v603 = vsel %vm598, %v595, 0
      %v605 = vsel %vm598, %v597, 0
      %607 = vmatpush.xpose.msra.mxu0 0.0
      %608 = vmatpush.xpose.msra.mxu0 0.0
      %609 = vmatpush.xpose.msra.mxu0 0.0
      %610 = vmatpush.xpose.msra.mxu0 0.0
      %611 = vmatpush.xpose.msra.mxu0 0.0
      %612 = vmatpush.xpose.msra.mxu0 0.0
      %613 = vmatpush.xpose.msra.mxu0 0.0
      %614 = vmatpush.xpose.msra.mxu0 0.0
      %615 = vmatpush.xpose.msra.mxu0 0.0
      %616 = vmatpush.xpose.msra.mxu0 0.0
      %617 = vmatpush.xpose.msra.mxu0 0.0
      %618 = vmatpush.xpose.msra.mxu0 0.0
      %619 = vmatpush.xpose.msra.mxu0 0.0
      %620 = vmatpush.xpose.msra.mxu0 0.0
      %621 = vmatpush.xpose.msra.mxu0 %v605
      %622 = vmatpush.xpose.msra.mxu0 %v603
      %623 = vmatmul.f32.gmra.mxu0 %v599
      %v624 = vpop.f32.mrf.mxu0
      %v625 = vadd.f32 0.0, %v624
      %626 = vmatmul.f32.gmra.mxu0 %v601
      %v627 = vpop.f32.mrf.mxu0
      %v628 = vadd.f32 0.0, %v627
      %629 = vdwg.mxu0
      %v630 = vmul.f32 %v625, 0.35355338
      %v631 = vmul.f32 %v628, 0.35355338
      %v633 = vperm.slane %v484, 0
      %v635 = vadd.f32 %v630, %v633
      %v636 = vadd.f32 %v631, %v633
      %vm637 = vcmask 80896
      %v638 = vsel %vm637, %v635, -inf
      %639 = vmax.xlane.f32.xlu0 %v638
      %v640 = vpop.xlane.xlu0 %639
      %vm641 = vcmask 74752
      %v642 = vsel %vm641, %v636, -inf
      %643 = vmax.xlane.f32.xlu0 %v642
      %v644 = vpop.xlane.xlu0 %643
      %v645 = vsub.f32 %v635, %v640
      %v646 = vsub.f32 %v636, %v644
      %v647 = vmul.f32 %v645, 1.442695
      %v648 = vpow.pop %v647
      %v649 = vmul.f32 %v646, 1.442695
      %v650 = vpow.pop %v649
      %v651 = vsel %vm637, %v648, 0.0
      %652 = vadd.xlane.f32.xlu0 %v651
      %v653 = vpop.xlane.xlu0 %652
      %v654 = vsel %vm641, %v650, 0.0
      %655 = vadd.xlane.f32.xlu0 %v654
      %v656 = vpop.xlane.xlu0 %655
      %v657 = vrcp.pop %v653
      %v658 = vrcp.pop %v656
      %v659 = vmul.f32 %v648, %v657
      %v660 = vmul.f32 %v650, %v658
      %661 = vrot.lane.b32.xlu0 %v582, 64
      %v662 = vpop.permute.xlu0 %661
      %663 = vrot.lane.b32.xlu0 %v585, 64
      %v664 = vpop.permute.xlu0 %663
      %v667 = vsel %vm637, %v659, 0
      %v670 = vsel %vm637, %v660, 0
      %vm672 = vcmask 1041408
      %v673 = vsel %vm672, %v664, 0
      %675 = vmatpush.msra.mxu0 0.0
      %676 = vmatpush.msra.mxu0 0.0
      %677 = vmatpush.msra.mxu0 0.0
      %678 = vmatpush.msra.mxu0 0.0
      %679 = vmatpush.msra.mxu0 0.0
      %680 = vmatpush.msra.mxu0 0.0
      %681 = vmatpush.msra.mxu0 0.0
      %682 = vmatpush.msra.mxu0 0.0
      %683 = vmatpush.msra.mxu0 0.0
      %684 = vmatpush.msra.mxu0 0.0
      %685 = vmatpush.msra.mxu0 0.0
      %686 = vmatpush.msra.mxu0 0.0
      %687 = vmatpush.msra.mxu0 0.0
      %688 = vmatpush.msra.mxu0 0.0
      %689 = vmatpush.msra.mxu0 %v673
      %690 = vmatpush.msra.mxu0 %v662
      %691 = vmatmul.f32.gmra.mxu0 %v667
      %v692 = vpop.f32.mrf.mxu0
      %v693 = vadd.f32 0.0, %v692
      %694 = vmatmul.f32.gmra.mxu0 %v670
      %v695 = vpop.f32.mrf.mxu0
      %v696 = vadd.f32 0.0, %v695
      %697 = vdwg.mxu0
      %698 = vrot.lane.b32.xlu0 %v582, 120
      %v699 = vpop.permute.xlu0 %698
      %700 = vrot.lane.b32.xlu0 %v585, 120
      %v701 = vpop.permute.xlu0 %700
      %702 = vrot.lane.b32.xlu0 %v582, 88
      %v703 = vpop.permute.xlu0 %702
      %704 = vrot.lane.b32.xlu0 %v585, 88
      %v705 = vpop.permute.xlu0 %704
      %v706 = vsel %vm598, %v699, 0
      %v708 = vsel %vm598, %v701, 0
      %v710 = vsel %vm598, %v703, 0
      %v712 = vsel %vm598, %v705, 0
      %714 = vmatpush.xpose.msra.mxu0 0.0
      %715 = vmatpush.xpose.msra.mxu0 0.0
      %716 = vmatpush.xpose.msra.mxu0 0.0
      %717 = vmatpush.xpose.msra.mxu0 0.0
      %718 = vmatpush.xpose.msra.mxu0 0.0
      %719 = vmatpush.xpose.msra.mxu0 0.0
      %720 = vmatpush.xpose.msra.mxu0 0.0
      %721 = vmatpush.xpose.msra.mxu0 0.0
      %722 = vmatpush.xpose.msra.mxu0 0.0
      %723 = vmatpush.xpose.msra.mxu0 0.0
      %724 = vmatpush.xpose.msra.mxu0 0.0
      %725 = vmatpush.xpose.msra.mxu0 0.0
      %726 = vmatpush.xpose.msra.mxu0 0.0
      %727 = vmatpush.xpose.msra.mxu0 0.0
      %728 = vmatpush.xpose.msra.mxu0 %v712
      %729 = vmatpush.xpose.msra.mxu0 %v710
      %730 = vmatmul.f32.gmra.mxu0 %v706
      %v731 = vpop.f32.mrf.mxu0
      %v732 = vadd.f32 0.0, %v731
      %733 = vmatmul.f32.gmra.mxu0 %v708
      %v734 = vpop.f32.mrf.mxu0
      %v735 = vadd.f32 0.0, %v734
      %736 = vdwg.mxu0
      %v737 = vmul.f32 %v732, 0.35355338
      %v738 = vmul.f32 %v735, 0.35355338
      %v739 = vadd.f32 %v737, %v633
      %v740 = vadd.f32 %v738, %v633
      %v741 = vsel %vm637, %v739, -inf
      %742 = vmax.xlane.f32.xlu0 %v741
      %v743 = vpop.xlane.xlu0 %742
      %v744 = vsel %vm641, %v740, -inf
      %745 = vmax.xlane.f32.xlu0 %v744
      %v746 = vpop.xlane.xlu0 %745
      %v747 = vsub.f32 %v739, %v743
      %v748 = vsub.f32 %v740, %v746
      %v749 = vmul.f32 %v747, 1.442695
      %v750 = vpow.pop %v749
      %v751 = vmul.f32 %v748, 1.442695
      %v752 = vpow.pop %v751
      %v753 = vsel %vm637, %v750, 0.0
      %754 = vadd.xlane.f32.xlu0 %v753
      %v755 = vpop.xlane.xlu0 %754
      %v756 = vsel %vm641, %v752, 0.0
      %757 = vadd.xlane.f32.xlu0 %v756
      %v758 = vpop.xlane.xlu0 %757
      %v759 = vrcp.pop %v755
      %v760 = vrcp.pop %v758
      %v761 = vmul.f32 %v750, %v759
      %v762 = vmul.f32 %v752, %v760
      %763 = vrot.lane.b32.xlu0 %v582, 56
      %v764 = vpop.permute.xlu0 %763
      %765 = vrot.lane.b32.xlu0 %v585, 56
      %v766 = vpop.permute.xlu0 %765
      %v769 = vsel %vm637, %v761, 0
      %v772 = vsel %vm637, %v762, 0
      %v774 = vsel %vm672, %v766, 0
      %776 = vmatpush.msra.mxu0 0.0
      %777 = vmatpush.msra.mxu0 0.0
      %778 = vmatpush.msra.mxu0 0.0
      %779 = vmatpush.msra.mxu0 0.0
      %780 = vmatpush.msra.mxu0 0.0
      %781 = vmatpush.msra.mxu0 0.0
      %782 = vmatpush.msra.mxu0 0.0
      %783 = vmatpush.msra.mxu0 0.0
      %784 = vmatpush.msra.mxu0 0.0
      %785 = vmatpush.msra.mxu0 0.0
      %786 = vmatpush.msra.mxu0 0.0
      %787 = vmatpush.msra.mxu0 0.0
      %788 = vmatpush.msra.mxu0 0.0
      %789 = vmatpush.msra.mxu0 0.0
      %790 = vmatpush.msra.mxu0 %v774
      %791 = vmatpush.msra.mxu0 %v764
      %792 = vmatmul.f32.gmra.mxu0 %v769
      %v793 = vpop.f32.mrf.mxu0
      %v794 = vadd.f32 0.0, %v793
      %795 = vmatmul.f32.gmra.mxu0 %v772
      %v796 = vpop.f32.mrf.mxu0
      %v797 = vadd.f32 0.0, %v796
      %798 = vdwg.mxu0
      %v800 = vsel %vm598, %v794, 0
      %v803 = vsel %vm598, %v797, 0
      %805 = vmatpush.msra.mxu0 0.0
      %806 = vmatpush.msra.mxu0 0.0
      %807 = vmatpush.msra.mxu0 0.0
      %808 = vmatpush.msra.mxu0 0.0
      %809 = vmatpush.msra.mxu0 0.0
      %810 = vmatpush.msra.mxu0 0.0
      %811 = vmatpush.msra.mxu0 0.0
      %812 = vmatpush.msra.mxu0 0.0
      %813 = vmatpush.msra.mxu0 0.0
      %814 = vmatpush.msra.mxu0 0.0
      %815 = vmatpush.msra.mxu0 0.0
      %816 = vmatpush.msra.mxu0 0.0
      %817 = vmatpush.msra.mxu0 0.0
      %818 = vmatpush.msra.mxu0 0.0
      %819 = vmatpush.msra.mxu0 0.0
      %820 = vmatpush.msra.mxu0 %v588
      %821 = vmatmul.f32.gmra.mxu0 %v800
      %v822 = vpop.f32.mrf.mxu0
      %v823 = vadd.f32 0.0, %v822
      %824 = vmatmul.f32.gmra.mxu0 %v803
      %v825 = vpop.f32.mrf.mxu0
      %v826 = vadd.f32 0.0, %v825
      %827 = vdwg.mxu0
      %v829 = vsel %vm598, %v693, 0
      %v832 = vsel %vm598, %v696, 0
      %834 = vmatpush.msra.mxu0 0.0
      %835 = vmatpush.msra.mxu0 0.0
      %836 = vmatpush.msra.mxu0 0.0
      %837 = vmatpush.msra.mxu0 0.0
      %838 = vmatpush.msra.mxu0 0.0
      %839 = vmatpush.msra.mxu0 0.0
      %840 = vmatpush.msra.mxu0 0.0
      %841 = vmatpush.msra.mxu0 0.0
      %842 = vmatpush.msra.mxu0 0.0
      %843 = vmatpush.msra.mxu0 0.0
      %844 = vmatpush.msra.mxu0 0.0
      %845 = vmatpush.msra.mxu0 0.0
      %846 = vmatpush.msra.mxu0 0.0
      %847 = vmatpush.msra.mxu0 0.0
      %848 = vmatpush.msra.mxu0 0.0
      %849 = vmatpush.msra.mxu0 %v587
      %850 = vmatmul.f32.gmra.mxu0 %v829
      %v851 = vpop.f32.mrf.mxu0
      %v852 = vadd.f32 %v823, %v851
      %853 = vmatmul.f32.gmra.mxu0 %v832
      %v854 = vpop.f32.mrf.mxu0
      %v855 = vadd.f32 %v826, %v854
      %856 = vdwg.mxu0
      %857 = vrot.lane.b32.xlu0 %v582, 112
      %v858 = vpop.permute.xlu0 %857
      %859 = vrot.lane.b32.xlu0 %v585, 112
      %v860 = vpop.permute.xlu0 %859
      %861 = vrot.lane.b32.xlu0 %v582, 80
      %v862 = vpop.permute.xlu0 %861
      %863 = vrot.lane.b32.xlu0 %v585, 80
      %v864 = vpop.permute.xlu0 %863
      %v865 = vsel %vm598, %v858, 0
      %v867 = vsel %vm598, %v860, 0
      %v869 = vsel %vm598, %v862, 0
      %v871 = vsel %vm598, %v864, 0
      %873 = vmatpush.xpose.msra.mxu0 0.0
      %874 = vmatpush.xpose.msra.mxu0 0.0
      %875 = vmatpush.xpose.msra.mxu0 0.0
      %876 = vmatpush.xpose.msra.mxu0 0.0
      %877 = vmatpush.xpose.msra.mxu0 0.0
      %878 = vmatpush.xpose.msra.mxu0 0.0
      %879 = vmatpush.xpose.msra.mxu0 0.0
      %880 = vmatpush.xpose.msra.mxu0 0.0
      %881 = vmatpush.xpose.msra.mxu0 0.0
      %882 = vmatpush.xpose.msra.mxu0 0.0
      %883 = vmatpush.xpose.msra.mxu0 0.0
      %884 = vmatpush.xpose.msra.mxu0 0.0
      %885 = vmatpush.xpose.msra.mxu0 0.0
      %886 = vmatpush.xpose.msra.mxu0 0.0
      %887 = vmatpush.xpose.msra.mxu0 %v871
      %888 = vmatpush.xpose.msra.mxu0 %v869
      %889 = vmatmul.f32.gmra.mxu0 %v865
      %v890 = vpop.f32.mrf.mxu0
      %v891 = vadd.f32 0.0, %v890
      %892 = vmatmul.f32.gmra.mxu0 %v867
      %v893 = vpop.f32.mrf.mxu0
      %v894 = vadd.f32 0.0, %v893
      %895 = vdwg.mxu0
      %v896 = vmul.f32 %v891, 0.35355338
      %v897 = vmul.f32 %v894, 0.35355338
      %v898 = vadd.f32 %v896, %v633
      %v899 = vadd.f32 %v897, %v633
      %v900 = vsel %vm637, %v898, -inf
      %901 = vmax.xlane.f32.xlu0 %v900
      %v902 = vpop.xlane.xlu0 %901
      %v903 = vsel %vm641, %v899, -inf
      %904 = vmax.xlane.f32.xlu0 %v903
      %v905 = vpop.xlane.xlu0 %904
      %v906 = vsub.f32 %v898, %v902
      %v907 = vsub.f32 %v899, %v905
      %v908 = vmul.f32 %v906, 1.442695
      %v909 = vpow.pop %v908
      %v910 = vmul.f32 %v907, 1.442695
      %v911 = vpow.pop %v910
      %v912 = vsel %vm637, %v909, 0.0
      %913 = vadd.xlane.f32.xlu0 %v912
      %v914 = vpop.xlane.xlu0 %913
      %v915 = vsel %vm641, %v911, 0.0
      %916 = vadd.xlane.f32.xlu0 %v915
      %v917 = vpop.xlane.xlu0 %916
      %v918 = vrcp.pop %v914
      %v919 = vrcp.pop %v917
      %v920 = vmul.f32 %v909, %v918
      %v921 = vmul.f32 %v911, %v919
      %922 = vrot.lane.b32.xlu0 %v582, 48
      %v923 = vpop.permute.xlu0 %922
      %924 = vrot.lane.b32.xlu0 %v585, 48
      %v925 = vpop.permute.xlu0 %924
      %v928 = vsel %vm637, %v920, 0
      %v931 = vsel %vm637, %v921, 0
      %v933 = vsel %vm672, %v925, 0
      %935 = vmatpush.msra.mxu0 0.0
      %936 = vmatpush.msra.mxu0 0.0
      %937 = vmatpush.msra.mxu0 0.0
      %938 = vmatpush.msra.mxu0 0.0
      %939 = vmatpush.msra.mxu0 0.0
      %940 = vmatpush.msra.mxu0 0.0
      %941 = vmatpush.msra.mxu0 0.0
      %942 = vmatpush.msra.mxu0 0.0
      %943 = vmatpush.msra.mxu0 0.0
      %944 = vmatpush.msra.mxu0 0.0
      %945 = vmatpush.msra.mxu0 0.0
      %946 = vmatpush.msra.mxu0 0.0
      %947 = vmatpush.msra.mxu0 0.0
      %948 = vmatpush.msra.mxu0 0.0
      %949 = vmatpush.msra.mxu0 %v933
      %950 = vmatpush.msra.mxu0 %v923
      %951 = vmatmul.f32.gmra.mxu0 %v928
      %v952 = vpop.f32.mrf.mxu0
      %v953 = vadd.f32 0.0, %v952
      %954 = vmatmul.f32.gmra.mxu0 %v931
      %v955 = vpop.f32.mrf.mxu0
      %v956 = vadd.f32 0.0, %v955
      %957 = vdwg.mxu0
      %v959 = vsel %vm598, %v953, 0
      %v962 = vsel %vm598, %v956, 0
      %964 = vmatpush.msra.mxu0 0.0
      %965 = vmatpush.msra.mxu0 0.0
      %966 = vmatpush.msra.mxu0 0.0
      %967 = vmatpush.msra.mxu0 0.0
      %968 = vmatpush.msra.mxu0 0.0
      %969 = vmatpush.msra.mxu0 0.0
      %970 = vmatpush.msra.mxu0 0.0
      %971 = vmatpush.msra.mxu0 0.0
      %972 = vmatpush.msra.mxu0 0.0
      %973 = vmatpush.msra.mxu0 0.0
      %974 = vmatpush.msra.mxu0 0.0
      %975 = vmatpush.msra.mxu0 0.0
      %976 = vmatpush.msra.mxu0 0.0
      %977 = vmatpush.msra.mxu0 0.0
      %978 = vmatpush.msra.mxu0 0.0
      %979 = vmatpush.msra.mxu0 %v589
      %980 = vmatmul.f32.gmra.mxu0 %v959
      %v981 = vpop.f32.mrf.mxu0
      %v982 = vadd.f32 0.0, %v981
      %983 = vmatmul.f32.gmra.mxu0 %v962
      %v984 = vpop.f32.mrf.mxu0
      %v985 = vadd.f32 0.0, %v984
      %986 = vdwg.mxu0
      %v987 = vadd.f32 %v852, %v982
      %v988 = vadd.f32 %v855, %v985
      %989 = vrot.lane.b32.xlu0 %v582, 104
      %v990 = vpop.permute.xlu0 %989
      %991 = vrot.lane.b32.xlu0 %v585, 104
      %v992 = vpop.permute.xlu0 %991
      %993 = vrot.lane.b32.xlu0 %v582, 72
      %v994 = vpop.permute.xlu0 %993
      %995 = vrot.lane.b32.xlu0 %v585, 72
      %v996 = vpop.permute.xlu0 %995
      %v997 = vsel %vm598, %v990, 0
      %v999 = vsel %vm598, %v992, 0
      %v1001 = vsel %vm598, %v994, 0
      %v1003 = vsel %vm598, %v996, 0
      %1005 = vmatpush.xpose.msra.mxu0 0.0
      %1006 = vmatpush.xpose.msra.mxu0 0.0
      %1007 = vmatpush.xpose.msra.mxu0 0.0
      %1008 = vmatpush.xpose.msra.mxu0 0.0
      %1009 = vmatpush.xpose.msra.mxu0 0.0
      %1010 = vmatpush.xpose.msra.mxu0 0.0
      %1011 = vmatpush.xpose.msra.mxu0 0.0
      %1012 = vmatpush.xpose.msra.mxu0 0.0
      %1013 = vmatpush.xpose.msra.mxu0 0.0
      %1014 = vmatpush.xpose.msra.mxu0 0.0
      %1015 = vmatpush.xpose.msra.mxu0 0.0
      %1016 = vmatpush.xpose.msra.mxu0 0.0
      %1017 = vmatpush.xpose.msra.mxu0 0.0
      %1018 = vmatpush.xpose.msra.mxu0 0.0
      %1019 = vmatpush.xpose.msra.mxu0 %v1003
      %1020 = vmatpush.xpose.msra.mxu0 %v1001
      %1021 = vmatmul.f32.gmra.mxu0 %v997
      %v1022 = vpop.f32.mrf.mxu0
      %v1023 = vadd.f32 0.0, %v1022
      %1024 = vmatmul.f32.gmra.mxu0 %v999
      %v1025 = vpop.f32.mrf.mxu0
      %v1026 = vadd.f32 0.0, %v1025
      %1027 = vdwg.mxu0
      %v1028 = vmul.f32 %v1023, 0.35355338
      %v1029 = vmul.f32 %v1026, 0.35355338
      %v1030 = vadd.f32 %v1028, %v633
      %v1031 = vadd.f32 %v1029, %v633
      %v1032 = vsel %vm637, %v1030, -inf
      %1033 = vmax.xlane.f32.xlu0 %v1032
      %v1034 = vpop.xlane.xlu0 %1033
      %v1035 = vsel %vm641, %v1031, -inf
      %1036 = vmax.xlane.f32.xlu0 %v1035
      %v1037 = vpop.xlane.xlu0 %1036
      %v1038 = vsub.f32 %v1030, %v1034
      %v1039 = vsub.f32 %v1031, %v1037
      %v1040 = vmul.f32 %v1038, 1.442695
      %v1041 = vpow.pop %v1040
      %v1042 = vmul.f32 %v1039, 1.442695
      %v1043 = vpow.pop %v1042
      %v1044 = vsel %vm637, %v1041, 0.0
      %1045 = vadd.xlane.f32.xlu0 %v1044
      %v1046 = vpop.xlane.xlu0 %1045
      %v1047 = vsel %vm641, %v1043, 0.0
      %1048 = vadd.xlane.f32.xlu0 %v1047
      %v1049 = vpop.xlane.xlu0 %1048
      %v1050 = vrcp.pop %v1046
      %v1051 = vrcp.pop %v1049
      %v1052 = vmul.f32 %v1041, %v1050
      %v1053 = vmul.f32 %v1043, %v1051
      %1054 = vrot.lane.b32.xlu0 %v582, 40
      %v1055 = vpop.permute.xlu0 %1054
      %1056 = vrot.lane.b32.xlu0 %v585, 40
      %v1057 = vpop.permute.xlu0 %1056
      %v1060 = vsel %vm637, %v1052, 0
      %v1063 = vsel %vm637, %v1053, 0
      %v1065 = vsel %vm672, %v1057, 0
      %1067 = vmatpush.msra.mxu0 0.0
      %1068 = vmatpush.msra.mxu0 0.0
      %1069 = vmatpush.msra.mxu0 0.0
      %1070 = vmatpush.msra.mxu0 0.0
      %1071 = vmatpush.msra.mxu0 0.0
      %1072 = vmatpush.msra.mxu0 0.0
      %1073 = vmatpush.msra.mxu0 0.0
      %1074 = vmatpush.msra.mxu0 0.0
      %1075 = vmatpush.msra.mxu0 0.0
      %1076 = vmatpush.msra.mxu0 0.0
      %1077 = vmatpush.msra.mxu0 0.0
      %1078 = vmatpush.msra.mxu0 0.0
      %1079 = vmatpush.msra.mxu0 0.0
      %1080 = vmatpush.msra.mxu0 0.0
      %1081 = vmatpush.msra.mxu0 %v1065
      %1082 = vmatpush.msra.mxu0 %v1055
      %1083 = vmatmul.f32.gmra.mxu0 %v1060
      %v1084 = vpop.f32.mrf.mxu0
      %v1085 = vadd.f32 0.0, %v1084
      %1086 = vmatmul.f32.gmra.mxu0 %v1063
      %v1087 = vpop.f32.mrf.mxu0
      %v1088 = vadd.f32 0.0, %v1087
      %1089 = vdwg.mxu0
      %v1091 = vsel %vm598, %v1085, 0
      %v1094 = vsel %vm598, %v1088, 0
      %1096 = vmatpush.msra.mxu0 0.0
      %1097 = vmatpush.msra.mxu0 0.0
      %1098 = vmatpush.msra.mxu0 0.0
      %1099 = vmatpush.msra.mxu0 0.0
      %1100 = vmatpush.msra.mxu0 0.0
      %1101 = vmatpush.msra.mxu0 0.0
      %1102 = vmatpush.msra.mxu0 0.0
      %1103 = vmatpush.msra.mxu0 0.0
      %1104 = vmatpush.msra.mxu0 0.0
      %1105 = vmatpush.msra.mxu0 0.0
      %1106 = vmatpush.msra.mxu0 0.0
      %1107 = vmatpush.msra.mxu0 0.0
      %1108 = vmatpush.msra.mxu0 0.0
      %1109 = vmatpush.msra.mxu0 0.0
      %1110 = vmatpush.msra.mxu0 0.0
      %1111 = vmatpush.msra.mxu0 %v590
      %1112 = vmatmul.f32.gmra.mxu0 %v1091
      %v1113 = vpop.f32.mrf.mxu0
      %v1114 = vadd.f32 0.0, %v1113
      %1115 = vmatmul.f32.gmra.mxu0 %v1094
      %v1116 = vpop.f32.mrf.mxu0
      %v1117 = vadd.f32 0.0, %v1116
      %1118 = vdwg.mxu0
      %v1119 = vadd.f32 %v987, %v1114
      %v1120 = vadd.f32 %v988, %v1117
      %v1122 = vperm.slane %v591, 0
      %v1124 = vadd.f32 %v1119, %v1122
      %v1125 = vadd.f32 %v1120, %v1122
      %v1126 = vadd.f32 %v482, %v1124
      %v1127 = vadd.f32 %v483, %v1125
      %v1128 = vld [vmem:[%s8] sm:$0x1]
      %v1129 = vld [vmem:[%s9] sm:$0x1]
      %v1130 = vsel %vm487, %v1126, 0.0
      %1131 = vadd.xlane.f32.xlu0 %v1130
      %v1132 = vpop.xlane.xlu0 %1131
      %v1133 = vsel %vm491, %v1127, 0.0
      %1134 = vadd.xlane.f32.xlu0 %v1133
      %v1135 = vpop.xlane.xlu0 %1134
      %v1136 = vmul.f32 %v1132, %v501
      %v1137 = vmul.f32 %v1135, %v501
      %v1138 = vsub.f32 %v1126, %v1136
      %v1139 = vsub.f32 %v1127, %v1137
      %v1140 = vmul.f32 %v1138, %v1138
      %v1141 = vmul.f32 %v1139, %v1139
      %v1142 = vsel %vm487, %v1140, 0.0
      %1143 = vadd.xlane.f32.xlu0 %v1142
      %v1144 = vpop.xlane.xlu0 %1143
      %v1145 = vsel %vm491, %v1141, 0.0
      %1146 = vadd.xlane.f32.xlu0 %v1145
      %v1147 = vpop.xlane.xlu0 %1146
      %v1148 = vmul.f32 %v1144, %v501
      %v1149 = vmul.f32 %v1147, %v501
      %v1150 = vadd.f32 %v1148, 1e-05
      %v1151 = vadd.f32 %v1149, 1e-05
      %v1152 = vrsqrt.pop %v1150
      %v1153 = vmul.f32 %v1152, %v1150
      %v1154 = vmul.f32 %v1153, %v1152
      %v1155 = vmul.f32 0.5, %v1154
      %v1156 = vsub.f32 1.5, %v1155
      %v1157 = vmul.f32 %v1152, %v1156
      %vm1158 = vweird.f32 %v1150
      %vm1159 = vweird.f32 %v1152
      %vm1160 = vmor %vm1158, %vm1159
      %v1161 = vsel %vm1160, %v1152, %v1157
      %v1162 = vrsqrt.pop %v1151
      %v1163 = vmul.f32 %v1162, %v1151
      %v1164 = vmul.f32 %v1163, %v1162
      %v1165 = vmul.f32 0.5, %v1164
      %v1166 = vsub.f32 1.5, %v1165
      %v1167 = vmul.f32 %v1162, %v1166
      %vm1168 = vweird.f32 %v1151
      %vm1169 = vweird.f32 %v1162
      %vm1170 = vmor %vm1168, %vm1169
      %v1171 = vsel %vm1170, %v1162, %v1167
      %v1172 = vmul.f32 %v1138, %v1161
      %v1173 = vmul.f32 %v1139, %v1171
      %v1175 = vperm.slane %v1128, 0
      %v1177 = vmul.f32 %v1172, %v1175
      %v1178 = vmul.f32 %v1173, %v1175
      %v1180 = vperm.slane %v1129, 0
      %v1182 = vadd.f32 %v1177, %v1180
      %v1183 = vadd.f32 %v1178, %v1180
      %v1184 = vld [vmem:[%s10] sm:$0xff]
      %v1185 = vld [vmem:[%s10 + $0x8] sm:$0xff]
      %v1186 = vld [vmem:[%s10 + $0x10] sm:$0xff]
      %v1187 = vld [vmem:[%s10 + $0x18] sm:$0xff]
      %v1188 = vld [vmem:[%s11] sm:$0x1]
      %v1190 = vperm.slane %v1188, 0
      %v1193 = vsel %vm487, %v1182, 0
      %v1196 = vsel %vm487, %v1183, 0
      %1198 = vmatpush.msra.mxu0 0.0
      %1199 = vmatpush.msra.mxu0 0.0
      %1200 = vmatpush.msra.mxu0 0.0
      %1201 = vmatpush.msra.mxu0 0.0
      %1202 = vmatpush.msra.mxu0 0.0
      %1203 = vmatpush.msra.mxu0 0.0
      %1204 = vmatpush.msra.mxu0 0.0
      %1205 = vmatpush.msra.mxu0 0.0
      %1206 = vmatpush.msra.mxu0 0.0
      %1207 = vmatpush.msra.mxu0 0.0
      %1208 = vmatpush.msra.mxu0 0.0
      %1209 = vmatpush.msra.mxu0 0.0
      %1210 = vmatpush.msra.mxu0 %v1187
      %1211 = vmatpush.msra.mxu0 %v1186
      %1212 = vmatpush.msra.mxu0 %v1185
      %1213 = vmatpush.msra.mxu0 %v1184
      %1214 = vmatmul.f32.gmra.mxu0 %v1193
      %v1215 = vpop.f32.mrf.mxu0
      %v1216 = vadd.f32 %v1190, %v1215
      %1217 = vmatmul.f32.gmra.mxu0 %v1196
      %v1218 = vpop.f32.mrf.mxu0
      %v1219 = vadd.f32 %v1190, %v1218
      %1220 = vdwg.mxu0
      %v1221 = vmax.f32 %v1216, 0.0
      %v1222 = vmax.f32 %v1219, 0.0
      %v1223 = vld [vmem:[%s12] sm:$0xff]
      %v1224 = vld [vmem:[%s12 + $0x8] sm:$0xff]
      %v1225 = vld [vmem:[%s12 + $0x10] sm:$0xff]
      %v1226 = vld [vmem:[%s12 + $0x18] sm:$0xff]
      %v1227 = vld [vmem:[%s12 + $0x20] sm:$0xff]
      %v1228 = vld [vmem:[%s12 + $0x28] sm:$0xff]
      %v1229 = vld [vmem:[%s12 + $0x30] sm:$0xff]
      %v1230 = vld [vmem:[%s12 + $0x38] sm:$0xff]
      %v1231 = vld [vmem:[%s13] sm:$0x1]
      %v1233 = vperm.slane %v1231, 0
      %vm1235 = vcmask 523264
      %v1237 = vsel %vm1235, %v1221, 0
      %v1240 = vsel %vm1235, %v1222, 0
      %1242 = vmatpush.msra.mxu0 0.0
      %1243 = vmatpush.msra.mxu0 0.0
      %1244 = vmatpush.msra.mxu0 0.0
      %1245 = vmatpush.msra.mxu0 0.0
      %1246 = vmatpush.msra.mxu0 0.0
      %1247 = vmatpush.msra.mxu0 0.0
      %1248 = vmatpush.msra.mxu0 0.0
      %1249 = vmatpush.msra.mxu0 0.0
      %1250 = vmatpush.msra.mxu0 %v1230
      %1251 = vmatpush.msra.mxu0 %v1229
      %1252 = vmatpush.msra.mxu0 %v1228
      %1253 = vmatpush.msra.mxu0 %v1227
      %1254 = vmatpush.msra.mxu0 %v1226
      %1255 = vmatpush.msra.mxu0 %v1225
      %1256 = vmatpush.msra.mxu0 %v1224
      %1257 = vmatpush.msra.mxu0 %v1223
      %1258 = vmatmul.f32.gmra.mxu0 %v1237
      %v1259 = vpop.f32.mrf.mxu0
      %v1260 = vadd.f32 %v1233, %v1259
      %1261 = vmatmul.f32.gmra.mxu0 %v1240
      %v1262 = vpop.f32.mrf.mxu0
      %v1263 = vadd.f32 %v1233, %v1262
      %1264 = vdwg.mxu0
      %v1265 = vadd.f32 %v1126, %v1260
      %v1266 = vadd.f32 %v1127, %v1263
      %1267 = vst.msk [vmem:[%s481] sm:$0xff] %vm487, %v1265
      %1268 = vst.msk [vmem:[%s481 + $0x8] sm:$0x3] %vm491, %v1266
      %p1269 = scmp.lt.s32.totalorder %s25, 1
      %s1270 = scalar_select %p1269, %s25, 1
      %s1271 = smul.addr %s1270, 2
      %s1272 = smul.addr %s1271, 8
      %s1273 = scalar_lea.vmem %s14, %s1272
      // Predicated region
      $region77: #{ptransformer_forward.6} parent=75 // pred_check
        %p1274 = pneg %p347
      $region78: #{ptransformer_forward.6} parent=75 // pred_check_branch
        %1276 = sbr.rel (%p1274) target = $region80
      $region79: #{ptransformer_forward.6} parent=75 // pred_region
        _
      $region80: #{ptransformer_forward.6} parent=75 // pred_fallthru
        _
    $region76: #{ptransformer_forward.6} parent=5 // pred_fallthru
      _
    %p1277 = scmp.le.s32.totalorder 2, %s20
    // Predicated region
    $region81: #{ptransformer_forward.6} parent=5 // pred_check
      %p1278 = pneg %p1277
    $region82: #{ptransformer_forward.6} parent=5 // pred_check_branch
      %1280 = sbr.rel (%p1278) target = $region84
    $region83: #{ptransformer_forward.6} parent=5 // pred_region
      %s1281 = ssub.s32 %s20, 2
      // Predicated region
      $region85: #{ptransformer_forward.6} parent=83 // pred_check
        %p1282 = pneg %p353
      $region86: #{ptransformer_forward.6} parent=83 // pred_check_branch
        %1284 = sbr.rel (%p1282) target = $region88
      $region87: #{ptransformer_forward.6} parent=83 // pred_region
        %p1285 = scmp.lt.s32.totalorder %s26, 1
        %s1286 = scalar_select %p1285, %s26, 1
        %s1287 = smul.addr %s1286, 2
        %s1288 = smul.addr %s1287, 8
        %s1289 = scalar_lea.vmem %s14, %s1288
      $region88: #{ptransformer_forward.6} parent=83 // pred_fallthru
        _
    $region84: #{ptransformer_forward.6} parent=5 // pred_fallthru
      _
  $region6: #{ptransformer_forward.6} parent=0 // loop_footer
    %s24 = sadd.s32 1, %s20
  $region7: #{ptransformer_forward.6} parent=0 // loop_footer_branch
    %19 = sbr.rel target = $region3
  $region8: #{ptransformer_forward.6} parent=0 // loop_exit
    _

// kernel: ptransformer_forward.10
$region0: #{ptransformer_forward.10}
  #allocation0 [shape = 'u32[]', space=smem, size = 0x4, offset = 0x4, fixed_abs, tag = 'smem constant byte address 0x4 - core index']
  #allocation1 [shape = 'u32[72,128]{1,0:T(1,128)}', space=vmem, size = 0x9000, scoped, tag = 'internal scratch']
  %s0 = inlined_call_operand.vmem [shape: f32[2,8,32], index: 0, kind: input, shape index: {}]
  %s1 = inlined_call_operand.vmem [shape: f32[2,10,32], index: 1, kind: input, shape index: {}]
  %s2 = inlined_call_operand.vmem [shape: f32[2,8,8], index: 2, kind: input, shape index: {}]
  %s3 = inlined_call_operand.vmem [shape: f32[2,1,10], index: 3, kind: input, shape index: {}]
  %s4 = inlined_call_operand.vmem [shape: f32[1,32], index: 4, kind: input, shape index: {}]
  %s5 = inlined_call_operand.vmem [shape: f32[1,32], index: 5, kind: input, shape index: {}]
  %s6 = inlined_call_operand.vmem [shape: f32[32,96], index: 6, kind: input, shape index: {}]
  %s7 = inlined_call_operand.vmem [shape: f32[1,96], index: 7, kind: input, shape index: {}]
  %s8 = inlined_call_operand.vmem [shape: f32[32,32], index: 8, kind: input, shape index: {}]
  %s9 = inlined_call_operand.vmem [shape: f32[1,32], index: 9, kind: input, shape index: {}]
  %s10 = inlined_call_operand.vmem [shape: f32[1,32], index: 10, kind: input, shape index: {}]
  %s11 = inlined_call_operand.vmem [shape: f32[1,32], index: 11, kind: input, shape index: {}]
  %s12 = inlined_call_operand.vmem [shape: f32[32,32], index: 12, kind: input, shape index: {}]
  %s13 = inlined_call_operand.vmem [shape: f32[1,32], index: 13, kind: input, shape index: {}]
  %s14 = inlined_call_operand.vmem [shape: f32[32,64], index: 14, kind: input, shape index: {}]
  %s15 = inlined_call_operand.vmem [shape: f32[1,64], index: 15, kind: input, shape index: {}]
  %s16 = inlined_call_operand.vmem [shape: f32[32,32], index: 16, kind: input, shape index: {}]
  %s17 = inlined_call_operand.vmem [shape: f32[1,32], index: 17, kind: input, shape index: {}]
  %s18 = inlined_call_operand.vmem [shape: f32[1,32], index: 18, kind: input, shape index: {}]
  %s19 = inlined_call_operand.vmem [shape: f32[1,32], index: 19, kind: input, shape index: {}]
  %s20 = inlined_call_operand.vmem [shape: f32[32,64], index: 20, kind: input, shape index: {}]
  %s21 = inlined_call_operand.vmem [shape: f32[1,64], index: 21, kind: input, shape index: {}]
  %s22 = inlined_call_operand.vmem [shape: f32[64,32], index: 22, kind: input, shape index: {}]
  %s23 = inlined_call_operand.vmem [shape: f32[1,32], index: 23, kind: input, shape index: {}]
  %s24 = inlined_call_operand.vmem [shape: f32[2,8,32], index: 24, kind: output, shape index: {}]
  %s25 = sld [smem:[#allocation0]]
  $region129: #{ptransformer_forward.10} parent=0
    _
  %s27 = ssub.s32 1, %s25
  %s28 = scalar_select 0, %s27, %s25
  loop: start=0, step=1, limit=4
  $region2: #{ptransformer_forward.10} parent=0 // loop_pre_header
    _
  $region3: #{ptransformer_forward.10} parent=0 // loop_header
    %s30 = sphi 0, %s34
    %p31 = scmp.ge.s32.totalorder %s30, 4
    %s40 = sphi 0, %s42
    %s43 = sphi 0, %s40
    %s44 = sphi 0, %s43
    %s60 = sphi 0, %s44
    %s66 = sphi 0, %s68
    %s69 = sphi 0, %s66
    %s70 = sphi 0, %s69
    %s86 = sphi 0, %s70
    %s92 = sphi 0, %s94
    %s95 = sphi 0, %s92
    %s96 = sphi 0, %s95
    %s112 = sphi 0, %s96
    %s118 = sphi 0, %s120
    %s121 = sphi 0, %s118
    %s122 = sphi 0, %s121
    %s138 = sphi 0, %s122
    %s142 = sphi 0, %s142
    %s144 = sphi 0, %s142
    %s145 = sphi 0, %s144
    %s159 = sphi 0, %s145
    %s163 = sphi 0, %s163
    %s165 = sphi 0, %s163
    %s166 = sphi 0, %s165
    %s180 = sphi 0, %s166
    %s184 = sphi 0, %s184
    %s186 = sphi 0, %s184
    %s187 = sphi 0, %s186
    %s201 = sphi 0, %s187
    %s205 = sphi 0, %s205
    %s207 = sphi 0, %s205
    %s208 = sphi 0, %s207
    %s222 = sphi 0, %s208
    %s226 = sphi 0, %s226
    %s228 = sphi 0, %s226
    %s229 = sphi 0, %s228
    %s243 = sphi 0, %s229
    %s247 = sphi 0, %s247
    %s249 = sphi 0, %s247
    %s250 = sphi 0, %s249
    %s264 = sphi 0, %s250
    %s268 = sphi 0, %s268
    %s270 = sphi 0, %s268
    %s271 = sphi 0, %s270
    %s285 = sphi 0, %s271
    %s289 = sphi 0, %s289
    %s291 = sphi 0, %s289
    %s292 = sphi 0, %s291
    %s306 = sphi 0, %s292
    %s310 = sphi 0, %s310
    %s312 = sphi 0, %s310
    %s313 = sphi 0, %s312
    %s327 = sphi 0, %s313
    %s331 = sphi 0, %s331
    %s333 = sphi 0, %s331
    %s334 = sphi 0, %s333
    %s348 = sphi 0, %s334
    %s352 = sphi 0, %s352
    %s354 = sphi 0, %s352
    %s355 = sphi 0, %s354
    %s369 = sphi 0, %s355
    %s373 = sphi 0, %s373
    %s375 = sphi 0, %s373
    %s376 = sphi 0, %s375
    %s390 = sphi 0, %s376
    %s394 = sphi 0, %s394
    %s396 = sphi 0, %s394
    %s397 = sphi 0, %s396
    %s411 = sphi 0, %s397
    %s415 = sphi 0, %s415
    %s417 = sphi 0, %s415
    %s418 = sphi 0, %s417
    %s432 = sphi 0, %s418
    %s436 = sphi 0, %s436
    %s438 = sphi 0, %s436
    %s439 = sphi 0, %s438
    %s453 = sphi 0, %s439
    %s457 = sphi 0, %s457
    %s459 = sphi 0, %s457
    %s460 = sphi 0, %s459
    %s474 = sphi 0, %s460
    %s478 = sphi 0, %s478
    %s480 = sphi 0, %s478
    %s481 = sphi 0, %s480
    %s495 = sphi 0, %s481
    %s499 = sphi 0, %s499
    %s501 = sphi 0, %s499
    %s502 = sphi 0, %s501
    %s516 = sphi 0, %s502
    %s520 = sphi 0, %s520
    %s522 = sphi 0, %s520
    %s523 = sphi 0, %s522
    %s537 = sphi 0, %s523
    %s541 = sphi 0, %s541
    %s543 = sphi 0, %s541
    %s544 = sphi 0, %s543
    %s558 = sphi 0, %s544
    %s564 = sphi 0, %s566
    %s567 = sphi 0, %s564
    %s568 = sphi 0, %s567
    %s584 = sphi 0, %s568
  $region4: #{ptransformer_forward.10} parent=0 // loop_header_branch
    %33 = sbr.rel (%p31) target = $region8
  $region5: #{ptransformer_forward.10} parent=0 // loop_body
    %s35 = ssub.s32 %s30, 1
    %s36 = ssub.s32 %s30, 2
    %s37 = sadd.s32 %s30, 1
    %s38 = ssub.s32 %s30, %s37
    %p39 = scmp.eq.s32.totalorder %s38, 0
    %s41 = sadd.s32 %s40, 1
    %s42 = scalar_select %p39, %s40, %s41
    %p45 = pneg %p39
    %p46 = scmp.eq.s32.totalorder %s30, 1
    %p47 = por %p45, %p46
    %p48 = scmp.ne.s32.totalorder %s40, %s43
    %p49 = scmp.eq.s32.totalorder %s30, 0
    %p50 = por %p48, %p49
    %p51 = scmp.ne.s32.totalorder %s40, %s43
    %p52 = scmp.eq.s32.totalorder %s35, 1
    %p53 = por %p51, %p52
    %p54 = scmp.ne.s32.totalorder %s43, %s44
    %p55 = scmp.eq.s32.totalorder %s35, 0
    %p56 = por %p54, %p55
    %p57 = scmp.ne.s32.totalorder %s43, %s44
    %p58 = scmp.eq.s32.totalorder %s36, 1
    %p59 = por %p57, %p58
    %p61 = scmp.ne.s32.totalorder %s44, %s60
    %p62 = scmp.eq.s32.totalorder %s36, 0
    %p63 = por %p61, %p62
    %s64 = ssub.s32 %s30, %s37
    %p65 = scmp.eq.s32.totalorder %s64, 0
    %s67 = sadd.s32 %s66, 1
    %s68 = scalar_select %p65, %s66, %s67
    %p71 = pneg %p65
    %p72 = scmp.eq.s32.totalorder %s30, 1
    %p73 = por %p71, %p72
    %p74 = scmp.ne.s32.totalorder %s66, %s69
    %p75 = scmp.eq.s32.totalorder %s30, 0
    %p76 = por %p74, %p75
    %p77 = scmp.ne.s32.totalorder %s66, %s69
    %p78 = scmp.eq.s32.totalorder %s35, 1
    %p79 = por %p77, %p78
    %p80 = scmp.ne.s32.totalorder %s69, %s70
    %p81 = scmp.eq.s32.totalorder %s35, 0
    %p82 = por %p80, %p81
    %p83 = scmp.ne.s32.totalorder %s69, %s70
    %p84 = scmp.eq.s32.totalorder %s36, 1
    %p85 = por %p83, %p84
    %p87 = scmp.ne.s32.totalorder %s70, %s86
    %p88 = scmp.eq.s32.totalorder %s36, 0
    %p89 = por %p87, %p88
    %s90 = ssub.s32 %s30, %s37
    %p91 = scmp.eq.s32.totalorder %s90, 0
    %s93 = sadd.s32 %s92, 1
    %s94 = scalar_select %p91, %s92, %s93
    %p97 = pneg %p91
    %p98 = scmp.eq.s32.totalorder %s30, 1
    %p99 = por %p97, %p98
    %p100 = scmp.ne.s32.totalorder %s92, %s95
    %p101 = scmp.eq.s32.totalorder %s30, 0
    %p102 = por %p100, %p101
    %p103 = scmp.ne.s32.totalorder %s92, %s95
    %p104 = scmp.eq.s32.totalorder %s35, 1
    %p105 = por %p103, %p104
    %p106 = scmp.ne.s32.totalorder %s95, %s96
    %p107 = scmp.eq.s32.totalorder %s35, 0
    %p108 = por %p106, %p107
    %p109 = scmp.ne.s32.totalorder %s95, %s96
    %p110 = scmp.eq.s32.totalorder %s36, 1
    %p111 = por %p109, %p110
    %p113 = scmp.ne.s32.totalorder %s96, %s112
    %p114 = scmp.eq.s32.totalorder %s36, 0
    %p115 = por %p113, %p114
    %s116 = ssub.s32 %s30, %s37
    %p117 = scmp.eq.s32.totalorder %s116, 0
    %s119 = sadd.s32 %s118, 1
    %s120 = scalar_select %p117, %s118, %s119
    %p123 = pneg %p117
    %p124 = scmp.eq.s32.totalorder %s30, 1
    %p125 = por %p123, %p124
    %p126 = scmp.ne.s32.totalorder %s118, %s121
    %p127 = scmp.eq.s32.totalorder %s30, 0
    %p128 = por %p126, %p127
    %p129 = scmp.ne.s32.totalorder %s118, %s121
    %p130 = scmp.eq.s32.totalorder %s35, 1
    %p131 = por %p129, %p130
    %p132 = scmp.ne.s32.totalorder %s121, %s122
    %p133 = scmp.eq.s32.totalorder %s35, 0
    %p134 = por %p132, %p133
    %p135 = scmp.ne.s32.totalorder %s121, %s122
    %p136 = scmp.eq.s32.totalorder %s36, 1
    %p137 = por %p135, %p136
    %p139 = scmp.ne.s32.totalorder %s122, %s138
    %p140 = scmp.eq.s32.totalorder %s36, 0
    %p141 = por %p139, %p140
    %s143 = sadd.s32 %s142, 1
    %p146 = scmp.eq.s32.totalorder %s30, 1
    %p147 = scmp.ne.s32.totalorder %s142, %s144
    %p148 = scmp.eq.s32.totalorder %s30, 0
    %p149 = por %p147, %p148
    %p150 = scmp.ne.s32.totalorder %s142, %s144
    %p151 = scmp.eq.s32.totalorder %s35, 1
    %p152 = por %p150, %p151
    %p153 = scmp.ne.s32.totalorder %s144, %s145
    %p154 = scmp.eq.s32.totalorder %s35, 0
    %p155 = por %p153, %p154
    %p156 = scmp.ne.s32.totalorder %s144, %s145
    %p157 = scmp.eq.s32.totalorder %s36, 1
    %p158 = por %p156, %p157
    %p160 = scmp.ne.s32.totalorder %s145, %s159
    %p161 = scmp.eq.s32.totalorder %s36, 0
    %p162 = por %p160, %p161
    %s164 = sadd.s32 %s163, 1
    %p167 = scmp.eq.s32.totalorder %s30, 1
    %p168 = scmp.ne.s32.totalorder %s163, %s165
    %p169 = scmp.eq.s32.totalorder %s30, 0
    %p170 = por %p168, %p169
    %p171 = scmp.ne.s32.totalorder %s163, %s165
    %p172 = scmp.eq.s32.totalorder %s35, 1
    %p173 = por %p171, %p172
    %p174 = scmp.ne.s32.totalorder %s165, %s166
    %p175 = scmp.eq.s32.totalorder %s35, 0
    %p176 = por %p174, %p175
    %p177 = scmp.ne.s32.totalorder %s165, %s166
    %p178 = scmp.eq.s32.totalorder %s36, 1
    %p179 = por %p177, %p178
    %p181 = scmp.ne.s32.totalorder %s166, %s180
    %p182 = scmp.eq.s32.totalorder %s36, 0
    %p183 = por %p181, %p182
    %s185 = sadd.s32 %s184, 1
    %p188 = scmp.eq.s32.totalorder %s30, 1
    %p189 = scmp.ne.s32.totalorder %s184, %s186
    %p190 = scmp.eq.s32.totalorder %s30, 0
    %p191 = por %p189, %p190
    %p192 = scmp.ne.s32.totalorder %s184, %s186
    %p193 = scmp.eq.s32.totalorder %s35, 1
    %p194 = por %p192, %p193
    %p195 = scmp.ne.s32.totalorder %s186, %s187
    %p196 = scmp.eq.s32.totalorder %s35, 0
    %p197 = por %p195, %p196
    %p198 = scmp.ne.s32.totalorder %s186, %s187
    %p199 = scmp.eq.s32.totalorder %s36, 1
    %p200 = por %p198, %p199
    %p202 = scmp.ne.s32.totalorder %s187, %s201
    %p203 = scmp.eq.s32.totalorder %s36, 0
    %p204 = por %p202, %p203
    %s206 = sadd.s32 %s205, 1
    %p209 = scmp.eq.s32.totalorder %s30, 1
    %p210 = scmp.ne.s32.totalorder %s205, %s207
    %p211 = scmp.eq.s32.totalorder %s30, 0
    %p212 = por %p210, %p211
    %p213 = scmp.ne.s32.totalorder %s205, %s207
    %p214 = scmp.eq.s32.totalorder %s35, 1
    %p215 = por %p213, %p214
    %p216 = scmp.ne.s32.totalorder %s207, %s208
    %p217 = scmp.eq.s32.totalorder %s35, 0
    %p218 = por %p216, %p217
    %p219 = scmp.ne.s32.totalorder %s207, %s208
    %p220 = scmp.eq.s32.totalorder %s36, 1
    %p221 = por %p219, %p220
    %p223 = scmp.ne.s32.totalorder %s208, %s222
    %p224 = scmp.eq.s32.totalorder %s36, 0
    %p225 = por %p223, %p224
    %s227 = sadd.s32 %s226, 1
    %p230 = scmp.eq.s32.totalorder %s30, 1
    %p231 = scmp.ne.s32.totalorder %s226, %s228
    %p232 = scmp.eq.s32.totalorder %s30, 0
    %p233 = por %p231, %p232
    %p234 = scmp.ne.s32.totalorder %s226, %s228
    %p235 = scmp.eq.s32.totalorder %s35, 1
    %p236 = por %p234, %p235
    %p237 = scmp.ne.s32.totalorder %s228, %s229
    %p238 = scmp.eq.s32.totalorder %s35, 0
    %p239 = por %p237, %p238
    %p240 = scmp.ne.s32.totalorder %s228, %s229
    %p241 = scmp.eq.s32.totalorder %s36, 1
    %p242 = por %p240, %p241
    %p244 = scmp.ne.s32.totalorder %s229, %s243
    %p245 = scmp.eq.s32.totalorder %s36, 0
    %p246 = por %p244, %p245
    %s248 = sadd.s32 %s247, 1
    %p251 = scmp.eq.s32.totalorder %s30, 1
    %p252 = scmp.ne.s32.totalorder %s247, %s249
    %p253 = scmp.eq.s32.totalorder %s30, 0
    %p254 = por %p252, %p253
    %p255 = scmp.ne.s32.totalorder %s247, %s249
    %p256 = scmp.eq.s32.totalorder %s35, 1
    %p257 = por %p255, %p256
    %p258 = scmp.ne.s32.totalorder %s249, %s250
    %p259 = scmp.eq.s32.totalorder %s35, 0
    %p260 = por %p258, %p259
    %p261 = scmp.ne.s32.totalorder %s249, %s250
    %p262 = scmp.eq.s32.totalorder %s36, 1
    %p263 = por %p261, %p262
    %p265 = scmp.ne.s32.totalorder %s250, %s264
    %p266 = scmp.eq.s32.totalorder %s36, 0
    %p267 = por %p265, %p266
    %s269 = sadd.s32 %s268, 1
    %p272 = scmp.eq.s32.totalorder %s30, 1
    %p273 = scmp.ne.s32.totalorder %s268, %s270
    %p274 = scmp.eq.s32.totalorder %s30, 0
    %p275 = por %p273, %p274
    %p276 = scmp.ne.s32.totalorder %s268, %s270
    %p277 = scmp.eq.s32.totalorder %s35, 1
    %p278 = por %p276, %p277
    %p279 = scmp.ne.s32.totalorder %s270, %s271
    %p280 = scmp.eq.s32.totalorder %s35, 0
    %p281 = por %p279, %p280
    %p282 = scmp.ne.s32.totalorder %s270, %s271
    %p283 = scmp.eq.s32.totalorder %s36, 1
    %p284 = por %p282, %p283
    %p286 = scmp.ne.s32.totalorder %s271, %s285
    %p287 = scmp.eq.s32.totalorder %s36, 0
    %p288 = por %p286, %p287
    %s290 = sadd.s32 %s289, 1
    %p293 = scmp.eq.s32.totalorder %s30, 1
    %p294 = scmp.ne.s32.totalorder %s289, %s291
    %p295 = scmp.eq.s32.totalorder %s30, 0
    %p296 = por %p294, %p295
    %p297 = scmp.ne.s32.totalorder %s289, %s291
    %p298 = scmp.eq.s32.totalorder %s35, 1
    %p299 = por %p297, %p298
    %p300 = scmp.ne.s32.totalorder %s291, %s292
    %p301 = scmp.eq.s32.totalorder %s35, 0
    %p302 = por %p300, %p301
    %p303 = scmp.ne.s32.totalorder %s291, %s292
    %p304 = scmp.eq.s32.totalorder %s36, 1
    %p305 = por %p303, %p304
    %p307 = scmp.ne.s32.totalorder %s292, %s306
    %p308 = scmp.eq.s32.totalorder %s36, 0
    %p309 = por %p307, %p308
    %s311 = sadd.s32 %s310, 1
    %p314 = scmp.eq.s32.totalorder %s30, 1
    %p315 = scmp.ne.s32.totalorder %s310, %s312
    %p316 = scmp.eq.s32.totalorder %s30, 0
    %p317 = por %p315, %p316
    %p318 = scmp.ne.s32.totalorder %s310, %s312
    %p319 = scmp.eq.s32.totalorder %s35, 1
    %p320 = por %p318, %p319
    %p321 = scmp.ne.s32.totalorder %s312, %s313
    %p322 = scmp.eq.s32.totalorder %s35, 0
    %p323 = por %p321, %p322
    %p324 = scmp.ne.s32.totalorder %s312, %s313
    %p325 = scmp.eq.s32.totalorder %s36, 1
    %p326 = por %p324, %p325
    %p328 = scmp.ne.s32.totalorder %s313, %s327
    %p329 = scmp.eq.s32.totalorder %s36, 0
    %p330 = por %p328, %p329
    %s332 = sadd.s32 %s331, 1
    %p335 = scmp.eq.s32.totalorder %s30, 1
    %p336 = scmp.ne.s32.totalorder %s331, %s333
    %p337 = scmp.eq.s32.totalorder %s30, 0
    %p338 = por %p336, %p337
    %p339 = scmp.ne.s32.totalorder %s331, %s333
    %p340 = scmp.eq.s32.totalorder %s35, 1
    %p341 = por %p339, %p340
    %p342 = scmp.ne.s32.totalorder %s333, %s334
    %p343 = scmp.eq.s32.totalorder %s35, 0
    %p344 = por %p342, %p343
    %p345 = scmp.ne.s32.totalorder %s333, %s334
    %p346 = scmp.eq.s32.totalorder %s36, 1
    %p347 = por %p345, %p346
    %p349 = scmp.ne.s32.totalorder %s334, %s348
    %p350 = scmp.eq.s32.totalorder %s36, 0
    %p351 = por %p349, %p350
    %s353 = sadd.s32 %s352, 1
    %p356 = scmp.eq.s32.totalorder %s30, 1
    %p357 = scmp.ne.s32.totalorder %s352, %s354
    %p358 = scmp.eq.s32.totalorder %s30, 0
    %p359 = por %p357, %p358
    %p360 = scmp.ne.s32.totalorder %s352, %s354
    %p361 = scmp.eq.s32.totalorder %s35, 1
    %p362 = por %p360, %p361
    %p363 = scmp.ne.s32.totalorder %s354, %s355
    %p364 = scmp.eq.s32.totalorder %s35, 0
    %p365 = por %p363, %p364
    %p366 = scmp.ne.s32.totalorder %s354, %s355
    %p367 = scmp.eq.s32.totalorder %s36, 1
    %p368 = por %p366, %p367
    %p370 = scmp.ne.s32.totalorder %s355, %s369
    %p371 = scmp.eq.s32.totalorder %s36, 0
    %p372 = por %p370, %p371
    %s374 = sadd.s32 %s373, 1
    %p377 = scmp.eq.s32.totalorder %s30, 1
    %p378 = scmp.ne.s32.totalorder %s373, %s375
    %p379 = scmp.eq.s32.totalorder %s30, 0
    %p380 = por %p378, %p379
    %p381 = scmp.ne.s32.totalorder %s373, %s375
    %p382 = scmp.eq.s32.totalorder %s35, 1
    %p383 = por %p381, %p382
    %p384 = scmp.ne.s32.totalorder %s375, %s376
    %p385 = scmp.eq.s32.totalorder %s35, 0
    %p386 = por %p384, %p385
    %p387 = scmp.ne.s32.totalorder %s375, %s376
    %p388 = scmp.eq.s32.totalorder %s36, 1
    %p389 = por %p387, %p388
    %p391 = scmp.ne.s32.totalorder %s376, %s390
    %p392 = scmp.eq.s32.totalorder %s36, 0
    %p393 = por %p391, %p392
    %s395 = sadd.s32 %s394, 1
    %p398 = scmp.eq.s32.totalorder %s30, 1
    %p399 = scmp.ne.s32.totalorder %s394, %s396
    %p400 = scmp.eq.s32.totalorder %s30, 0
    %p401 = por %p399, %p400
    %p402 = scmp.ne.s32.totalorder %s394, %s396
    %p403 = scmp.eq.s32.totalorder %s35, 1
    %p404 = por %p402, %p403
    %p405 = scmp.ne.s32.totalorder %s396, %s397
    %p406 = scmp.eq.s32.totalorder %s35, 0
    %p407 = por %p405, %p406
    %p408 = scmp.ne.s32.totalorder %s396, %s397
    %p409 = scmp.eq.s32.totalorder %s36, 1
    %p410 = por %p408, %p409
    %p412 = scmp.ne.s32.totalorder %s397, %s411
    %p413 = scmp.eq.s32.totalorder %s36, 0
    %p414 = por %p412, %p413
    %s416 = sadd.s32 %s415, 1
    %p419 = scmp.eq.s32.totalorder %s30, 1
    %p420 = scmp.ne.s32.totalorder %s415, %s417
    %p421 = scmp.eq.s32.totalorder %s30, 0
    %p422 = por %p420, %p421
    %p423 = scmp.ne.s32.totalorder %s415, %s417
    %p424 = scmp.eq.s32.totalorder %s35, 1
    %p425 = por %p423, %p424
    %p426 = scmp.ne.s32.totalorder %s417, %s418
    %p427 = scmp.eq.s32.totalorder %s35, 0
    %p428 = por %p426, %p427
    %p429 = scmp.ne.s32.totalorder %s417, %s418
    %p430 = scmp.eq.s32.totalorder %s36, 1
    %p431 = por %p429, %p430
    %p433 = scmp.ne.s32.totalorder %s418, %s432
    %p434 = scmp.eq.s32.totalorder %s36, 0
    %p435 = por %p433, %p434
    %s437 = sadd.s32 %s436, 1
    %p440 = scmp.eq.s32.totalorder %s30, 1
    %p441 = scmp.ne.s32.totalorder %s436, %s438
    %p442 = scmp.eq.s32.totalorder %s30, 0
    %p443 = por %p441, %p442
    %p444 = scmp.ne.s32.totalorder %s436, %s438
    %p445 = scmp.eq.s32.totalorder %s35, 1
    %p446 = por %p444, %p445
    %p447 = scmp.ne.s32.totalorder %s438, %s439
    %p448 = scmp.eq.s32.totalorder %s35, 0
    %p449 = por %p447, %p448
    %p450 = scmp.ne.s32.totalorder %s438, %s439
    %p451 = scmp.eq.s32.totalorder %s36, 1
    %p452 = por %p450, %p451
    %p454 = scmp.ne.s32.totalorder %s439, %s453
    %p455 = scmp.eq.s32.totalorder %s36, 0
    %p456 = por %p454, %p455
    %s458 = sadd.s32 %s457, 1
    %p461 = scmp.eq.s32.totalorder %s30, 1
    %p462 = scmp.ne.s32.totalorder %s457, %s459
    %p463 = scmp.eq.s32.totalorder %s30, 0
    %p464 = por %p462, %p463
    %p465 = scmp.ne.s32.totalorder %s457, %s459
    %p466 = scmp.eq.s32.totalorder %s35, 1
    %p467 = por %p465, %p466
    %p468 = scmp.ne.s32.totalorder %s459, %s460
    %p469 = scmp.eq.s32.totalorder %s35, 0
    %p470 = por %p468, %p469
    %p471 = scmp.ne.s32.totalorder %s459, %s460
    %p472 = scmp.eq.s32.totalorder %s36, 1
    %p473 = por %p471, %p472
    %p475 = scmp.ne.s32.totalorder %s460, %s474
    %p476 = scmp.eq.s32.totalorder %s36, 0
    %p477 = por %p475, %p476
    %s479 = sadd.s32 %s478, 1
    %p482 = scmp.eq.s32.totalorder %s30, 1
    %p483 = scmp.ne.s32.totalorder %s478, %s480
    %p484 = scmp.eq.s32.totalorder %s30, 0
    %p485 = por %p483, %p484
    %p486 = scmp.ne.s32.totalorder %s478, %s480
    %p487 = scmp.eq.s32.totalorder %s35, 1
    %p488 = por %p486, %p487
    %p489 = scmp.ne.s32.totalorder %s480, %s481
    %p490 = scmp.eq.s32.totalorder %s35, 0
    %p491 = por %p489, %p490
    %p492 = scmp.ne.s32.totalorder %s480, %s481
    %p493 = scmp.eq.s32.totalorder %s36, 1
    %p494 = por %p492, %p493
    %p496 = scmp.ne.s32.totalorder %s481, %s495
    %p497 = scmp.eq.s32.totalorder %s36, 0
    %p498 = por %p496, %p497
    %s500 = sadd.s32 %s499, 1
    %p503 = scmp.eq.s32.totalorder %s30, 1
    %p504 = scmp.ne.s32.totalorder %s499, %s501
    %p505 = scmp.eq.s32.totalorder %s30, 0
    %p506 = por %p504, %p505
    %p507 = scmp.ne.s32.totalorder %s499, %s501
    %p508 = scmp.eq.s32.totalorder %s35, 1
    %p509 = por %p507, %p508
    %p510 = scmp.ne.s32.totalorder %s501, %s502
    %p511 = scmp.eq.s32.totalorder %s35, 0
    %p512 = por %p510, %p511
    %p513 = scmp.ne.s32.totalorder %s501, %s502
    %p514 = scmp.eq.s32.totalorder %s36, 1
    %p515 = por %p513, %p514
    %p517 = scmp.ne.s32.totalorder %s502, %s516
    %p518 = scmp.eq.s32.totalorder %s36, 0
    %p519 = por %p517, %p518
    %s521 = sadd.s32 %s520, 1
    %p524 = scmp.eq.s32.totalorder %s30, 1
    %p525 = scmp.ne.s32.totalorder %s520, %s522
    %p526 = scmp.eq.s32.totalorder %s30, 0
    %p527 = por %p525, %p526
    %p528 = scmp.ne.s32.totalorder %s520, %s522
    %p529 = scmp.eq.s32.totalorder %s35, 1
    %p530 = por %p528, %p529
    %p531 = scmp.ne.s32.totalorder %s522, %s523
    %p532 = scmp.eq.s32.totalorder %s35, 0
    %p533 = por %p531, %p532
    %p534 = scmp.ne.s32.totalorder %s522, %s523
    %p535 = scmp.eq.s32.totalorder %s36, 1
    %p536 = por %p534, %p535
    %p538 = scmp.ne.s32.totalorder %s523, %s537
    %p539 = scmp.eq.s32.totalorder %s36, 0
    %p540 = por %p538, %p539
    %s542 = sadd.s32 %s541, 1
    %p545 = scmp.eq.s32.totalorder %s30, 1
    %p546 = scmp.ne.s32.totalorder %s541, %s543
    %p547 = scmp.eq.s32.totalorder %s30, 0
    %p548 = por %p546, %p547
    %p549 = scmp.ne.s32.totalorder %s541, %s543
    %p550 = scmp.eq.s32.totalorder %s35, 1
    %p551 = por %p549, %p550
    %p552 = scmp.ne.s32.totalorder %s543, %s544
    %p553 = scmp.eq.s32.totalorder %s35, 0
    %p554 = por %p552, %p553
    %p555 = scmp.ne.s32.totalorder %s543, %s544
    %p556 = scmp.eq.s32.totalorder %s36, 1
    %p557 = por %p555, %p556
    %p559 = scmp.ne.s32.totalorder %s544, %s558
    %p560 = scmp.eq.s32.totalorder %s36, 0
    %p561 = por %p559, %p560
    %s562 = ssub.s32 %s30, %s37
    %p563 = scmp.eq.s32.totalorder %s562, 0
    %s565 = sadd.s32 %s564, 1
    %s566 = scalar_select %p563, %s564, %s565
    %p569 = pneg %p563
    %p570 = scmp.eq.s32.totalorder %s30, 1
    %p571 = por %p569, %p570
    %p572 = scmp.ne.s32.totalorder %s564, %s567
    %p573 = scmp.eq.s32.totalorder %s30, 0
    %p574 = por %p572, %p573
    %p575 = scmp.ne.s32.totalorder %s564, %s567
    %p576 = scmp.eq.s32.totalorder %s35, 1
    %p577 = por %p575, %p576
    %p578 = scmp.ne.s32.totalorder %s567, %s568
    %p579 = scmp.eq.s32.totalorder %s35, 0
    %p580 = por %p578, %p579
    %p581 = scmp.ne.s32.totalorder %s567, %s568
    %p582 = scmp.eq.s32.totalorder %s36, 1
    %p583 = por %p581, %p582
    %p585 = scmp.ne.s32.totalorder %s568, %s584
    %p586 = scmp.eq.s32.totalorder %s36, 0
    %p587 = por %p585, %p586
    %p588 = scmp.le.s32.totalorder 1, %s30
    %p589 = scmp.lt.s32.totalorder %s30, 3
    %p590 = pnand %p588, %p589
    %p591 = pneg %p590
    // Predicated region
    $region9: #{ptransformer_forward.10} parent=5 // pred_check
      _
    $region10: #{ptransformer_forward.10} parent=5 // pred_check_branch
      %593 = sbr.rel (%p590) target = $region12
    $region11: #{ptransformer_forward.10} parent=5 // pred_region
      %s594 = ssub.s32 %s30, 1
      // Predicated region
      $region13: #{ptransformer_forward.10} parent=11 // pred_check
        %p595 = pneg %p155
      $region14: #{ptransformer_forward.10} parent=11 // pred_check_branch
        %597 = sbr.rel (%p595) target = $region16
      $region15: #{ptransformer_forward.10} parent=11 // pred_region
        _
      $region16: #{ptransformer_forward.10} parent=11 // pred_fallthru
        _
      // Predicated region
      $region17: #{ptransformer_forward.10} parent=11 // pred_check
        %p598 = pneg %p176
      $region18: #{ptransformer_forward.10} parent=11 // pred_check_branch
        %600 = sbr.rel (%p598) target = $region20
      $region19: #{ptransformer_forward.10} parent=11 // pred_region
        _
      $region20: #{ptransformer_forward.10} parent=11 // pred_fallthru
        _
      // Predicated region
      $region21: #{ptransformer_forward.10} parent=11 // pred_check
        %p601 = pneg %p197
      $region22: #{ptransformer_forward.10} parent=11 // pred_check_branch
        %603 = sbr.rel (%p601) target = $region24
      $region23: #{ptransformer_forward.10} parent=11 // pred_region
        _
      $region24: #{ptransformer_forward.10} parent=11 // pred_fallthru
        _
      // Predicated region
      $region25: #{ptransformer_forward.10} parent=11 // pred_check
        %p604 = pneg %p218
      $region26: #{ptransformer_forward.10} parent=11 // pred_check_branch
        %606 = sbr.rel (%p604) target = $region28
      $region27: #{ptransformer_forward.10} parent=11 // pred_region
        _
      $region28: #{ptransformer_forward.10} parent=11 // pred_fallthru
        _
      // Predicated region
      $region29: #{ptransformer_forward.10} parent=11 // pred_check
        %p607 = pneg %p239
      $region30: #{ptransformer_forward.10} parent=11 // pred_check_branch
        %609 = sbr.rel (%p607) target = $region32
      $region31: #{ptransformer_forward.10} parent=11 // pred_region
        _
      $region32: #{ptransformer_forward.10} parent=11 // pred_fallthru
        _
      // Predicated region
      $region33: #{ptransformer_forward.10} parent=11 // pred_check
        %p610 = pneg %p260
      $region34: #{ptransformer_forward.10} parent=11 // pred_check_branch
        %612 = sbr.rel (%p610) target = $region36
      $region35: #{ptransformer_forward.10} parent=11 // pred_region
        _
      $region36: #{ptransformer_forward.10} parent=11 // pred_fallthru
        _
      // Predicated region
      $region37: #{ptransformer_forward.10} parent=11 // pred_check
        %p613 = pneg %p281
      $region38: #{ptransformer_forward.10} parent=11 // pred_check_branch
        %615 = sbr.rel (%p613) target = $region40
      $region39: #{ptransformer_forward.10} parent=11 // pred_region
        _
      $region40: #{ptransformer_forward.10} parent=11 // pred_fallthru
        _
      // Predicated region
      $region41: #{ptransformer_forward.10} parent=11 // pred_check
        %p616 = pneg %p302
      $region42: #{ptransformer_forward.10} parent=11 // pred_check_branch
        %618 = sbr.rel (%p616) target = $region44
      $region43: #{ptransformer_forward.10} parent=11 // pred_region
        _
      $region44: #{ptransformer_forward.10} parent=11 // pred_fallthru
        _
      // Predicated region
      $region45: #{ptransformer_forward.10} parent=11 // pred_check
        %p619 = pneg %p323
      $region46: #{ptransformer_forward.10} parent=11 // pred_check_branch
        %621 = sbr.rel (%p619) target = $region48
      $region47: #{ptransformer_forward.10} parent=11 // pred_region
        _
      $region48: #{ptransformer_forward.10} parent=11 // pred_fallthru
        _
      // Predicated region
      $region49: #{ptransformer_forward.10} parent=11 // pred_check
        %p622 = pneg %p344
      $region50: #{ptransformer_forward.10} parent=11 // pred_check_branch
        %624 = sbr.rel (%p622) target = $region52
      $region51: #{ptransformer_forward.10} parent=11 // pred_region
        _
      $region52: #{ptransformer_forward.10} parent=11 // pred_fallthru
        _
      // Predicated region
      $region53: #{ptransformer_forward.10} parent=11 // pred_check
        %p625 = pneg %p365
      $region54: #{ptransformer_forward.10} parent=11 // pred_check_branch
        %627 = sbr.rel (%p625) target = $region56
      $region55: #{ptransformer_forward.10} parent=11 // pred_region
        _
      $region56: #{ptransformer_forward.10} parent=11 // pred_fallthru
        _
      // Predicated region
      $region57: #{ptransformer_forward.10} parent=11 // pred_check
        %p628 = pneg %p386
      $region58: #{ptransformer_forward.10} parent=11 // pred_check_branch
        %630 = sbr.rel (%p628) target = $region60
      $region59: #{ptransformer_forward.10} parent=11 // pred_region
        _
      $region60: #{ptransformer_forward.10} parent=11 // pred_fallthru
        _
      // Predicated region
      $region61: #{ptransformer_forward.10} parent=11 // pred_check
        %p631 = pneg %p407
      $region62: #{ptransformer_forward.10} parent=11 // pred_check_branch
        %633 = sbr.rel (%p631) target = $region64
      $region63: #{ptransformer_forward.10} parent=11 // pred_region
        _
      $region64: #{ptransformer_forward.10} parent=11 // pred_fallthru
        _
      // Predicated region
      $region65: #{ptransformer_forward.10} parent=11 // pred_check
        %p634 = pneg %p428
      $region66: #{ptransformer_forward.10} parent=11 // pred_check_branch
        %636 = sbr.rel (%p634) target = $region68
      $region67: #{ptransformer_forward.10} parent=11 // pred_region
        _
      $region68: #{ptransformer_forward.10} parent=11 // pred_fallthru
        _
      // Predicated region
      $region69: #{ptransformer_forward.10} parent=11 // pred_check
        %p637 = pneg %p449
      $region70: #{ptransformer_forward.10} parent=11 // pred_check_branch
        %639 = sbr.rel (%p637) target = $region72
      $region71: #{ptransformer_forward.10} parent=11 // pred_region
        _
      $region72: #{ptransformer_forward.10} parent=11 // pred_fallthru
        _
      // Predicated region
      $region73: #{ptransformer_forward.10} parent=11 // pred_check
        %p640 = pneg %p470
      $region74: #{ptransformer_forward.10} parent=11 // pred_check_branch
        %642 = sbr.rel (%p640) target = $region76
      $region75: #{ptransformer_forward.10} parent=11 // pred_region
        _
      $region76: #{ptransformer_forward.10} parent=11 // pred_fallthru
        _
      // Predicated region
      $region77: #{ptransformer_forward.10} parent=11 // pred_check
        %p643 = pneg %p491
      $region78: #{ptransformer_forward.10} parent=11 // pred_check_branch
        %645 = sbr.rel (%p643) target = $region80
      $region79: #{ptransformer_forward.10} parent=11 // pred_region
        _
      $region80: #{ptransformer_forward.10} parent=11 // pred_fallthru
        _
      // Predicated region
      $region81: #{ptransformer_forward.10} parent=11 // pred_check
        %p646 = pneg %p512
      $region82: #{ptransformer_forward.10} parent=11 // pred_check_branch
        %648 = sbr.rel (%p646) target = $region84
      $region83: #{ptransformer_forward.10} parent=11 // pred_region
        _
      $region84: #{ptransformer_forward.10} parent=11 // pred_fallthru
        _
      // Predicated region
      $region85: #{ptransformer_forward.10} parent=11 // pred_check
        %p649 = pneg %p533
      $region86: #{ptransformer_forward.10} parent=11 // pred_check_branch
        %651 = sbr.rel (%p649) target = $region88
      $region87: #{ptransformer_forward.10} parent=11 // pred_region
        _
      $region88: #{ptransformer_forward.10} parent=11 // pred_fallthru
        _
      // Predicated region
      $region89: #{ptransformer_forward.10} parent=11 // pred_check
        %p652 = pneg %p554
      $region90: #{ptransformer_forward.10} parent=11 // pred_check_branch
        %654 = sbr.rel (%p652) target = $region92
      $region91: #{ptransformer_forward.10} parent=11 // pred_region
        _
      $region92: #{ptransformer_forward.10} parent=11 // pred_fallthru
        _
    $region12: #{ptransformer_forward.10} parent=5 // pred_fallthru
      _
    %p655 = scmp.lt.s32.totalorder %s30, 2
    // Predicated region
    $region93: #{ptransformer_forward.10} parent=5 // pred_check
      %p656 = pneg %p655
    $region94: #{ptransformer_forward.10} parent=5 // pred_check_branch
      %658 = sbr.rel (%p656) target = $region96
    $region95: #{ptransformer_forward.10} parent=5 // pred_region
      // Predicated region
      $region97: #{ptransformer_forward.10} parent=95 // pred_check
        %p659 = pneg %p50
      $region98: #{ptransformer_forward.10} parent=95 // pred_check_branch
        %661 = sbr.rel (%p659) target = $region100
      $region99: #{ptransformer_forward.10} parent=95 // pred_region
        %p662 = scmp.lt.s32.totalorder %s30, 1
        %s663 = scalar_select %p662, %s30, 1
        %s664 = smul.addr %s663, 8
        %s665 = scalar_lea.vmem %s0, %s664
      $region100: #{ptransformer_forward.10} parent=95 // pred_fallthru
        _
      // Predicated region
      $region101: #{ptransformer_forward.10} parent=95 // pred_check
        %p666 = pneg %p76
      $region102: #{ptransformer_forward.10} parent=95 // pred_check_branch
        %668 = sbr.rel (%p666) target = $region104
      $region103: #{ptransformer_forward.10} parent=95 // pred_region
        %p669 = scmp.lt.s32.totalorder %s30, 1
        %s670 = scalar_select %p669, %s30, 1
        %s671 = smul.addr %s670, 2
        %s672 = smul.addr %s671, 8
        %s673 = scalar_lea.vmem %s1, %s672
      $region104: #{ptransformer_forward.10} parent=95 // pred_fallthru
        _
      // Predicated region
      $region105: #{ptransformer_forward.10} parent=95 // pred_check
        %p674 = pneg %p102
      $region106: #{ptransformer_forward.10} parent=95 // pred_check_branch
        %676 = sbr.rel (%p674) target = $region108
      $region107: #{ptransformer_forward.10} parent=95 // pred_region
        %p677 = scmp.lt.s32.totalorder %s30, 1
        %s678 = scalar_select %p677, %s30, 1
        %s679 = smul.addr %s678, 8
        %s680 = scalar_lea.vmem %s2, %s679
      $region108: #{ptransformer_forward.10} parent=95 // pred_fallthru
        _
      // Predicated region
      $region109: #{ptransformer_forward.10} parent=95 // pred_check
        %p681 = pneg %p128
      $region110: #{ptransformer_forward.10} parent=95 // pred_check_branch
        %683 = sbr.rel (%p681) target = $region112
      $region111: #{ptransformer_forward.10} parent=95 // pred_region
        %p684 = scmp.lt.s32.totalorder %s30, 1
        %s685 = scalar_select %p684, %s30, 1
        %s686 = scalar_lea.vmem %s3, %s685
      $region112: #{ptransformer_forward.10} parent=95 // pred_fallthru
        _
    $region96: #{ptransformer_forward.10} parent=5 // pred_fallthru
      _
    %p687 = scmp.le.s32.totalorder 1, %s30
    %p688 = scmp.lt.s32.totalorder %s30, 3
    %p689 = pnand %p687, %p688
    %p690 = pneg %p689
    // Predicated region
    $region113: #{ptransformer_forward.10} parent=5 // pred_check
      _
    $region114: #{ptransformer_forward.10} parent=5 // pred_check_branch
      %692 = sbr.rel (%p689) target = $region116
    $region115: #{ptransformer_forward.10} parent=5 // pred_region
      %s693 = ssub.s32 %s30, 1
      %p694 = scmp.lt.s32.totalorder %s35, 1
      %s695 = scalar_select %p694, %s35, 1
      %s696 = smul.addr %s695, 8
      %s697 = scalar_lea.vmem %s0, %s696
      %p698 = pneg %p56
      %p699 = pneg %p53
      %p700 = scmp.lt.s32.totalorder %s35, 1
      %s701 = scalar_select %p700, %s35, 1
      %s702 = smul.addr %s701, 2
      %s703 = smul.addr %s702, 8
      %s704 = scalar_lea.vmem %s1, %s703
      %p705 = pneg %p82
      %p706 = pneg %p79
      %p707 = scmp.lt.s32.totalorder %s35, 1
      %s708 = scalar_select %p707, %s35, 1
      %s709 = smul.addr %s708, 8
      %s710 = scalar_lea.vmem %s2, %s709
      %p711 = pneg %p108
      %p712 = pneg %p105
      %p713 = scmp.lt.s32.totalorder %s35, 1
      %s714 = scalar_select %p713, %s35, 1
      %s715 = scalar_lea.vmem %s3, %s714
      %p716 = pneg %p134
      %p717 = pneg %p131
      %p718 = pneg %p155
      %p719 = pneg %p152
      %p720 = pneg %p176
      %p721 = pneg %p173
      %p722 = pneg %p197
      %p723 = pneg %p194
      %p724 = pneg %p218
      %p725 = pneg %p215
      %p726 = pneg %p239
      %p727 = pneg %p236
      %p728 = pneg %p260
      %p729 = pneg %p257
      %p730 = pneg %p281
      %p731 = pneg %p278
      %p732 = pneg %p302
      %p733 = pneg %p299
      %p734 = pneg %p323
      %p735 = pneg %p320
      %p736 = pneg %p344
      %p737 = pneg %p341
      %p738 = pneg %p365
      %p739 = pneg %p362
      %p740 = pneg %p386
      %p741 = pneg %p383
      %p742 = pneg %p407
      %p743 = pneg %p404
      %p744 = pneg %p428
      %p745 = pneg %p425
      %p746 = pneg %p449
      %p747 = pneg %p446
      %p748 = pneg %p470
      %p749 = pneg %p467
      %p750 = pneg %p491
      %p751 = pneg %p488
      %p752 = pneg %p512
      %p753 = pneg %p509
      %p754 = pneg %p533
      %p755 = pneg %p530
      %p756 = pneg %p554
      %p757 = pneg %p551
      %p758 = pneg %p580
      %p759 = pneg %p577
      %p760 = scmp.lt.s32.totalorder %s35, 1
      %s761 = scalar_select %p760, %s35, 1
      %s762 = smul.addr %s761, 8
      %s763 = scalar_lea.vmem %s24, %s762
      %p764 = scmp.lt.s32.totalorder %s35, 1
      %s765 = scalar_select %p764, %s35, 1
      %s766 = smul.addr %s765, 8
      %s767 = scalar_lea.vmem %s0, %s766
      %p768 = scmp.lt.s32.totalorder %s35, 1
      %s769 = scalar_select %p768, %s35, 1
      %s770 = smul.addr %s769, 2
      %s771 = smul.addr %s770, 8
      %s772 = scalar_lea.vmem %s1, %s771
      %p773 = scmp.lt.s32.totalorder %s35, 1
      %s774 = scalar_select %p773, %s35, 1
      %s775 = smul.addr %s774, 8
      %s776 = scalar_lea.vmem %s2, %s775
      %p777 = scmp.lt.s32.totalorder %s35, 1
      %s778 = scalar_select %p777, %s35, 1
      %s779 = scalar_lea.vmem %s3, %s778
      %p780 = scmp.lt.s32.totalorder %s35, 1
      %s781 = scalar_select %p780, %s35, 1
      %s782 = smul.addr %s781, 8
      %s783 = scalar_lea.vmem %s24, %s782
      %v784 = vld [vmem:[%s767] sm:$0xff]
      %v785 = vld [vmem:[%s772] sm:$0xff]
      %v786 = vld [vmem:[%s772 + $0x8] sm:$0x3]
      %v787 = vld [vmem:[%s776] sm:$0xff]
      %v788 = vld [vmem:[%s779] sm:$0x1]
      %v789 = vld [vmem:[%s4] sm:$0x1]
      %v790 = vld [vmem:[%s5] sm:$0x1]
      %vm791 = vcmask 261120
      %v792 = vsel %vm791, %v784, 0.0
      %793 = vadd.xlane.f32.xlu0 %v792
      %v794 = vpop.xlane.xlu0 %793
      %v795 = vrcp.pop 32.0
      %v796 = vmul.f32 32.0, %v795
      %v797 = vsub.f32 1.0, %v796
      %v798 = vmul.f32 %v795, %v797
      %v799 = vadd.f32 %v795, %v798
      %vm800 = vweird.f32 %v795
      %v801 = vsel %vm800, %v795, %v799
      %v802 = vmul.f32 %v794, %v801
      %v803 = vsub.f32 %v784, %v802
      %v804 = vmul.f32 %v803, %v803
      %v805 = vsel %vm791, %v804, 0.0
      %806 = vadd.xlane.f32.xlu0 %v805
      %v807 = vpop.xlane.xlu0 %806
      %v808 = vmul.f32 %v807, %v801
      %v809 = vadd.f32 %v808, 1e-05
      %v810 = vrsqrt.pop %v809
      %v811 = vmul.f32 %v810, %v809
      %v812 = vmul.f32 %v811, %v810
      %v813 = vmul.f32 0.5, %v812
      %v814 = vsub.f32 1.5, %v813
      %v815 = vmul.f32 %v810, %v814
      %vm816 = vweird.f32 %v809
      %vm817 = vweird.f32 %v810
      %vm818 = vmor %vm816, %vm817
      %v819 = vsel %vm818, %v810, %v815
      %v820 = vmul.f32 %v803, %v819
      %v822 = vperm.slane %v789, 0
      %v824 = vmul.f32 %v820, %v822
      %v826 = vperm.slane %v790, 0
      %v828 = vadd.f32 %v824, %v826
      %v829 = vld [vmem:[%s6] sm:$0xff]
      %v830 = vld [vmem:[%s6 + $0x8] sm:$0xff]
      %v831 = vld [vmem:[%s6 + $0x10] sm:$0xff]
      %v832 = vld [vmem:[%s6 + $0x18] sm:$0xff]
      %v833 = vld [vmem:[%s7] sm:$0x1]
      %v835 = vperm.slane %v833, 0
      %v838 = vsel %vm791, %v828, 0
      %840 = vmatpush.msra.mxu0 0.0
      %841 = vmatpush.msra.mxu0 0.0
      %842 = vmatpush.msra.mxu0 0.0
      %843 = vmatpush.msra.mxu0 0.0
      %844 = vmatpush.msra.mxu0 0.0
      %845 = vmatpush.msra.mxu0 0.0
      %846 = vmatpush.msra.mxu0 0.0
      %847 = vmatpush.msra.mxu0 0.0
      %848 = vmatpush.msra.mxu0 0.0
      %849 = vmatpush.msra.mxu0 0.0
      %850 = vmatpush.msra.mxu0 0.0
      %851 = vmatpush.msra.mxu0 0.0
      %852 = vmatpush.msra.mxu0 %v832
      %853 = vmatpush.msra.mxu0 %v831
      %854 = vmatpush.msra.mxu0 %v830
      %855 = vmatpush.msra.mxu0 %v829
      %856 = vmatmul.f32.gmra.mxu0 %v838
      %v857 = vpop.f32.mrf.mxu0
      %v858 = vadd.f32 %v835, %v857
      %859 = vdwg.mxu0
      %v860 = vld [vmem:[%s8] sm:$0xff]
      %v861 = vld [vmem:[%s8 + $0x8] sm:$0xff]
      %v862 = vld [vmem:[%s8 + $0x10] sm:$0xff]
      %v863 = vld [vmem:[%s8 + $0x18] sm:$0xff]
      %v864 = vld [vmem:[%s9] sm:$0x1]
      %866 = vrot.lane.b32.xlu0 %v858, 96
      %v867 = vpop.permute.xlu0 %866
      %vm868 = vcmask 64512
      %v869 = vsel %vm868, %v858, 0
      %v871 = vsel %vm868, %v867, 0
      %873 = vmatpush.xpose.msra.mxu0 0.0
      %874 = vmatpush.xpose.msra.mxu0 0.0
      %875 = vmatpush.xpose.msra.mxu0 0.0
      %876 = vmatpush.xpose.msra.mxu0 0.0
      %877 = vmatpush.xpose.msra.mxu0 0.0
      %878 = vmatpush.xpose.msra.mxu0 0.0
      %879 = vmatpush.xpose.msra.mxu0 0.0
      %880 = vmatpush.xpose.msra.mxu0 0.0
      %881 = vmatpush.xpose.msra.mxu0 0.0
      %882 = vmatpush.xpose.msra.mxu0 0.0
      %883 = vmatpush.xpose.msra.mxu0 0.0
      %884 = vmatpush.xpose.msra.mxu0 0.0
      %885 = vmatpush.xpose.msra.mxu0 0.0
      %886 = vmatpush.xpose.msra.mxu0 0.0
      %887 = vmatpush.xpose.msra.mxu0 0.0
      %888 = vmatpush.xpose.msra.mxu0 %v871
      %889 = vmatmul.f32.gmra.mxu0 %v869
      %v890 = vpop.f32.mrf.mxu0
      %v891 = vadd.f32 0.0, %v890
      %892 = vdwg.mxu0
      %v893 = vmul.f32 %v891, 0.35355338
      %v894 = vadd.f32 %v893, %v787
      %v895 = vsel %vm868, %v894, -inf
      %896 = vmax.xlane.f32.xlu0 %v895
      %v897 = vpop.xlane.xlu0 %896
      %v898 = vsub.f32 %v894, %v897
      %v899 = vmul.f32 %v898, 1.442695
      %v900 = vpow.pop %v899
      %v901 = vsel %vm868, %v900, 0.0
      %902 = vadd.xlane.f32.xlu0 %v901
      %v903 = vpop.xlane.xlu0 %902
      %v904 = vrcp.pop %v903
      %v905 = vmul.f32 %v900, %v904
      %906 = vrot.lane.b32.xlu0 %v858, 64
      %v907 = vpop.permute.xlu0 %906
      %v910 = vsel %vm868, %v905, 0
      %912 = vmatpush.msra.mxu0 0.0
      %913 = vmatpush.msra.mxu0 0.0
      %914 = vmatpush.msra.mxu0 0.0
      %915 = vmatpush.msra.mxu0 0.0
      %916 = vmatpush.msra.mxu0 0.0
      %917 = vmatpush.msra.mxu0 0.0
      %918 = vmatpush.msra.mxu0 0.0
      %919 = vmatpush.msra.mxu0 0.0
      %920 = vmatpush.msra.mxu0 0.0
      %921 = vmatpush.msra.mxu0 0.0
      %922 = vmatpush.msra.mxu0 0.0
      %923 = vmatpush.msra.mxu0 0.0
      %924 = vmatpush.msra.mxu0 0.0
      %925 = vmatpush.msra.mxu0 0.0
      %926 = vmatpush.msra.mxu0 0.0
      %927 = vmatpush.msra.mxu0 %v907
      %928 = vmatmul.f32.gmra.mxu0 %v910
      %v929 = vpop.f32.mrf.mxu0
      %v930 = vadd.f32 0.0, %v929
      %931 = vdwg.mxu0
      %932 = vrot.lane.b32.xlu0 %v858, 120
      %v933 = vpop.permute.xlu0 %932
      %934 = vrot.lane.b32.xlu0 %v858, 88
      %v935 = vpop.permute.xlu0 %934
      %v936 = vsel %vm868, %v933, 0
      %v938 = vsel %vm868, %v935, 0
      %940 = vmatpush.xpose.msra.mxu0 0.0
      %941 = vmatpush.xpose.msra.mxu0 0.0
      %942 = vmatpush.xpose.msra.mxu0 0.0
      %943 = vmatpush.xpose.msra.mxu0 0.0
      %944 = vmatpush.xpose.msra.mxu0 0.0
      %945 = vmatpush.xpose.msra.mxu0 0.0
      %946 = vmatpush.xpose.msra.mxu0 0.0
      %947 = vmatpush.xpose.msra.mxu0 0.0
      %948 = vmatpush.xpose.msra.mxu0 0.0
      %949 = vmatpush.xpose.msra.mxu0 0.0
      %950 = vmatpush.xpose.msra.mxu0 0.0
      %951 = vmatpush.xpose.msra.mxu0 0.0
      %952 = vmatpush.xpose.msra.mxu0 0.0
      %953 = vmatpush.xpose.msra.mxu0 0.0
      %954 = vmatpush.xpose.msra.mxu0 0.0
      %955 = vmatpush.xpose.msra.mxu0 %v938
      %956 = vmatmul.f32.gmra.mxu0 %v936
      %v957 = vpop.f32.mrf.mxu0
      %v958 = vadd.f32 0.0, %v957
      %959 = vdwg.mxu0
      %v960 = vmul.f32 %v958, 0.35355338
      %v961 = vadd.f32 %v960, %v787
      %v962 = vsel %vm868, %v961, -inf
      %963 = vmax.xlane.f32.xlu0 %v962
      %v964 = vpop.xlane.xlu0 %963
      %v965 = vsub.f32 %v961, %v964
      %v966 = vmul.f32 %v965, 1.442695
      %v967 = vpow.pop %v966
      %v968 = vsel %vm868, %v967, 0.0
      %969 = vadd.xlane.f32.xlu0 %v968
      %v970 = vpop.xlane.xlu0 %969
      %v971 = vrcp.pop %v970
      %v972 = vmul.f32 %v967, %v971
      %973 = vrot.lane.b32.xlu0 %v858, 56
      %v974 = vpop.permute.xlu0 %973
      %v977 = vsel %vm868, %v972, 0
      %979 = vmatpush.msra.mxu0 0.0
      %980 = vmatpush.msra.mxu0 0.0
      %981 = vmatpush.msra.mxu0 0.0
      %982 = vmatpush.msra.mxu0 0.0
      %983 = vmatpush.msra.mxu0 0.0
      %984 = vmatpush.msra.mxu0 0.0
      %985 = vmatpush.msra.mxu0 0.0
      %986 = vmatpush.msra.mxu0 0.0
      %987 = vmatpush.msra.mxu0 0.0
      %988 = vmatpush.msra.mxu0 0.0
      %989 = vmatpush.msra.mxu0 0.0
      %990 = vmatpush.msra.mxu0 0.0
      %991 = vmatpush.msra.mxu0 0.0
      %992 = vmatpush.msra.mxu0 0.0
      %993 = vmatpush.msra.mxu0 0.0
      %994 = vmatpush.msra.mxu0 %v974
      %995 = vmatmul.f32.gmra.mxu0 %v977
      %v996 = vpop.f32.mrf.mxu0
      %v997 = vadd.f32 0.0, %v996
      %998 = vdwg.mxu0
      %v1000 = vsel %vm868, %v997, 0
      %1002 = vmatpush.msra.mxu0 0.0
      %1003 = vmatpush.msra.mxu0 0.0
      %1004 = vmatpush.msra.mxu0 0.0
      %1005 = vmatpush.msra.mxu0 0.0
      %1006 = vmatpush.msra.mxu0 0.0
      %1007 = vmatpush.msra.mxu0 0.0
      %1008 = vmatpush.msra.mxu0 0.0
      %1009 = vmatpush.msra.mxu0 0.0
      %1010 = vmatpush.msra.mxu0 0.0
      %1011 = vmatpush.msra.mxu0 0.0
      %1012 = vmatpush.msra.mxu0 0.0
      %1013 = vmatpush.msra.mxu0 0.0
      %1014 = vmatpush.msra.mxu0 0.0
      %1015 = vmatpush.msra.mxu0 0.0
      %1016 = vmatpush.msra.mxu0 0.0
      %1017 = vmatpush.msra.mxu0 %v861
      %1018 = vmatmul.f32.gmra.mxu0 %v1000
      %v1019 = vpop.f32.mrf.mxu0
      %v1020 = vadd.f32 0.0, %v1019
      %1021 = vdwg.mxu0
      %v1023 = vsel %vm868, %v930, 0
      %1025 = vmatpush.msra.mxu0 0.0
      %1026 = vmatpush.msra.mxu0 0.0
      %1027 = vmatpush.msra.mxu0 0.0
      %1028 = vmatpush.msra.mxu0 0.0
      %1029 = vmatpush.msra.mxu0 0.0
      %1030 = vmatpush.msra.mxu0 0.0
      %1031 = vmatpush.msra.mxu0 0.0
      %1032 = vmatpush.msra.mxu0 0.0
      %1033 = vmatpush.msra.mxu0 0.0
      %1034 = vmatpush.msra.mxu0 0.0
      %1035 = vmatpush.msra.mxu0 0.0
      %1036 = vmatpush.msra.mxu0 0.0
      %1037 = vmatpush.msra.mxu0 0.0
      %1038 = vmatpush.msra.mxu0 0.0
      %1039 = vmatpush.msra.mxu0 0.0
      %1040 = vmatpush.msra.mxu0 %v860
      %1041 = vmatmul.f32.gmra.mxu0 %v1023
      %v1042 = vpop.f32.mrf.mxu0
      %v1043 = vadd.f32 %v1020, %v1042
      %1044 = vdwg.mxu0
      %1045 = vrot.lane.b32.xlu0 %v858, 112
      %v1046 = vpop.permute.xlu0 %1045
      %1047 = vrot.lane.b32.xlu0 %v858, 80
      %v1048 = vpop.permute.xlu0 %1047
      %v1049 = vsel %vm868, %v1046, 0
      %v1051 = vsel %vm868, %v1048, 0
      %1053 = vmatpush.xpose.msra.mxu0 0.0
      %1054 = vmatpush.xpose.msra.mxu0 0.0
      %1055 = vmatpush.xpose.msra.mxu0 0.0
      %1056 = vmatpush.xpose.msra.mxu0 0.0
      %1057 = vmatpush.xpose.msra.mxu0 0.0
      %1058 = vmatpush.xpose.msra.mxu0 0.0
      %1059 = vmatpush.xpose.msra.mxu0 0.0
      %1060 = vmatpush.xpose.msra.mxu0 0.0
      %1061 = vmatpush.xpose.msra.mxu0 0.0
      %1062 = vmatpush.xpose.msra.mxu0 0.0
      %1063 = vmatpush.xpose.msra.mxu0 0.0
      %1064 = vmatpush.xpose.msra.mxu0 0.0
      %1065 = vmatpush.xpose.msra.mxu0 0.0
      %1066 = vmatpush.xpose.msra.mxu0 0.0
      %1067 = vmatpush.xpose.msra.mxu0 0.0
      %1068 = vmatpush.xpose.msra.mxu0 %v1051
      %1069 = vmatmul.f32.gmra.mxu0 %v1049
      %v1070 = vpop.f32.mrf.mxu0
      %v1071 = vadd.f32 0.0, %v1070
      %1072 = vdwg.mxu0
      %v1073 = vmul.f32 %v1071, 0.35355338
      %v1074 = vadd.f32 %v1073, %v787
      %v1075 = vsel %vm868, %v1074, -inf
      %1076 = vmax.xlane.f32.xlu0 %v1075
      %v1077 = vpop.xlane.xlu0 %1076
      %v1078 = vsub.f32 %v1074, %v1077
      %v1079 = vmul.f32 %v1078, 1.442695
      %v1080 = vpow.pop %v1079
      %v1081 = vsel %vm868, %v1080, 0.0
      %1082 = vadd.xlane.f32.xlu0 %v1081
      %v1083 = vpop.xlane.xlu0 %1082
      %v1084 = vrcp.pop %v1083
      %v1085 = vmul.f32 %v1080, %v1084
      %1086 = vrot.lane.b32.xlu0 %v858, 48
      %v1087 = vpop.permute.xlu0 %1086
      %v1090 = vsel %vm868, %v1085, 0
      %1092 = vmatpush.msra.mxu0 0.0
      %1093 = vmatpush.msra.mxu0 0.0
      %1094 = vmatpush.msra.mxu0 0.0
      %1095 = vmatpush.msra.mxu0 0.0
      %1096 = vmatpush.msra.mxu0 0.0
      %1097 = vmatpush.msra.mxu0 0.0
      %1098 = vmatpush.msra.mxu0 0.0
      %1099 = vmatpush.msra.mxu0 0.0
      %1100 = vmatpush.msra.mxu0 0.0
      %1101 = vmatpush.msra.mxu0 0.0
      %1102 = vmatpush.msra.mxu0 0.0
      %1103 = vmatpush.msra.mxu0 0.0
      %1104 = vmatpush.msra.mxu0 0.0
      %1105 = vmatpush.msra.mxu0 0.0
      %1106 = vmatpush.msra.mxu0 0.0
      %1107 = vmatpush.msra.mxu0 %v1087
      %1108 = vmatmul.f32.gmra.mxu0 %v1090
      %v1109 = vpop.f32.mrf.mxu0
      %v1110 = vadd.f32 0.0, %v1109
      %1111 = vdwg.mxu0
      %v1113 = vsel %vm868, %v1110, 0
      %1115 = vmatpush.msra.mxu0 0.0
      %1116 = vmatpush.msra.mxu0 0.0
      %1117 = vmatpush.msra.mxu0 0.0
      %1118 = vmatpush.msra.mxu0 0.0
      %1119 = vmatpush.msra.mxu0 0.0
      %1120 = vmatpush.msra.mxu0 0.0
      %1121 = vmatpush.msra.mxu0 0.0
      %1122 = vmatpush.msra.mxu0 0.0
      %1123 = vmatpush.msra.mxu0 0.0
      %1124 = vmatpush.msra.mxu0 0.0
      %1125 = vmatpush.msra.mxu0 0.0
      %1126 = vmatpush.msra.mxu0 0.0
      %1127 = vmatpush.msra.mxu0 0.0
      %1128 = vmatpush.msra.mxu0 0.0
      %1129 = vmatpush.msra.mxu0 0.0
      %1130 = vmatpush.msra.mxu0 %v862
      %1131 = vmatmul.f32.gmra.mxu0 %v1113
      %v1132 = vpop.f32.mrf.mxu0
      %v1133 = vadd.f32 0.0, %v1132
      %1134 = vdwg.mxu0
      %v1135 = vadd.f32 %v1043, %v1133
      %1136 = vrot.lane.b32.xlu0 %v858, 104
      %v1137 = vpop.permute.xlu0 %1136
      %1138 = vrot.lane.b32.xlu0 %v858, 72
      %v1139 = vpop.permute.xlu0 %1138
      %v1140 = vsel %vm868, %v1137, 0
      %v1142 = vsel %vm868, %v1139, 0
      %1144 = vmatpush.xpose.msra.mxu0 0.0
      %1145 = vmatpush.xpose.msra.mxu0 0.0
      %1146 = vmatpush.xpose.msra.mxu0 0.0
      %1147 = vmatpush.xpose.msra.mxu0 0.0
      %1148 = vmatpush.xpose.msra.mxu0 0.0
      %1149 = vmatpush.xpose.msra.mxu0 0.0
      %1150 = vmatpush.xpose.msra.mxu0 0.0
      %1151 = vmatpush.xpose.msra.mxu0 0.0
      %1152 = vmatpush.xpose.msra.mxu0 0.0
      %1153 = vmatpush.xpose.msra.mxu0 0.0
      %1154 = vmatpush.xpose.msra.mxu0 0.0
      %1155 = vmatpush.xpose.msra.mxu0 0.0
      %1156 = vmatpush.xpose.msra.mxu0 0.0
      %1157 = vmatpush.xpose.msra.mxu0 0.0
      %1158 = vmatpush.xpose.msra.mxu0 0.0
      %1159 = vmatpush.xpose.msra.mxu0 %v1142
      %1160 = vmatmul.f32.gmra.mxu0 %v1140
      %v1161 = vpop.f32.mrf.mxu0
      %v1162 = vadd.f32 0.0, %v1161
      %1163 = vdwg.mxu0
      %v1164 = vmul.f32 %v1162, 0.35355338
      %v1165 = vadd.f32 %v1164, %v787
      %v1166 = vsel %vm868, %v1165, -inf
      %1167 = vmax.xlane.f32.xlu0 %v1166
      %v1168 = vpop.xlane.xlu0 %1167
      %v1169 = vsub.f32 %v1165, %v1168
      %v1170 = vmul.f32 %v1169, 1.442695
      %v1171 = vpow.pop %v1170
      %v1172 = vsel %vm868, %v1171, 0.0
      %1173 = vadd.xlane.f32.xlu0 %v1172
      %v1174 = vpop.xlane.xlu0 %1173
      %v1175 = vrcp.pop %v1174
      %v1176 = vmul.f32 %v1171, %v1175
      %1177 = vrot.lane.b32.xlu0 %v858, 40
      %v1178 = vpop.permute.xlu0 %1177
      %v1181 = vsel %vm868, %v1176, 0
      %1183 = vmatpush.msra.mxu0 0.0
      %1184 = vmatpush.msra.mxu0 0.0
      %1185 = vmatpush.msra.mxu0 0.0
      %1186 = vmatpush.msra.mxu0 0.0
      %1187 = vmatpush.msra.mxu0 0.0
      %1188 = vmatpush.msra.mxu0 0.0
      %1189 = vmatpush.msra.mxu0 0.0
      %1190 = vmatpush.msra.mxu0 0.0
      %1191 = vmatpush.msra.mxu0 0.0
      %1192 = vmatpush.msra.mxu0 0.0
      %1193 = vmatpush.msra.mxu0 0.0
      %1194 = vmatpush.msra.mxu0 0.0
      %1195 = vmatpush.msra.mxu0 0.0
      %1196 = vmatpush.msra.mxu0 0.0
      %1197 = vmatpush.msra.mxu0 0.0
      %1198 = vmatpush.msra.mxu0 %v1178
      %1199 = vmatmul.f32.gmra.mxu0 %v1181
      %v1200 = vpop.f32.mrf.mxu0
      %v1201 = vadd.f32 0.0, %v1200
      %1202 = vdwg.mxu0
      %v1204 = vsel %vm868, %v1201, 0
      %1206 = vmatpush.msra.mxu0 0.0
      %1207 = vmatpush.msra.mxu0 0.0
      %1208 = vmatpush.msra.mxu0 0.0
      %1209 = vmatpush.msra.mxu0 0.0
      %1210 = vmatpush.msra.mxu0 0.0
      %1211 = vmatpush.msra.mxu0 0.0
      %1212 = vmatpush.msra.mxu0 0.0
      %1213 = vmatpush.msra.mxu0 0.0
      %1214 = vmatpush.msra.mxu0 0.0
      %1215 = vmatpush.msra.mxu0 0.0
      %1216 = vmatpush.msra.mxu0 0.0
      %1217 = vmatpush.msra.mxu0 0.0
      %1218 = vmatpush.msra.mxu0 0.0
      %1219 = vmatpush.msra.mxu0 0.0
      %1220 = vmatpush.msra.mxu0 0.0
      %1221 = vmatpush.msra.mxu0 %v863
      %1222 = vmatmul.f32.gmra.mxu0 %v1204
      %v1223 = vpop.f32.mrf.mxu0
      %v1224 = vadd.f32 0.0, %v1223
      %1225 = vdwg.mxu0
      %v1226 = vadd.f32 %v1135, %v1224
      %v1228 = vperm.slane %v864, 0
      %v1230 = vadd.f32 %v1226, %v1228
      %v1231 = vadd.f32 %v784, %v1230
      %v1232 = vld [vmem:[%s10] sm:$0x1]
      %v1233 = vld [vmem:[%s11] sm:$0x1]
      %v1234 = vsel %vm791, %v1231, 0.0
      %1235 = vadd.xlane.f32.xlu0 %v1234
      %v1236 = vpop.xlane.xlu0 %1235
      %v1237 = vmul.f32 %v1236, %v801
      %v1238 = vsub.f32 %v1231, %v1237
      %v1239 = vmul.f32 %v1238, %v1238
      %v1240 = vsel %vm791, %v1239, 0.0
      %1241 = vadd.xlane.f32.xlu0 %v1240
      %v1242 = vpop.xlane.xlu0 %1241
      %v1243 = vmul.f32 %v1242, %v801
      %v1244 = vadd.f32 %v1243, 1e-05
      %v1245 = vrsqrt.pop %v1244
      %v1246 = vmul.f32 %v1245, %v1244
      %v1247 = vmul.f32 %v1246, %v1245
      %v1248 = vmul.f32 0.5, %v1247
      %v1249 = vsub.f32 1.5, %v1248
      %v1250 = vmul.f32 %v1245, %v1249
      %vm1251 = vweird.f32 %v1244
      %vm1252 = vweird.f32 %v1245
      %vm1253 = vmor %vm1251, %vm1252
      %v1254 = vsel %vm1253, %v1245, %v1250
      %v1255 = vmul.f32 %v1238, %v1254
      %v1257 = vperm.slane %v1232, 0
      %v1259 = vmul.f32 %v1255, %v1257
      %v1261 = vperm.slane %v1233, 0
      %v1263 = vadd.f32 %v1259, %v1261
      %v1264 = vld [vmem:[%s12] sm:$0xff]
      %v1265 = vld [vmem:[%s12 + $0x8] sm:$0xff]
      %v1266 = vld [vmem:[%s12 + $0x10] sm:$0xff]
      %v1267 = vld [vmem:[%s12 + $0x18] sm:$0xff]
      %v1268 = vld [vmem:[%s13] sm:$0x1]
      %v1270 = vperm.slane %v1268, 0
      %v1273 = vsel %vm791, %v1263, 0
      %1275 = vmatpush.msra.mxu0 0.0
      %1276 = vmatpush.msra.mxu0 0.0
      %1277 = vmatpush.msra.mxu0 0.0
      %1278 = vmatpush.msra.mxu0 0.0
      %1279 = vmatpush.msra.mxu0 0.0
      %1280 = vmatpush.msra.mxu0 0.0
      %1281 = vmatpush.msra.mxu0 0.0
      %1282 = vmatpush.msra.mxu0 0.0
      %1283 = vmatpush.msra.mxu0 0.0
      %1284 = vmatpush.msra.mxu0 0.0
      %1285 = vmatpush.msra.mxu0 0.0
      %1286 = vmatpush.msra.mxu0 0.0
      %1287 = vmatpush.msra.mxu0 %v1267
      %1288 = vmatpush.msra.mxu0 %v1266
      %1289 = vmatpush.msra.mxu0 %v1265
      %1290 = vmatpush.msra.mxu0 %v1264
      %1291 = vmatmul.f32.gmra.mxu0 %v1273
      %v1292 = vpop.f32.mrf.mxu0
      %v1293 = vadd.f32 %v1270, %v1292
      %1294 = vdwg.mxu0
      %v1295 = vld [vmem:[%s14] sm:$0xff]
      %v1296 = vld [vmem:[%s14 + $0x8] sm:$0xff]
      %v1297 = vld [vmem:[%s14 + $0x10] sm:$0xff]
      %v1298 = vld [vmem:[%s14 + $0x18] sm:$0xff]
      %v1299 = vld [vmem:[%s15] sm:$0x1]
      %v1301 = vperm.slane %v1299, 0
      %v1304 = vsel %vm791, %v785, 0
      %v1307 = vsel %vm791, %v786, 0
      %1309 = vmatpush.msra.mxu0 0.0
      %1310 = vmatpush.msra.mxu0 0.0
      %1311 = vmatpush.msra.mxu0 0.0
      %1312 = vmatpush.msra.mxu0 0.0
      %1313 = vmatpush.msra.mxu0 0.0
      %1314 = vmatpush.msra.mxu0 0.0
      %1315 = vmatpush.msra.mxu0 0.0
      %1316 = vmatpush.msra.mxu0 0.0
      %1317 = vmatpush.msra.mxu0 0.0
      %1318 = vmatpush.msra.mxu0 0.0
      %1319 = vmatpush.msra.mxu0 0.0
      %1320 = vmatpush.msra.mxu0 0.0
      %1321 = vmatpush.msra.mxu0 %v1298
      %1322 = vmatpush.msra.mxu0 %v1297
      %1323 = vmatpush.msra.mxu0 %v1296
      %1324 = vmatpush.msra.mxu0 %v1295
      %1325 = vmatmul.f32.gmra.mxu0 %v1304
      %v1326 = vpop.f32.mrf.mxu0
      %v1327 = vadd.f32 %v1301, %v1326
      %1328 = vmatmul.f32.gmra.mxu0 %v1307
      %v1329 = vpop.f32.mrf.mxu0
      %v1330 = vadd.f32 %v1301, %v1329
      %1331 = vdwg.mxu0
      %v1332 = vld [vmem:[%s16] sm:$0xff]
      %v1333 = vld [vmem:[%s16 + $0x8] sm:$0xff]
      %v1334 = vld [vmem:[%s16 + $0x10] sm:$0xff]
      %v1335 = vld [vmem:[%s16 + $0x18] sm:$0xff]
      %v1336 = vld [vmem:[%s17] sm:$0x1]
      %v1338 = vsel %vm868, %v1293, 0
      %v1341 = vsel %vm868, %v1327, 0
      %v1344 = vsel %vm868, %v1330, 0
      %1346 = vmatpush.xpose.msra.mxu0 0.0
      %1347 = vmatpush.xpose.msra.mxu0 0.0
      %1348 = vmatpush.xpose.msra.mxu0 0.0
      %1349 = vmatpush.xpose.msra.mxu0 0.0
      %1350 = vmatpush.xpose.msra.mxu0 0.0
      %1351 = vmatpush.xpose.msra.mxu0 0.0
      %1352 = vmatpush.xpose.msra.mxu0 0.0
      %1353 = vmatpush.xpose.msra.mxu0 0.0
      %1354 = vmatpush.xpose.msra.mxu0 0.0
      %1355 = vmatpush.xpose.msra.mxu0 0.0
      %1356 = vmatpush.xpose.msra.mxu0 0.0
      %1357 = vmatpush.xpose.msra.mxu0 0.0
      %1358 = vmatpush.xpose.msra.mxu0 0.0
      %1359 = vmatpush.xpose.msra.mxu0 0.0
      %1360 = vmatpush.xpose.msra.mxu0 %v1344
      %1361 = vmatpush.xpose.msra.mxu0 %v1341
      %1362 = vmatmul.f32.gmra.mxu0 %v1338
      %v1363 = vpop.f32.mrf.mxu0
      %v1364 = vadd.f32 0.0, %v1363
      %1365 = vdwg.mxu0
      %v1366 = vmul.f32 %v1364, 0.35355338
      %v1368 = vperm.slane %v788, 0
      %v1370 = vadd.f32 %v1366, %v1368
      %vm1371 = vcmask 80896
      %v1372 = vsel %vm1371, %v1370, -inf
      %1373 = vmax.xlane.f32.xlu0 %v1372
      %v1374 = vpop.xlane.xlu0 %1373
      %v1375 = vsub.f32 %v1370, %v1374
      %v1376 = vmul.f32 %v1375, 1.442695
      %v1377 = vpow.pop %v1376
      %v1378 = vsel %vm1371, %v1377, 0.0
      %1379 = vadd.xlane.f32.xlu0 %v1378
      %v1380 = vpop.xlane.xlu0 %1379
      %v1381 = vrcp.pop %v1380
      %v1382 = vmul.f32 %v1377, %v1381
      %1383 = vrot.lane.b32.xlu0 %v1327, 96
      %v1384 = vpop.permute.xlu0 %1383
      %1385 = vrot.lane.b32.xlu0 %v1330, 96
      %v1386 = vpop.permute.xlu0 %1385
      %v1389 = vsel %vm1371, %v1382, 0
      %vm1391 = vcmask 1041408
      %v1392 = vsel %vm1391, %v1386, 0
      %1394 = vmatpush.msra.mxu0 0.0
      %1395 = vmatpush.msra.mxu0 0.0
      %1396 = vmatpush.msra.mxu0 0.0
      %1397 = vmatpush.msra.mxu0 0.0
      %1398 = vmatpush.msra.mxu0 0.0
      %1399 = vmatpush.msra.mxu0 0.0
      %1400 = vmatpush.msra.mxu0 0.0
      %1401 = vmatpush.msra.mxu0 0.0
      %1402 = vmatpush.msra.mxu0 0.0
      %1403 = vmatpush.msra.mxu0 0.0
      %1404 = vmatpush.msra.mxu0 0.0
      %1405 = vmatpush.msra.mxu0 0.0
      %1406 = vmatpush.msra.mxu0 0.0
      %1407 = vmatpush.msra.mxu0 0.0
      %1408 = vmatpush.msra.mxu0 %v1392
      %1409 = vmatpush.msra.mxu0 %v1384
      %1410 = vmatmul.f32.gmra.mxu0 %v1389
      %v1411 = vpop.f32.mrf.mxu0
      %v1412 = vadd.f32 0.0, %v1411
      %1413 = vdwg.mxu0
      %1414 = vrot.lane.b32.xlu0 %v1293, 120
      %v1415 = vpop.permute.xlu0 %1414
      %1416 = vrot.lane.b32.xlu0 %v1327, 120
      %v1417 = vpop.permute.xlu0 %1416
      %1418 = vrot.lane.b32.xlu0 %v1330, 120
      %v1419 = vpop.permute.xlu0 %1418
      %v1420 = vsel %vm868, %v1415, 0
      %v1422 = vsel %vm868, %v1417, 0
      %v1424 = vsel %vm868, %v1419, 0
      %1426 = vmatpush.xpose.msra.mxu0 0.0
      %1427 = vmatpush.xpose.msra.mxu0 0.0
      %1428 = vmatpush.xpose.msra.mxu0 0.0
      %1429 = vmatpush.xpose.msra.mxu0 0.0
      %1430 = vmatpush.xpose.msra.mxu0 0.0
      %1431 = vmatpush.xpose.msra.mxu0 0.0
      %1432 = vmatpush.xpose.msra.mxu0 0.0
      %1433 = vmatpush.xpose.msra.mxu0 0.0
      %1434 = vmatpush.xpose.msra.mxu0 0.0
      %1435 = vmatpush.xpose.msra.mxu0 0.0
      %1436 = vmatpush.xpose.msra.mxu0 0.0
      %1437 = vmatpush.xpose.msra.mxu0 0.0
      %1438 = vmatpush.xpose.msra.mxu0 0.0
      %1439 = vmatpush.xpose.msra.mxu0 0.0
      %1440 = vmatpush.xpose.msra.mxu0 %v1424
      %1441 = vmatpush.xpose.msra.mxu0 %v1422
      %1442 = vmatmul.f32.gmra.mxu0 %v1420
      %v1443 = vpop.f32.mrf.mxu0
      %v1444 = vadd.f32 0.0, %v1443
      %1445 = vdwg.mxu0
      %v1446 = vmul.f32 %v1444, 0.35355338
      %v1447 = vadd.f32 %v1446, %v1368
      %v1448 = vsel %vm1371, %v1447, -inf
      %1449 = vmax.xlane.f32.xlu0 %v1448
      %v1450 = vpop.xlane.xlu0 %1449
      %v1451 = vsub.f32 %v1447, %v1450
      %v1452 = vmul.f32 %v1451, 1.442695
      %v1453 = vpow.pop %v1452
      %v1454 = vsel %vm1371, %v1453, 0.0
      %1455 = vadd.xlane.f32.xlu0 %v1454
      %v1456 = vpop.xlane.xlu0 %1455
      %v1457 = vrcp.pop %v1456
      %v1458 = vmul.f32 %v1453, %v1457
      %1459 = vrot.lane.b32.xlu0 %v1327, 88
      %v1460 = vpop.permute.xlu0 %1459
      %1461 = vrot.lane.b32.xlu0 %v1330, 88
      %v1462 = vpop.permute.xlu0 %1461
      %v1465 = vsel %vm1371, %v1458, 0
      %v1467 = vsel %vm1391, %v1462, 0
      %1469 = vmatpush.msra.mxu0 0.0
      %1470 = vmatpush.msra.mxu0 0.0
      %1471 = vmatpush.msra.mxu0 0.0
      %1472 = vmatpush.msra.mxu0 0.0
      %1473 = vmatpush.msra.mxu0 0.0
      %1474 = vmatpush.msra.mxu0 0.0
      %1475 = vmatpush.msra.mxu0 0.0
      %1476 = vmatpush.msra.mxu0 0.0
      %1477 = vmatpush.msra.mxu0 0.0
      %1478 = vmatpush.msra.mxu0 0.0
      %1479 = vmatpush.msra.mxu0 0.0
      %1480 = vmatpush.msra.mxu0 0.0
      %1481 = vmatpush.msra.mxu0 0.0
      %1482 = vmatpush.msra.mxu0 0.0
      %1483 = vmatpush.msra.mxu0 %v1467
      %1484 = vmatpush.msra.mxu0 %v1460
      %1485 = vmatmul.f32.gmra.mxu0 %v1465
      %v1486 = vpop.f32.mrf.mxu0
      %v1487 = vadd.f32 0.0, %v1486
      %1488 = vdwg.mxu0
      %v1490 = vsel %vm868, %v1487, 0
      %1492 = vmatpush.msra.mxu0 0.0
      %1493 = vmatpush.msra.mxu0 0.0
      %1494 = vmatpush.msra.mxu0 0.0
      %1495 = vmatpush.msra.mxu0 0.0
      %1496 = vmatpush.msra.mxu0 0.0
      %1497 = vmatpush.msra.mxu0 0.0
      %1498 = vmatpush.msra.mxu0 0.0
      %1499 = vmatpush.msra.mxu0 0.0
      %1500 = vmatpush.msra.mxu0 0.0
      %1501 = vmatpush.msra.mxu0 0.0
      %1502 = vmatpush.msra.mxu0 0.0
      %1503 = vmatpush.msra.mxu0 0.0
      %1504 = vmatpush.msra.mxu0 0.0
      %1505 = vmatpush.msra.mxu0 0.0
      %1506 = vmatpush.msra.mxu0 0.0
      %1507 = vmatpush.msra.mxu0 %v1333
      %1508 = vmatmul.f32.gmra.mxu0 %v1490
      %v1509 = vpop.f32.mrf.mxu0
      %v1510 = vadd.f32 0.0, %v1509
      %1511 = vdwg.mxu0
      %v1513 = vsel %vm868, %v1412, 0
      %1515 = vmatpush.msra.mxu0 0.0
      %1516 = vmatpush.msra.mxu0 0.0
      %1517 = vmatpush.msra.mxu0 0.0
      %1518 = vmatpush.msra.mxu0 0.0
      %1519 = vmatpush.msra.mxu0 0.0
      %1520 = vmatpush.msra.mxu0 0.0
      %1521 = vmatpush.msra.mxu0 0.0
      %1522 = vmatpush.msra.mxu0 0.0
      %1523 = vmatpush.msra.mxu0 0.0
      %1524 = vmatpush.msra.mxu0 0.0
      %1525 = vmatpush.msra.mxu0 0.0
      %1526 = vmatpush.msra.mxu0 0.0
      %1527 = vmatpush.msra.mxu0 0.0
      %1528 = vmatpush.msra.mxu0 0.0
      %1529 = vmatpush.msra.mxu0 0.0
      %1530 = vmatpush.msra.mxu0 %v1332
      %1531 = vmatmul.f32.gmra.mxu0 %v1513
      %v1532 = vpop.f32.mrf.mxu0
      %v1533 = vadd.f32 %v1510, %v1532
      %1534 = vdwg.mxu0
      %1535 = vrot.lane.b32.xlu0 %v1293, 112
      %v1536 = vpop.permute.xlu0 %1535
      %1537 = vrot.lane.b32.xlu0 %v1327, 112
      %v1538 = vpop.permute.xlu0 %1537
      %1539 = vrot.lane.b32.xlu0 %v1330, 112
      %v1540 = vpop.permute.xlu0 %1539
      %v1541 = vsel %vm868, %v1536, 0
      %v1543 = vsel %vm868, %v1538, 0
      %v1545 = vsel %vm868, %v1540, 0
      %1547 = vmatpush.xpose.msra.mxu0 0.0
      %1548 = vmatpush.xpose.msra.mxu0 0.0
      %1549 = vmatpush.xpose.msra.mxu0 0.0
      %1550 = vmatpush.xpose.msra.mxu0 0.0
      %1551 = vmatpush.xpose.msra.mxu0 0.0
      %1552 = vmatpush.xpose.msra.mxu0 0.0
      %1553 = vmatpush.xpose.msra.mxu0 0.0
      %1554 = vmatpush.xpose.msra.mxu0 0.0
      %1555 = vmatpush.xpose.msra.mxu0 0.0
      %1556 = vmatpush.xpose.msra.mxu0 0.0
      %1557 = vmatpush.xpose.msra.mxu0 0.0
      %1558 = vmatpush.xpose.msra.mxu0 0.0
      %1559 = vmatpush.xpose.msra.mxu0 0.0
      %1560 = vmatpush.xpose.msra.mxu0 0.0
      %1561 = vmatpush.xpose.msra.mxu0 %v1545
      %1562 = vmatpush.xpose.msra.mxu0 %v1543
      %1563 = vmatmul.f32.gmra.mxu0 %v1541
      %v1564 = vpop.f32.mrf.mxu0
      %v1565 = vadd.f32 0.0, %v1564
      %1566 = vdwg.mxu0
      %v1567 = vmul.f32 %v1565, 0.35355338
      %v1568 = vadd.f32 %v1567, %v1368
      %v1569 = vsel %vm1371, %v1568, -inf
      %1570 = vmax.xlane.f32.xlu0 %v1569
      %v1571 = vpop.xlane.xlu0 %1570
      %v1572 = vsub.f32 %v1568, %v1571
      %v1573 = vmul.f32 %v1572, 1.442695
      %v1574 = vpow.pop %v1573
      %v1575 = vsel %vm1371, %v1574, 0.0
      %1576 = vadd.xlane.f32.xlu0 %v1575
      %v1577 = vpop.xlane.xlu0 %1576
      %v1578 = vrcp.pop %v1577
      %v1579 = vmul.f32 %v1574, %v1578
      %1580 = vrot.lane.b32.xlu0 %v1327, 80
      %v1581 = vpop.permute.xlu0 %1580
      %1582 = vrot.lane.b32.xlu0 %v1330, 80
      %v1583 = vpop.permute.xlu0 %1582
      %v1586 = vsel %vm1371, %v1579, 0
      %v1588 = vsel %vm1391, %v1583, 0
      %1590 = vmatpush.msra.mxu0 0.0
      %1591 = vmatpush.msra.mxu0 0.0
      %1592 = vmatpush.msra.mxu0 0.0
      %1593 = vmatpush.msra.mxu0 0.0
      %1594 = vmatpush.msra.mxu0 0.0
      %1595 = vmatpush.msra.mxu0 0.0
      %1596 = vmatpush.msra.mxu0 0.0
      %1597 = vmatpush.msra.mxu0 0.0
      %1598 = vmatpush.msra.mxu0 0.0
      %1599 = vmatpush.msra.mxu0 0.0
      %1600 = vmatpush.msra.mxu0 0.0
      %1601 = vmatpush.msra.mxu0 0.0
      %1602 = vmatpush.msra.mxu0 0.0
      %1603 = vmatpush.msra.mxu0 0.0
      %1604 = vmatpush.msra.mxu0 %v1588
      %1605 = vmatpush.msra.mxu0 %v1581
      %1606 = vmatmul.f32.gmra.mxu0 %v1586
      %v1607 = vpop.f32.mrf.mxu0
      %v1608 = vadd.f32 0.0, %v1607
      %1609 = vdwg.mxu0
      %v1611 = vsel %vm868, %v1608, 0
      %1613 = vmatpush.msra.mxu0 0.0
      %1614 = vmatpush.msra.mxu0 0.0
      %1615 = vmatpush.msra.mxu0 0.0
      %1616 = vmatpush.msra.mxu0 0.0
      %1617 = vmatpush.msra.mxu0 0.0
      %1618 = vmatpush.msra.mxu0 0.0
      %1619 = vmatpush.msra.mxu0 0.0
      %1620 = vmatpush.msra.mxu0 0.0
      %1621 = vmatpush.msra.mxu0 0.0
      %1622 = vmatpush.msra.mxu0 0.0
      %1623 = vmatpush.msra.mxu0 0.0
      %1624 = vmatpush.msra.mxu0 0.0
      %1625 = vmatpush.msra.mxu0 0.0
      %1626 = vmatpush.msra.mxu0 0.0
      %1627 = vmatpush.msra.mxu0 0.0
      %1628 = vmatpush.msra.mxu0 %v1334
      %1629 = vmatmul.f32.gmra.mxu0 %v1611
      %v1630 = vpop.f32.mrf.mxu0
      %v1631 = vadd.f32 0.0, %v1630
      %1632 = vdwg.mxu0
      %v1633 = vadd.f32 %v1533, %v1631
      %1634 = vrot.lane.b32.xlu0 %v1293, 104
      %v1635 = vpop.permute.xlu0 %1634
      %1636 = vrot.lane.b32.xlu0 %v1327, 104
      %v1637 = vpop.permute.xlu0 %1636
      %1638 = vrot.lane.b32.xlu0 %v1330, 104
      %v1639 = vpop.permute.xlu0 %1638
      %v1640 = vsel %vm868, %v1635, 0
      %v1642 = vsel %vm868, %v1637, 0
      %v1644 = vsel %vm868, %v1639, 0
      %1646 = vmatpush.xpose.msra.mxu0 0.0
      %1647 = vmatpush.xpose.msra.mxu0 0.0
      %1648 = vmatpush.xpose.msra.mxu0 0.0
      %1649 = vmatpush.xpose.msra.mxu0 0.0
      %1650 = vmatpush.xpose.msra.mxu0 0.0
      %1651 = vmatpush.xpose.msra.mxu0 0.0
      %1652 = vmatpush.xpose.msra.mxu0 0.0
      %1653 = vmatpush.xpose.msra.mxu0 0.0
      %1654 = vmatpush.xpose.msra.mxu0 0.0
      %1655 = vmatpush.xpose.msra.mxu0 0.0
      %1656 = vmatpush.xpose.msra.mxu0 0.0
      %1657 = vmatpush.xpose.msra.mxu0 0.0
      %1658 = vmatpush.xpose.msra.mxu0 0.0
      %1659 = vmatpush.xpose.msra.mxu0 0.0
      %1660 = vmatpush.xpose.msra.mxu0 %v1644
      %1661 = vmatpush.xpose.msra.mxu0 %v1642
      %1662 = vmatmul.f32.gmra.mxu0 %v1640
      %v1663 = vpop.f32.mrf.mxu0
      %v1664 = vadd.f32 0.0, %v1663
      %1665 = vdwg.mxu0
      %v1666 = vmul.f32 %v1664, 0.35355338
      %v1667 = vadd.f32 %v1666, %v1368
      %v1668 = vsel %vm1371, %v1667, -inf
      %1669 = vmax.xlane.f32.xlu0 %v1668
      %v1670 = vpop.xlane.xlu0 %1669
      %v1671 = vsub.f32 %v1667, %v1670
      %v1672 = vmul.f32 %v1671, 1.442695
      %v1673 = vpow.pop %v1672
      %v1674 = vsel %vm1371, %v1673, 0.0
      %1675 = vadd.xlane.f32.xlu0 %v1674
      %v1676 = vpop.xlane.xlu0 %1675
      %v1677 = vrcp.pop %v1676
      %v1678 = vmul.f32 %v1673, %v1677
      %1679 = vrot.lane.b32.xlu0 %v1327, 72
      %v1680 = vpop.permute.xlu0 %1679
      %1681 = vrot.lane.b32.xlu0 %v1330, 72
      %v1682 = vpop.permute.xlu0 %1681
      %v1685 = vsel %vm1371, %v1678, 0
      %v1687 = vsel %vm1391, %v1682, 0
      %1689 = vmatpush.msra.mxu0 0.0
      %1690 = vmatpush.msra.mxu0 0.0
      %1691 = vmatpush.msra.mxu0 0.0
      %1692 = vmatpush.msra.mxu0 0.0
      %1693 = vmatpush.msra.mxu0 0.0
      %1694 = vmatpush.msra.mxu0 0.0
      %1695 = vmatpush.msra.mxu0 0.0
      %1696 = vmatpush.msra.mxu0 0.0
      %1697 = vmatpush.msra.mxu0 0.0
      %1698 = vmatpush.msra.mxu0 0.0
      %1699 = vmatpush.msra.mxu0 0.0
      %1700 = vmatpush.msra.mxu0 0.0
      %1701 = vmatpush.msra.mxu0 0.0
      %1702 = vmatpush.msra.mxu0 0.0
      %1703 = vmatpush.msra.mxu0 %v1687
      %1704 = vmatpush.msra.mxu0 %v1680
      %1705 = vmatmul.f32.gmra.mxu0 %v1685
      %v1706 = vpop.f32.mrf.mxu0
      %v1707 = vadd.f32 0.0, %v1706
      %1708 = vdwg.mxu0
      %v1710 = vsel %vm868, %v1707, 0
      %1712 = vmatpush.msra.mxu0 0.0
      %1713 = vmatpush.msra.mxu0 0.0
      %1714 = vmatpush.msra.mxu0 0.0
      %1715 = vmatpush.msra.mxu0 0.0
      %1716 = vmatpush.msra.mxu0 0.0
      %1717 = vmatpush.msra.mxu0 0.0
      %1718 = vmatpush.msra.mxu0 0.0
      %1719 = vmatpush.msra.mxu0 0.0
      %1720 = vmatpush.msra.mxu0 0.0
      %1721 = vmatpush.msra.mxu0 0.0
      %1722 = vmatpush.msra.mxu0 0.0
      %1723 = vmatpush.msra.mxu0 0.0
      %1724 = vmatpush.msra.mxu0 0.0
      %1725 = vmatpush.msra.mxu0 0.0
      %1726 = vmatpush.msra.mxu0 0.0
      %1727 = vmatpush.msra.mxu0 %v1335
      %1728 = vmatmul.f32.gmra.mxu0 %v1710
      %v1729 = vpop.f32.mrf.mxu0
      %v1730 = vadd.f32 0.0, %v1729
      %1731 = vdwg.mxu0
      %v1732 = vadd.f32 %v1633, %v1730
      %v1734 = vperm.slane %v1336, 0
      %v1736 = vadd.f32 %v1732, %v1734
      %v1737 = vadd.f32 %v1231, %v1736
      %v1738 = vld [vmem:[%s18] sm:$0x1]
      %v1739 = vld [vmem:[%s19] sm:$0x1]
      %v1740 = vsel %vm791, %v1737, 0.0
      %1741 = vadd.xlane.f32.xlu0 %v1740
      %v1742 = vpop.xlane.xlu0 %1741
      %v1743 = vmul.f32 %v1742, %v801
      %v1744 = vsub.f32 %v1737, %v1743
      %v1745 = vmul.f32 %v1744, %v1744
      %v1746 = vsel %vm791, %v1745, 0.0
      %1747 = vadd.xlane.f32.xlu0 %v1746
      %v1748 = vpop.xlane.xlu0 %1747
      %v1749 = vmul.f32 %v1748, %v801
      %v1750 = vadd.f32 %v1749, 1e-05
      %v1751 = vrsqrt.pop %v1750
      %v1752 = vmul.f32 %v1751, %v1750
      %v1753 = vmul.f32 %v1752, %v1751
      %v1754 = vmul.f32 0.5, %v1753
      %v1755 = vsub.f32 1.5, %v1754
      %v1756 = vmul.f32 %v1751, %v1755
      %vm1757 = vweird.f32 %v1750
      %vm1758 = vweird.f32 %v1751
      %vm1759 = vmor %vm1757, %vm1758
      %v1760 = vsel %vm1759, %v1751, %v1756
      %v1761 = vmul.f32 %v1744, %v1760
      %v1763 = vperm.slane %v1738, 0
      %v1765 = vmul.f32 %v1761, %v1763
      %v1767 = vperm.slane %v1739, 0
      %v1769 = vadd.f32 %v1765, %v1767
      %v1770 = vld [vmem:[%s20] sm:$0xff]
      %v1771 = vld [vmem:[%s20 + $0x8] sm:$0xff]
      %v1772 = vld [vmem:[%s20 + $0x10] sm:$0xff]
      %v1773 = vld [vmem:[%s20 + $0x18] sm:$0xff]
      %v1774 = vld [vmem:[%s21] sm:$0x1]
      %v1776 = vperm.slane %v1774, 0
      %v1779 = vsel %vm791, %v1769, 0
      %1781 = vmatpush.msra.mxu0 0.0
      %1782 = vmatpush.msra.mxu0 0.0
      %1783 = vmatpush.msra.mxu0 0.0
      %1784 = vmatpush.msra.mxu0 0.0
      %1785 = vmatpush.msra.mxu0 0.0
      %1786 = vmatpush.msra.mxu0 0.0
      %1787 = vmatpush.msra.mxu0 0.0
      %1788 = vmatpush.msra.mxu0 0.0
      %1789 = vmatpush.msra.mxu0 0.0
      %1790 = vmatpush.msra.mxu0 0.0
      %1791 = vmatpush.msra.mxu0 0.0
      %1792 = vmatpush.msra.mxu0 0.0
      %1793 = vmatpush.msra.mxu0 %v1773
      %1794 = vmatpush.msra.mxu0 %v1772
      %1795 = vmatpush.msra.mxu0 %v1771
      %1796 = vmatpush.msra.mxu0 %v1770
      %1797 = vmatmul.f32.gmra.mxu0 %v1779
      %v1798 = vpop.f32.mrf.mxu0
      %v1799 = vadd.f32 %v1776, %v1798
      %1800 = vdwg.mxu0
      %v1801 = vmax.f32 %v1799, 0.0
      %v1802 = vld [vmem:[%s22] sm:$0xff]
      %v1803 = vld [vmem:[%s22 + $0x8] sm:$0xff]
      %v1804 = vld [vmem:[%s22 + $0x10] sm:$0xff]
      %v1805 = vld [vmem:[%s22 + $0x18] sm:$0xff]
      %v1806 = vld [vmem:[%s22 + $0x20] sm:$0xff]
      %v1807 = vld [vmem:[%s22 + $0x28] sm:$0xff]
      %v1808 = vld [vmem:[%s22 + $0x30] sm:$0xff]
      %v1809 = vld [vmem:[%s22 + $0x38] sm:$0xff]
      %v1810 = vld [vmem:[%s23] sm:$0x1]
      %v1812 = vperm.slane %v1810, 0
      %vm1814 = vcmask 523264
      %v1816 = vsel %vm1814, %v1801, 0
      %1818 = vmatpush.msra.mxu0 0.0
      %1819 = vmatpush.msra.mxu0 0.0
      %1820 = vmatpush.msra.mxu0 0.0
      %1821 = vmatpush.msra.mxu0 0.0
      %1822 = vmatpush.msra.mxu0 0.0
      %1823 = vmatpush.msra.mxu0 0.0
      %1824 = vmatpush.msra.mxu0 0.0
      %1825 = vmatpush.msra.mxu0 0.0
      %1826 = vmatpush.msra.mxu0 %v1809
      %1827 = vmatpush.msra.mxu0 %v1808
      %1828 = vmatpush.msra.mxu0 %v1807
      %1829 = vmatpush.msra.mxu0 %v1806
      %1830 = vmatpush.msra.mxu0 %v1805
      %1831 = vmatpush.msra.mxu0 %v1804
      %1832 = vmatpush.msra.mxu0 %v1803
      %1833 = vmatpush.msra.mxu0 %v1802
      %1834 = vmatmul.f32.gmra.mxu0 %v1816
      %v1835 = vpop.f32.mrf.mxu0
      %v1836 = vadd.f32 %v1812, %v1835
      %1837 = vdwg.mxu0
      %v1838 = vadd.f32 %v1737, %v1836
      %1839 = vst.msk [vmem:[%s783] sm:$0xff] %vm791, %v1838
      %p1840 = scmp.lt.s32.totalorder %s35, 1
      %s1841 = scalar_select %p1840, %s35, 1
      %s1842 = smul.addr %s1841, 8
      %s1843 = scalar_lea.vmem %s24, %s1842
      // Predicated region
      $region117: #{ptransformer_forward.10} parent=115 // pred_check
        %p1844 = pneg %p577
      $region118: #{ptransformer_forward.10} parent=115 // pred_check_branch
        %1846 = sbr.rel (%p1844) target = $region120
      $region119: #{ptransformer_forward.10} parent=115 // pred_region
        _
      $region120: #{ptransformer_forward.10} parent=115 // pred_fallthru
        _
    $region116: #{ptransformer_forward.10} parent=5 // pred_fallthru
      _
    %p1847 = scmp.le.s32.totalorder 2, %s30
    // Predicated region
    $region121: #{ptransformer_forward.10} parent=5 // pred_check
      %p1848 = pneg %p1847
    $region122: #{ptransformer_forward.10} parent=5 // pred_check_branch
      %1850 = sbr.rel (%p1848) target = $region124
    $region123: #{ptransformer_forward.10} parent=5 // pred_region
      %s1851 = ssub.s32 %s30, 2
      // Predicated region
      $region125: #{ptransformer_forward.10} parent=123 // pred_check
        %p1852 = pneg %p583
      $region126: #{ptransformer_forward.10} parent=123 // pred_check_branch
        %1854 = sbr.rel (%p1852) target = $region128
      $region127: #{ptransformer_forward.10} parent=123 // pred_region
        %p1855 = scmp.lt.s32.totalorder %s36, 1
        %s1856 = scalar_select %p1855, %s36, 1
        %s1857 = smul.addr %s1856, 8
        %s1858 = scalar_lea.vmem %s24, %s1857
      $region128: #{ptransformer_forward.10} parent=123 // pred_fallthru
        _
    $region124: #{ptransformer_forward.10} parent=5 // pred_fallthru
      _
  $region6: #{ptransformer_forward.10} parent=0 // loop_footer
    %s34 = sadd.s32 1, %s30
  $region7: #{ptransformer_forward.10} parent=0 // loop_footer_branch
    %29 = sbr.rel target = $region3
  $region8: #{ptransformer_forward.10} parent=0 // loop_exit
    _

// kernel: ptransformer_forward.9
$region0: #{ptransformer_forward.9}
  #allocation0 [shape = 'u32[]', space=smem, size = 0x4, offset = 0x4, fixed_abs, tag = 'smem constant byte address 0x4 - core index']
  #allocation1 [shape = 'u32[72,128]{1,0:T(1,128)}', space=vmem, size = 0x9000, scoped, tag = 'internal scratch']
  %s0 = inlined_call_operand.vmem [shape: f32[2,8,32], index: 0, kind: input, shape index: {}]
  %s1 = inlined_call_operand.vmem [shape: f32[2,10,32], index: 1, kind: input, shape index: {}]
  %s2 = inlined_call_operand.vmem [shape: f32[2,8,8], index: 2, kind: input, shape index: {}]
  %s3 = inlined_call_operand.vmem [shape: f32[2,1,10], index: 3, kind: input, shape index: {}]
  %s4 = inlined_call_operand.vmem [shape: f32[1,32], index: 4, kind: input, shape index: {}]
  %s5 = inlined_call_operand.vmem [shape: f32[1,32], index: 5, kind: input, shape index: {}]
  %s6 = inlined_call_operand.vmem [shape: f32[32,96], index: 6, kind: input, shape index: {}]
  %s7 = inlined_call_operand.vmem [shape: f32[1,96], index: 7, kind: input, shape index: {}]
  %s8 = inlined_call_operand.vmem [shape: f32[32,32], index: 8, kind: input, shape index: {}]
  %s9 = inlined_call_operand.hbm [shape: f32[1,32], index: 9, kind: input, shape index: {}]
  %s10 = inlined_call_operand.hbm [shape: f32[1,32], index: 10, kind: input, shape index: {}]
  %s11 = inlined_call_operand.hbm [shape: f32[1,32], index: 11, kind: input, shape index: {}]
  %s12 = inlined_call_operand.vmem [shape: f32[32,32], index: 12, kind: input, shape index: {}]
  %s13 = inlined_call_operand.hbm [shape: f32[1,32], index: 13, kind: input, shape index: {}]
  %s14 = inlined_call_operand.vmem [shape: f32[32,64], index: 14, kind: input, shape index: {}]
  %s15 = inlined_call_operand.hbm [shape: f32[1,64], index: 15, kind: input, shape index: {}]
  %s16 = inlined_call_operand.vmem [shape: f32[32,32], index: 16, kind: input, shape index: {}]
  %s17 = inlined_call_operand.hbm [shape: f32[1,32], index: 17, kind: input, shape index: {}]
  %s18 = inlined_call_operand.hbm [shape: f32[1,32], index: 18, kind: input, shape index: {}]
  %s19 = inlined_call_operand.hbm [shape: f32[1,32], index: 19, kind: input, shape index: {}]
  %s20 = inlined_call_operand.vmem [shape: f32[32,64], index: 20, kind: input, shape index: {}]
  %s21 = inlined_call_operand.hbm [shape: f32[1,64], index: 21, kind: input, shape index: {}]
  %s22 = inlined_call_operand.vmem [shape: f32[64,32], index: 22, kind: input, shape index: {}]
  %s23 = inlined_call_operand.hbm [shape: f32[1,32], index: 23, kind: input, shape index: {}]
  %s24 = inlined_call_operand.vmem [shape: f32[2,8,32], index: 24, kind: output, shape index: {}]
  %s25 = sld [smem:[#allocation0]]
  $region169: #{ptransformer_forward.9} parent=0
    _
  %s27 = ssub.s32 1, %s25
  %s28 = scalar_select 0, %s27, %s25
  $region1: #{ptransformer_forward.9} parent=0
    #allocation2 [shape = 'u8[512]{0}', space=vmem, size = 0x400, scoped, tag = 'input window, operand 9, single buffered']
    #allocation3 [shape = 's32[2]{0}', space=sflag, size = 0x8, scoped, tag = 'scoped memory for ptransformer_forward.9']
    #allocation4 [shape = 'u8[512]{0}', space=vmem, size = 0x400, scoped, tag = 'input window, operand 10, single buffered']
    #allocation5 [shape = 's32[1]{0}', space=sflag, size = 0x4, scoped, tag = 'scoped memory for ptransformer_forward.9']
    #allocation6 [shape = 'u8[512]{0}', space=vmem, size = 0x400, scoped, tag = 'input window, operand 11, single buffered']
    #allocation7 [shape = 'u8[512]{0}', space=vmem, size = 0x400, scoped, tag = 'input window, operand 13, single buffered']
    #allocation8 [shape = 's32[1]{0}', space=sflag, size = 0x4, scoped, tag = 'scoped memory for ptransformer_forward.9']
    #allocation9 [shape = 'u8[512]{0}', space=vmem, size = 0x400, scoped, tag = 'input window, operand 15, single buffered']
    #allocation10 [shape = 'u8[512]{0}', space=vmem, size = 0x400, scoped, tag = 'input window, operand 17, single buffered']
    #allocation11 [shape = 's32[1]{0}', space=sflag, size = 0x4, scoped, tag = 'scoped memory for ptransformer_forward.9']
    #allocation12 [shape = 'u8[512]{0}', space=vmem, size = 0x400, scoped, tag = 'input window, operand 18, single buffered']
    #allocation13 [shape = 'u8[512]{0}', space=vmem, size = 0x400, scoped, tag = 'input window, operand 19, single buffered']
    #allocation14 [shape = 's32[1]{0}', space=sflag, size = 0x4, scoped, tag = 'scoped memory for ptransformer_forward.9']
    #allocation15 [shape = 'u8[512]{0}', space=vmem, size = 0x400, scoped, tag = 'input window, operand 21, single buffered']
    #allocation16 [shape = 'u8[512]{0}', space=vmem, size = 0x400, scoped, tag = 'input window, operand 23, single buffered']
    #allocation17 [shape = 's32[1]{0}', space=sflag, size = 0x4, scoped, tag = 'scoped memory for ptransformer_forward.9']
    %29 = vsyncpa [#allocation3], 0
    %30 = vsyncpa [#allocation5], 0
    %31 = vsyncpa [#allocation8], 0
    %32 = vsyncpa [#allocation11], 0
    %33 = vsyncpa [#allocation14], 0
    %34 = vsyncpa [#allocation17], 0
    loop: start=0, step=1, limit=4
    $region2: #{ptransformer_forward.9} parent=1 // loop_pre_header
      _
    $region3: #{ptransformer_forward.9} parent=1 // loop_header
      %s36 = sphi 0, %s40
      %p37 = scmp.ge.s32.totalorder %s36, 4
      %s46 = sphi 0, %s48
      %s49 = sphi 0, %s46
      %s50 = sphi 0, %s49
      %s66 = sphi 0, %s50
      %s72 = sphi 0, %s74
      %s75 = sphi 0, %s72
      %s76 = sphi 0, %s75
      %s92 = sphi 0, %s76
      %s98 = sphi 0, %s100
      %s101 = sphi 0, %s98
      %s102 = sphi 0, %s101
      %s118 = sphi 0, %s102
      %s124 = sphi 0, %s126
      %s127 = sphi 0, %s124
      %s128 = sphi 0, %s127
      %s144 = sphi 0, %s128
      %s148 = sphi 0, %s148
      %s150 = sphi 0, %s148
      %s151 = sphi 0, %s150
      %s165 = sphi 0, %s151
      %s169 = sphi 0, %s169
      %s171 = sphi 0, %s169
      %s172 = sphi 0, %s171
      %s186 = sphi 0, %s172
      %s190 = sphi 0, %s190
      %s192 = sphi 0, %s190
      %s193 = sphi 0, %s192
      %s207 = sphi 0, %s193
      %s211 = sphi 0, %s211
      %s213 = sphi 0, %s211
      %s214 = sphi 0, %s213
      %s228 = sphi 0, %s214
      %s232 = sphi 0, %s232
      %s234 = sphi 0, %s232
      %s235 = sphi 0, %s234
      %s249 = sphi 0, %s235
      %s253 = sphi 0, %s253
      %s255 = sphi 0, %s253
      %s256 = sphi 0, %s255
      %s270 = sphi 0, %s256
      %s274 = sphi 0, %s274
      %s276 = sphi 0, %s274
      %s277 = sphi 0, %s276
      %s291 = sphi 0, %s277
      %s295 = sphi 0, %s295
      %s297 = sphi 0, %s295
      %s298 = sphi 0, %s297
      %s312 = sphi 0, %s298
      %s316 = sphi 0, %s316
      %s318 = sphi 0, %s316
      %s319 = sphi 0, %s318
      %s333 = sphi 0, %s319
      %s337 = sphi 0, %s337
      %s339 = sphi 0, %s337
      %s340 = sphi 0, %s339
      %s354 = sphi 0, %s340
      %s358 = sphi 0, %s358
      %s360 = sphi 0, %s358
      %s361 = sphi 0, %s360
      %s375 = sphi 0, %s361
      %s379 = sphi 0, %s379
      %s381 = sphi 0, %s379
      %s382 = sphi 0, %s381
      %s396 = sphi 0, %s382
      %s400 = sphi 0, %s400
      %s402 = sphi 0, %s400
      %s403 = sphi 0, %s402
      %s417 = sphi 0, %s403
      %s421 = sphi 0, %s421
      %s423 = sphi 0, %s421
      %s424 = sphi 0, %s423
      %s438 = sphi 0, %s424
      %s442 = sphi 0, %s442
      %s444 = sphi 0, %s442
      %s445 = sphi 0, %s444
      %s459 = sphi 0, %s445
      %s463 = sphi 0, %s463
      %s465 = sphi 0, %s463
      %s466 = sphi 0, %s465
      %s480 = sphi 0, %s466
      %s484 = sphi 0, %s484
      %s486 = sphi 0, %s484
      %s487 = sphi 0, %s486
      %s501 = sphi 0, %s487
      %s505 = sphi 0, %s505
      %s507 = sphi 0, %s505
      %s508 = sphi 0, %s507
      %s522 = sphi 0, %s508
      %s526 = sphi 0, %s526
      %s528 = sphi 0, %s526
      %s529 = sphi 0, %s528
      %s543 = sphi 0, %s529
      %s547 = sphi 0, %s547
      %s549 = sphi 0, %s547
      %s550 = sphi 0, %s549
      %s564 = sphi 0, %s550
      %s570 = sphi 0, %s572
      %s573 = sphi 0, %s570
      %s574 = sphi 0, %s573
      %s590 = sphi 0, %s574
    $region4: #{ptransformer_forward.9} parent=1 // loop_header_branch
      %39 = sbr.rel (%p37) target = $region8
    $region5: #{ptransformer_forward.9} parent=1 // loop_body
      %s41 = ssub.s32 %s36, 1
      %s42 = ssub.s32 %s36, 2
      %s43 = sadd.s32 %s36, 1
      %s44 = ssub.s32 %s36, %s43
      %p45 = scmp.eq.s32.totalorder %s44, 0
      %s47 = sadd.s32 %s46, 1
      %s48 = scalar_select %p45, %s46, %s47
      %p51 = pneg %p45
      %p52 = scmp.eq.s32.totalorder %s36, 1
      %p53 = por %p51, %p52
      %p54 = scmp.ne.s32.totalorder %s46, %s49
      %p55 = scmp.eq.s32.totalorder %s36, 0
      %p56 = por %p54, %p55
      %p57 = scmp.ne.s32.totalorder %s46, %s49
      %p58 = scmp.eq.s32.totalorder %s41, 1
      %p59 = por %p57, %p58
      %p60 = scmp.ne.s32.totalorder %s49, %s50
      %p61 = scmp.eq.s32.totalorder %s41, 0
      %p62 = por %p60, %p61
      %p63 = scmp.ne.s32.totalorder %s49, %s50
      %p64 = scmp.eq.s32.totalorder %s42, 1
      %p65 = por %p63, %p64
      %p67 = scmp.ne.s32.totalorder %s50, %s66
      %p68 = scmp.eq.s32.totalorder %s42, 0
      %p69 = por %p67, %p68
      %s70 = ssub.s32 %s36, %s43
      %p71 = scmp.eq.s32.totalorder %s70, 0
      %s73 = sadd.s32 %s72, 1
      %s74 = scalar_select %p71, %s72, %s73
      %p77 = pneg %p71
      %p78 = scmp.eq.s32.totalorder %s36, 1
      %p79 = por %p77, %p78
      %p80 = scmp.ne.s32.totalorder %s72, %s75
      %p81 = scmp.eq.s32.totalorder %s36, 0
      %p82 = por %p80, %p81
      %p83 = scmp.ne.s32.totalorder %s72, %s75
      %p84 = scmp.eq.s32.totalorder %s41, 1
      %p85 = por %p83, %p84
      %p86 = scmp.ne.s32.totalorder %s75, %s76
      %p87 = scmp.eq.s32.totalorder %s41, 0
      %p88 = por %p86, %p87
      %p89 = scmp.ne.s32.totalorder %s75, %s76
      %p90 = scmp.eq.s32.totalorder %s42, 1
      %p91 = por %p89, %p90
      %p93 = scmp.ne.s32.totalorder %s76, %s92
      %p94 = scmp.eq.s32.totalorder %s42, 0
      %p95 = por %p93, %p94
      %s96 = ssub.s32 %s36, %s43
      %p97 = scmp.eq.s32.totalorder %s96, 0
      %s99 = sadd.s32 %s98, 1
      %s100 = scalar_select %p97, %s98, %s99
      %p103 = pneg %p97
      %p104 = scmp.eq.s32.totalorder %s36, 1
      %p105 = por %p103, %p104
      %p106 = scmp.ne.s32.totalorder %s98, %s101
      %p107 = scmp.eq.s32.totalorder %s36, 0
      %p108 = por %p106, %p107
      %p109 = scmp.ne.s32.totalorder %s98, %s101
      %p110 = scmp.eq.s32.totalorder %s41, 1
      %p111 = por %p109, %p110
      %p112 = scmp.ne.s32.totalorder %s101, %s102
      %p113 = scmp.eq.s32.totalorder %s41, 0
      %p114 = por %p112, %p113
      %p115 = scmp.ne.s32.totalorder %s101, %s102
      %p116 = scmp.eq.s32.totalorder %s42, 1
      %p117 = por %p115, %p116
      %p119 = scmp.ne.s32.totalorder %s102, %s118
      %p120 = scmp.eq.s32.totalorder %s42, 0
      %p121 = por %p119, %p120
      %s122 = ssub.s32 %s36, %s43
      %p123 = scmp.eq.s32.totalorder %s122, 0
      %s125 = sadd.s32 %s124, 1
      %s126 = scalar_select %p123, %s124, %s125
      %p129 = pneg %p123
      %p130 = scmp.eq.s32.totalorder %s36, 1
      %p131 = por %p129, %p130
      %p132 = scmp.ne.s32.totalorder %s124, %s127
      %p133 = scmp.eq.s32.totalorder %s36, 0
      %p134 = por %p132, %p133
      %p135 = scmp.ne.s32.totalorder %s124, %s127
      %p136 = scmp.eq.s32.totalorder %s41, 1
      %p137 = por %p135, %p136
      %p138 = scmp.ne.s32.totalorder %s127, %s128
      %p139 = scmp.eq.s32.totalorder %s41, 0
      %p140 = por %p138, %p139
      %p141 = scmp.ne.s32.totalorder %s127, %s128
      %p142 = scmp.eq.s32.totalorder %s42, 1
      %p143 = por %p141, %p142
      %p145 = scmp.ne.s32.totalorder %s128, %s144
      %p146 = scmp.eq.s32.totalorder %s42, 0
      %p147 = por %p145, %p146
      %s149 = sadd.s32 %s148, 1
      %p152 = scmp.eq.s32.totalorder %s36, 1
      %p153 = scmp.ne.s32.totalorder %s148, %s150
      %p154 = scmp.eq.s32.totalorder %s36, 0
      %p155 = por %p153, %p154
      %p156 = scmp.ne.s32.totalorder %s148, %s150
      %p157 = scmp.eq.s32.totalorder %s41, 1
      %p158 = por %p156, %p157
      %p159 = scmp.ne.s32.totalorder %s150, %s151
      %p160 = scmp.eq.s32.totalorder %s41, 0
      %p161 = por %p159, %p160
      %p162 = scmp.ne.s32.totalorder %s150, %s151
      %p163 = scmp.eq.s32.totalorder %s42, 1
      %p164 = por %p162, %p163
      %p166 = scmp.ne.s32.totalorder %s151, %s165
      %p167 = scmp.eq.s32.totalorder %s42, 0
      %p168 = por %p166, %p167
      %s170 = sadd.s32 %s169, 1
      %p173 = scmp.eq.s32.totalorder %s36, 1
      %p174 = scmp.ne.s32.totalorder %s169, %s171
      %p175 = scmp.eq.s32.totalorder %s36, 0
      %p176 = por %p174, %p175
      %p177 = scmp.ne.s32.totalorder %s169, %s171
      %p178 = scmp.eq.s32.totalorder %s41, 1
      %p179 = por %p177, %p178
      %p180 = scmp.ne.s32.totalorder %s171, %s172
      %p181 = scmp.eq.s32.totalorder %s41, 0
      %p182 = por %p180, %p181
      %p183 = scmp.ne.s32.totalorder %s171, %s172
      %p184 = scmp.eq.s32.totalorder %s42, 1
      %p185 = por %p183, %p184
      %p187 = scmp.ne.s32.totalorder %s172, %s186
      %p188 = scmp.eq.s32.totalorder %s42, 0
      %p189 = por %p187, %p188
      %s191 = sadd.s32 %s190, 1
      %p194 = scmp.eq.s32.totalorder %s36, 1
      %p195 = scmp.ne.s32.totalorder %s190, %s192
      %p196 = scmp.eq.s32.totalorder %s36, 0
      %p197 = por %p195, %p196
      %p198 = scmp.ne.s32.totalorder %s190, %s192
      %p199 = scmp.eq.s32.totalorder %s41, 1
      %p200 = por %p198, %p199
      %p201 = scmp.ne.s32.totalorder %s192, %s193
      %p202 = scmp.eq.s32.totalorder %s41, 0
      %p203 = por %p201, %p202
      %p204 = scmp.ne.s32.totalorder %s192, %s193
      %p205 = scmp.eq.s32.totalorder %s42, 1
      %p206 = por %p204, %p205
      %p208 = scmp.ne.s32.totalorder %s193, %s207
      %p209 = scmp.eq.s32.totalorder %s42, 0
      %p210 = por %p208, %p209
      %s212 = sadd.s32 %s211, 1
      %p215 = scmp.eq.s32.totalorder %s36, 1
      %p216 = scmp.ne.s32.totalorder %s211, %s213
      %p217 = scmp.eq.s32.totalorder %s36, 0
      %p218 = por %p216, %p217
      %p219 = scmp.ne.s32.totalorder %s211, %s213
      %p220 = scmp.eq.s32.totalorder %s41, 1
      %p221 = por %p219, %p220
      %p222 = scmp.ne.s32.totalorder %s213, %s214
      %p223 = scmp.eq.s32.totalorder %s41, 0
      %p224 = por %p222, %p223
      %p225 = scmp.ne.s32.totalorder %s213, %s214
      %p226 = scmp.eq.s32.totalorder %s42, 1
      %p227 = por %p225, %p226
      %p229 = scmp.ne.s32.totalorder %s214, %s228
      %p230 = scmp.eq.s32.totalorder %s42, 0
      %p231 = por %p229, %p230
      %s233 = sadd.s32 %s232, 1
      %p236 = scmp.eq.s32.totalorder %s36, 1
      %p237 = scmp.ne.s32.totalorder %s232, %s234
      %p238 = scmp.eq.s32.totalorder %s36, 0
      %p239 = por %p237, %p238
      %p240 = scmp.ne.s32.totalorder %s232, %s234
      %p241 = scmp.eq.s32.totalorder %s41, 1
      %p242 = por %p240, %p241
      %p243 = scmp.ne.s32.totalorder %s234, %s235
      %p244 = scmp.eq.s32.totalorder %s41, 0
      %p245 = por %p243, %p244
      %p246 = scmp.ne.s32.totalorder %s234, %s235
      %p247 = scmp.eq.s32.totalorder %s42, 1
      %p248 = por %p246, %p247
      %p250 = scmp.ne.s32.totalorder %s235, %s249
      %p251 = scmp.eq.s32.totalorder %s42, 0
      %p252 = por %p250, %p251
      %s254 = sadd.s32 %s253, 1
      %p257 = scmp.eq.s32.totalorder %s36, 1
      %p258 = scmp.ne.s32.totalorder %s253, %s255
      %p259 = scmp.eq.s32.totalorder %s36, 0
      %p260 = por %p258, %p259
      %p261 = scmp.ne.s32.totalorder %s253, %s255
      %p262 = scmp.eq.s32.totalorder %s41, 1
      %p263 = por %p261, %p262
      %p264 = scmp.ne.s32.totalorder %s255, %s256
      %p265 = scmp.eq.s32.totalorder %s41, 0
      %p266 = por %p264, %p265
      %p267 = scmp.ne.s32.totalorder %s255, %s256
      %p268 = scmp.eq.s32.totalorder %s42, 1
      %p269 = por %p267, %p268
      %p271 = scmp.ne.s32.totalorder %s256, %s270
      %p272 = scmp.eq.s32.totalorder %s42, 0
      %p273 = por %p271, %p272
      %s275 = sadd.s32 %s274, 1
      %p278 = scmp.eq.s32.totalorder %s36, 1
      %p279 = scmp.ne.s32.totalorder %s274, %s276
      %p280 = scmp.eq.s32.totalorder %s36, 0
      %p281 = por %p279, %p280
      %p282 = scmp.ne.s32.totalorder %s274, %s276
      %p283 = scmp.eq.s32.totalorder %s41, 1
      %p284 = por %p282, %p283
      %p285 = scmp.ne.s32.totalorder %s276, %s277
      %p286 = scmp.eq.s32.totalorder %s41, 0
      %p287 = por %p285, %p286
      %p288 = scmp.ne.s32.totalorder %s276, %s277
      %p289 = scmp.eq.s32.totalorder %s42, 1
      %p290 = por %p288, %p289
      %p292 = scmp.ne.s32.totalorder %s277, %s291
      %p293 = scmp.eq.s32.totalorder %s42, 0
      %p294 = por %p292, %p293
      %s296 = sadd.s32 %s295, 1
      %p299 = scmp.eq.s32.totalorder %s36, 1
      %p300 = scmp.ne.s32.totalorder %s295, %s297
      %p301 = scmp.eq.s32.totalorder %s36, 0
      %p302 = por %p300, %p301
      %p303 = scmp.ne.s32.totalorder %s295, %s297
      %p304 = scmp.eq.s32.totalorder %s41, 1
      %p305 = por %p303, %p304
      %p306 = scmp.ne.s32.totalorder %s297, %s298
      %p307 = scmp.eq.s32.totalorder %s41, 0
      %p308 = por %p306, %p307
      %p309 = scmp.ne.s32.totalorder %s297, %s298
      %p310 = scmp.eq.s32.totalorder %s42, 1
      %p311 = por %p309, %p310
      %p313 = scmp.ne.s32.totalorder %s298, %s312
      %p314 = scmp.eq.s32.totalorder %s42, 0
      %p315 = por %p313, %p314
      %s317 = sadd.s32 %s316, 1
      %p320 = scmp.eq.s32.totalorder %s36, 1
      %p321 = scmp.ne.s32.totalorder %s316, %s318
      %p322 = scmp.eq.s32.totalorder %s36, 0
      %p323 = por %p321, %p322
      %p324 = scmp.ne.s32.totalorder %s316, %s318
      %p325 = scmp.eq.s32.totalorder %s41, 1
      %p326 = por %p324, %p325
      %p327 = scmp.ne.s32.totalorder %s318, %s319
      %p328 = scmp.eq.s32.totalorder %s41, 0
      %p329 = por %p327, %p328
      %p330 = scmp.ne.s32.totalorder %s318, %s319
      %p331 = scmp.eq.s32.totalorder %s42, 1
      %p332 = por %p330, %p331
      %p334 = scmp.ne.s32.totalorder %s319, %s333
      %p335 = scmp.eq.s32.totalorder %s42, 0
      %p336 = por %p334, %p335
      %s338 = sadd.s32 %s337, 1
      %p341 = scmp.eq.s32.totalorder %s36, 1
      %p342 = scmp.ne.s32.totalorder %s337, %s339
      %p343 = scmp.eq.s32.totalorder %s36, 0
      %p344 = por %p342, %p343
      %p345 = scmp.ne.s32.totalorder %s337, %s339
      %p346 = scmp.eq.s32.totalorder %s41, 1
      %p347 = por %p345, %p346
      %p348 = scmp.ne.s32.totalorder %s339, %s340
      %p349 = scmp.eq.s32.totalorder %s41, 0
      %p350 = por %p348, %p349
      %p351 = scmp.ne.s32.totalorder %s339, %s340
      %p352 = scmp.eq.s32.totalorder %s42, 1
      %p353 = por %p351, %p352
      %p355 = scmp.ne.s32.totalorder %s340, %s354
      %p356 = scmp.eq.s32.totalorder %s42, 0
      %p357 = por %p355, %p356
      %s359 = sadd.s32 %s358, 1
      %p362 = scmp.eq.s32.totalorder %s36, 1
      %p363 = scmp.ne.s32.totalorder %s358, %s360
      %p364 = scmp.eq.s32.totalorder %s36, 0
      %p365 = por %p363, %p364
      %p366 = scmp.ne.s32.totalorder %s358, %s360
      %p367 = scmp.eq.s32.totalorder %s41, 1
      %p368 = por %p366, %p367
      %p369 = scmp.ne.s32.totalorder %s360, %s361
      %p370 = scmp.eq.s32.totalorder %s41, 0
      %p371 = por %p369, %p370
      %p372 = scmp.ne.s32.totalorder %s360, %s361
      %p373 = scmp.eq.s32.totalorder %s42, 1
      %p374 = por %p372, %p373
      %p376 = scmp.ne.s32.totalorder %s361, %s375
      %p377 = scmp.eq.s32.totalorder %s42, 0
      %p378 = por %p376, %p377
      %s380 = sadd.s32 %s379, 1
      %p383 = scmp.eq.s32.totalorder %s36, 1
      %p384 = scmp.ne.s32.totalorder %s379, %s381
      %p385 = scmp.eq.s32.totalorder %s36, 0
      %p386 = por %p384, %p385
      %p387 = scmp.ne.s32.totalorder %s379, %s381
      %p388 = scmp.eq.s32.totalorder %s41, 1
      %p389 = por %p387, %p388
      %p390 = scmp.ne.s32.totalorder %s381, %s382
      %p391 = scmp.eq.s32.totalorder %s41, 0
      %p392 = por %p390, %p391
      %p393 = scmp.ne.s32.totalorder %s381, %s382
      %p394 = scmp.eq.s32.totalorder %s42, 1
      %p395 = por %p393, %p394
      %p397 = scmp.ne.s32.totalorder %s382, %s396
      %p398 = scmp.eq.s32.totalorder %s42, 0
      %p399 = por %p397, %p398
      %s401 = sadd.s32 %s400, 1
      %p404 = scmp.eq.s32.totalorder %s36, 1
      %p405 = scmp.ne.s32.totalorder %s400, %s402
      %p406 = scmp.eq.s32.totalorder %s36, 0
      %p407 = por %p405, %p406
      %p408 = scmp.ne.s32.totalorder %s400, %s402
      %p409 = scmp.eq.s32.totalorder %s41, 1
      %p410 = por %p408, %p409
      %p411 = scmp.ne.s32.totalorder %s402, %s403
      %p412 = scmp.eq.s32.totalorder %s41, 0
      %p413 = por %p411, %p412
      %p414 = scmp.ne.s32.totalorder %s402, %s403
      %p415 = scmp.eq.s32.totalorder %s42, 1
      %p416 = por %p414, %p415
      %p418 = scmp.ne.s32.totalorder %s403, %s417
      %p419 = scmp.eq.s32.totalorder %s42, 0
      %p420 = por %p418, %p419
      %s422 = sadd.s32 %s421, 1
      %p425 = scmp.eq.s32.totalorder %s36, 1
      %p426 = scmp.ne.s32.totalorder %s421, %s423
      %p427 = scmp.eq.s32.totalorder %s36, 0
      %p428 = por %p426, %p427
      %p429 = scmp.ne.s32.totalorder %s421, %s423
      %p430 = scmp.eq.s32.totalorder %s41, 1
      %p431 = por %p429, %p430
      %p432 = scmp.ne.s32.totalorder %s423, %s424
      %p433 = scmp.eq.s32.totalorder %s41, 0
      %p434 = por %p432, %p433
      %p435 = scmp.ne.s32.totalorder %s423, %s424
      %p436 = scmp.eq.s32.totalorder %s42, 1
      %p437 = por %p435, %p436
      %p439 = scmp.ne.s32.totalorder %s424, %s438
      %p440 = scmp.eq.s32.totalorder %s42, 0
      %p441 = por %p439, %p440
      %s443 = sadd.s32 %s442, 1
      %p446 = scmp.eq.s32.totalorder %s36, 1
      %p447 = scmp.ne.s32.totalorder %s442, %s444
      %p448 = scmp.eq.s32.totalorder %s36, 0
      %p449 = por %p447, %p448
      %p450 = scmp.ne.s32.totalorder %s442, %s444
      %p451 = scmp.eq.s32.totalorder %s41, 1
      %p452 = por %p450, %p451
      %p453 = scmp.ne.s32.totalorder %s444, %s445
      %p454 = scmp.eq.s32.totalorder %s41, 0
      %p455 = por %p453, %p454
      %p456 = scmp.ne.s32.totalorder %s444, %s445
      %p457 = scmp.eq.s32.totalorder %s42, 1
      %p458 = por %p456, %p457
      %p460 = scmp.ne.s32.totalorder %s445, %s459
      %p461 = scmp.eq.s32.totalorder %s42, 0
      %p462 = por %p460, %p461
      %s464 = sadd.s32 %s463, 1
      %p467 = scmp.eq.s32.totalorder %s36, 1
      %p468 = scmp.ne.s32.totalorder %s463, %s465
      %p469 = scmp.eq.s32.totalorder %s36, 0
      %p470 = por %p468, %p469
      %p471 = scmp.ne.s32.totalorder %s463, %s465
      %p472 = scmp.eq.s32.totalorder %s41, 1
      %p473 = por %p471, %p472
      %p474 = scmp.ne.s32.totalorder %s465, %s466
      %p475 = scmp.eq.s32.totalorder %s41, 0
      %p476 = por %p474, %p475
      %p477 = scmp.ne.s32.totalorder %s465, %s466
      %p478 = scmp.eq.s32.totalorder %s42, 1
      %p479 = por %p477, %p478
      %p481 = scmp.ne.s32.totalorder %s466, %s480
      %p482 = scmp.eq.s32.totalorder %s42, 0
      %p483 = por %p481, %p482
      %s485 = sadd.s32 %s484, 1
      %p488 = scmp.eq.s32.totalorder %s36, 1
      %p489 = scmp.ne.s32.totalorder %s484, %s486
      %p490 = scmp.eq.s32.totalorder %s36, 0
      %p491 = por %p489, %p490
      %p492 = scmp.ne.s32.totalorder %s484, %s486
      %p493 = scmp.eq.s32.totalorder %s41, 1
      %p494 = por %p492, %p493
      %p495 = scmp.ne.s32.totalorder %s486, %s487
      %p496 = scmp.eq.s32.totalorder %s41, 0
      %p497 = por %p495, %p496
      %p498 = scmp.ne.s32.totalorder %s486, %s487
      %p499 = scmp.eq.s32.totalorder %s42, 1
      %p500 = por %p498, %p499
      %p502 = scmp.ne.s32.totalorder %s487, %s501
      %p503 = scmp.eq.s32.totalorder %s42, 0
      %p504 = por %p502, %p503
      %s506 = sadd.s32 %s505, 1
      %p509 = scmp.eq.s32.totalorder %s36, 1
      %p510 = scmp.ne.s32.totalorder %s505, %s507
      %p511 = scmp.eq.s32.totalorder %s36, 0
      %p512 = por %p510, %p511
      %p513 = scmp.ne.s32.totalorder %s505, %s507
      %p514 = scmp.eq.s32.totalorder %s41, 1
      %p515 = por %p513, %p514
      %p516 = scmp.ne.s32.totalorder %s507, %s508
      %p517 = scmp.eq.s32.totalorder %s41, 0
      %p518 = por %p516, %p517
      %p519 = scmp.ne.s32.totalorder %s507, %s508
      %p520 = scmp.eq.s32.totalorder %s42, 1
      %p521 = por %p519, %p520
      %p523 = scmp.ne.s32.totalorder %s508, %s522
      %p524 = scmp.eq.s32.totalorder %s42, 0
      %p525 = por %p523, %p524
      %s527 = sadd.s32 %s526, 1
      %p530 = scmp.eq.s32.totalorder %s36, 1
      %p531 = scmp.ne.s32.totalorder %s526, %s528
      %p532 = scmp.eq.s32.totalorder %s36, 0
      %p533 = por %p531, %p532
      %p534 = scmp.ne.s32.totalorder %s526, %s528
      %p535 = scmp.eq.s32.totalorder %s41, 1
      %p536 = por %p534, %p535
      %p537 = scmp.ne.s32.totalorder %s528, %s529
      %p538 = scmp.eq.s32.totalorder %s41, 0
      %p539 = por %p537, %p538
      %p540 = scmp.ne.s32.totalorder %s528, %s529
      %p541 = scmp.eq.s32.totalorder %s42, 1
      %p542 = por %p540, %p541
      %p544 = scmp.ne.s32.totalorder %s529, %s543
      %p545 = scmp.eq.s32.totalorder %s42, 0
      %p546 = por %p544, %p545
      %s548 = sadd.s32 %s547, 1
      %p551 = scmp.eq.s32.totalorder %s36, 1
      %p552 = scmp.ne.s32.totalorder %s547, %s549
      %p553 = scmp.eq.s32.totalorder %s36, 0
      %p554 = por %p552, %p553
      %p555 = scmp.ne.s32.totalorder %s547, %s549
      %p556 = scmp.eq.s32.totalorder %s41, 1
      %p557 = por %p555, %p556
      %p558 = scmp.ne.s32.totalorder %s549, %s550
      %p559 = scmp.eq.s32.totalorder %s41, 0
      %p560 = por %p558, %p559
      %p561 = scmp.ne.s32.totalorder %s549, %s550
      %p562 = scmp.eq.s32.totalorder %s42, 1
      %p563 = por %p561, %p562
      %p565 = scmp.ne.s32.totalorder %s550, %s564
      %p566 = scmp.eq.s32.totalorder %s42, 0
      %p567 = por %p565, %p566
      %s568 = ssub.s32 %s36, %s43
      %p569 = scmp.eq.s32.totalorder %s568, 0
      %s571 = sadd.s32 %s570, 1
      %s572 = scalar_select %p569, %s570, %s571
      %p575 = pneg %p569
      %p576 = scmp.eq.s32.totalorder %s36, 1
      %p577 = por %p575, %p576
      %p578 = scmp.ne.s32.totalorder %s570, %s573
      %p579 = scmp.eq.s32.totalorder %s36, 0
      %p580 = por %p578, %p579
      %p581 = scmp.ne.s32.totalorder %s570, %s573
      %p582 = scmp.eq.s32.totalorder %s41, 1
      %p583 = por %p581, %p582
      %p584 = scmp.ne.s32.totalorder %s573, %s574
      %p585 = scmp.eq.s32.totalorder %s41, 0
      %p586 = por %p584, %p585
      %p587 = scmp.ne.s32.totalorder %s573, %s574
      %p588 = scmp.eq.s32.totalorder %s42, 1
      %p589 = por %p587, %p588
      %p591 = scmp.ne.s32.totalorder %s574, %s590
      %p592 = scmp.eq.s32.totalorder %s42, 0
      %p593 = por %p591, %p592
      %p594 = scmp.le.s32.totalorder 1, %s36
      %p595 = scmp.lt.s32.totalorder %s36, 3
      %p596 = pnand %p594, %p595
      %p597 = pneg %p596
      // Predicated region
      $region9: #{ptransformer_forward.9} parent=5 // pred_check
        _
      $region10: #{ptransformer_forward.9} parent=5 // pred_check_branch
        %599 = sbr.rel (%p596) target = $region12
      $region11: #{ptransformer_forward.9} parent=5 // pred_region
        %s600 = ssub.s32 %s36, 1
        // Predicated region
        $region13: #{ptransformer_forward.9} parent=11 // pred_check
          %p601 = pneg %p161
        $region14: #{ptransformer_forward.9} parent=11 // pred_check_branch
          %603 = sbr.rel (%p601) target = $region16
        $region15: #{ptransformer_forward.9} parent=11 // pred_region
          _
        $region16: #{ptransformer_forward.9} parent=11 // pred_fallthru
          _
        // Predicated region
        $region17: #{ptransformer_forward.9} parent=11 // pred_check
          %p604 = pneg %p182
        $region18: #{ptransformer_forward.9} parent=11 // pred_check_branch
          %606 = sbr.rel (%p604) target = $region20
        $region19: #{ptransformer_forward.9} parent=11 // pred_region
          _
        $region20: #{ptransformer_forward.9} parent=11 // pred_fallthru
          _
        // Predicated region
        $region21: #{ptransformer_forward.9} parent=11 // pred_check
          %p607 = pneg %p203
        $region22: #{ptransformer_forward.9} parent=11 // pred_check_branch
          %609 = sbr.rel (%p607) target = $region24
        $region23: #{ptransformer_forward.9} parent=11 // pred_region
          _
        $region24: #{ptransformer_forward.9} parent=11 // pred_fallthru
          _
        // Predicated region
        $region25: #{ptransformer_forward.9} parent=11 // pred_check
          %p610 = pneg %p224
        $region26: #{ptransformer_forward.9} parent=11 // pred_check_branch
          %612 = sbr.rel (%p610) target = $region28
        $region27: #{ptransformer_forward.9} parent=11 // pred_region
          _
        $region28: #{ptransformer_forward.9} parent=11 // pred_fallthru
          _
        // Predicated region
        $region29: #{ptransformer_forward.9} parent=11 // pred_check
          %p613 = pneg %p245
        $region30: #{ptransformer_forward.9} parent=11 // pred_check_branch
          %615 = sbr.rel (%p613) target = $region32
        $region31: #{ptransformer_forward.9} parent=11 // pred_region
          _
        $region32: #{ptransformer_forward.9} parent=11 // pred_fallthru
          _
        // Predicated region
        $region33: #{ptransformer_forward.9} parent=11 // pred_check
          %p616 = pneg %p266
        $region34: #{ptransformer_forward.9} parent=11 // pred_check_branch
          %618 = sbr.rel (%p616) target = $region36
        $region35: #{ptransformer_forward.9} parent=11 // pred_region
          %620 = vsyncadd [#allocation3], 0
          %s622 = sshll.u32 %s9, 4
          %s623 = int_to_ptr.hbm [resolvable:$true] %s622
          %s624 = sshll.u32 [#allocation2], 4
          %s625 = int_to_ptr.vmem [resolvable:$true] %s624
          %627 = dma.hbm_to_vmem [thread:$0]  %s623, 16, %s625, [#allocation3]
        $region36: #{ptransformer_forward.9} parent=11 // pred_fallthru
          _
        // Predicated region
        $region37: #{ptransformer_forward.9} parent=11 // pred_check
          %p628 = pneg %p287
        $region38: #{ptransformer_forward.9} parent=11 // pred_check_branch
          %630 = sbr.rel (%p628) target = $region40
        $region39: #{ptransformer_forward.9} parent=11 // pred_region
          %632 = vsyncadd [#allocation5], 0
          %s634 = sshll.u32 %s10, 4
          %s635 = int_to_ptr.hbm [resolvable:$true] %s634
          %s636 = sshll.u32 [#allocation4], 4
          %s637 = int_to_ptr.vmem [resolvable:$true] %s636
          %639 = dma.hbm_to_vmem [thread:$0]  %s635, 16, %s637, [#allocation5]
        $region40: #{ptransformer_forward.9} parent=11 // pred_fallthru
          _
        // Predicated region
        $region41: #{ptransformer_forward.9} parent=11 // pred_check
          %p640 = pneg %p308
        $region42: #{ptransformer_forward.9} parent=11 // pred_check_branch
          %642 = sbr.rel (%p640) target = $region44
        $region43: #{ptransformer_forward.9} parent=11 // pred_region
          %644 = vsyncadd [#allocation5], 0
          %s646 = sshll.u32 %s11, 4
          %s647 = int_to_ptr.hbm [resolvable:$true] %s646
          %s648 = sshll.u32 [#allocation6], 4
          %s649 = int_to_ptr.vmem [resolvable:$true] %s648
          %651 = dma.hbm_to_vmem [thread:$0]  %s647, 16, %s649, [#allocation5]
        $region44: #{ptransformer_forward.9} parent=11 // pred_fallthru
          _
        // Predicated region
        $region45: #{ptransformer_forward.9} parent=11 // pred_check
          %p652 = pneg %p329
        $region46: #{ptransformer_forward.9} parent=11 // pred_check_branch
          %654 = sbr.rel (%p652) target = $region48
        $region47: #{ptransformer_forward.9} parent=11 // pred_region
          _
        $region48: #{ptransformer_forward.9} parent=11 // pred_fallthru
          _
        // Predicated region
        $region49: #{ptransformer_forward.9} parent=11 // pred_check
          %p655 = pneg %p350
        $region50: #{ptransformer_forward.9} parent=11 // pred_check_branch
          %657 = sbr.rel (%p655) target = $region52
        $region51: #{ptransformer_forward.9} parent=11 // pred_region
          %659 = vsyncadd [#allocation8], 0
          %s661 = sshll.u32 %s13, 4
          %s662 = int_to_ptr.hbm [resolvable:$true] %s661
          %s663 = sshll.u32 [#allocation7], 4
          %s664 = int_to_ptr.vmem [resolvable:$true] %s663
          %666 = dma.hbm_to_vmem [thread:$0]  %s662, 16, %s664, [#allocation8]
        $region52: #{ptransformer_forward.9} parent=11 // pred_fallthru
          _
        // Predicated region
        $region53: #{ptransformer_forward.9} parent=11 // pred_check
          %p667 = pneg %p371
        $region54: #{ptransformer_forward.9} parent=11 // pred_check_branch
          %669 = sbr.rel (%p667) target = $region56
        $region55: #{ptransformer_forward.9} parent=11 // pred_region
          _
        $region56: #{ptransformer_forward.9} parent=11 // pred_fallthru
          _
        // Predicated region
        $region57: #{ptransformer_forward.9} parent=11 // pred_check
          %p670 = pneg %p392
        $region58: #{ptransformer_forward.9} parent=11 // pred_check_branch
          %672 = sbr.rel (%p670) target = $region60
        $region59: #{ptransformer_forward.9} parent=11 // pred_region
          %674 = vsyncadd [#allocation8], 0
          %s676 = sshll.u32 %s15, 4
          %s677 = int_to_ptr.hbm [resolvable:$true] %s676
          %s678 = sshll.u32 [#allocation9], 4
          %s679 = int_to_ptr.vmem [resolvable:$true] %s678
          %681 = dma.hbm_to_vmem [thread:$0]  %s677, 16, %s679, [#allocation8]
        $region60: #{ptransformer_forward.9} parent=11 // pred_fallthru
          _
        // Predicated region
        $region61: #{ptransformer_forward.9} parent=11 // pred_check
          %p682 = pneg %p413
        $region62: #{ptransformer_forward.9} parent=11 // pred_check_branch
          %684 = sbr.rel (%p682) target = $region64
        $region63: #{ptransformer_forward.9} parent=11 // pred_region
          _
        $region64: #{ptransformer_forward.9} parent=11 // pred_fallthru
          _
        // Predicated region
        $region65: #{ptransformer_forward.9} parent=11 // pred_check
          %p685 = pneg %p434
        $region66: #{ptransformer_forward.9} parent=11 // pred_check_branch
          %687 = sbr.rel (%p685) target = $region68
        $region67: #{ptransformer_forward.9} parent=11 // pred_region
          %689 = vsyncadd [#allocation11], 0
          %s691 = sshll.u32 %s17, 4
          %s692 = int_to_ptr.hbm [resolvable:$true] %s691
          %s693 = sshll.u32 [#allocation10], 4
          %s694 = int_to_ptr.vmem [resolvable:$true] %s693
          %696 = dma.hbm_to_vmem [thread:$0]  %s692, 16, %s694, [#allocation11]
        $region68: #{ptransformer_forward.9} parent=11 // pred_fallthru
          _
        // Predicated region
        $region69: #{ptransformer_forward.9} parent=11 // pred_check
          %p697 = pneg %p455
        $region70: #{ptransformer_forward.9} parent=11 // pred_check_branch
          %699 = sbr.rel (%p697) target = $region72
        $region71: #{ptransformer_forward.9} parent=11 // pred_region
          %701 = vsyncadd [#allocation11], 0
          %s703 = sshll.u32 %s18, 4
          %s704 = int_to_ptr.hbm [resolvable:$true] %s703
          %s705 = sshll.u32 [#allocation12], 4
          %s706 = int_to_ptr.vmem [resolvable:$true] %s705
          %708 = dma.hbm_to_vmem [thread:$0]  %s704, 16, %s706, [#allocation11]
        $region72: #{ptransformer_forward.9} parent=11 // pred_fallthru
          _
        // Predicated region
        $region73: #{ptransformer_forward.9} parent=11 // pred_check
          %p709 = pneg %p476
        $region74: #{ptransformer_forward.9} parent=11 // pred_check_branch
          %711 = sbr.rel (%p709) target = $region76
        $region75: #{ptransformer_forward.9} parent=11 // pred_region
          %713 = vsyncadd [#allocation14], 0
          %s715 = sshll.u32 %s19, 4
          %s716 = int_to_ptr.hbm [resolvable:$true] %s715
          %s717 = sshll.u32 [#allocation13], 4
          %s718 = int_to_ptr.vmem [resolvable:$true] %s717
          %720 = dma.hbm_to_vmem [thread:$0]  %s716, 16, %s718, [#allocation14]
        $region76: #{ptransformer_forward.9} parent=11 // pred_fallthru
          _
        // Predicated region
        $region77: #{ptransformer_forward.9} parent=11 // pred_check
          %p721 = pneg %p497
        $region78: #{ptransformer_forward.9} parent=11 // pred_check_branch
          %723 = sbr.rel (%p721) target = $region80
        $region79: #{ptransformer_forward.9} parent=11 // pred_region
          _
        $region80: #{ptransformer_forward.9} parent=11 // pred_fallthru
          _
        // Predicated region
        $region81: #{ptransformer_forward.9} parent=11 // pred_check
          %p724 = pneg %p518
        $region82: #{ptransformer_forward.9} parent=11 // pred_check_branch
          %726 = sbr.rel (%p724) target = $region84
        $region83: #{ptransformer_forward.9} parent=11 // pred_region
          %728 = vsyncadd [#allocation14], 0
          %s730 = sshll.u32 %s21, 4
          %s731 = int_to_ptr.hbm [resolvable:$true] %s730
          %s732 = sshll.u32 [#allocation15], 4
          %s733 = int_to_ptr.vmem [resolvable:$true] %s732
          %735 = dma.hbm_to_vmem [thread:$0]  %s731, 16, %s733, [#allocation14]
        $region84: #{ptransformer_forward.9} parent=11 // pred_fallthru
          _
        // Predicated region
        $region85: #{ptransformer_forward.9} parent=11 // pred_check
          %p736 = pneg %p539
        $region86: #{ptransformer_forward.9} parent=11 // pred_check_branch
          %738 = sbr.rel (%p736) target = $region88
        $region87: #{ptransformer_forward.9} parent=11 // pred_region
          _
        $region88: #{ptransformer_forward.9} parent=11 // pred_fallthru
          _
        // Predicated region
        $region89: #{ptransformer_forward.9} parent=11 // pred_check
          %p739 = pneg %p560
        $region90: #{ptransformer_forward.9} parent=11 // pred_check_branch
          %741 = sbr.rel (%p739) target = $region92
        $region91: #{ptransformer_forward.9} parent=11 // pred_region
          %743 = vsyncadd [#allocation17], 0
          %s745 = sshll.u32 %s23, 4
          %s746 = int_to_ptr.hbm [resolvable:$true] %s745
          %s747 = sshll.u32 [#allocation16], 4
          %s748 = int_to_ptr.vmem [resolvable:$true] %s747
          %750 = dma.hbm_to_vmem [thread:$0]  %s746, 16, %s748, [#allocation17]
        $region92: #{ptransformer_forward.9} parent=11 // pred_fallthru
          _
      $region12: #{ptransformer_forward.9} parent=5 // pred_fallthru
        _
      %p751 = scmp.lt.s32.totalorder %s36, 2
      // Predicated region
      $region93: #{ptransformer_forward.9} parent=5 // pred_check
        %p752 = pneg %p751
      $region94: #{ptransformer_forward.9} parent=5 // pred_check_branch
        %754 = sbr.rel (%p752) target = $region96
      $region95: #{ptransformer_forward.9} parent=5 // pred_region
        // Predicated region
        $region97: #{ptransformer_forward.9} parent=95 // pred_check
          %p755 = pneg %p56
        $region98: #{ptransformer_forward.9} parent=95 // pred_check_branch
          %757 = sbr.rel (%p755) target = $region100
        $region99: #{ptransformer_forward.9} parent=95 // pred_region
          %p758 = scmp.lt.s32.totalorder %s36, 1
          %s759 = scalar_select %p758, %s36, 1
          %s760 = smul.addr %s759, 8
          %s761 = scalar_lea.vmem %s0, %s760
        $region100: #{ptransformer_forward.9} parent=95 // pred_fallthru
          _
        // Predicated region
        $region101: #{ptransformer_forward.9} parent=95 // pred_check
          %p762 = pneg %p82
        $region102: #{ptransformer_forward.9} parent=95 // pred_check_branch
          %764 = sbr.rel (%p762) target = $region104
        $region103: #{ptransformer_forward.9} parent=95 // pred_region
          %p765 = scmp.lt.s32.totalorder %s36, 1
          %s766 = scalar_select %p765, %s36, 1
          %s767 = smul.addr %s766, 2
          %s768 = smul.addr %s767, 8
          %s769 = scalar_lea.vmem %s1, %s768
        $region104: #{ptransformer_forward.9} parent=95 // pred_fallthru
          _
        // Predicated region
        $region105: #{ptransformer_forward.9} parent=95 // pred_check
          %p770 = pneg %p108
        $region106: #{ptransformer_forward.9} parent=95 // pred_check_branch
          %772 = sbr.rel (%p770) target = $region108
        $region107: #{ptransformer_forward.9} parent=95 // pred_region
          %p773 = scmp.lt.s32.totalorder %s36, 1
          %s774 = scalar_select %p773, %s36, 1
          %s775 = smul.addr %s774, 8
          %s776 = scalar_lea.vmem %s2, %s775
        $region108: #{ptransformer_forward.9} parent=95 // pred_fallthru
          _
        // Predicated region
        $region109: #{ptransformer_forward.9} parent=95 // pred_check
          %p777 = pneg %p134
        $region110: #{ptransformer_forward.9} parent=95 // pred_check_branch
          %779 = sbr.rel (%p777) target = $region112
        $region111: #{ptransformer_forward.9} parent=95 // pred_region
          %p780 = scmp.lt.s32.totalorder %s36, 1
          %s781 = scalar_select %p780, %s36, 1
          %s782 = scalar_lea.vmem %s3, %s781
        $region112: #{ptransformer_forward.9} parent=95 // pred_fallthru
          _
      $region96: #{ptransformer_forward.9} parent=5 // pred_fallthru
        _
      %p783 = scmp.le.s32.totalorder 1, %s36
      %p784 = scmp.lt.s32.totalorder %s36, 3
      %p785 = pnand %p783, %p784
      %p786 = pneg %p785
      // Predicated region
      $region113: #{ptransformer_forward.9} parent=5 // pred_check
        _
      $region114: #{ptransformer_forward.9} parent=5 // pred_check_branch
        %788 = sbr.rel (%p785) target = $region116
      $region115: #{ptransformer_forward.9} parent=5 // pred_region
        %s789 = ssub.s32 %s36, 1
        // Predicated region
        $region117: #{ptransformer_forward.9} parent=115 // pred_check
          %p790 = pneg %p266
        $region118: #{ptransformer_forward.9} parent=115 // pred_check_branch
          %792 = sbr.rel (%p790) target = $region120
        $region119: #{ptransformer_forward.9} parent=115 // pred_region
          %794 = dma.done [#allocation3], 16
        $region120: #{ptransformer_forward.9} parent=115 // pred_fallthru
          _
        // Predicated region
        $region121: #{ptransformer_forward.9} parent=115 // pred_check
          %p795 = pneg %p287
        $region122: #{ptransformer_forward.9} parent=115 // pred_check_branch
          %797 = sbr.rel (%p795) target = $region124
        $region123: #{ptransformer_forward.9} parent=115 // pred_region
          %799 = dma.done [#allocation5], 16
        $region124: #{ptransformer_forward.9} parent=115 // pred_fallthru
          _
        // Predicated region
        $region125: #{ptransformer_forward.9} parent=115 // pred_check
          %p800 = pneg %p308
        $region126: #{ptransformer_forward.9} parent=115 // pred_check_branch
          %802 = sbr.rel (%p800) target = $region128
        $region127: #{ptransformer_forward.9} parent=115 // pred_region
          %804 = dma.done [#allocation5], 16
        $region128: #{ptransformer_forward.9} parent=115 // pred_fallthru
          _
        // Predicated region
        $region129: #{ptransformer_forward.9} parent=115 // pred_check
          %p805 = pneg %p350
        $region130: #{ptransformer_forward.9} parent=115 // pred_check_branch
          %807 = sbr.rel (%p805) target = $region132
        $region131: #{ptransformer_forward.9} parent=115 // pred_region
          %809 = dma.done [#allocation8], 16
        $region132: #{ptransformer_forward.9} parent=115 // pred_fallthru
          _
        // Predicated region
        $region133: #{ptransformer_forward.9} parent=115 // pred_check
          %p810 = pneg %p392
        $region134: #{ptransformer_forward.9} parent=115 // pred_check_branch
          %812 = sbr.rel (%p810) target = $region136
        $region135: #{ptransformer_forward.9} parent=115 // pred_region
          %814 = dma.done [#allocation8], 16
        $region136: #{ptransformer_forward.9} parent=115 // pred_fallthru
          _
        // Predicated region
        $region137: #{ptransformer_forward.9} parent=115 // pred_check
          %p815 = pneg %p434
        $region138: #{ptransformer_forward.9} parent=115 // pred_check_branch
          %817 = sbr.rel (%p815) target = $region140
        $region139: #{ptransformer_forward.9} parent=115 // pred_region
          %819 = dma.done [#allocation11], 16
        $region140: #{ptransformer_forward.9} parent=115 // pred_fallthru
          _
        // Predicated region
        $region141: #{ptransformer_forward.9} parent=115 // pred_check
          %p820 = pneg %p455
        $region142: #{ptransformer_forward.9} parent=115 // pred_check_branch
          %822 = sbr.rel (%p820) target = $region144
        $region143: #{ptransformer_forward.9} parent=115 // pred_region
          %824 = dma.done [#allocation11], 16
        $region144: #{ptransformer_forward.9} parent=115 // pred_fallthru
          _
        // Predicated region
        $region145: #{ptransformer_forward.9} parent=115 // pred_check
          %p825 = pneg %p476
        $region146: #{ptransformer_forward.9} parent=115 // pred_check_branch
          %827 = sbr.rel (%p825) target = $region148
        $region147: #{ptransformer_forward.9} parent=115 // pred_region
          %829 = dma.done [#allocation14], 16
        $region148: #{ptransformer_forward.9} parent=115 // pred_fallthru
          _
        // Predicated region
        $region149: #{ptransformer_forward.9} parent=115 // pred_check
          %p830 = pneg %p518
        $region150: #{ptransformer_forward.9} parent=115 // pred_check_branch
          %832 = sbr.rel (%p830) target = $region152
        $region151: #{ptransformer_forward.9} parent=115 // pred_region
          %834 = dma.done [#allocation14], 16
        $region152: #{ptransformer_forward.9} parent=115 // pred_fallthru
          _
        // Predicated region
        $region153: #{ptransformer_forward.9} parent=115 // pred_check
          %p835 = pneg %p560
        $region154: #{ptransformer_forward.9} parent=115 // pred_check_branch
          %837 = sbr.rel (%p835) target = $region156
        $region155: #{ptransformer_forward.9} parent=115 // pred_region
          %839 = dma.done [#allocation17], 16
        $region156: #{ptransformer_forward.9} parent=115 // pred_fallthru
          _
        %p840 = scmp.lt.s32.totalorder %s41, 1
        %s841 = scalar_select %p840, %s41, 1
        %s842 = smul.addr %s841, 8
        %s843 = scalar_lea.vmem %s0, %s842
        %p844 = pneg %p62
        %p845 = pneg %p59
        %p846 = scmp.lt.s32.totalorder %s41, 1
        %s847 = scalar_select %p846, %s41, 1
        %s848 = smul.addr %s847, 2
        %s849 = smul.addr %s848, 8
        %s850 = scalar_lea.vmem %s1, %s849
        %p851 = pneg %p88
        %p852 = pneg %p85
        %p853 = scmp.lt.s32.totalorder %s41, 1
        %s854 = scalar_select %p853, %s41, 1
        %s855 = smul.addr %s854, 8
        %s856 = scalar_lea.vmem %s2, %s855
        %p857 = pneg %p114
        %p858 = pneg %p111
        %p859 = scmp.lt.s32.totalorder %s41, 1
        %s860 = scalar_select %p859, %s41, 1
        %s861 = scalar_lea.vmem %s3, %s860
        %p862 = pneg %p140
        %p863 = pneg %p137
        %p864 = pneg %p161
        %p865 = pneg %p158
        %p866 = pneg %p182
        %p867 = pneg %p179
        %p868 = pneg %p203
        %p869 = pneg %p200
        %p870 = pneg %p224
        %p871 = pneg %p221
        %p872 = pneg %p245
        %p873 = pneg %p242
        %p874 = pneg %p266
        %p875 = pneg %p263
        %p876 = pneg %p287
        %p877 = pneg %p284
        %p878 = pneg %p308
        %p879 = pneg %p305
        %p880 = pneg %p329
        %p881 = pneg %p326
        %p882 = pneg %p350
        %p883 = pneg %p347
        %p884 = pneg %p371
        %p885 = pneg %p368
        %p886 = pneg %p392
        %p887 = pneg %p389
        %p888 = pneg %p413
        %p889 = pneg %p410
        %p890 = pneg %p434
        %p891 = pneg %p431
        %p892 = pneg %p455
        %p893 = pneg %p452
        %p894 = pneg %p476
        %p895 = pneg %p473
        %p896 = pneg %p497
        %p897 = pneg %p494
        %p898 = pneg %p518
        %p899 = pneg %p515
        %p900 = pneg %p539
        %p901 = pneg %p536
        %p902 = pneg %p560
        %p903 = pneg %p557
        %p904 = pneg %p586
        %p905 = pneg %p583
        %p906 = scmp.lt.s32.totalorder %s41, 1
        %s907 = scalar_select %p906, %s41, 1
        %s908 = smul.addr %s907, 8
        %s909 = scalar_lea.vmem %s24, %s908
        %p910 = scmp.lt.s32.totalorder %s41, 1
        %s911 = scalar_select %p910, %s41, 1
        %s912 = smul.addr %s911, 8
        %s913 = scalar_lea.vmem %s0, %s912
        %p914 = scmp.lt.s32.totalorder %s41, 1
        %s915 = scalar_select %p914, %s41, 1
        %s916 = smul.addr %s915, 2
        %s917 = smul.addr %s916, 8
        %s918 = scalar_lea.vmem %s1, %s917
        %p919 = scmp.lt.s32.totalorder %s41, 1
        %s920 = scalar_select %p919, %s41, 1
        %s921 = smul.addr %s920, 8
        %s922 = scalar_lea.vmem %s2, %s921
        %p923 = scmp.lt.s32.totalorder %s41, 1
        %s924 = scalar_select %p923, %s41, 1
        %s925 = scalar_lea.vmem %s3, %s924
        %p926 = scmp.lt.s32.totalorder %s41, 1
        %s927 = scalar_select %p926, %s41, 1
        %s928 = smul.addr %s927, 8
        %s929 = scalar_lea.vmem %s24, %s928
        %v930 = vld [vmem:[%s913] sm:$0xff]
        %v931 = vld [vmem:[%s918] sm:$0xff]
        %v932 = vld [vmem:[%s918 + $0x8] sm:$0x3]
        %v933 = vld [vmem:[%s922] sm:$0xff]
        %v934 = vld [vmem:[%s925] sm:$0x1]
        %v935 = vld [vmem:[%s4] sm:$0x1]
        %v936 = vld [vmem:[%s5] sm:$0x1]
        %vm937 = vcmask 261120
        %v938 = vsel %vm937, %v930, 0.0
        %939 = vadd.xlane.f32.xlu0 %v938
        %v940 = vpop.xlane.xlu0 %939
        %v941 = vrcp.pop 32.0
        %v942 = vmul.f32 32.0, %v941
        %v943 = vsub.f32 1.0, %v942
        %v944 = vmul.f32 %v941, %v943
        %v945 = vadd.f32 %v941, %v944
        %vm946 = vweird.f32 %v941
        %v947 = vsel %vm946, %v941, %v945
        %v948 = vmul.f32 %v940, %v947
        %v949 = vsub.f32 %v930, %v948
        %v950 = vmul.f32 %v949, %v949
        %v951 = vsel %vm937, %v950, 0.0
        %952 = vadd.xlane.f32.xlu0 %v951
        %v953 = vpop.xlane.xlu0 %952
        %v954 = vmul.f32 %v953, %v947
        %v955 = vadd.f32 %v954, 1e-05
        %v956 = vrsqrt.pop %v955
        %v957 = vmul.f32 %v956, %v955
        %v958 = vmul.f32 %v957, %v956
        %v959 = vmul.f32 0.5, %v958
        %v960 = vsub.f32 1.5, %v959
        %v961 = vmul.f32 %v956, %v960
        %vm962 = vweird.f32 %v955
        %vm963 = vweird.f32 %v956
        %vm964 = vmor %vm962, %vm963
        %v965 = vsel %vm964, %v956, %v961
        %v966 = vmul.f32 %v949, %v965
        %v968 = vperm.slane %v935, 0
        %v970 = vmul.f32 %v966, %v968
        %v972 = vperm.slane %v936, 0
        %v974 = vadd.f32 %v970, %v972
        %v975 = vld [vmem:[%s6] sm:$0xff]
        %v976 = vld [vmem:[%s6 + $0x8] sm:$0xff]
        %v977 = vld [vmem:[%s6 + $0x10] sm:$0xff]
        %v978 = vld [vmem:[%s6 + $0x18] sm:$0xff]
        %v979 = vld [vmem:[%s7] sm:$0x1]
        %v981 = vperm.slane %v979, 0
        %v984 = vsel %vm937, %v974, 0
        %986 = vmatpush.msra.mxu0 0.0
        %987 = vmatpush.msra.mxu0 0.0
        %988 = vmatpush.msra.mxu0 0.0
        %989 = vmatpush.msra.mxu0 0.0
        %990 = vmatpush.msra.mxu0 0.0
        %991 = vmatpush.msra.mxu0 0.0
        %992 = vmatpush.msra.mxu0 0.0
        %993 = vmatpush.msra.mxu0 0.0
        %994 = vmatpush.msra.mxu0 0.0
        %995 = vmatpush.msra.mxu0 0.0
        %996 = vmatpush.msra.mxu0 0.0
        %997 = vmatpush.msra.mxu0 0.0
        %998 = vmatpush.msra.mxu0 %v978
        %999 = vmatpush.msra.mxu0 %v977
        %1000 = vmatpush.msra.mxu0 %v976
        %1001 = vmatpush.msra.mxu0 %v975
        %1002 = vmatmul.f32.gmra.mxu0 %v984
        %v1003 = vpop.f32.mrf.mxu0
        %v1004 = vadd.f32 %v981, %v1003
        %1005 = vdwg.mxu0
        %v1006 = vld [vmem:[%s8] sm:$0xff]
        %v1007 = vld [vmem:[%s8 + $0x8] sm:$0xff]
        %v1008 = vld [vmem:[%s8 + $0x10] sm:$0xff]
        %v1009 = vld [vmem:[%s8 + $0x18] sm:$0xff]
        %v1010 = vld [vmem:[#allocation2] sm:$0x1]
        %1012 = vrot.lane.b32.xlu0 %v1004, 96
        %v1013 = vpop.permute.xlu0 %1012
        %vm1014 = vcmask 64512
        %v1015 = vsel %vm1014, %v1004, 0
        %v1017 = vsel %vm1014, %v1013, 0
        %1019 = vmatpush.xpose.msra.mxu0 0.0
        %1020 = vmatpush.xpose.msra.mxu0 0.0
        %1021 = vmatpush.xpose.msra.mxu0 0.0
        %1022 = vmatpush.xpose.msra.mxu0 0.0
        %1023 = vmatpush.xpose.msra.mxu0 0.0
        %1024 = vmatpush.xpose.msra.mxu0 0.0
        %1025 = vmatpush.xpose.msra.mxu0 0.0
        %1026 = vmatpush.xpose.msra.mxu0 0.0
        %1027 = vmatpush.xpose.msra.mxu0 0.0
        %1028 = vmatpush.xpose.msra.mxu0 0.0
        %1029 = vmatpush.xpose.msra.mxu0 0.0
        %1030 = vmatpush.xpose.msra.mxu0 0.0
        %1031 = vmatpush.xpose.msra.mxu0 0.0
        %1032 = vmatpush.xpose.msra.mxu0 0.0
        %1033 = vmatpush.xpose.msra.mxu0 0.0
        %1034 = vmatpush.xpose.msra.mxu0 %v1017
        %1035 = vmatmul.f32.gmra.mxu0 %v1015
        %v1036 = vpop.f32.mrf.mxu0
        %v1037 = vadd.f32 0.0, %v1036
        %1038 = vdwg.mxu0
        %v1039 = vmul.f32 %v1037, 0.35355338
        %v1040 = vadd.f32 %v1039, %v933
        %v1041 = vsel %vm1014, %v1040, -inf
        %1042 = vmax.xlane.f32.xlu0 %v1041
        %v1043 = vpop.xlane.xlu0 %1042
        %v1044 = vsub.f32 %v1040, %v1043
        %v1045 = vmul.f32 %v1044, 1.442695
        %v1046 = vpow.pop %v1045
        %v1047 = vsel %vm1014, %v1046, 0.0
        %1048 = vadd.xlane.f32.xlu0 %v1047
        %v1049 = vpop.xlane.xlu0 %1048
        %v1050 = vrcp.pop %v1049
        %v1051 = vmul.f32 %v1046, %v1050
        %1052 = vrot.lane.b32.xlu0 %v1004, 64
        %v1053 = vpop.permute.xlu0 %1052
        %v1056 = vsel %vm1014, %v1051, 0
        %1058 = vmatpush.msra.mxu0 0.0
        %1059 = vmatpush.msra.mxu0 0.0
        %1060 = vmatpush.msra.mxu0 0.0
        %1061 = vmatpush.msra.mxu0 0.0
        %1062 = vmatpush.msra.mxu0 0.0
        %1063 = vmatpush.msra.mxu0 0.0
        %1064 = vmatpush.msra.mxu0 0.0
        %1065 = vmatpush.msra.mxu0 0.0
        %1066 = vmatpush.msra.mxu0 0.0
        %1067 = vmatpush.msra.mxu0 0.0
        %1068 = vmatpush.msra.mxu0 0.0
        %1069 = vmatpush.msra.mxu0 0.0
        %1070 = vmatpush.msra.mxu0 0.0
        %1071 = vmatpush.msra.mxu0 0.0
        %1072 = vmatpush.msra.mxu0 0.0
        %1073 = vmatpush.msra.mxu0 %v1053
        %1074 = vmatmul.f32.gmra.mxu0 %v1056
        %v1075 = vpop.f32.mrf.mxu0
        %v1076 = vadd.f32 0.0, %v1075
        %1077 = vdwg.mxu0
        %1078 = vrot.lane.b32.xlu0 %v1004, 120
        %v1079 = vpop.permute.xlu0 %1078
        %1080 = vrot.lane.b32.xlu0 %v1004, 88
        %v1081 = vpop.permute.xlu0 %1080
        %v1082 = vsel %vm1014, %v1079, 0
        %v1084 = vsel %vm1014, %v1081, 0
        %1086 = vmatpush.xpose.msra.mxu0 0.0
        %1087 = vmatpush.xpose.msra.mxu0 0.0
        %1088 = vmatpush.xpose.msra.mxu0 0.0
        %1089 = vmatpush.xpose.msra.mxu0 0.0
        %1090 = vmatpush.xpose.msra.mxu0 0.0
        %1091 = vmatpush.xpose.msra.mxu0 0.0
        %1092 = vmatpush.xpose.msra.mxu0 0.0
        %1093 = vmatpush.xpose.msra.mxu0 0.0
        %1094 = vmatpush.xpose.msra.mxu0 0.0
        %1095 = vmatpush.xpose.msra.mxu0 0.0
        %1096 = vmatpush.xpose.msra.mxu0 0.0
        %1097 = vmatpush.xpose.msra.mxu0 0.0
        %1098 = vmatpush.xpose.msra.mxu0 0.0
        %1099 = vmatpush.xpose.msra.mxu0 0.0
        %1100 = vmatpush.xpose.msra.mxu0 0.0
        %1101 = vmatpush.xpose.msra.mxu0 %v1084
        %1102 = vmatmul.f32.gmra.mxu0 %v1082
        %v1103 = vpop.f32.mrf.mxu0
        %v1104 = vadd.f32 0.0, %v1103
        %1105 = vdwg.mxu0
        %v1106 = vmul.f32 %v1104, 0.35355338
        %v1107 = vadd.f32 %v1106, %v933
        %v1108 = vsel %vm1014, %v1107, -inf
        %1109 = vmax.xlane.f32.xlu0 %v1108
        %v1110 = vpop.xlane.xlu0 %1109
        %v1111 = vsub.f32 %v1107, %v1110
        %v1112 = vmul.f32 %v1111, 1.442695
        %v1113 = vpow.pop %v1112
        %v1114 = vsel %vm1014, %v1113, 0.0
        %1115 = vadd.xlane.f32.xlu0 %v1114
        %v1116 = vpop.xlane.xlu0 %1115
        %v1117 = vrcp.pop %v1116
        %v1118 = vmul.f32 %v1113, %v1117
        %1119 = vrot.lane.b32.xlu0 %v1004, 56
        %v1120 = vpop.permute.xlu0 %1119
        %v1123 = vsel %vm1014, %v1118, 0
        %1125 = vmatpush.msra.mxu0 0.0
        %1126 = vmatpush.msra.mxu0 0.0
        %1127 = vmatpush.msra.mxu0 0.0
        %1128 = vmatpush.msra.mxu0 0.0
        %1129 = vmatpush.msra.mxu0 0.0
        %1130 = vmatpush.msra.mxu0 0.0
        %1131 = vmatpush.msra.mxu0 0.0
        %1132 = vmatpush.msra.mxu0 0.0
        %1133 = vmatpush.msra.mxu0 0.0
        %1134 = vmatpush.msra.mxu0 0.0
        %1135 = vmatpush.msra.mxu0 0.0
        %1136 = vmatpush.msra.mxu0 0.0
        %1137 = vmatpush.msra.mxu0 0.0
        %1138 = vmatpush.msra.mxu0 0.0
        %1139 = vmatpush.msra.mxu0 0.0
        %1140 = vmatpush.msra.mxu0 %v1120
        %1141 = vmatmul.f32.gmra.mxu0 %v1123
        %v1142 = vpop.f32.mrf.mxu0
        %v1143 = vadd.f32 0.0, %v1142
        %1144 = vdwg.mxu0
        %v1146 = vsel %vm1014, %v1143, 0
        %1148 = vmatpush.msra.mxu0 0.0
        %1149 = vmatpush.msra.mxu0 0.0
        %1150 = vmatpush.msra.mxu0 0.0
        %1151 = vmatpush.msra.mxu0 0.0
        %1152 = vmatpush.msra.mxu0 0.0
        %1153 = vmatpush.msra.mxu0 0.0
        %1154 = vmatpush.msra.mxu0 0.0
        %1155 = vmatpush.msra.mxu0 0.0
        %1156 = vmatpush.msra.mxu0 0.0
        %1157 = vmatpush.msra.mxu0 0.0
        %1158 = vmatpush.msra.mxu0 0.0
        %1159 = vmatpush.msra.mxu0 0.0
        %1160 = vmatpush.msra.mxu0 0.0
        %1161 = vmatpush.msra.mxu0 0.0
        %1162 = vmatpush.msra.mxu0 0.0
        %1163 = vmatpush.msra.mxu0 %v1007
        %1164 = vmatmul.f32.gmra.mxu0 %v1146
        %v1165 = vpop.f32.mrf.mxu0
        %v1166 = vadd.f32 0.0, %v1165
        %1167 = vdwg.mxu0
        %v1169 = vsel %vm1014, %v1076, 0
        %1171 = vmatpush.msra.mxu0 0.0
        %1172 = vmatpush.msra.mxu0 0.0
        %1173 = vmatpush.msra.mxu0 0.0
        %1174 = vmatpush.msra.mxu0 0.0
        %1175 = vmatpush.msra.mxu0 0.0
        %1176 = vmatpush.msra.mxu0 0.0
        %1177 = vmatpush.msra.mxu0 0.0
        %1178 = vmatpush.msra.mxu0 0.0
        %1179 = vmatpush.msra.mxu0 0.0
        %1180 = vmatpush.msra.mxu0 0.0
        %1181 = vmatpush.msra.mxu0 0.0
        %1182 = vmatpush.msra.mxu0 0.0
        %1183 = vmatpush.msra.mxu0 0.0
        %1184 = vmatpush.msra.mxu0 0.0
        %1185 = vmatpush.msra.mxu0 0.0
        %1186 = vmatpush.msra.mxu0 %v1006
        %1187 = vmatmul.f32.gmra.mxu0 %v1169
        %v1188 = vpop.f32.mrf.mxu0
        %v1189 = vadd.f32 %v1166, %v1188
        %1190 = vdwg.mxu0
        %1191 = vrot.lane.b32.xlu0 %v1004, 112
        %v1192 = vpop.permute.xlu0 %1191
        %1193 = vrot.lane.b32.xlu0 %v1004, 80
        %v1194 = vpop.permute.xlu0 %1193
        %v1195 = vsel %vm1014, %v1192, 0
        %v1197 = vsel %vm1014, %v1194, 0
        %1199 = vmatpush.xpose.msra.mxu0 0.0
        %1200 = vmatpush.xpose.msra.mxu0 0.0
        %1201 = vmatpush.xpose.msra.mxu0 0.0
        %1202 = vmatpush.xpose.msra.mxu0 0.0
        %1203 = vmatpush.xpose.msra.mxu0 0.0
        %1204 = vmatpush.xpose.msra.mxu0 0.0
        %1205 = vmatpush.xpose.msra.mxu0 0.0
        %1206 = vmatpush.xpose.msra.mxu0 0.0
        %1207 = vmatpush.xpose.msra.mxu0 0.0
        %1208 = vmatpush.xpose.msra.mxu0 0.0
        %1209 = vmatpush.xpose.msra.mxu0 0.0
        %1210 = vmatpush.xpose.msra.mxu0 0.0
        %1211 = vmatpush.xpose.msra.mxu0 0.0
        %1212 = vmatpush.xpose.msra.mxu0 0.0
        %1213 = vmatpush.xpose.msra.mxu0 0.0
        %1214 = vmatpush.xpose.msra.mxu0 %v1197
        %1215 = vmatmul.f32.gmra.mxu0 %v1195
        %v1216 = vpop.f32.mrf.mxu0
        %v1217 = vadd.f32 0.0, %v1216
        %1218 = vdwg.mxu0
        %v1219 = vmul.f32 %v1217, 0.35355338
        %v1220 = vadd.f32 %v1219, %v933
        %v1221 = vsel %vm1014, %v1220, -inf
        %1222 = vmax.xlane.f32.xlu0 %v1221
        %v1223 = vpop.xlane.xlu0 %1222
        %v1224 = vsub.f32 %v1220, %v1223
        %v1225 = vmul.f32 %v1224, 1.442695
        %v1226 = vpow.pop %v1225
        %v1227 = vsel %vm1014, %v1226, 0.0
        %1228 = vadd.xlane.f32.xlu0 %v1227
        %v1229 = vpop.xlane.xlu0 %1228
        %v1230 = vrcp.pop %v1229
        %v1231 = vmul.f32 %v1226, %v1230
        %1232 = vrot.lane.b32.xlu0 %v1004, 48
        %v1233 = vpop.permute.xlu0 %1232
        %v1236 = vsel %vm1014, %v1231, 0
        %1238 = vmatpush.msra.mxu0 0.0
        %1239 = vmatpush.msra.mxu0 0.0
        %1240 = vmatpush.msra.mxu0 0.0
        %1241 = vmatpush.msra.mxu0 0.0
        %1242 = vmatpush.msra.mxu0 0.0
        %1243 = vmatpush.msra.mxu0 0.0
        %1244 = vmatpush.msra.mxu0 0.0
        %1245 = vmatpush.msra.mxu0 0.0
        %1246 = vmatpush.msra.mxu0 0.0
        %1247 = vmatpush.msra.mxu0 0.0
        %1248 = vmatpush.msra.mxu0 0.0
        %1249 = vmatpush.msra.mxu0 0.0
        %1250 = vmatpush.msra.mxu0 0.0
        %1251 = vmatpush.msra.mxu0 0.0
        %1252 = vmatpush.msra.mxu0 0.0
        %1253 = vmatpush.msra.mxu0 %v1233
        %1254 = vmatmul.f32.gmra.mxu0 %v1236
        %v1255 = vpop.f32.mrf.mxu0
        %v1256 = vadd.f32 0.0, %v1255
        %1257 = vdwg.mxu0
        %v1259 = vsel %vm1014, %v1256, 0
        %1261 = vmatpush.msra.mxu0 0.0
        %1262 = vmatpush.msra.mxu0 0.0
        %1263 = vmatpush.msra.mxu0 0.0
        %1264 = vmatpush.msra.mxu0 0.0
        %1265 = vmatpush.msra.mxu0 0.0
        %1266 = vmatpush.msra.mxu0 0.0
        %1267 = vmatpush.msra.mxu0 0.0
        %1268 = vmatpush.msra.mxu0 0.0
        %1269 = vmatpush.msra.mxu0 0.0
        %1270 = vmatpush.msra.mxu0 0.0
        %1271 = vmatpush.msra.mxu0 0.0
        %1272 = vmatpush.msra.mxu0 0.0
        %1273 = vmatpush.msra.mxu0 0.0
        %1274 = vmatpush.msra.mxu0 0.0
        %1275 = vmatpush.msra.mxu0 0.0
        %1276 = vmatpush.msra.mxu0 %v1008
        %1277 = vmatmul.f32.gmra.mxu0 %v1259
        %v1278 = vpop.f32.mrf.mxu0
        %v1279 = vadd.f32 0.0, %v1278
        %1280 = vdwg.mxu0
        %v1281 = vadd.f32 %v1189, %v1279
        %1282 = vrot.lane.b32.xlu0 %v1004, 104
        %v1283 = vpop.permute.xlu0 %1282
        %1284 = vrot.lane.b32.xlu0 %v1004, 72
        %v1285 = vpop.permute.xlu0 %1284
        %v1286 = vsel %vm1014, %v1283, 0
        %v1288 = vsel %vm1014, %v1285, 0
        %1290 = vmatpush.xpose.msra.mxu0 0.0
        %1291 = vmatpush.xpose.msra.mxu0 0.0
        %1292 = vmatpush.xpose.msra.mxu0 0.0
        %1293 = vmatpush.xpose.msra.mxu0 0.0
        %1294 = vmatpush.xpose.msra.mxu0 0.0
        %1295 = vmatpush.xpose.msra.mxu0 0.0
        %1296 = vmatpush.xpose.msra.mxu0 0.0
        %1297 = vmatpush.xpose.msra.mxu0 0.0
        %1298 = vmatpush.xpose.msra.mxu0 0.0
        %1299 = vmatpush.xpose.msra.mxu0 0.0
        %1300 = vmatpush.xpose.msra.mxu0 0.0
        %1301 = vmatpush.xpose.msra.mxu0 0.0
        %1302 = vmatpush.xpose.msra.mxu0 0.0
        %1303 = vmatpush.xpose.msra.mxu0 0.0
        %1304 = vmatpush.xpose.msra.mxu0 0.0
        %1305 = vmatpush.xpose.msra.mxu0 %v1288
        %1306 = vmatmul.f32.gmra.mxu0 %v1286
        %v1307 = vpop.f32.mrf.mxu0
        %v1308 = vadd.f32 0.0, %v1307
        %1309 = vdwg.mxu0
        %v1310 = vmul.f32 %v1308, 0.35355338
        %v1311 = vadd.f32 %v1310, %v933
        %v1312 = vsel %vm1014, %v1311, -inf
        %1313 = vmax.xlane.f32.xlu0 %v1312
        %v1314 = vpop.xlane.xlu0 %1313
        %v1315 = vsub.f32 %v1311, %v1314
        %v1316 = vmul.f32 %v1315, 1.442695
        %v1317 = vpow.pop %v1316
        %v1318 = vsel %vm1014, %v1317, 0.0
        %1319 = vadd.xlane.f32.xlu0 %v1318
        %v1320 = vpop.xlane.xlu0 %1319
        %v1321 = vrcp.pop %v1320
        %v1322 = vmul.f32 %v1317, %v1321
        %1323 = vrot.lane.b32.xlu0 %v1004, 40
        %v1324 = vpop.permute.xlu0 %1323
        %v1327 = vsel %vm1014, %v1322, 0
        %1329 = vmatpush.msra.mxu0 0.0
        %1330 = vmatpush.msra.mxu0 0.0
        %1331 = vmatpush.msra.mxu0 0.0
        %1332 = vmatpush.msra.mxu0 0.0
        %1333 = vmatpush.msra.mxu0 0.0
        %1334 = vmatpush.msra.mxu0 0.0
        %1335 = vmatpush.msra.mxu0 0.0
        %1336 = vmatpush.msra.mxu0 0.0
        %1337 = vmatpush.msra.mxu0 0.0
        %1338 = vmatpush.msra.mxu0 0.0
        %1339 = vmatpush.msra.mxu0 0.0
        %1340 = vmatpush.msra.mxu0 0.0
        %1341 = vmatpush.msra.mxu0 0.0
        %1342 = vmatpush.msra.mxu0 0.0
        %1343 = vmatpush.msra.mxu0 0.0
        %1344 = vmatpush.msra.mxu0 %v1324
        %1345 = vmatmul.f32.gmra.mxu0 %v1327
        %v1346 = vpop.f32.mrf.mxu0
        %v1347 = vadd.f32 0.0, %v1346
        %1348 = vdwg.mxu0
        %v1350 = vsel %vm1014, %v1347, 0
        %1352 = vmatpush.msra.mxu0 0.0
        %1353 = vmatpush.msra.mxu0 0.0
        %1354 = vmatpush.msra.mxu0 0.0
        %1355 = vmatpush.msra.mxu0 0.0
        %1356 = vmatpush.msra.mxu0 0.0
        %1357 = vmatpush.msra.mxu0 0.0
        %1358 = vmatpush.msra.mxu0 0.0
        %1359 = vmatpush.msra.mxu0 0.0
        %1360 = vmatpush.msra.mxu0 0.0
        %1361 = vmatpush.msra.mxu0 0.0
        %1362 = vmatpush.msra.mxu0 0.0
        %1363 = vmatpush.msra.mxu0 0.0
        %1364 = vmatpush.msra.mxu0 0.0
        %1365 = vmatpush.msra.mxu0 0.0
        %1366 = vmatpush.msra.mxu0 0.0
        %1367 = vmatpush.msra.mxu0 %v1009
        %1368 = vmatmul.f32.gmra.mxu0 %v1350
        %v1369 = vpop.f32.mrf.mxu0
        %v1370 = vadd.f32 0.0, %v1369
        %1371 = vdwg.mxu0
        %v1372 = vadd.f32 %v1281, %v1370
        %v1374 = vperm.slane %v1010, 0
        %v1376 = vadd.f32 %v1372, %v1374
        %v1377 = vadd.f32 %v930, %v1376
        %v1378 = vld [vmem:[#allocation4] sm:$0x1]
        %v1379 = vld [vmem:[#allocation6] sm:$0x1]
        %v1380 = vsel %vm937, %v1377, 0.0
        %1381 = vadd.xlane.f32.xlu0 %v1380
        %v1382 = vpop.xlane.xlu0 %1381
        %v1383 = vmul.f32 %v1382, %v947
        %v1384 = vsub.f32 %v1377, %v1383
        %v1385 = vmul.f32 %v1384, %v1384
        %v1386 = vsel %vm937, %v1385, 0.0
        %1387 = vadd.xlane.f32.xlu0 %v1386
        %v1388 = vpop.xlane.xlu0 %1387
        %v1389 = vmul.f32 %v1388, %v947
        %v1390 = vadd.f32 %v1389, 1e-05
        %v1391 = vrsqrt.pop %v1390
        %v1392 = vmul.f32 %v1391, %v1390
        %v1393 = vmul.f32 %v1392, %v1391
        %v1394 = vmul.f32 0.5, %v1393
        %v1395 = vsub.f32 1.5, %v1394
        %v1396 = vmul.f32 %v1391, %v1395
        %vm1397 = vweird.f32 %v1390
        %vm1398 = vweird.f32 %v1391
        %vm1399 = vmor %vm1397, %vm1398
        %v1400 = vsel %vm1399, %v1391, %v1396
        %v1401 = vmul.f32 %v1384, %v1400
        %v1403 = vperm.slane %v1378, 0
        %v1405 = vmul.f32 %v1401, %v1403
        %v1407 = vperm.slane %v1379, 0
        %v1409 = vadd.f32 %v1405, %v1407
        %v1410 = vld [vmem:[%s12] sm:$0xff]
        %v1411 = vld [vmem:[%s12 + $0x8] sm:$0xff]
        %v1412 = vld [vmem:[%s12 + $0x10] sm:$0xff]
        %v1413 = vld [vmem:[%s12 + $0x18] sm:$0xff]
        %v1414 = vld [vmem:[#allocation7] sm:$0x1]
        %v1416 = vperm.slane %v1414, 0
        %v1419 = vsel %vm937, %v1409, 0
        %1421 = vmatpush.msra.mxu0 0.0
        %1422 = vmatpush.msra.mxu0 0.0
        %1423 = vmatpush.msra.mxu0 0.0
        %1424 = vmatpush.msra.mxu0 0.0
        %1425 = vmatpush.msra.mxu0 0.0
        %1426 = vmatpush.msra.mxu0 0.0
        %1427 = vmatpush.msra.mxu0 0.0
        %1428 = vmatpush.msra.mxu0 0.0
        %1429 = vmatpush.msra.mxu0 0.0
        %1430 = vmatpush.msra.mxu0 0.0
        %1431 = vmatpush.msra.mxu0 0.0
        %1432 = vmatpush.msra.mxu0 0.0
        %1433 = vmatpush.msra.mxu0 %v1413
        %1434 = vmatpush.msra.mxu0 %v1412
        %1435 = vmatpush.msra.mxu0 %v1411
        %1436 = vmatpush.msra.mxu0 %v1410
        %1437 = vmatmul.f32.gmra.mxu0 %v1419
        %v1438 = vpop.f32.mrf.mxu0
        %v1439 = vadd.f32 %v1416, %v1438
        %1440 = vdwg.mxu0
        %v1441 = vld [vmem:[%s14] sm:$0xff]
        %v1442 = vld [vmem:[%s14 + $0x8] sm:$0xff]
        %v1443 = vld [vmem:[%s14 + $0x10] sm:$0xff]
        %v1444 = vld [vmem:[%s14 + $0x18] sm:$0xff]
        %v1445 = vld [vmem:[#allocation9] sm:$0x1]
        %v1447 = vperm.slane %v1445, 0
        %v1450 = vsel %vm937, %v931, 0
        %v1453 = vsel %vm937, %v932, 0
        %1455 = vmatpush.msra.mxu0 0.0
        %1456 = vmatpush.msra.mxu0 0.0
        %1457 = vmatpush.msra.mxu0 0.0
        %1458 = vmatpush.msra.mxu0 0.0
        %1459 = vmatpush.msra.mxu0 0.0
        %1460 = vmatpush.msra.mxu0 0.0
        %1461 = vmatpush.msra.mxu0 0.0
        %1462 = vmatpush.msra.mxu0 0.0
        %1463 = vmatpush.msra.mxu0 0.0
        %1464 = vmatpush.msra.mxu0 0.0
        %1465 = vmatpush.msra.mxu0 0.0
        %1466 = vmatpush.msra.mxu0 0.0
        %1467 = vmatpush.msra.mxu0 %v1444
        %1468 = vmatpush.msra.mxu0 %v1443
        %1469 = vmatpush.msra.mxu0 %v1442
        %1470 = vmatpush.msra.mxu0 %v1441
        %1471 = vmatmul.f32.gmra.mxu0 %v1450
        %v1472 = vpop.f32.mrf.mxu0
        %v1473 = vadd.f32 %v1447, %v1472
        %1474 = vmatmul.f32.gmra.mxu0 %v1453
        %v1475 = vpop.f32.mrf.mxu0
        %v1476 = vadd.f32 %v1447, %v1475
        %1477 = vdwg.mxu0
        %v1478 = vld [vmem:[%s16] sm:$0xff]
        %v1479 = vld [vmem:[%s16 + $0x8] sm:$0xff]
        %v1480 = vld [vmem:[%s16 + $0x10] sm:$0xff]
        %v1481 = vld [vmem:[%s16 + $0x18] sm:$0xff]
        %v1482 = vld [vmem:[#allocation10] sm:$0x1]
        %v1484 = vsel %vm1014, %v1439, 0
        %v1487 = vsel %vm1014, %v1473, 0
        %v1490 = vsel %vm1014, %v1476, 0
        %1492 = vmatpush.xpose.msra.mxu0 0.0
        %1493 = vmatpush.xpose.msra.mxu0 0.0
        %1494 = vmatpush.xpose.msra.mxu0 0.0
        %1495 = vmatpush.xpose.msra.mxu0 0.0
        %1496 = vmatpush.xpose.msra.mxu0 0.0
        %1497 = vmatpush.xpose.msra.mxu0 0.0
        %1498 = vmatpush.xpose.msra.mxu0 0.0
        %1499 = vmatpush.xpose.msra.mxu0 0.0
        %1500 = vmatpush.xpose.msra.mxu0 0.0
        %1501 = vmatpush.xpose.msra.mxu0 0.0
        %1502 = vmatpush.xpose.msra.mxu0 0.0
        %1503 = vmatpush.xpose.msra.mxu0 0.0
        %1504 = vmatpush.xpose.msra.mxu0 0.0
        %1505 = vmatpush.xpose.msra.mxu0 0.0
        %1506 = vmatpush.xpose.msra.mxu0 %v1490
        %1507 = vmatpush.xpose.msra.mxu0 %v1487
        %1508 = vmatmul.f32.gmra.mxu0 %v1484
        %v1509 = vpop.f32.mrf.mxu0
        %v1510 = vadd.f32 0.0, %v1509
        %1511 = vdwg.mxu0
        %v1512 = vmul.f32 %v1510, 0.35355338
        %v1514 = vperm.slane %v934, 0
        %v1516 = vadd.f32 %v1512, %v1514
        %vm1517 = vcmask 80896
        %v1518 = vsel %vm1517, %v1516, -inf
        %1519 = vmax.xlane.f32.xlu0 %v1518
        %v1520 = vpop.xlane.xlu0 %1519
        %v1521 = vsub.f32 %v1516, %v1520
        %v1522 = vmul.f32 %v1521, 1.442695
        %v1523 = vpow.pop %v1522
        %v1524 = vsel %vm1517, %v1523, 0.0
        %1525 = vadd.xlane.f32.xlu0 %v1524
        %v1526 = vpop.xlane.xlu0 %1525
        %v1527 = vrcp.pop %v1526
        %v1528 = vmul.f32 %v1523, %v1527
        %1529 = vrot.lane.b32.xlu0 %v1473, 96
        %v1530 = vpop.permute.xlu0 %1529
        %1531 = vrot.lane.b32.xlu0 %v1476, 96
        %v1532 = vpop.permute.xlu0 %1531
        %v1535 = vsel %vm1517, %v1528, 0
        %vm1537 = vcmask 1041408
        %v1538 = vsel %vm1537, %v1532, 0
        %1540 = vmatpush.msra.mxu0 0.0
        %1541 = vmatpush.msra.mxu0 0.0
        %1542 = vmatpush.msra.mxu0 0.0
        %1543 = vmatpush.msra.mxu0 0.0
        %1544 = vmatpush.msra.mxu0 0.0
        %1545 = vmatpush.msra.mxu0 0.0
        %1546 = vmatpush.msra.mxu0 0.0
        %1547 = vmatpush.msra.mxu0 0.0
        %1548 = vmatpush.msra.mxu0 0.0
        %1549 = vmatpush.msra.mxu0 0.0
        %1550 = vmatpush.msra.mxu0 0.0
        %1551 = vmatpush.msra.mxu0 0.0
        %1552 = vmatpush.msra.mxu0 0.0
        %1553 = vmatpush.msra.mxu0 0.0
        %1554 = vmatpush.msra.mxu0 %v1538
        %1555 = vmatpush.msra.mxu0 %v1530
        %1556 = vmatmul.f32.gmra.mxu0 %v1535
        %v1557 = vpop.f32.mrf.mxu0
        %v1558 = vadd.f32 0.0, %v1557
        %1559 = vdwg.mxu0
        %1560 = vrot.lane.b32.xlu0 %v1439, 120
        %v1561 = vpop.permute.xlu0 %1560
        %1562 = vrot.lane.b32.xlu0 %v1473, 120
        %v1563 = vpop.permute.xlu0 %1562
        %1564 = vrot.lane.b32.xlu0 %v1476, 120
        %v1565 = vpop.permute.xlu0 %1564
        %v1566 = vsel %vm1014, %v1561, 0
        %v1568 = vsel %vm1014, %v1563, 0
        %v1570 = vsel %vm1014, %v1565, 0
        %1572 = vmatpush.xpose.msra.mxu0 0.0
        %1573 = vmatpush.xpose.msra.mxu0 0.0
        %1574 = vmatpush.xpose.msra.mxu0 0.0
        %1575 = vmatpush.xpose.msra.mxu0 0.0
        %1576 = vmatpush.xpose.msra.mxu0 0.0
        %1577 = vmatpush.xpose.msra.mxu0 0.0
        %1578 = vmatpush.xpose.msra.mxu0 0.0
        %1579 = vmatpush.xpose.msra.mxu0 0.0
        %1580 = vmatpush.xpose.msra.mxu0 0.0
        %1581 = vmatpush.xpose.msra.mxu0 0.0
        %1582 = vmatpush.xpose.msra.mxu0 0.0
        %1583 = vmatpush.xpose.msra.mxu0 0.0
        %1584 = vmatpush.xpose.msra.mxu0 0.0
        %1585 = vmatpush.xpose.msra.mxu0 0.0
        %1586 = vmatpush.xpose.msra.mxu0 %v1570
        %1587 = vmatpush.xpose.msra.mxu0 %v1568
        %1588 = vmatmul.f32.gmra.mxu0 %v1566
        %v1589 = vpop.f32.mrf.mxu0
        %v1590 = vadd.f32 0.0, %v1589
        %1591 = vdwg.mxu0
        %v1592 = vmul.f32 %v1590, 0.35355338
        %v1593 = vadd.f32 %v1592, %v1514
        %v1594 = vsel %vm1517, %v1593, -inf
        %1595 = vmax.xlane.f32.xlu0 %v1594
        %v1596 = vpop.xlane.xlu0 %1595
        %v1597 = vsub.f32 %v1593, %v1596
        %v1598 = vmul.f32 %v1597, 1.442695
        %v1599 = vpow.pop %v1598
        %v1600 = vsel %vm1517, %v1599, 0.0
        %1601 = vadd.xlane.f32.xlu0 %v1600
        %v1602 = vpop.xlane.xlu0 %1601
        %v1603 = vrcp.pop %v1602
        %v1604 = vmul.f32 %v1599, %v1603
        %1605 = vrot.lane.b32.xlu0 %v1473, 88
        %v1606 = vpop.permute.xlu0 %1605
        %1607 = vrot.lane.b32.xlu0 %v1476, 88
        %v1608 = vpop.permute.xlu0 %1607
        %v1611 = vsel %vm1517, %v1604, 0
        %v1613 = vsel %vm1537, %v1608, 0
        %1615 = vmatpush.msra.mxu0 0.0
        %1616 = vmatpush.msra.mxu0 0.0
        %1617 = vmatpush.msra.mxu0 0.0
        %1618 = vmatpush.msra.mxu0 0.0
        %1619 = vmatpush.msra.mxu0 0.0
        %1620 = vmatpush.msra.mxu0 0.0
        %1621 = vmatpush.msra.mxu0 0.0
        %1622 = vmatpush.msra.mxu0 0.0
        %1623 = vmatpush.msra.mxu0 0.0
        %1624 = vmatpush.msra.mxu0 0.0
        %1625 = vmatpush.msra.mxu0 0.0
        %1626 = vmatpush.msra.mxu0 0.0
        %1627 = vmatpush.msra.mxu0 0.0
        %1628 = vmatpush.msra.mxu0 0.0
        %1629 = vmatpush.msra.mxu0 %v1613
        %1630 = vmatpush.msra.mxu0 %v1606
        %1631 = vmatmul.f32.gmra.mxu0 %v1611
        %v1632 = vpop.f32.mrf.mxu0
        %v1633 = vadd.f32 0.0, %v1632
        %1634 = vdwg.mxu0
        %v1636 = vsel %vm1014, %v1633, 0
        %1638 = vmatpush.msra.mxu0 0.0
        %1639 = vmatpush.msra.mxu0 0.0
        %1640 = vmatpush.msra.mxu0 0.0
        %1641 = vmatpush.msra.mxu0 0.0
        %1642 = vmatpush.msra.mxu0 0.0
        %1643 = vmatpush.msra.mxu0 0.0
        %1644 = vmatpush.msra.mxu0 0.0
        %1645 = vmatpush.msra.mxu0 0.0
        %1646 = vmatpush.msra.mxu0 0.0
        %1647 = vmatpush.msra.mxu0 0.0
        %1648 = vmatpush.msra.mxu0 0.0
        %1649 = vmatpush.msra.mxu0 0.0
        %1650 = vmatpush.msra.mxu0 0.0
        %1651 = vmatpush.msra.mxu0 0.0
        %1652 = vmatpush.msra.mxu0 0.0
        %1653 = vmatpush.msra.mxu0 %v1479
        %1654 = vmatmul.f32.gmra.mxu0 %v1636
        %v1655 = vpop.f32.mrf.mxu0
        %v1656 = vadd.f32 0.0, %v1655
        %1657 = vdwg.mxu0
        %v1659 = vsel %vm1014, %v1558, 0
        %1661 = vmatpush.msra.mxu0 0.0
        %1662 = vmatpush.msra.mxu0 0.0
        %1663 = vmatpush.msra.mxu0 0.0
        %1664 = vmatpush.msra.mxu0 0.0
        %1665 = vmatpush.msra.mxu0 0.0
        %1666 = vmatpush.msra.mxu0 0.0
        %1667 = vmatpush.msra.mxu0 0.0
        %1668 = vmatpush.msra.mxu0 0.0
        %1669 = vmatpush.msra.mxu0 0.0
        %1670 = vmatpush.msra.mxu0 0.0
        %1671 = vmatpush.msra.mxu0 0.0
        %1672 = vmatpush.msra.mxu0 0.0
        %1673 = vmatpush.msra.mxu0 0.0
        %1674 = vmatpush.msra.mxu0 0.0
        %1675 = vmatpush.msra.mxu0 0.0
        %1676 = vmatpush.msra.mxu0 %v1478
        %1677 = vmatmul.f32.gmra.mxu0 %v1659
        %v1678 = vpop.f32.mrf.mxu0
        %v1679 = vadd.f32 %v1656, %v1678
        %1680 = vdwg.mxu0
        %1681 = vrot.lane.b32.xlu0 %v1439, 112
        %v1682 = vpop.permute.xlu0 %1681
        %1683 = vrot.lane.b32.xlu0 %v1473, 112
        %v1684 = vpop.permute.xlu0 %1683
        %1685 = vrot.lane.b32.xlu0 %v1476, 112
        %v1686 = vpop.permute.xlu0 %1685
        %v1687 = vsel %vm1014, %v1682, 0
        %v1689 = vsel %vm1014, %v1684, 0
        %v1691 = vsel %vm1014, %v1686, 0
        %1693 = vmatpush.xpose.msra.mxu0 0.0
        %1694 = vmatpush.xpose.msra.mxu0 0.0
        %1695 = vmatpush.xpose.msra.mxu0 0.0
        %1696 = vmatpush.xpose.msra.mxu0 0.0
        %1697 = vmatpush.xpose.msra.mxu0 0.0
        %1698 = vmatpush.xpose.msra.mxu0 0.0
        %1699 = vmatpush.xpose.msra.mxu0 0.0
        %1700 = vmatpush.xpose.msra.mxu0 0.0
        %1701 = vmatpush.xpose.msra.mxu0 0.0
        %1702 = vmatpush.xpose.msra.mxu0 0.0
        %1703 = vmatpush.xpose.msra.mxu0 0.0
        %1704 = vmatpush.xpose.msra.mxu0 0.0
        %1705 = vmatpush.xpose.msra.mxu0 0.0
        %1706 = vmatpush.xpose.msra.mxu0 0.0
        %1707 = vmatpush.xpose.msra.mxu0 %v1691
        %1708 = vmatpush.xpose.msra.mxu0 %v1689
        %1709 = vmatmul.f32.gmra.mxu0 %v1687
        %v1710 = vpop.f32.mrf.mxu0
        %v1711 = vadd.f32 0.0, %v1710
        %1712 = vdwg.mxu0
        %v1713 = vmul.f32 %v1711, 0.35355338
        %v1714 = vadd.f32 %v1713, %v1514
        %v1715 = vsel %vm1517, %v1714, -inf
        %1716 = vmax.xlane.f32.xlu0 %v1715
        %v1717 = vpop.xlane.xlu0 %1716
        %v1718 = vsub.f32 %v1714, %v1717
        %v1719 = vmul.f32 %v1718, 1.442695
        %v1720 = vpow.pop %v1719
        %v1721 = vsel %vm1517, %v1720, 0.0
        %1722 = vadd.xlane.f32.xlu0 %v1721
        %v1723 = vpop.xlane.xlu0 %1722
        %v1724 = vrcp.pop %v1723
        %v1725 = vmul.f32 %v1720, %v1724
        %1726 = vrot.lane.b32.xlu0 %v1473, 80
        %v1727 = vpop.permute.xlu0 %1726
        %1728 = vrot.lane.b32.xlu0 %v1476, 80
        %v1729 = vpop.permute.xlu0 %1728
        %v1732 = vsel %vm1517, %v1725, 0
        %v1734 = vsel %vm1537, %v1729, 0
        %1736 = vmatpush.msra.mxu0 0.0
        %1737 = vmatpush.msra.mxu0 0.0
        %1738 = vmatpush.msra.mxu0 0.0
        %1739 = vmatpush.msra.mxu0 0.0
        %1740 = vmatpush.msra.mxu0 0.0
        %1741 = vmatpush.msra.mxu0 0.0
        %1742 = vmatpush.msra.mxu0 0.0
        %1743 = vmatpush.msra.mxu0 0.0
        %1744 = vmatpush.msra.mxu0 0.0
        %1745 = vmatpush.msra.mxu0 0.0
        %1746 = vmatpush.msra.mxu0 0.0
        %1747 = vmatpush.msra.mxu0 0.0
        %1748 = vmatpush.msra.mxu0 0.0
        %1749 = vmatpush.msra.mxu0 0.0
        %1750 = vmatpush.msra.mxu0 %v1734
        %1751 = vmatpush.msra.mxu0 %v1727
        %1752 = vmatmul.f32.gmra.mxu0 %v1732
        %v1753 = vpop.f32.mrf.mxu0
        %v1754 = vadd.f32 0.0, %v1753
        %1755 = vdwg.mxu0
        %v1757 = vsel %vm1014, %v1754, 0
        %1759 = vmatpush.msra.mxu0 0.0
        %1760 = vmatpush.msra.mxu0 0.0
        %1761 = vmatpush.msra.mxu0 0.0
        %1762 = vmatpush.msra.mxu0 0.0
        %1763 = vmatpush.msra.mxu0 0.0
        %1764 = vmatpush.msra.mxu0 0.0
        %1765 = vmatpush.msra.mxu0 0.0
        %1766 = vmatpush.msra.mxu0 0.0
        %1767 = vmatpush.msra.mxu0 0.0
        %1768 = vmatpush.msra.mxu0 0.0
        %1769 = vmatpush.msra.mxu0 0.0
        %1770 = vmatpush.msra.mxu0 0.0
        %1771 = vmatpush.msra.mxu0 0.0
        %1772 = vmatpush.msra.mxu0 0.0
        %1773 = vmatpush.msra.mxu0 0.0
        %1774 = vmatpush.msra.mxu0 %v1480
        %1775 = vmatmul.f32.gmra.mxu0 %v1757
        %v1776 = vpop.f32.mrf.mxu0
        %v1777 = vadd.f32 0.0, %v1776
        %1778 = vdwg.mxu0
        %v1779 = vadd.f32 %v1679, %v1777
        %1780 = vrot.lane.b32.xlu0 %v1439, 104
        %v1781 = vpop.permute.xlu0 %1780
        %1782 = vrot.lane.b32.xlu0 %v1473, 104
        %v1783 = vpop.permute.xlu0 %1782
        %1784 = vrot.lane.b32.xlu0 %v1476, 104
        %v1785 = vpop.permute.xlu0 %1784
        %v1786 = vsel %vm1014, %v1781, 0
        %v1788 = vsel %vm1014, %v1783, 0
        %v1790 = vsel %vm1014, %v1785, 0
        %1792 = vmatpush.xpose.msra.mxu0 0.0
        %1793 = vmatpush.xpose.msra.mxu0 0.0
        %1794 = vmatpush.xpose.msra.mxu0 0.0
        %1795 = vmatpush.xpose.msra.mxu0 0.0
        %1796 = vmatpush.xpose.msra.mxu0 0.0
        %1797 = vmatpush.xpose.msra.mxu0 0.0
        %1798 = vmatpush.xpose.msra.mxu0 0.0
        %1799 = vmatpush.xpose.msra.mxu0 0.0
        %1800 = vmatpush.xpose.msra.mxu0 0.0
        %1801 = vmatpush.xpose.msra.mxu0 0.0
        %1802 = vmatpush.xpose.msra.mxu0 0.0
        %1803 = vmatpush.xpose.msra.mxu0 0.0
        %1804 = vmatpush.xpose.msra.mxu0 0.0
        %1805 = vmatpush.xpose.msra.mxu0 0.0
        %1806 = vmatpush.xpose.msra.mxu0 %v1790
        %1807 = vmatpush.xpose.msra.mxu0 %v1788
        %1808 = vmatmul.f32.gmra.mxu0 %v1786
        %v1809 = vpop.f32.mrf.mxu0
        %v1810 = vadd.f32 0.0, %v1809
        %1811 = vdwg.mxu0
        %v1812 = vmul.f32 %v1810, 0.35355338
        %v1813 = vadd.f32 %v1812, %v1514
        %v1814 = vsel %vm1517, %v1813, -inf
        %1815 = vmax.xlane.f32.xlu0 %v1814
        %v1816 = vpop.xlane.xlu0 %1815
        %v1817 = vsub.f32 %v1813, %v1816
        %v1818 = vmul.f32 %v1817, 1.442695
        %v1819 = vpow.pop %v1818
        %v1820 = vsel %vm1517, %v1819, 0.0
        %1821 = vadd.xlane.f32.xlu0 %v1820
        %v1822 = vpop.xlane.xlu0 %1821
        %v1823 = vrcp.pop %v1822
        %v1824 = vmul.f32 %v1819, %v1823
        %1825 = vrot.lane.b32.xlu0 %v1473, 72
        %v1826 = vpop.permute.xlu0 %1825
        %1827 = vrot.lane.b32.xlu0 %v1476, 72
        %v1828 = vpop.permute.xlu0 %1827
        %v1831 = vsel %vm1517, %v1824, 0
        %v1833 = vsel %vm1537, %v1828, 0
        %1835 = vmatpush.msra.mxu0 0.0
        %1836 = vmatpush.msra.mxu0 0.0
        %1837 = vmatpush.msra.mxu0 0.0
        %1838 = vmatpush.msra.mxu0 0.0
        %1839 = vmatpush.msra.mxu0 0.0
        %1840 = vmatpush.msra.mxu0 0.0
        %1841 = vmatpush.msra.mxu0 0.0
        %1842 = vmatpush.msra.mxu0 0.0
        %1843 = vmatpush.msra.mxu0 0.0
        %1844 = vmatpush.msra.mxu0 0.0
        %1845 = vmatpush.msra.mxu0 0.0
        %1846 = vmatpush.msra.mxu0 0.0
        %1847 = vmatpush.msra.mxu0 0.0
        %1848 = vmatpush.msra.mxu0 0.0
        %1849 = vmatpush.msra.mxu0 %v1833
        %1850 = vmatpush.msra.mxu0 %v1826
        %1851 = vmatmul.f32.gmra.mxu0 %v1831
        %v1852 = vpop.f32.mrf.mxu0
        %v1853 = vadd.f32 0.0, %v1852
        %1854 = vdwg.mxu0
        %v1856 = vsel %vm1014, %v1853, 0
        %1858 = vmatpush.msra.mxu0 0.0
        %1859 = vmatpush.msra.mxu0 0.0
        %1860 = vmatpush.msra.mxu0 0.0
        %1861 = vmatpush.msra.mxu0 0.0
        %1862 = vmatpush.msra.mxu0 0.0
        %1863 = vmatpush.msra.mxu0 0.0
        %1864 = vmatpush.msra.mxu0 0.0
        %1865 = vmatpush.msra.mxu0 0.0
        %1866 = vmatpush.msra.mxu0 0.0
        %1867 = vmatpush.msra.mxu0 0.0
        %1868 = vmatpush.msra.mxu0 0.0
        %1869 = vmatpush.msra.mxu0 0.0
        %1870 = vmatpush.msra.mxu0 0.0
        %1871 = vmatpush.msra.mxu0 0.0
        %1872 = vmatpush.msra.mxu0 0.0
        %1873 = vmatpush.msra.mxu0 %v1481
        %1874 = vmatmul.f32.gmra.mxu0 %v1856
        %v1875 = vpop.f32.mrf.mxu0
        %v1876 = vadd.f32 0.0, %v1875
        %1877 = vdwg.mxu0
        %v1878 = vadd.f32 %v1779, %v1876
        %v1880 = vperm.slane %v1482, 0
        %v1882 = vadd.f32 %v1878, %v1880
        %v1883 = vadd.f32 %v1377, %v1882
        %v1884 = vld [vmem:[#allocation12] sm:$0x1]
        %v1885 = vld [vmem:[#allocation13] sm:$0x1]
        %v1886 = vsel %vm937, %v1883, 0.0
        %1887 = vadd.xlane.f32.xlu0 %v1886
        %v1888 = vpop.xlane.xlu0 %1887
        %v1889 = vmul.f32 %v1888, %v947
        %v1890 = vsub.f32 %v1883, %v1889
        %v1891 = vmul.f32 %v1890, %v1890
        %v1892 = vsel %vm937, %v1891, 0.0
        %1893 = vadd.xlane.f32.xlu0 %v1892
        %v1894 = vpop.xlane.xlu0 %1893
        %v1895 = vmul.f32 %v1894, %v947
        %v1896 = vadd.f32 %v1895, 1e-05
        %v1897 = vrsqrt.pop %v1896
        %v1898 = vmul.f32 %v1897, %v1896
        %v1899 = vmul.f32 %v1898, %v1897
        %v1900 = vmul.f32 0.5, %v1899
        %v1901 = vsub.f32 1.5, %v1900
        %v1902 = vmul.f32 %v1897, %v1901
        %vm1903 = vweird.f32 %v1896
        %vm1904 = vweird.f32 %v1897
        %vm1905 = vmor %vm1903, %vm1904
        %v1906 = vsel %vm1905, %v1897, %v1902
        %v1907 = vmul.f32 %v1890, %v1906
        %v1909 = vperm.slane %v1884, 0
        %v1911 = vmul.f32 %v1907, %v1909
        %v1913 = vperm.slane %v1885, 0
        %v1915 = vadd.f32 %v1911, %v1913
        %v1916 = vld [vmem:[%s20] sm:$0xff]
        %v1917 = vld [vmem:[%s20 + $0x8] sm:$0xff]
        %v1918 = vld [vmem:[%s20 + $0x10] sm:$0xff]
        %v1919 = vld [vmem:[%s20 + $0x18] sm:$0xff]
        %v1920 = vld [vmem:[#allocation15] sm:$0x1]
        %v1922 = vperm.slane %v1920, 0
        %v1925 = vsel %vm937, %v1915, 0
        %1927 = vmatpush.msra.mxu0 0.0
        %1928 = vmatpush.msra.mxu0 0.0
        %1929 = vmatpush.msra.mxu0 0.0
        %1930 = vmatpush.msra.mxu0 0.0
        %1931 = vmatpush.msra.mxu0 0.0
        %1932 = vmatpush.msra.mxu0 0.0
        %1933 = vmatpush.msra.mxu0 0.0
        %1934 = vmatpush.msra.mxu0 0.0
        %1935 = vmatpush.msra.mxu0 0.0
        %1936 = vmatpush.msra.mxu0 0.0
        %1937 = vmatpush.msra.mxu0 0.0
        %1938 = vmatpush.msra.mxu0 0.0
        %1939 = vmatpush.msra.mxu0 %v1919
        %1940 = vmatpush.msra.mxu0 %v1918
        %1941 = vmatpush.msra.mxu0 %v1917
        %1942 = vmatpush.msra.mxu0 %v1916
        %1943 = vmatmul.f32.gmra.mxu0 %v1925
        %v1944 = vpop.f32.mrf.mxu0
        %v1945 = vadd.f32 %v1922, %v1944
        %1946 = vdwg.mxu0
        %v1947 = vmax.f32 %v1945, 0.0
        %v1948 = vld [vmem:[%s22] sm:$0xff]
        %v1949 = vld [vmem:[%s22 + $0x8] sm:$0xff]
        %v1950 = vld [vmem:[%s22 + $0x10] sm:$0xff]
        %v1951 = vld [vmem:[%s22 + $0x18] sm:$0xff]
        %v1952 = vld [vmem:[%s22 + $0x20] sm:$0xff]
        %v1953 = vld [vmem:[%s22 + $0x28] sm:$0xff]
        %v1954 = vld [vmem:[%s22 + $0x30] sm:$0xff]
        %v1955 = vld [vmem:[%s22 + $0x38] sm:$0xff]
        %v1956 = vld [vmem:[#allocation16] sm:$0x1]
        %v1958 = vperm.slane %v1956, 0
        %vm1960 = vcmask 523264
        %v1962 = vsel %vm1960, %v1947, 0
        %1964 = vmatpush.msra.mxu0 0.0
        %1965 = vmatpush.msra.mxu0 0.0
        %1966 = vmatpush.msra.mxu0 0.0
        %1967 = vmatpush.msra.mxu0 0.0
        %1968 = vmatpush.msra.mxu0 0.0
        %1969 = vmatpush.msra.mxu0 0.0
        %1970 = vmatpush.msra.mxu0 0.0
        %1971 = vmatpush.msra.mxu0 0.0
        %1972 = vmatpush.msra.mxu0 %v1955
        %1973 = vmatpush.msra.mxu0 %v1954
        %1974 = vmatpush.msra.mxu0 %v1953
        %1975 = vmatpush.msra.mxu0 %v1952
        %1976 = vmatpush.msra.mxu0 %v1951
        %1977 = vmatpush.msra.mxu0 %v1950
        %1978 = vmatpush.msra.mxu0 %v1949
        %1979 = vmatpush.msra.mxu0 %v1948
        %1980 = vmatmul.f32.gmra.mxu0 %v1962
        %v1981 = vpop.f32.mrf.mxu0
        %v1982 = vadd.f32 %v1958, %v1981
        %1983 = vdwg.mxu0
        %v1984 = vadd.f32 %v1883, %v1982
        %1985 = vst.msk [vmem:[%s929] sm:$0xff] %vm937, %v1984
        %p1986 = scmp.lt.s32.totalorder %s41, 1
        %s1987 = scalar_select %p1986, %s41, 1
        %s1988 = smul.addr %s1987, 8
        %s1989 = scalar_lea.vmem %s24, %s1988
        // Predicated region
        $region157: #{ptransformer_forward.9} parent=115 // pred_check
          %p1990 = pneg %p583
        $region158: #{ptransformer_forward.9} parent=115 // pred_check_branch
          %1992 = sbr.rel (%p1990) target = $region160
        $region159: #{ptransformer_forward.9} parent=115 // pred_region
          _
        $region160: #{ptransformer_forward.9} parent=115 // pred_fallthru
          _
      $region116: #{ptransformer_forward.9} parent=5 // pred_fallthru
        _
      %p1993 = scmp.le.s32.totalorder 2, %s36
      // Predicated region
      $region161: #{ptransformer_forward.9} parent=5 // pred_check
        %p1994 = pneg %p1993
      $region162: #{ptransformer_forward.9} parent=5 // pred_check_branch
        %1996 = sbr.rel (%p1994) target = $region164
      $region163: #{ptransformer_forward.9} parent=5 // pred_region
        %s1997 = ssub.s32 %s36, 2
        // Predicated region
        $region165: #{ptransformer_forward.9} parent=163 // pred_check
          %p1998 = pneg %p589
        $region166: #{ptransformer_forward.9} parent=163 // pred_check_branch
          %2000 = sbr.rel (%p1998) target = $region168
        $region167: #{ptransformer_forward.9} parent=163 // pred_region
          %p2001 = scmp.lt.s32.totalorder %s42, 1
          %s2002 = scalar_select %p2001, %s42, 1
          %s2003 = smul.addr %s2002, 8
          %s2004 = scalar_lea.vmem %s24, %s2003
        $region168: #{ptransformer_forward.9} parent=163 // pred_fallthru
          _
      $region164: #{ptransformer_forward.9} parent=5 // pred_fallthru
        _
    $region6: #{ptransformer_forward.9} parent=1 // loop_footer
      %s40 = sadd.s32 1, %s36
    $region7: #{ptransformer_forward.9} parent=1 // loop_footer_branch
      %35 = sbr.rel target = $region3
    $region8: #{ptransformer_forward.9} parent=1 // loop_exit
      _
    %2005 = vsyncpa [#allocation3], 1
    %s2006 = scalar_lea.sflag [#allocation3], 1
    %2007 = vsyncpa %s2006, 1
    %2008 = vsyncpa [#allocation5], 1
    %2009 = vsyncpa [#allocation8], 1
    %2010 = vsyncpa [#allocation11], 1
    %2011 = vsyncpa [#allocation14], 1
    %2012 = vsyncpa [#allocation17], 1

</llo_original>
